<compile_context>
chip_gen: v7x
topology: tpu7x:2x2x1
jax: 0.10.0
libtpu: 0.0.40
codegen_flags: <defaults>
</compile_context>

<pallas_src>
import functools

import jax
import jax.numpy as jnp
from jax.experimental import pallas as pl
from jax.experimental.pallas import tpu as pltpu


def _maml_mlp_kernel(x_ref, w1_ref, w2_ref, aux_ref, o_ref, *,
                     task_tile, fc2_on_mxu):
    """One grid step = one tile of `task_tile` tasks.

    x_ref  : [T, B, I]   f32  full array (constant index map; DMA'd once)
    w1_ref : [tt, I, H]  f32
    w2_ref : [tt, H, H]  bf16 (dominant HBM stream; MXU accumulates in f32)
    aux_ref: [tt, 4, H]  f32  rows = (b1, b2, w3, lane-broadcast b3)
    o_ref  : [tt, B]     f32
    """
    t0 = pl.multiple_of(pl.program_id(0) * task_tile, task_tile)
    x = x_ref[pl.ds(t0, task_tile)]                       # [tt, B, I]
    w1 = w1_ref[...]
    aux = aux_ref[...]
    b1 = aux[:, 0:1, :]                                   # [tt, 1, H]
    b2 = aux[:, 1:2, :]                                   # [tt, 1, H]
    w3 = aux[:, 2:3, :]                                   # [tt, 1, H]
    b3 = aux[:, 3:4, 0:1]                                 # [tt, 1, 1]

    # fc1 -- K = in_dim is tiny (1 by default): VPU broadcast MAC; keep the
    # degenerate K=1 outer product off the MXU (avoids push + result-FIFO latency).
    in_dim = x.shape[-1]
    if in_dim <= 8:
        acc = x[:, :, 0:1] * w1[:, 0:1, :]
        for k in range(1, in_dim):                        # static, tiny
            acc = acc + x[:, :, k:k + 1] * w1[:, k:k + 1, :]
    else:   # general fallback: a real contraction belongs on the MXU
        acc = jnp.einsum("tbi,tih->tbh", x, w1,
                         preferred_element_type=jnp.float32)
    h1 = jnp.maximum(acc + b1, 0.0)                       # [tt, B, H] f32

    # fc2 -- the only real matmul: bf16 operands, f32 accumulate on the MXU.
    if fc2_on_mxu:
        w2 = w2_ref[...]                                  # bf16
        h2 = jnp.einsum("tbh,thk->tbk", h1.astype(w2.dtype), w2,
                        preferred_element_type=jnp.float32)
    else:
        # VPU broadcast-MAC alternative (benchmark vs the batched-MXU path:
        # at B=8 rows per task the MXU is only ~10% utilized).
        w2f = w2_ref[...].astype(jnp.float32)
        hidden = h1.shape[-1]
        h2 = h1[:, :, 0:1] * w2f[:, 0:1, :]
        for k in range(1, hidden):                        # static unroll
            h2 = h2 + h1[:, :, k:k + 1] * w2f[:, k:k + 1, :]
    h2 = jnp.maximum(h2 + b2, 0.0)                        # [tt, B, H] f32

    # fc3 -- N = 1: elementwise multiply + lane reduce (XLU), not MXU.
    y = jnp.sum(h2 * w3, axis=-1) + b3[:, :, 0]           # [tt, B]

    # Store [tt, B] directly (output is ~8 KB total: not worth an in-kernel XLU
    # transpose for lane density); the wrapper reshapes to [T, B, 1].
    o_ref[...] = y


def _task_tile(num_tasks: int) -> int:
    """Pick the task-tile size.

    Prefer >= 4 grid steps (>= 2 per TensorCore on v7x) so DMA overlaps compute,
    and cap the tile at 64 to bound the lane-padded, double-buffered w2 block.
    """
    if num_tasks <= 64:
        return num_tasks                      # one block; pipelining irrelevant
    divisors = [t for t in (64, 32, 16, 8) if num_tasks % t == 0]
    for t in divisors:
        if num_tasks // t >= 4:
            return t
    if divisors:
        return divisors[0]
    # Irregular large T: one block. Pad T to a multiple of 64 upstream for huge
    # T to avoid a single oversized w2 block in VMEM.
    return num_tasks


def prepare_fast_weights(params, w2_dtype=jnp.bfloat16):
    """One-time layout/dtype conversion (run OUTSIDE the MAML inner loop).

    params: per-task stacks in PyTorch layout:
      'fc1.weight' [T,H,I], 'fc1.bias' [T,H], 'fc2.weight' [T,H,H],
      'fc2.bias'  [T,H],   'fc3.weight' [T,1,H], 'fc3.bias' [T,1]

    Returns:
      w1  [T,I,H] f32; w2 [T,H,H] bf16 (dominant HBM stream);
      aux [T,4,H] f32 = stacked (b1, b2, w3, lane-broadcast b3).
    Keep fast weights in this layout through the inner loop so each step
    dispatches exactly one XLA op (the pallas_call).
    """
    T, H = params["fc1.bias"].shape
    aux = jnp.stack(
        [params["fc1.bias"],
         params["fc2.bias"],
         params["fc3.weight"][:, 0, :],
         jnp.broadcast_to(params["fc3.bias"], (T, H))],
        axis=1).astype(jnp.float32)                                    # [T,4,H]
    return {
        "w1": jnp.transpose(params["fc1.weight"], (0, 2, 1)).astype(jnp.float32),
        "w2": jnp.transpose(params["fc2.weight"], (0, 2, 1)).astype(w2_dtype),
        "aux": aux,
    }


def maml_learner_forward_tasks(x, fw, fc2_on_mxu=True):
    """Task-batched forward. x: [T, B, in_dim]; fw from prepare_fast_weights.
    Returns [T, B, 1]; out[t] == MamlLearner.forward(x[t], params_t)."""
    T, B, in_dim = x.shape
    H = fw["w1"].shape[-1]
    tt = _task_tile(T)
    assert T % tt == 0

    kernel = functools.partial(_maml_mlp_kernel, task_tile=tt,
                               fc2_on_mxu=fc2_on_mxu)
    out = pl.pallas_call(
        kernel,
        out_shape=jax.ShapeDtypeStruct((T, B), jnp.float32),
        grid=(T // tt,),
        in_specs=[
            # x is tiny: constant index map -> DMA'd once; tile sliced in-kernel.
            pl.BlockSpec((T, B, in_dim), lambda i: (0, 0, 0)),
            pl.BlockSpec((tt, in_dim, H), lambda i: (i, 0, 0)),
            pl.BlockSpec((tt, H, H), lambda i: (i, 0, 0)),
            pl.BlockSpec((tt, 4, H), lambda i: (i, 0, 0)),
        ],
        out_specs=pl.BlockSpec((tt, B), lambda i: (i, 0)),
        compiler_params=pltpu.CompilerParams(
            # Task tiles are independent -> shard across TensorCores on v7x.
            dimension_semantics=("parallel",),
            # Headroom for tt/H sweeps (v5e default scoped VMEM is only 16 MiB).
            vmem_limit_bytes=32 * 1024 * 1024,
        ),
    )(x, fw["w1"], fw["w2"], fw["aux"])
    return out[:, :, None]                                             # [T, B, 1]


def maml_learner_forward(x, params):
    """Single-task API matching MamlLearner.forward: x [B, in_dim] + PyTorch-layout
    params -> [B, 1]. Prefer maml_learner_forward_tasks for a whole meta-batch."""
    stacked = {k: v[None] for k, v in params.items()}
    return maml_learner_forward_tasks(x[None], prepare_fast_weights(stacked))[0]


def init_task_params(key, num_tasks, input_dim=1, hidden_dim=64):
    """Per-task params in PyTorch layout. Weights: Kaiming-normal (relu) like the
    module init; biases: small random values standing in for adapted fast weights
    (the module init is zeros, which would not exercise the bias path)."""
    ks = jax.random.split(key, 6)

    def kaiming(k, shape):  # shape [..., out_features, in_features]; fan_in mode
        std = (2.0 / shape[-1]) ** 0.5
        return std * jax.random.normal(k, shape, dtype=jnp.float32)

    T, H, I = num_tasks, hidden_dim, input_dim
    return {
        "fc1.weight": kaiming(ks[0], (T, H, I)),
        "fc1.bias": 0.1 * jax.random.normal(ks[1], (T, H), jnp.float32),
        "fc2.weight": kaiming(ks[2], (T, H, H)),
        "fc2.bias": 0.1 * jax.random.normal(ks[3], (T, H), jnp.float32),
        "fc3.weight": kaiming(ks[4], (T, 1, H)),
        "fc3.bias": 0.1 * jax.random.normal(ks[5], (T, 1), jnp.float32),
    }


def reference_forward_tasks(x, params, fc2_dtype=jnp.float32):
    """Pure-JAX reference (vmapped F.linear/relu stack). Returns [T, B, 1].
    fc2_dtype=jnp.bfloat16 emulates the kernel's bf16 fc2 operands (f32 accum)
    for a tight numerical comparison."""
    def one(xt, w1, b1, w2, b2, w3, b3):
        h = jnp.maximum(xt @ w1.T + b1, 0.0)
        h = jnp.dot(h.astype(fc2_dtype), w2.T.astype(fc2_dtype),
                    preferred_element_type=jnp.float32) + b2
        h = jnp.maximum(h, 0.0)
        return h @ w3.T + b3
    return jax.vmap(one)(x, params["fc1.weight"], params["fc1.bias"],
                         params["fc2.weight"], params["fc2.bias"],
                         params["fc3.weight"], params["fc3.bias"])


if __name__ == "__main__":
    key = jax.random.PRNGKey(0)
    kp, kx = jax.random.split(key)

    num_tasks, batch, input_dim, hidden_dim = 256, 8, 1, 64
    params = init_task_params(kp, num_tasks, input_dim, hidden_dim)
    x = jax.random.normal(kx, (num_tasks, batch, input_dim), dtype=jnp.float32)

    # One-time layout/dtype prep (outside the hot path), then ONE pallas_call
    # for the whole meta-batch of tasks (grid=4 over 64-task tiles).
    fw = prepare_fast_weights(params)
    out = jax.block_until_ready(maml_learner_forward_tasks(x, fw))     # [T, B, 1]
    assert out.shape == (num_tasks, batch, 1)

    # Tight check vs a reference that emulates the kernel's bf16 fc2 operands.
    ref_bf16 = reference_forward_tasks(x, params, fc2_dtype=jnp.bfloat16)
    assert jnp.allclose(out, ref_bf16, atol=1e-3, rtol=1e-3), \
        "task-batched kernel mismatch vs bf16-emulating reference"

    # Loose sanity check vs the full-f32 reference (bf16 fc2 error budget).
    ref_f32 = reference_forward_tasks(x, params)
    assert jnp.allclose(out, ref_f32, atol=1e-1, rtol=1e-1), \
        "task-batched kernel drifted too far from f32 reference"

    # Single-task API (original MamlLearner.forward semantics).
    single_params = {k: v[0] for k, v in params.items()}
    y0 = jax.block_until_ready(maml_learner_forward(x[0], single_params))
    assert y0.shape == (batch, 1)
    assert jnp.allclose(y0, ref_bf16[0], atol=1e-3, rtol=1e-3), "single-task mismatch"

    print("KERNEL_OK")
</pallas_src>

<mosaic_0001>
module attributes {stable_mosaic.version = 11 : i64} {
  func.func @_maml_mlp_kernel(%arg0: i32, %arg1: memref<256x8x1xf32, #tpu.memory_space<vmem>>, %arg2: memref<64x1x64xf32, #tpu.memory_space<vmem>>, %arg3: memref<64x64x64xbf16, #tpu.memory_space<vmem>>, %arg4: memref<64x4x64xf32, #tpu.memory_space<vmem>>, %arg5: memref<64x8xf32, #tpu.memory_space<vmem>>) attributes {dimension_semantics = [#tpu.dimension_semantics<parallel>], iteration_bounds = array<i64: 4>, scalar_prefetch = 0 : i64, scratch_operands = 0 : i64, tpu.core_type = #tpu.core_type<tc>, window_params = [{pipeline_mode = #tpu.pipeline_mode<synchronous>, transform_indices = @transform_0, window_bounds = array<i64: 256, 8, 1>}, {transform_indices = @transform_1, window_bounds = array<i64: 64, 1, 64>}, {transform_indices = @transform_2, window_bounds = array<i64: 64, 64, 64>}, {transform_indices = @transform_3, window_bounds = array<i64: 64, 4, 64>}, {transform_indices = @transform_4, window_bounds = array<i64: 64, 8>}]} {
    %c64_i32 = arith.constant 64 : i32
    %0 = arith.muli %arg0, %c64_i32 : i32
    %1 = tpu.assume_multiple %0, 64 : i32
    %2 = arith.index_cast %1 : i32 to index
    %c0 = arith.constant 0 : index
    %c0_0 = arith.constant 0 : index
    %3 = vector.load %arg1[%2, %c0, %c0_0] : memref<256x8x1xf32, #tpu.memory_space<vmem>>, vector<64x8x1xf32>
    %c0_1 = arith.constant 0 : index
    %c0_2 = arith.constant 0 : index
    %c0_3 = arith.constant 0 : index
    %4 = vector.load %arg2[%c0_1, %c0_2, %c0_3] : memref<64x1x64xf32, #tpu.memory_space<vmem>>, vector<64x1x64xf32>
    %c0_4 = arith.constant 0 : index
    %c0_5 = arith.constant 0 : index
    %c0_6 = arith.constant 0 : index
    %5 = vector.load %arg4[%c0_4, %c0_5, %c0_6] : memref<64x4x64xf32, #tpu.memory_space<vmem>>, vector<64x4x64xf32>
    %6 = vector.extract_strided_slice %5 {offsets = [0, 0, 0], sizes = [64, 1, 64], strides = [1, 1, 1]} : vector<64x4x64xf32> to vector<64x1x64xf32>
    %7 = vector.extract_strided_slice %5 {offsets = [0, 1, 0], sizes = [64, 1, 64], strides = [1, 1, 1]} : vector<64x4x64xf32> to vector<64x1x64xf32>
    %8 = vector.extract_strided_slice %5 {offsets = [0, 2, 0], sizes = [64, 1, 64], strides = [1, 1, 1]} : vector<64x4x64xf32> to vector<64x1x64xf32>
    %9 = vector.extract_strided_slice %5 {offsets = [0, 3, 0], sizes = [64, 1, 1], strides = [1, 1, 1]} : vector<64x4x64xf32> to vector<64x1x1xf32>
    %10 = vector.broadcast %3 : vector<64x8x1xf32> to vector<64x8x64xf32>
    %11 = vector.broadcast %4 : vector<64x1x64xf32> to vector<64x8x64xf32>
    %12 = arith.mulf %10, %11 : vector<64x8x64xf32>
    %13 = vector.broadcast %6 : vector<64x1x64xf32> to vector<64x8x64xf32>
    %14 = arith.addf %12, %13 : vector<64x8x64xf32>
    %cst = arith.constant 0.000000e+00 : f32
    %15 = vector.broadcast %cst : f32 to vector<64x8x64xf32>
    %16 = arith.maximumf %14, %15 : vector<64x8x64xf32>
    %c0_7 = arith.constant 0 : index
    %c0_8 = arith.constant 0 : index
    %c0_9 = arith.constant 0 : index
    %17 = vector.load %arg3[%c0_7, %c0_8, %c0_9] : memref<64x64x64xbf16, #tpu.memory_space<vmem>>, vector<64x64x64xbf16>
    %18 = arith.truncf %16 : vector<64x8x64xf32> to vector<64x8x64xbf16>
    "tpu.trace_start"() <{level = 10 : i32, message = "tbh,thk->tbk"}> : () -> ()
    %cst_10 = arith.constant dense<0.000000e+00> : vector<64x8x64xf32>
    %19 = tpu.matmul %18, %17, %cst_10 {dimension_numbers = #tpu.dot_dimension_numbers<[2], [1], [1], [2], [0, 0, 0, 1, 1, 2], [0], [0]>} : vector<64x8x64xbf16>, vector<64x64x64xbf16>, vector<64x8x64xf32> -> vector<64x8x64xf32>
    "tpu.trace_stop"() : () -> ()
    %20 = vector.broadcast %7 : vector<64x1x64xf32> to vector<64x8x64xf32>
    %21 = arith.addf %19, %20 : vector<64x8x64xf32>
    %cst_11 = arith.constant 0.000000e+00 : f32
    %22 = vector.broadcast %cst_11 : f32 to vector<64x8x64xf32>
    %23 = arith.maximumf %21, %22 : vector<64x8x64xf32>
    %24 = vector.broadcast %8 : vector<64x1x64xf32> to vector<64x8x64xf32>
    %25 = arith.mulf %23, %24 : vector<64x8x64xf32>
    %cst_12 = arith.constant dense<0.000000e+00> : vector<64x8xf32>
    %26 = vector.multi_reduction <add>, %25, %cst_12 [2] : vector<64x8x64xf32> to vector<64x8xf32>
    %27 = vector.shape_cast %9 : vector<64x1x1xf32> to vector<64x1xf32>
    %28 = vector.broadcast %27 : vector<64x1xf32> to vector<64x8xf32>
    %29 = arith.addf %26, %28 : vector<64x8xf32>
    %c0_13 = arith.constant 0 : index
    %c0_14 = arith.constant 0 : index
    %30 = vector.load %arg5[%c0_13, %c0_14] : memref<64x8xf32, #tpu.memory_space<vmem>>, vector<64x8xf32>
    tpu.vector_store %arg5[%c0_13, %c0_14], %29 {strides = array<i32>} : memref<64x8xf32, #tpu.memory_space<vmem>>, vector<64x8xf32>,
    return
  }
  func.func @transform_0(%arg0: i32) -> (i32, i32, i32) {
    %c0_i32 = arith.constant 0 : i32
    %c0_i32_0 = arith.constant 0 : i32
    %c0_i32_1 = arith.constant 0 : i32
    %c0_i32_2 = arith.constant 0 : i32
    return %c0_i32, %c0_i32_0, %c0_i32_1 : i32, i32, i32
  }
  func.func @transform_1(%arg0: i32) -> (i32, i32, i32) {
    %c0_i32 = arith.constant 0 : i32
    %c0_i32_0 = arith.constant 0 : i32
    %c0_i32_1 = arith.constant 0 : i32
    return %arg0, %c0_i32, %c0_i32_0 : i32, i32, i32
  }
  func.func @transform_2(%arg0: i32) -> (i32, i32, i32) {
    %c0_i32 = arith.constant 0 : i32
    %c0_i32_0 = arith.constant 0 : i32
    %c0_i32_1 = arith.constant 0 : i32
    return %arg0, %c0_i32, %c0_i32_0 : i32, i32, i32
  }
  func.func @transform_3(%arg0: i32) -> (i32, i32, i32) {
    %c0_i32 = arith.constant 0 : i32
    %c0_i32_0 = arith.constant 0 : i32
    %c0_i32_1 = arith.constant 0 : i32
    return %arg0, %c0_i32, %c0_i32_0 : i32, i32, i32
  }
  func.func @transform_4(%arg0: i32) -> (i32, i32) {
    %c0_i32 = arith.constant 0 : i32
    %c0_i32_0 = arith.constant 0 : i32
    return %arg0, %c0_i32 : i32, i32
  }
}

</mosaic_0001>

<llo_original>
// kernel: tpu_custom_call.1
$region0: #{tpu_custom_call.1}
  #allocation0 [shape = 'u32[]', space=smem, size = 0x4, offset = 0x4, fixed_abs, tag = 'smem constant byte address 0x4 - core index']
  #allocation1 [shape = 'u32[144,128]{1,0:T(1,128)}', space=vmem, size = 0x12000, scoped, tag = 'internal scratch']
  %s0 = inlined_call_operand.vmem [shape: f32[256,8,1], index: 0, kind: input, shape index: {}]
  %s1 = inlined_call_operand.vmem [shape: f32[256,1,64], index: 1, kind: input, shape index: {}]
  %s2 = inlined_call_operand.vmem [shape: bf16[256,64,64], index: 2, kind: input, shape index: {}]
  %s3 = inlined_call_operand.vmem [shape: f32[256,4,64], index: 3, kind: input, shape index: {}]
  %s4 = inlined_call_operand.vmem [shape: f32[256,8], index: 4, kind: output, shape index: {}]
  %s5 = sld [smem:[#allocation0]]
  $region49: #{tpu_custom_call.1} parent=0
    _
  %s7 = ssub.s32 1, %s5
  %s8 = scalar_select 0, %s7, %s5
  loop: start=0, step=1, limit=6
  $region2: #{tpu_custom_call.1} parent=0 // loop_pre_header
    _
  $region3: #{tpu_custom_call.1} parent=0 // loop_header
    %s10 = sphi 0, %s14
    %p11 = scmp.ge.s32.totalorder %s10, 6
    %s18 = sphi 0, %s18
    %s20 = sphi 0, %s18
    %s21 = sphi 0, %s20
    %s35 = sphi 0, %s21
    %s41 = sphi 0, %s43
    %s44 = sphi 0, %s41
    %s45 = sphi 0, %s44
    %s61 = sphi 0, %s45
    %s67 = sphi 0, %s69
    %s70 = sphi 0, %s67
    %s71 = sphi 0, %s70
    %s87 = sphi 0, %s71
    %s93 = sphi 0, %s95
    %s96 = sphi 0, %s93
    %s97 = sphi 0, %s96
    %s113 = sphi 0, %s97
    %s119 = sphi 0, %s121
    %s122 = sphi 0, %s119
    %s123 = sphi 0, %s122
    %s139 = sphi 0, %s123
  $region4: #{tpu_custom_call.1} parent=0 // loop_header_branch
    %13 = sbr.rel (%p11) target = $region8
  $region5: #{tpu_custom_call.1} parent=0 // loop_body
    %s15 = ssub.s32 %s10, 1
    %s16 = ssub.s32 %s10, 2
    %s17 = sadd.s32 %s10, 1
    %s19 = sadd.s32 %s18, 1
    %p22 = scmp.eq.s32.totalorder %s10, 3
    %p23 = scmp.ne.s32.totalorder %s18, %s20
    %p24 = scmp.eq.s32.totalorder %s10, 0
    %p25 = por %p23, %p24
    %p26 = scmp.ne.s32.totalorder %s18, %s20
    %p27 = scmp.eq.s32.totalorder %s15, 3
    %p28 = por %p26, %p27
    %p29 = scmp.ne.s32.totalorder %s20, %s21
    %p30 = scmp.eq.s32.totalorder %s15, 0
    %p31 = por %p29, %p30
    %p32 = scmp.ne.s32.totalorder %s20, %s21
    %p33 = scmp.eq.s32.totalorder %s16, 3
    %p34 = por %p32, %p33
    %p36 = scmp.ne.s32.totalorder %s21, %s35
    %p37 = scmp.eq.s32.totalorder %s16, 0
    %p38 = por %p36, %p37
    %s39 = ssub.s32 %s10, %s17
    %p40 = scmp.eq.s32.totalorder %s39, 0
    %s42 = sadd.s32 %s41, 1
    %s43 = scalar_select %p40, %s41, %s42
    %p46 = pneg %p40
    %p47 = scmp.eq.s32.totalorder %s10, 3
    %p48 = por %p46, %p47
    %p49 = scmp.ne.s32.totalorder %s41, %s44
    %p50 = scmp.eq.s32.totalorder %s10, 0
    %p51 = por %p49, %p50
    %p52 = scmp.ne.s32.totalorder %s41, %s44
    %p53 = scmp.eq.s32.totalorder %s15, 3
    %p54 = por %p52, %p53
    %p55 = scmp.ne.s32.totalorder %s44, %s45
    %p56 = scmp.eq.s32.totalorder %s15, 0
    %p57 = por %p55, %p56
    %p58 = scmp.ne.s32.totalorder %s44, %s45
    %p59 = scmp.eq.s32.totalorder %s16, 3
    %p60 = por %p58, %p59
    %p62 = scmp.ne.s32.totalorder %s45, %s61
    %p63 = scmp.eq.s32.totalorder %s16, 0
    %p64 = por %p62, %p63
    %s65 = ssub.s32 %s10, %s17
    %p66 = scmp.eq.s32.totalorder %s65, 0
    %s68 = sadd.s32 %s67, 1
    %s69 = scalar_select %p66, %s67, %s68
    %p72 = pneg %p66
    %p73 = scmp.eq.s32.totalorder %s10, 3
    %p74 = por %p72, %p73
    %p75 = scmp.ne.s32.totalorder %s67, %s70
    %p76 = scmp.eq.s32.totalorder %s10, 0
    %p77 = por %p75, %p76
    %p78 = scmp.ne.s32.totalorder %s67, %s70
    %p79 = scmp.eq.s32.totalorder %s15, 3
    %p80 = por %p78, %p79
    %p81 = scmp.ne.s32.totalorder %s70, %s71
    %p82 = scmp.eq.s32.totalorder %s15, 0
    %p83 = por %p81, %p82
    %p84 = scmp.ne.s32.totalorder %s70, %s71
    %p85 = scmp.eq.s32.totalorder %s16, 3
    %p86 = por %p84, %p85
    %p88 = scmp.ne.s32.totalorder %s71, %s87
    %p89 = scmp.eq.s32.totalorder %s16, 0
    %p90 = por %p88, %p89
    %s91 = ssub.s32 %s10, %s17
    %p92 = scmp.eq.s32.totalorder %s91, 0
    %s94 = sadd.s32 %s93, 1
    %s95 = scalar_select %p92, %s93, %s94
    %p98 = pneg %p92
    %p99 = scmp.eq.s32.totalorder %s10, 3
    %p100 = por %p98, %p99
    %p101 = scmp.ne.s32.totalorder %s93, %s96
    %p102 = scmp.eq.s32.totalorder %s10, 0
    %p103 = por %p101, %p102
    %p104 = scmp.ne.s32.totalorder %s93, %s96
    %p105 = scmp.eq.s32.totalorder %s15, 3
    %p106 = por %p104, %p105
    %p107 = scmp.ne.s32.totalorder %s96, %s97
    %p108 = scmp.eq.s32.totalorder %s15, 0
    %p109 = por %p107, %p108
    %p110 = scmp.ne.s32.totalorder %s96, %s97
    %p111 = scmp.eq.s32.totalorder %s16, 3
    %p112 = por %p110, %p111
    %p114 = scmp.ne.s32.totalorder %s97, %s113
    %p115 = scmp.eq.s32.totalorder %s16, 0
    %p116 = por %p114, %p115
    %s117 = ssub.s32 %s10, %s17
    %p118 = scmp.eq.s32.totalorder %s117, 0
    %s120 = sadd.s32 %s119, 1
    %s121 = scalar_select %p118, %s119, %s120
    %p124 = pneg %p118
    %p125 = scmp.eq.s32.totalorder %s10, 3
    %p126 = por %p124, %p125
    %p127 = scmp.ne.s32.totalorder %s119, %s122
    %p128 = scmp.eq.s32.totalorder %s10, 0
    %p129 = por %p127, %p128
    %p130 = scmp.ne.s32.totalorder %s119, %s122
    %p131 = scmp.eq.s32.totalorder %s15, 3
    %p132 = por %p130, %p131
    %p133 = scmp.ne.s32.totalorder %s122, %s123
    %p134 = scmp.eq.s32.totalorder %s15, 0
    %p135 = por %p133, %p134
    %p136 = scmp.ne.s32.totalorder %s122, %s123
    %p137 = scmp.eq.s32.totalorder %s16, 3
    %p138 = por %p136, %p137
    %p140 = scmp.ne.s32.totalorder %s123, %s139
    %p141 = scmp.eq.s32.totalorder %s16, 0
    %p142 = por %p140, %p141
    %p143 = scmp.le.s32.totalorder 1, %s10
    %p144 = scmp.lt.s32.totalorder %s10, 5
    %p145 = pnand %p143, %p144
    %p146 = pneg %p145
    // Predicated region
    $region9: #{tpu_custom_call.1} parent=5 // pred_check
      _
    $region10: #{tpu_custom_call.1} parent=5 // pred_check_branch
      %148 = sbr.rel (%p145) target = $region12
    $region11: #{tpu_custom_call.1} parent=5 // pred_region
      %s149 = ssub.s32 %s10, 1
      // Predicated region
      $region13: #{tpu_custom_call.1} parent=11 // pred_check
        %p150 = pneg %p31
      $region14: #{tpu_custom_call.1} parent=11 // pred_check_branch
        %152 = sbr.rel (%p150) target = $region16
      $region15: #{tpu_custom_call.1} parent=11 // pred_region
        _
      $region16: #{tpu_custom_call.1} parent=11 // pred_fallthru
        _
    $region12: #{tpu_custom_call.1} parent=5 // pred_fallthru
      _
    %p153 = scmp.lt.s32.totalorder %s10, 4
    // Predicated region
    $region17: #{tpu_custom_call.1} parent=5 // pred_check
      %p154 = pneg %p153
    $region18: #{tpu_custom_call.1} parent=5 // pred_check_branch
      %156 = sbr.rel (%p154) target = $region20
    $region19: #{tpu_custom_call.1} parent=5 // pred_region
      // Predicated region
      $region21: #{tpu_custom_call.1} parent=19 // pred_check
        %p157 = pneg %p51
      $region22: #{tpu_custom_call.1} parent=19 // pred_check_branch
        %159 = sbr.rel (%p157) target = $region24
      $region23: #{tpu_custom_call.1} parent=19 // pred_region
        %s160 = smul.u32 64, %s10
        %p161 = scmp.lt.s32.totalorder %s160, 255
        %s162 = scalar_select %p161, %s160, 255
        %s163 = scalar_lea.vmem %s1, %s162
        %s164 = smul.u32 64, %s10
      $region24: #{tpu_custom_call.1} parent=19 // pred_fallthru
        _
      // Predicated region
      $region25: #{tpu_custom_call.1} parent=19 // pred_check
        %p165 = pneg %p77
      $region26: #{tpu_custom_call.1} parent=19 // pred_check_branch
        %167 = sbr.rel (%p165) target = $region28
      $region27: #{tpu_custom_call.1} parent=19 // pred_region
        %s168 = smul.u32 64, %s10
        %p169 = scmp.lt.s32.totalorder %s168, 255
        %s170 = scalar_select %p169, %s168, 255
        %s171 = smul.addr %s170, 8
        %s172 = smul.addr %s171, 4
        %s173 = scalar_lea.vmem %s2, %s172
        %s174 = smul.u32 64, %s10
      $region28: #{tpu_custom_call.1} parent=19 // pred_fallthru
        _
      // Predicated region
      $region29: #{tpu_custom_call.1} parent=19 // pred_check
        %p175 = pneg %p103
      $region30: #{tpu_custom_call.1} parent=19 // pred_check_branch
        %177 = sbr.rel (%p175) target = $region32
      $region31: #{tpu_custom_call.1} parent=19 // pred_region
        %s178 = smul.u32 64, %s10
        %p179 = scmp.lt.s32.totalorder %s178, 255
        %s180 = scalar_select %p179, %s178, 255
        %s181 = smul.addr %s180, 4
        %s182 = scalar_lea.vmem %s3, %s181
        %s183 = smul.u32 64, %s10
      $region32: #{tpu_custom_call.1} parent=19 // pred_fallthru
        _
    $region20: #{tpu_custom_call.1} parent=5 // pred_fallthru
      _
    %p184 = scmp.le.s32.totalorder 1, %s10
    %p185 = scmp.lt.s32.totalorder %s10, 5
    %p186 = pnand %p184, %p185
    %p187 = pneg %p186
    // Predicated region
    $region33: #{tpu_custom_call.1} parent=5 // pred_check
      _
    $region34: #{tpu_custom_call.1} parent=5 // pred_check_branch
      %189 = sbr.rel (%p186) target = $region36
    $region35: #{tpu_custom_call.1} parent=5 // pred_region
      %s190 = ssub.s32 %s10, 1
      %p191 = pneg %p31
      %p192 = pneg %p28
      %s193 = smul.u32 64, %s15
      %p194 = scmp.lt.s32.totalorder %s193, 255
      %s195 = scalar_select %p194, %s193, 255
      %s196 = scalar_lea.vmem %s1, %s195
      %p197 = pneg %p57
      %p198 = pneg %p54
      %s199 = smul.u32 64, %s15
      %p200 = scmp.lt.s32.totalorder %s199, 255
      %s201 = scalar_select %p200, %s199, 255
      %s202 = smul.addr %s201, 8
      %s203 = smul.addr %s202, 4
      %s204 = scalar_lea.vmem %s2, %s203
      %p205 = pneg %p83
      %p206 = pneg %p80
      %s207 = smul.u32 64, %s15
      %p208 = scmp.lt.s32.totalorder %s207, 255
      %s209 = scalar_select %p208, %s207, 255
      %s210 = smul.addr %s209, 4
      %s211 = scalar_lea.vmem %s3, %s210
      %p212 = pneg %p109
      %p213 = pneg %p106
      %p214 = pneg %p135
      %p215 = pneg %p132
      %s216 = smul.u32 8, %s15
      %p217 = scmp.lt.s32.totalorder %s216, 31
      %s218 = scalar_select %p217, %s216, 31
      %s219 = smul.addr %s218, 8
      %s220 = scalar_lea.vmem %s4, %s219
      %s221 = smul.u32 64, %s15
      %p222 = scmp.lt.s32.totalorder %s221, 255
      %s223 = scalar_select %p222, %s221, 255
      %s224 = scalar_lea.vmem %s1, %s223
      %s225 = smul.u32 64, %s15
      %s226 = smul.u32 64, %s15
      %p227 = scmp.lt.s32.totalorder %s226, 255
      %s228 = scalar_select %p227, %s226, 255
      %s229 = smul.addr %s228, 8
      %s230 = smul.addr %s229, 4
      %s231 = scalar_lea.vmem %s2, %s230
      %s232 = smul.u32 64, %s15
      %s233 = smul.u32 64, %s15
      %p234 = scmp.lt.s32.totalorder %s233, 255
      %s235 = scalar_select %p234, %s233, 255
      %s236 = smul.addr %s235, 4
      %s237 = scalar_lea.vmem %s3, %s236
      %s238 = smul.u32 64, %s15
      %s239 = smul.u32 8, %s15
      %p240 = scmp.lt.s32.totalorder %s239, 31
      %s241 = scalar_select %p240, %s239, 31
      %s242 = smul.addr %s241, 8
      %s243 = scalar_lea.vmem %s4, %s242
      %s244 = smul.u32 8, %s15
      %s246 = smul.u32 %s15, 64
      %s247 = smul.u32 %s246, 8
      %s248 = scalar_lea.vmem %s0, %s247
      %v249 = vld [vmem:[%s248] sm:$0xff]
      %v250 = vld [vmem:[%s248 + $0x8] sm:$0xff]
      %v251 = vld [vmem:[%s248 + $0x10] sm:$0xff]
      %v252 = vld [vmem:[%s248 + $0x18] sm:$0xff]
      %v253 = vld [vmem:[%s248 + $0x20] sm:$0xff]
      %v254 = vld [vmem:[%s248 + $0x28] sm:$0xff]
      %v255 = vld [vmem:[%s248 + $0x30] sm:$0xff]
      %v256 = vld [vmem:[%s248 + $0x38] sm:$0xff]
      %v257 = vld [vmem:[%s248 + $0x40] sm:$0xff]
      %v258 = vld [vmem:[%s248 + $0x48] sm:$0xff]
      %v259 = vld [vmem:[%s248 + $0x50] sm:$0xff]
      %v260 = vld [vmem:[%s248 + $0x58] sm:$0xff]
      %v261 = vld [vmem:[%s248 + $0x60] sm:$0xff]
      %v262 = vld [vmem:[%s248 + $0x68] sm:$0xff]
      %v263 = vld [vmem:[%s248 + $0x70] sm:$0xff]
      %v264 = vld [vmem:[%s248 + $0x78] sm:$0xff]
      %v265 = vld [vmem:[%s248 + $0x80] sm:$0xff]
      %v266 = vld [vmem:[%s248 + $0x88] sm:$0xff]
      %v267 = vld [vmem:[%s248 + $0x90] sm:$0xff]
      %v268 = vld [vmem:[%s248 + $0x98] sm:$0xff]
      %v269 = vld [vmem:[%s248 + $0xa0] sm:$0xff]
      %v270 = vld [vmem:[%s248 + $0xa8] sm:$0xff]
      %v271 = vld [vmem:[%s248 + $0xb0] sm:$0xff]
      %v272 = vld [vmem:[%s248 + $0xb8] sm:$0xff]
      %v273 = vld [vmem:[%s248 + $0xc0] sm:$0xff]
      %v274 = vld [vmem:[%s248 + $0xc8] sm:$0xff]
      %v275 = vld [vmem:[%s248 + $0xd0] sm:$0xff]
      %v276 = vld [vmem:[%s248 + $0xd8] sm:$0xff]
      %v277 = vld [vmem:[%s248 + $0xe0] sm:$0xff]
      %v278 = vld [vmem:[%s248 + $0xe8] sm:$0xff]
      %v279 = vld [vmem:[%s248 + $0xf0] sm:$0xff]
      %v280 = vld [vmem:[%s248 + $0xf8] sm:$0xff]
      %v281 = vld [vmem:[%s248 + $0x100] sm:$0xff]
      %v282 = vld [vmem:[%s248 + $0x108] sm:$0xff]
      %v283 = vld [vmem:[%s248 + $0x110] sm:$0xff]
      %v284 = vld [vmem:[%s248 + $0x118] sm:$0xff]
      %v285 = vld [vmem:[%s248 + $0x120] sm:$0xff]
      %v286 = vld [vmem:[%s248 + $0x128] sm:$0xff]
      %v287 = vld [vmem:[%s248 + $0x130] sm:$0xff]
      %v288 = vld [vmem:[%s248 + $0x138] sm:$0xff]
      %v289 = vld [vmem:[%s248 + $0x140] sm:$0xff]
      %v290 = vld [vmem:[%s248 + $0x148] sm:$0xff]
      %v291 = vld [vmem:[%s248 + $0x150] sm:$0xff]
      %v292 = vld [vmem:[%s248 + $0x158] sm:$0xff]
      %v293 = vld [vmem:[%s248 + $0x160] sm:$0xff]
      %v294 = vld [vmem:[%s248 + $0x168] sm:$0xff]
      %v295 = vld [vmem:[%s248 + $0x170] sm:$0xff]
      %v296 = vld [vmem:[%s248 + $0x178] sm:$0xff]
      %v297 = vld [vmem:[%s248 + $0x180] sm:$0xff]
      %v298 = vld [vmem:[%s248 + $0x188] sm:$0xff]
      %v299 = vld [vmem:[%s248 + $0x190] sm:$0xff]
      %v300 = vld [vmem:[%s248 + $0x198] sm:$0xff]
      %v301 = vld [vmem:[%s248 + $0x1a0] sm:$0xff]
      %v302 = vld [vmem:[%s248 + $0x1a8] sm:$0xff]
      %v303 = vld [vmem:[%s248 + $0x1b0] sm:$0xff]
      %v304 = vld [vmem:[%s248 + $0x1b8] sm:$0xff]
      %v305 = vld [vmem:[%s248 + $0x1c0] sm:$0xff]
      %v306 = vld [vmem:[%s248 + $0x1c8] sm:$0xff]
      %v307 = vld [vmem:[%s248 + $0x1d0] sm:$0xff]
      %v308 = vld [vmem:[%s248 + $0x1d8] sm:$0xff]
      %v309 = vld [vmem:[%s248 + $0x1e0] sm:$0xff]
      %v310 = vld [vmem:[%s248 + $0x1e8] sm:$0xff]
      %v311 = vld [vmem:[%s248 + $0x1f0] sm:$0xff]
      %v312 = vld [vmem:[%s248 + $0x1f8] sm:$0xff]
      %v313 = vld [vmem:[%s224] sm:$0x1]
      %v314 = vld [vmem:[%s224 + $0x1] sm:$0x1]
      %v315 = vld [vmem:[%s224 + $0x2] sm:$0x1]
      %v316 = vld [vmem:[%s224 + $0x3] sm:$0x1]
      %v317 = vld [vmem:[%s224 + $0x4] sm:$0x1]
      %v318 = vld [vmem:[%s224 + $0x5] sm:$0x1]
      %v319 = vld [vmem:[%s224 + $0x6] sm:$0x1]
      %v320 = vld [vmem:[%s224 + $0x7] sm:$0x1]
      %v321 = vld [vmem:[%s224 + $0x8] sm:$0x1]
      %v322 = vld [vmem:[%s224 + $0x9] sm:$0x1]
      %v323 = vld [vmem:[%s224 + $0xa] sm:$0x1]
      %v324 = vld [vmem:[%s224 + $0xb] sm:$0x1]
      %v325 = vld [vmem:[%s224 + $0xc] sm:$0x1]
      %v326 = vld [vmem:[%s224 + $0xd] sm:$0x1]
      %v327 = vld [vmem:[%s224 + $0xe] sm:$0x1]
      %v328 = vld [vmem:[%s224 + $0xf] sm:$0x1]
      %v329 = vld [vmem:[%s224 + $0x10] sm:$0x1]
      %v330 = vld [vmem:[%s224 + $0x11] sm:$0x1]
      %v331 = vld [vmem:[%s224 + $0x12] sm:$0x1]
      %v332 = vld [vmem:[%s224 + $0x13] sm:$0x1]
      %v333 = vld [vmem:[%s224 + $0x14] sm:$0x1]
      %v334 = vld [vmem:[%s224 + $0x15] sm:$0x1]
      %v335 = vld [vmem:[%s224 + $0x16] sm:$0x1]
      %v336 = vld [vmem:[%s224 + $0x17] sm:$0x1]
      %v337 = vld [vmem:[%s224 + $0x18] sm:$0x1]
      %v338 = vld [vmem:[%s224 + $0x19] sm:$0x1]
      %v339 = vld [vmem:[%s224 + $0x1a] sm:$0x1]
      %v340 = vld [vmem:[%s224 + $0x1b] sm:$0x1]
      %v341 = vld [vmem:[%s224 + $0x1c] sm:$0x1]
      %v342 = vld [vmem:[%s224 + $0x1d] sm:$0x1]
      %v343 = vld [vmem:[%s224 + $0x1e] sm:$0x1]
      %v344 = vld [vmem:[%s224 + $0x1f] sm:$0x1]
      %v345 = vld [vmem:[%s224 + $0x20] sm:$0x1]
      %v346 = vld [vmem:[%s224 + $0x21] sm:$0x1]
      %v347 = vld [vmem:[%s224 + $0x22] sm:$0x1]
      %v348 = vld [vmem:[%s224 + $0x23] sm:$0x1]
      %v349 = vld [vmem:[%s224 + $0x24] sm:$0x1]
      %v350 = vld [vmem:[%s224 + $0x25] sm:$0x1]
      %v351 = vld [vmem:[%s224 + $0x26] sm:$0x1]
      %v352 = vld [vmem:[%s224 + $0x27] sm:$0x1]
      %v353 = vld [vmem:[%s224 + $0x28] sm:$0x1]
      %v354 = vld [vmem:[%s224 + $0x29] sm:$0x1]
      %v355 = vld [vmem:[%s224 + $0x2a] sm:$0x1]
      %v356 = vld [vmem:[%s224 + $0x2b] sm:$0x1]
      %v357 = vld [vmem:[%s224 + $0x2c] sm:$0x1]
      %v358 = vld [vmem:[%s224 + $0x2d] sm:$0x1]
      %v359 = vld [vmem:[%s224 + $0x2e] sm:$0x1]
      %v360 = vld [vmem:[%s224 + $0x2f] sm:$0x1]
      %v361 = vld [vmem:[%s224 + $0x30] sm:$0x1]
      %v362 = vld [vmem:[%s224 + $0x31] sm:$0x1]
      %v363 = vld [vmem:[%s224 + $0x32] sm:$0x1]
      %v364 = vld [vmem:[%s224 + $0x33] sm:$0x1]
      %v365 = vld [vmem:[%s224 + $0x34] sm:$0x1]
      %v366 = vld [vmem:[%s224 + $0x35] sm:$0x1]
      %v367 = vld [vmem:[%s224 + $0x36] sm:$0x1]
      %v368 = vld [vmem:[%s224 + $0x37] sm:$0x1]
      %v369 = vld [vmem:[%s224 + $0x38] sm:$0x1]
      %v370 = vld [vmem:[%s224 + $0x39] sm:$0x1]
      %v371 = vld [vmem:[%s224 + $0x3a] sm:$0x1]
      %v372 = vld [vmem:[%s224 + $0x3b] sm:$0x1]
      %v373 = vld [vmem:[%s224 + $0x3c] sm:$0x1]
      %v374 = vld [vmem:[%s224 + $0x3d] sm:$0x1]
      %v375 = vld [vmem:[%s224 + $0x3e] sm:$0x1]
      %v376 = vld [vmem:[%s224 + $0x3f] sm:$0x1]
      %v377 = vld [vmem:[%s237] sm:$0xf]
      %v378 = vld [vmem:[%s237 + $0x4] sm:$0xf]
      %v379 = vld [vmem:[%s237 + $0x8] sm:$0xf]
      %v380 = vld [vmem:[%s237 + $0xc] sm:$0xf]
      %v381 = vld [vmem:[%s237 + $0x10] sm:$0xf]
      %v382 = vld [vmem:[%s237 + $0x14] sm:$0xf]
      %v383 = vld [vmem:[%s237 + $0x18] sm:$0xf]
      %v384 = vld [vmem:[%s237 + $0x1c] sm:$0xf]
      %v385 = vld [vmem:[%s237 + $0x20] sm:$0xf]
      %v386 = vld [vmem:[%s237 + $0x24] sm:$0xf]
      %v387 = vld [vmem:[%s237 + $0x28] sm:$0xf]
      %v388 = vld [vmem:[%s237 + $0x2c] sm:$0xf]
      %v389 = vld [vmem:[%s237 + $0x30] sm:$0xf]
      %v390 = vld [vmem:[%s237 + $0x34] sm:$0xf]
      %v391 = vld [vmem:[%s237 + $0x38] sm:$0xf]
      %v392 = vld [vmem:[%s237 + $0x3c] sm:$0xf]
      %v393 = vld [vmem:[%s237 + $0x40] sm:$0xf]
      %v394 = vld [vmem:[%s237 + $0x44] sm:$0xf]
      %v395 = vld [vmem:[%s237 + $0x48] sm:$0xf]
      %v396 = vld [vmem:[%s237 + $0x4c] sm:$0xf]
      %v397 = vld [vmem:[%s237 + $0x50] sm:$0xf]
      %v398 = vld [vmem:[%s237 + $0x54] sm:$0xf]
      %v399 = vld [vmem:[%s237 + $0x58] sm:$0xf]
      %v400 = vld [vmem:[%s237 + $0x5c] sm:$0xf]
      %v401 = vld [vmem:[%s237 + $0x60] sm:$0xf]
      %v402 = vld [vmem:[%s237 + $0x64] sm:$0xf]
      %v403 = vld [vmem:[%s237 + $0x68] sm:$0xf]
      %v404 = vld [vmem:[%s237 + $0x6c] sm:$0xf]
      %v405 = vld [vmem:[%s237 + $0x70] sm:$0xf]
      %v406 = vld [vmem:[%s237 + $0x74] sm:$0xf]
      %v407 = vld [vmem:[%s237 + $0x78] sm:$0xf]
      %v408 = vld [vmem:[%s237 + $0x7c] sm:$0xf]
      %v409 = vld [vmem:[%s237 + $0x80] sm:$0xf]
      %v410 = vld [vmem:[%s237 + $0x84] sm:$0xf]
      %v411 = vld [vmem:[%s237 + $0x88] sm:$0xf]
      %v412 = vld [vmem:[%s237 + $0x8c] sm:$0xf]
      %v413 = vld [vmem:[%s237 + $0x90] sm:$0xf]
      %v414 = vld [vmem:[%s237 + $0x94] sm:$0xf]
      %v415 = vld [vmem:[%s237 + $0x98] sm:$0xf]
      %v416 = vld [vmem:[%s237 + $0x9c] sm:$0xf]
      %v417 = vld [vmem:[%s237 + $0xa0] sm:$0xf]
      %v418 = vld [vmem:[%s237 + $0xa4] sm:$0xf]
      %v419 = vld [vmem:[%s237 + $0xa8] sm:$0xf]
      %v420 = vld [vmem:[%s237 + $0xac] sm:$0xf]
      %v421 = vld [vmem:[%s237 + $0xb0] sm:$0xf]
      %v422 = vld [vmem:[%s237 + $0xb4] sm:$0xf]
      %v423 = vld [vmem:[%s237 + $0xb8] sm:$0xf]
      %v424 = vld [vmem:[%s237 + $0xbc] sm:$0xf]
      %v425 = vld [vmem:[%s237 + $0xc0] sm:$0xf]
      %v426 = vld [vmem:[%s237 + $0xc4] sm:$0xf]
      %v427 = vld [vmem:[%s237 + $0xc8] sm:$0xf]
      %v428 = vld [vmem:[%s237 + $0xcc] sm:$0xf]
      %v429 = vld [vmem:[%s237 + $0xd0] sm:$0xf]
      %v430 = vld [vmem:[%s237 + $0xd4] sm:$0xf]
      %v431 = vld [vmem:[%s237 + $0xd8] sm:$0xf]
      %v432 = vld [vmem:[%s237 + $0xdc] sm:$0xf]
      %v433 = vld [vmem:[%s237 + $0xe0] sm:$0xf]
      %v434 = vld [vmem:[%s237 + $0xe4] sm:$0xf]
      %v435 = vld [vmem:[%s237 + $0xe8] sm:$0xf]
      %v436 = vld [vmem:[%s237 + $0xec] sm:$0xf]
      %v437 = vld [vmem:[%s237 + $0xf0] sm:$0xf]
      %v438 = vld [vmem:[%s237 + $0xf4] sm:$0xf]
      %v439 = vld [vmem:[%s237 + $0xf8] sm:$0xf]
      %v440 = vld [vmem:[%s237 + $0xfc] sm:$0xf]
      %442 = vset.pattern.permute.xlu0 0
      %443 = vperm.xlu0 %442, %v249
      %v444 = vpop.permute.xlu0 %443
      %447 = vset.pattern.permute.xlu0 0
      %448 = vperm.xlu0 %447, %v250
      %v449 = vpop.permute.xlu0 %448
      %452 = vset.pattern.permute.xlu0 0
      %453 = vperm.xlu0 %452, %v251
      %v454 = vpop.permute.xlu0 %453
      %457 = vset.pattern.permute.xlu0 0
      %458 = vperm.xlu0 %457, %v252
      %v459 = vpop.permute.xlu0 %458
      %462 = vset.pattern.permute.xlu0 0
      %463 = vperm.xlu0 %462, %v253
      %v464 = vpop.permute.xlu0 %463
      %467 = vset.pattern.permute.xlu0 0
      %468 = vperm.xlu0 %467, %v254
      %v469 = vpop.permute.xlu0 %468
      %472 = vset.pattern.permute.xlu0 0
      %473 = vperm.xlu0 %472, %v255
      %v474 = vpop.permute.xlu0 %473
      %477 = vset.pattern.permute.xlu0 0
      %478 = vperm.xlu0 %477, %v256
      %v479 = vpop.permute.xlu0 %478
      %482 = vset.pattern.permute.xlu0 0
      %483 = vperm.xlu0 %482, %v257
      %v484 = vpop.permute.xlu0 %483
      %487 = vset.pattern.permute.xlu0 0
      %488 = vperm.xlu0 %487, %v258
      %v489 = vpop.permute.xlu0 %488
      %492 = vset.pattern.permute.xlu0 0
      %493 = vperm.xlu0 %492, %v259
      %v494 = vpop.permute.xlu0 %493
      %497 = vset.pattern.permute.xlu0 0
      %498 = vperm.xlu0 %497, %v260
      %v499 = vpop.permute.xlu0 %498
      %502 = vset.pattern.permute.xlu0 0
      %503 = vperm.xlu0 %502, %v261
      %v504 = vpop.permute.xlu0 %503
      %507 = vset.pattern.permute.xlu0 0
      %508 = vperm.xlu0 %507, %v262
      %v509 = vpop.permute.xlu0 %508
      %512 = vset.pattern.permute.xlu0 0
      %513 = vperm.xlu0 %512, %v263
      %v514 = vpop.permute.xlu0 %513
      %517 = vset.pattern.permute.xlu0 0
      %518 = vperm.xlu0 %517, %v264
      %v519 = vpop.permute.xlu0 %518
      %522 = vset.pattern.permute.xlu0 0
      %523 = vperm.xlu0 %522, %v265
      %v524 = vpop.permute.xlu0 %523
      %527 = vset.pattern.permute.xlu0 0
      %528 = vperm.xlu0 %527, %v266
      %v529 = vpop.permute.xlu0 %528
      %532 = vset.pattern.permute.xlu0 0
      %533 = vperm.xlu0 %532, %v267
      %v534 = vpop.permute.xlu0 %533
      %537 = vset.pattern.permute.xlu0 0
      %538 = vperm.xlu0 %537, %v268
      %v539 = vpop.permute.xlu0 %538
      %542 = vset.pattern.permute.xlu0 0
      %543 = vperm.xlu0 %542, %v269
      %v544 = vpop.permute.xlu0 %543
      %547 = vset.pattern.permute.xlu0 0
      %548 = vperm.xlu0 %547, %v270
      %v549 = vpop.permute.xlu0 %548
      %552 = vset.pattern.permute.xlu0 0
      %553 = vperm.xlu0 %552, %v271
      %v554 = vpop.permute.xlu0 %553
      %557 = vset.pattern.permute.xlu0 0
      %558 = vperm.xlu0 %557, %v272
      %v559 = vpop.permute.xlu0 %558
      %562 = vset.pattern.permute.xlu0 0
      %563 = vperm.xlu0 %562, %v273
      %v564 = vpop.permute.xlu0 %563
      %567 = vset.pattern.permute.xlu0 0
      %568 = vperm.xlu0 %567, %v274
      %v569 = vpop.permute.xlu0 %568
      %572 = vset.pattern.permute.xlu0 0
      %573 = vperm.xlu0 %572, %v275
      %v574 = vpop.permute.xlu0 %573
      %577 = vset.pattern.permute.xlu0 0
      %578 = vperm.xlu0 %577, %v276
      %v579 = vpop.permute.xlu0 %578
      %582 = vset.pattern.permute.xlu0 0
      %583 = vperm.xlu0 %582, %v277
      %v584 = vpop.permute.xlu0 %583
      %587 = vset.pattern.permute.xlu0 0
      %588 = vperm.xlu0 %587, %v278
      %v589 = vpop.permute.xlu0 %588
      %592 = vset.pattern.permute.xlu0 0
      %593 = vperm.xlu0 %592, %v279
      %v594 = vpop.permute.xlu0 %593
      %597 = vset.pattern.permute.xlu0 0
      %598 = vperm.xlu0 %597, %v280
      %v599 = vpop.permute.xlu0 %598
      %602 = vset.pattern.permute.xlu0 0
      %603 = vperm.xlu0 %602, %v281
      %v604 = vpop.permute.xlu0 %603
      %607 = vset.pattern.permute.xlu0 0
      %608 = vperm.xlu0 %607, %v282
      %v609 = vpop.permute.xlu0 %608
      %612 = vset.pattern.permute.xlu0 0
      %613 = vperm.xlu0 %612, %v283
      %v614 = vpop.permute.xlu0 %613
      %617 = vset.pattern.permute.xlu0 0
      %618 = vperm.xlu0 %617, %v284
      %v619 = vpop.permute.xlu0 %618
      %622 = vset.pattern.permute.xlu0 0
      %623 = vperm.xlu0 %622, %v285
      %v624 = vpop.permute.xlu0 %623
      %627 = vset.pattern.permute.xlu0 0
      %628 = vperm.xlu0 %627, %v286
      %v629 = vpop.permute.xlu0 %628
      %632 = vset.pattern.permute.xlu0 0
      %633 = vperm.xlu0 %632, %v287
      %v634 = vpop.permute.xlu0 %633
      %637 = vset.pattern.permute.xlu0 0
      %638 = vperm.xlu0 %637, %v288
      %v639 = vpop.permute.xlu0 %638
      %642 = vset.pattern.permute.xlu0 0
      %643 = vperm.xlu0 %642, %v289
      %v644 = vpop.permute.xlu0 %643
      %647 = vset.pattern.permute.xlu0 0
      %648 = vperm.xlu0 %647, %v290
      %v649 = vpop.permute.xlu0 %648
      %652 = vset.pattern.permute.xlu0 0
      %653 = vperm.xlu0 %652, %v291
      %v654 = vpop.permute.xlu0 %653
      %657 = vset.pattern.permute.xlu0 0
      %658 = vperm.xlu0 %657, %v292
      %v659 = vpop.permute.xlu0 %658
      %662 = vset.pattern.permute.xlu0 0
      %663 = vperm.xlu0 %662, %v293
      %v664 = vpop.permute.xlu0 %663
      %667 = vset.pattern.permute.xlu0 0
      %668 = vperm.xlu0 %667, %v294
      %v669 = vpop.permute.xlu0 %668
      %672 = vset.pattern.permute.xlu0 0
      %673 = vperm.xlu0 %672, %v295
      %v674 = vpop.permute.xlu0 %673
      %677 = vset.pattern.permute.xlu0 0
      %678 = vperm.xlu0 %677, %v296
      %v679 = vpop.permute.xlu0 %678
      %682 = vset.pattern.permute.xlu0 0
      %683 = vperm.xlu0 %682, %v297
      %v684 = vpop.permute.xlu0 %683
      %687 = vset.pattern.permute.xlu0 0
      %688 = vperm.xlu0 %687, %v298
      %v689 = vpop.permute.xlu0 %688
      %692 = vset.pattern.permute.xlu0 0
      %693 = vperm.xlu0 %692, %v299
      %v694 = vpop.permute.xlu0 %693
      %697 = vset.pattern.permute.xlu0 0
      %698 = vperm.xlu0 %697, %v300
      %v699 = vpop.permute.xlu0 %698
      %702 = vset.pattern.permute.xlu0 0
      %703 = vperm.xlu0 %702, %v301
      %v704 = vpop.permute.xlu0 %703
      %707 = vset.pattern.permute.xlu0 0
      %708 = vperm.xlu0 %707, %v302
      %v709 = vpop.permute.xlu0 %708
      %712 = vset.pattern.permute.xlu0 0
      %713 = vperm.xlu0 %712, %v303
      %v714 = vpop.permute.xlu0 %713
      %717 = vset.pattern.permute.xlu0 0
      %718 = vperm.xlu0 %717, %v304
      %v719 = vpop.permute.xlu0 %718
      %722 = vset.pattern.permute.xlu0 0
      %723 = vperm.xlu0 %722, %v305
      %v724 = vpop.permute.xlu0 %723
      %727 = vset.pattern.permute.xlu0 0
      %728 = vperm.xlu0 %727, %v306
      %v729 = vpop.permute.xlu0 %728
      %732 = vset.pattern.permute.xlu0 0
      %733 = vperm.xlu0 %732, %v307
      %v734 = vpop.permute.xlu0 %733
      %737 = vset.pattern.permute.xlu0 0
      %738 = vperm.xlu0 %737, %v308
      %v739 = vpop.permute.xlu0 %738
      %742 = vset.pattern.permute.xlu0 0
      %743 = vperm.xlu0 %742, %v309
      %v744 = vpop.permute.xlu0 %743
      %747 = vset.pattern.permute.xlu0 0
      %748 = vperm.xlu0 %747, %v310
      %v749 = vpop.permute.xlu0 %748
      %752 = vset.pattern.permute.xlu0 0
      %753 = vperm.xlu0 %752, %v311
      %v754 = vpop.permute.xlu0 %753
      %757 = vset.pattern.permute.xlu0 0
      %758 = vperm.xlu0 %757, %v312
      %v759 = vpop.permute.xlu0 %758
      %v825 = vlaneseq
      %v826 = vshrl.u32 %v825, 7
      %v827 = vsub.s32 0, %v826
      %v828 = vrot.slane %v313, %v827
      %v829 = vlaneseq
      %v830 = vshrl.u32 %v829, 7
      %v831 = vsub.s32 0, %v830
      %v832 = vrot.slane %v314, %v831
      %v833 = vlaneseq
      %v834 = vshrl.u32 %v833, 7
      %v835 = vsub.s32 0, %v834
      %v836 = vrot.slane %v315, %v835
      %v837 = vlaneseq
      %v838 = vshrl.u32 %v837, 7
      %v839 = vsub.s32 0, %v838
      %v840 = vrot.slane %v316, %v839
      %v841 = vlaneseq
      %v842 = vshrl.u32 %v841, 7
      %v843 = vsub.s32 0, %v842
      %v844 = vrot.slane %v317, %v843
      %v845 = vlaneseq
      %v846 = vshrl.u32 %v845, 7
      %v847 = vsub.s32 0, %v846
      %v848 = vrot.slane %v318, %v847
      %v849 = vlaneseq
      %v850 = vshrl.u32 %v849, 7
      %v851 = vsub.s32 0, %v850
      %v852 = vrot.slane %v319, %v851
      %v853 = vlaneseq
      %v854 = vshrl.u32 %v853, 7
      %v855 = vsub.s32 0, %v854
      %v856 = vrot.slane %v320, %v855
      %v857 = vlaneseq
      %v858 = vshrl.u32 %v857, 7
      %v859 = vsub.s32 0, %v858
      %v860 = vrot.slane %v321, %v859
      %v861 = vlaneseq
      %v862 = vshrl.u32 %v861, 7
      %v863 = vsub.s32 0, %v862
      %v864 = vrot.slane %v322, %v863
      %v865 = vlaneseq
      %v866 = vshrl.u32 %v865, 7
      %v867 = vsub.s32 0, %v866
      %v868 = vrot.slane %v323, %v867
      %v869 = vlaneseq
      %v870 = vshrl.u32 %v869, 7
      %v871 = vsub.s32 0, %v870
      %v872 = vrot.slane %v324, %v871
      %v873 = vlaneseq
      %v874 = vshrl.u32 %v873, 7
      %v875 = vsub.s32 0, %v874
      %v876 = vrot.slane %v325, %v875
      %v877 = vlaneseq
      %v878 = vshrl.u32 %v877, 7
      %v879 = vsub.s32 0, %v878
      %v880 = vrot.slane %v326, %v879
      %v881 = vlaneseq
      %v882 = vshrl.u32 %v881, 7
      %v883 = vsub.s32 0, %v882
      %v884 = vrot.slane %v327, %v883
      %v885 = vlaneseq
      %v886 = vshrl.u32 %v885, 7
      %v887 = vsub.s32 0, %v886
      %v888 = vrot.slane %v328, %v887
      %v889 = vlaneseq
      %v890 = vshrl.u32 %v889, 7
      %v891 = vsub.s32 0, %v890
      %v892 = vrot.slane %v329, %v891
      %v893 = vlaneseq
      %v894 = vshrl.u32 %v893, 7
      %v895 = vsub.s32 0, %v894
      %v896 = vrot.slane %v330, %v895
      %v897 = vlaneseq
      %v898 = vshrl.u32 %v897, 7
      %v899 = vsub.s32 0, %v898
      %v900 = vrot.slane %v331, %v899
      %v901 = vlaneseq
      %v902 = vshrl.u32 %v901, 7
      %v903 = vsub.s32 0, %v902
      %v904 = vrot.slane %v332, %v903
      %v905 = vlaneseq
      %v906 = vshrl.u32 %v905, 7
      %v907 = vsub.s32 0, %v906
      %v908 = vrot.slane %v333, %v907
      %v909 = vlaneseq
      %v910 = vshrl.u32 %v909, 7
      %v911 = vsub.s32 0, %v910
      %v912 = vrot.slane %v334, %v911
      %v913 = vlaneseq
      %v914 = vshrl.u32 %v913, 7
      %v915 = vsub.s32 0, %v914
      %v916 = vrot.slane %v335, %v915
      %v917 = vlaneseq
      %v918 = vshrl.u32 %v917, 7
      %v919 = vsub.s32 0, %v918
      %v920 = vrot.slane %v336, %v919
      %v921 = vlaneseq
      %v922 = vshrl.u32 %v921, 7
      %v923 = vsub.s32 0, %v922
      %v924 = vrot.slane %v337, %v923
      %v925 = vlaneseq
      %v926 = vshrl.u32 %v925, 7
      %v927 = vsub.s32 0, %v926
      %v928 = vrot.slane %v338, %v927
      %v929 = vlaneseq
      %v930 = vshrl.u32 %v929, 7
      %v931 = vsub.s32 0, %v930
      %v932 = vrot.slane %v339, %v931
      %v933 = vlaneseq
      %v934 = vshrl.u32 %v933, 7
      %v935 = vsub.s32 0, %v934
      %v936 = vrot.slane %v340, %v935
      %v937 = vlaneseq
      %v938 = vshrl.u32 %v937, 7
      %v939 = vsub.s32 0, %v938
      %v940 = vrot.slane %v341, %v939
      %v941 = vlaneseq
      %v942 = vshrl.u32 %v941, 7
      %v943 = vsub.s32 0, %v942
      %v944 = vrot.slane %v342, %v943
      %v945 = vlaneseq
      %v946 = vshrl.u32 %v945, 7
      %v947 = vsub.s32 0, %v946
      %v948 = vrot.slane %v343, %v947
      %v949 = vlaneseq
      %v950 = vshrl.u32 %v949, 7
      %v951 = vsub.s32 0, %v950
      %v952 = vrot.slane %v344, %v951
      %v953 = vlaneseq
      %v954 = vshrl.u32 %v953, 7
      %v955 = vsub.s32 0, %v954
      %v956 = vrot.slane %v345, %v955
      %v957 = vlaneseq
      %v958 = vshrl.u32 %v957, 7
      %v959 = vsub.s32 0, %v958
      %v960 = vrot.slane %v346, %v959
      %v961 = vlaneseq
      %v962 = vshrl.u32 %v961, 7
      %v963 = vsub.s32 0, %v962
      %v964 = vrot.slane %v347, %v963
      %v965 = vlaneseq
      %v966 = vshrl.u32 %v965, 7
      %v967 = vsub.s32 0, %v966
      %v968 = vrot.slane %v348, %v967
      %v969 = vlaneseq
      %v970 = vshrl.u32 %v969, 7
      %v971 = vsub.s32 0, %v970
      %v972 = vrot.slane %v349, %v971
      %v973 = vlaneseq
      %v974 = vshrl.u32 %v973, 7
      %v975 = vsub.s32 0, %v974
      %v976 = vrot.slane %v350, %v975
      %v977 = vlaneseq
      %v978 = vshrl.u32 %v977, 7
      %v979 = vsub.s32 0, %v978
      %v980 = vrot.slane %v351, %v979
      %v981 = vlaneseq
      %v982 = vshrl.u32 %v981, 7
      %v983 = vsub.s32 0, %v982
      %v984 = vrot.slane %v352, %v983
      %v985 = vlaneseq
      %v986 = vshrl.u32 %v985, 7
      %v987 = vsub.s32 0, %v986
      %v988 = vrot.slane %v353, %v987
      %v989 = vlaneseq
      %v990 = vshrl.u32 %v989, 7
      %v991 = vsub.s32 0, %v990
      %v992 = vrot.slane %v354, %v991
      %v993 = vlaneseq
      %v994 = vshrl.u32 %v993, 7
      %v995 = vsub.s32 0, %v994
      %v996 = vrot.slane %v355, %v995
      %v997 = vlaneseq
      %v998 = vshrl.u32 %v997, 7
      %v999 = vsub.s32 0, %v998
      %v1000 = vrot.slane %v356, %v999
      %v1001 = vlaneseq
      %v1002 = vshrl.u32 %v1001, 7
      %v1003 = vsub.s32 0, %v1002
      %v1004 = vrot.slane %v357, %v1003
      %v1005 = vlaneseq
      %v1006 = vshrl.u32 %v1005, 7
      %v1007 = vsub.s32 0, %v1006
      %v1008 = vrot.slane %v358, %v1007
      %v1009 = vlaneseq
      %v1010 = vshrl.u32 %v1009, 7
      %v1011 = vsub.s32 0, %v1010
      %v1012 = vrot.slane %v359, %v1011
      %v1013 = vlaneseq
      %v1014 = vshrl.u32 %v1013, 7
      %v1015 = vsub.s32 0, %v1014
      %v1016 = vrot.slane %v360, %v1015
      %v1017 = vlaneseq
      %v1018 = vshrl.u32 %v1017, 7
      %v1019 = vsub.s32 0, %v1018
      %v1020 = vrot.slane %v361, %v1019
      %v1021 = vlaneseq
      %v1022 = vshrl.u32 %v1021, 7
      %v1023 = vsub.s32 0, %v1022
      %v1024 = vrot.slane %v362, %v1023
      %v1025 = vlaneseq
      %v1026 = vshrl.u32 %v1025, 7
      %v1027 = vsub.s32 0, %v1026
      %v1028 = vrot.slane %v363, %v1027
      %v1029 = vlaneseq
      %v1030 = vshrl.u32 %v1029, 7
      %v1031 = vsub.s32 0, %v1030
      %v1032 = vrot.slane %v364, %v1031
      %v1033 = vlaneseq
      %v1034 = vshrl.u32 %v1033, 7
      %v1035 = vsub.s32 0, %v1034
      %v1036 = vrot.slane %v365, %v1035
      %v1037 = vlaneseq
      %v1038 = vshrl.u32 %v1037, 7
      %v1039 = vsub.s32 0, %v1038
      %v1040 = vrot.slane %v366, %v1039
      %v1041 = vlaneseq
      %v1042 = vshrl.u32 %v1041, 7
      %v1043 = vsub.s32 0, %v1042
      %v1044 = vrot.slane %v367, %v1043
      %v1045 = vlaneseq
      %v1046 = vshrl.u32 %v1045, 7
      %v1047 = vsub.s32 0, %v1046
      %v1048 = vrot.slane %v368, %v1047
      %v1049 = vlaneseq
      %v1050 = vshrl.u32 %v1049, 7
      %v1051 = vsub.s32 0, %v1050
      %v1052 = vrot.slane %v369, %v1051
      %v1053 = vlaneseq
      %v1054 = vshrl.u32 %v1053, 7
      %v1055 = vsub.s32 0, %v1054
      %v1056 = vrot.slane %v370, %v1055
      %v1057 = vlaneseq
      %v1058 = vshrl.u32 %v1057, 7
      %v1059 = vsub.s32 0, %v1058
      %v1060 = vrot.slane %v371, %v1059
      %v1061 = vlaneseq
      %v1062 = vshrl.u32 %v1061, 7
      %v1063 = vsub.s32 0, %v1062
      %v1064 = vrot.slane %v372, %v1063
      %v1065 = vlaneseq
      %v1066 = vshrl.u32 %v1065, 7
      %v1067 = vsub.s32 0, %v1066
      %v1068 = vrot.slane %v373, %v1067
      %v1069 = vlaneseq
      %v1070 = vshrl.u32 %v1069, 7
      %v1071 = vsub.s32 0, %v1070
      %v1072 = vrot.slane %v374, %v1071
      %v1073 = vlaneseq
      %v1074 = vshrl.u32 %v1073, 7
      %v1075 = vsub.s32 0, %v1074
      %v1076 = vrot.slane %v375, %v1075
      %v1077 = vlaneseq
      %v1078 = vshrl.u32 %v1077, 7
      %v1079 = vsub.s32 0, %v1078
      %v1080 = vrot.slane %v376, %v1079
      %v1145 = vmul.f32 %v444, %v828
      %v1146 = vmul.f32 %v449, %v832
      %v1147 = vmul.f32 %v454, %v836
      %v1148 = vmul.f32 %v459, %v840
      %v1149 = vmul.f32 %v464, %v844
      %v1150 = vmul.f32 %v469, %v848
      %v1151 = vmul.f32 %v474, %v852
      %v1152 = vmul.f32 %v479, %v856
      %v1153 = vmul.f32 %v484, %v860
      %v1154 = vmul.f32 %v489, %v864
      %v1155 = vmul.f32 %v494, %v868
      %v1156 = vmul.f32 %v499, %v872
      %v1157 = vmul.f32 %v504, %v876
      %v1158 = vmul.f32 %v509, %v880
      %v1159 = vmul.f32 %v514, %v884
      %v1160 = vmul.f32 %v519, %v888
      %v1161 = vmul.f32 %v524, %v892
      %v1162 = vmul.f32 %v529, %v896
      %v1163 = vmul.f32 %v534, %v900
      %v1164 = vmul.f32 %v539, %v904
      %v1165 = vmul.f32 %v544, %v908
      %v1166 = vmul.f32 %v549, %v912
      %v1167 = vmul.f32 %v554, %v916
      %v1168 = vmul.f32 %v559, %v920
      %v1169 = vmul.f32 %v564, %v924
      %v1170 = vmul.f32 %v569, %v928
      %v1171 = vmul.f32 %v574, %v932
      %v1172 = vmul.f32 %v579, %v936
      %v1173 = vmul.f32 %v584, %v940
      %v1174 = vmul.f32 %v589, %v944
      %v1175 = vmul.f32 %v594, %v948
      %v1176 = vmul.f32 %v599, %v952
      %v1177 = vmul.f32 %v604, %v956
      %v1178 = vmul.f32 %v609, %v960
      %v1179 = vmul.f32 %v614, %v964
      %v1180 = vmul.f32 %v619, %v968
      %v1181 = vmul.f32 %v624, %v972
      %v1182 = vmul.f32 %v629, %v976
      %v1183 = vmul.f32 %v634, %v980
      %v1184 = vmul.f32 %v639, %v984
      %v1185 = vmul.f32 %v644, %v988
      %v1186 = vmul.f32 %v649, %v992
      %v1187 = vmul.f32 %v654, %v996
      %v1188 = vmul.f32 %v659, %v1000
      %v1189 = vmul.f32 %v664, %v1004
      %v1190 = vmul.f32 %v669, %v1008
      %v1191 = vmul.f32 %v674, %v1012
      %v1192 = vmul.f32 %v679, %v1016
      %v1193 = vmul.f32 %v684, %v1020
      %v1194 = vmul.f32 %v689, %v1024
      %v1195 = vmul.f32 %v694, %v1028
      %v1196 = vmul.f32 %v699, %v1032
      %v1197 = vmul.f32 %v704, %v1036
      %v1198 = vmul.f32 %v709, %v1040
      %v1199 = vmul.f32 %v714, %v1044
      %v1200 = vmul.f32 %v719, %v1048
      %v1201 = vmul.f32 %v724, %v1052
      %v1202 = vmul.f32 %v729, %v1056
      %v1203 = vmul.f32 %v734, %v1060
      %v1204 = vmul.f32 %v739, %v1064
      %v1205 = vmul.f32 %v744, %v1068
      %v1206 = vmul.f32 %v749, %v1072
      %v1207 = vmul.f32 %v754, %v1076
      %v1208 = vmul.f32 %v759, %v1080
      %v1209 = vlaneseq
      %v1210 = vshrl.u32 %v1209, 7
      %v1211 = vsub.s32 0, %v1210
      %v1212 = vrot.slane %v377, %v1211
      %v1213 = vlaneseq
      %v1214 = vshrl.u32 %v1213, 7
      %v1215 = vsub.s32 0, %v1214
      %v1216 = vrot.slane %v378, %v1215
      %v1217 = vlaneseq
      %v1218 = vshrl.u32 %v1217, 7
      %v1219 = vsub.s32 0, %v1218
      %v1220 = vrot.slane %v379, %v1219
      %v1221 = vlaneseq
      %v1222 = vshrl.u32 %v1221, 7
      %v1223 = vsub.s32 0, %v1222
      %v1224 = vrot.slane %v380, %v1223
      %v1225 = vlaneseq
      %v1226 = vshrl.u32 %v1225, 7
      %v1227 = vsub.s32 0, %v1226
      %v1228 = vrot.slane %v381, %v1227
      %v1229 = vlaneseq
      %v1230 = vshrl.u32 %v1229, 7
      %v1231 = vsub.s32 0, %v1230
      %v1232 = vrot.slane %v382, %v1231
      %v1233 = vlaneseq
      %v1234 = vshrl.u32 %v1233, 7
      %v1235 = vsub.s32 0, %v1234
      %v1236 = vrot.slane %v383, %v1235
      %v1237 = vlaneseq
      %v1238 = vshrl.u32 %v1237, 7
      %v1239 = vsub.s32 0, %v1238
      %v1240 = vrot.slane %v384, %v1239
      %v1241 = vlaneseq
      %v1242 = vshrl.u32 %v1241, 7
      %v1243 = vsub.s32 0, %v1242
      %v1244 = vrot.slane %v385, %v1243
      %v1245 = vlaneseq
      %v1246 = vshrl.u32 %v1245, 7
      %v1247 = vsub.s32 0, %v1246
      %v1248 = vrot.slane %v386, %v1247
      %v1249 = vlaneseq
      %v1250 = vshrl.u32 %v1249, 7
      %v1251 = vsub.s32 0, %v1250
      %v1252 = vrot.slane %v387, %v1251
      %v1253 = vlaneseq
      %v1254 = vshrl.u32 %v1253, 7
      %v1255 = vsub.s32 0, %v1254
      %v1256 = vrot.slane %v388, %v1255
      %v1257 = vlaneseq
      %v1258 = vshrl.u32 %v1257, 7
      %v1259 = vsub.s32 0, %v1258
      %v1260 = vrot.slane %v389, %v1259
      %v1261 = vlaneseq
      %v1262 = vshrl.u32 %v1261, 7
      %v1263 = vsub.s32 0, %v1262
      %v1264 = vrot.slane %v390, %v1263
      %v1265 = vlaneseq
      %v1266 = vshrl.u32 %v1265, 7
      %v1267 = vsub.s32 0, %v1266
      %v1268 = vrot.slane %v391, %v1267
      %v1269 = vlaneseq
      %v1270 = vshrl.u32 %v1269, 7
      %v1271 = vsub.s32 0, %v1270
      %v1272 = vrot.slane %v392, %v1271
      %v1273 = vlaneseq
      %v1274 = vshrl.u32 %v1273, 7
      %v1275 = vsub.s32 0, %v1274
      %v1276 = vrot.slane %v393, %v1275
      %v1277 = vlaneseq
      %v1278 = vshrl.u32 %v1277, 7
      %v1279 = vsub.s32 0, %v1278
      %v1280 = vrot.slane %v394, %v1279
      %v1281 = vlaneseq
      %v1282 = vshrl.u32 %v1281, 7
      %v1283 = vsub.s32 0, %v1282
      %v1284 = vrot.slane %v395, %v1283
      %v1285 = vlaneseq
      %v1286 = vshrl.u32 %v1285, 7
      %v1287 = vsub.s32 0, %v1286
      %v1288 = vrot.slane %v396, %v1287
      %v1289 = vlaneseq
      %v1290 = vshrl.u32 %v1289, 7
      %v1291 = vsub.s32 0, %v1290
      %v1292 = vrot.slane %v397, %v1291
      %v1293 = vlaneseq
      %v1294 = vshrl.u32 %v1293, 7
      %v1295 = vsub.s32 0, %v1294
      %v1296 = vrot.slane %v398, %v1295
      %v1297 = vlaneseq
      %v1298 = vshrl.u32 %v1297, 7
      %v1299 = vsub.s32 0, %v1298
      %v1300 = vrot.slane %v399, %v1299
      %v1301 = vlaneseq
      %v1302 = vshrl.u32 %v1301, 7
      %v1303 = vsub.s32 0, %v1302
      %v1304 = vrot.slane %v400, %v1303
      %v1305 = vlaneseq
      %v1306 = vshrl.u32 %v1305, 7
      %v1307 = vsub.s32 0, %v1306
      %v1308 = vrot.slane %v401, %v1307
      %v1309 = vlaneseq
      %v1310 = vshrl.u32 %v1309, 7
      %v1311 = vsub.s32 0, %v1310
      %v1312 = vrot.slane %v402, %v1311
      %v1313 = vlaneseq
      %v1314 = vshrl.u32 %v1313, 7
      %v1315 = vsub.s32 0, %v1314
      %v1316 = vrot.slane %v403, %v1315
      %v1317 = vlaneseq
      %v1318 = vshrl.u32 %v1317, 7
      %v1319 = vsub.s32 0, %v1318
      %v1320 = vrot.slane %v404, %v1319
      %v1321 = vlaneseq
      %v1322 = vshrl.u32 %v1321, 7
      %v1323 = vsub.s32 0, %v1322
      %v1324 = vrot.slane %v405, %v1323
      %v1325 = vlaneseq
      %v1326 = vshrl.u32 %v1325, 7
      %v1327 = vsub.s32 0, %v1326
      %v1328 = vrot.slane %v406, %v1327
      %v1329 = vlaneseq
      %v1330 = vshrl.u32 %v1329, 7
      %v1331 = vsub.s32 0, %v1330
      %v1332 = vrot.slane %v407, %v1331
      %v1333 = vlaneseq
      %v1334 = vshrl.u32 %v1333, 7
      %v1335 = vsub.s32 0, %v1334
      %v1336 = vrot.slane %v408, %v1335
      %v1337 = vlaneseq
      %v1338 = vshrl.u32 %v1337, 7
      %v1339 = vsub.s32 0, %v1338
      %v1340 = vrot.slane %v409, %v1339
      %v1341 = vlaneseq
      %v1342 = vshrl.u32 %v1341, 7
      %v1343 = vsub.s32 0, %v1342
      %v1344 = vrot.slane %v410, %v1343
      %v1345 = vlaneseq
      %v1346 = vshrl.u32 %v1345, 7
      %v1347 = vsub.s32 0, %v1346
      %v1348 = vrot.slane %v411, %v1347
      %v1349 = vlaneseq
      %v1350 = vshrl.u32 %v1349, 7
      %v1351 = vsub.s32 0, %v1350
      %v1352 = vrot.slane %v412, %v1351
      %v1353 = vlaneseq
      %v1354 = vshrl.u32 %v1353, 7
      %v1355 = vsub.s32 0, %v1354
      %v1356 = vrot.slane %v413, %v1355
      %v1357 = vlaneseq
      %v1358 = vshrl.u32 %v1357, 7
      %v1359 = vsub.s32 0, %v1358
      %v1360 = vrot.slane %v414, %v1359
      %v1361 = vlaneseq
      %v1362 = vshrl.u32 %v1361, 7
      %v1363 = vsub.s32 0, %v1362
      %v1364 = vrot.slane %v415, %v1363
      %v1365 = vlaneseq
      %v1366 = vshrl.u32 %v1365, 7
      %v1367 = vsub.s32 0, %v1366
      %v1368 = vrot.slane %v416, %v1367
      %v1369 = vlaneseq
      %v1370 = vshrl.u32 %v1369, 7
      %v1371 = vsub.s32 0, %v1370
      %v1372 = vrot.slane %v417, %v1371
      %v1373 = vlaneseq
      %v1374 = vshrl.u32 %v1373, 7
      %v1375 = vsub.s32 0, %v1374
      %v1376 = vrot.slane %v418, %v1375
      %v1377 = vlaneseq
      %v1378 = vshrl.u32 %v1377, 7
      %v1379 = vsub.s32 0, %v1378
      %v1380 = vrot.slane %v419, %v1379
      %v1381 = vlaneseq
      %v1382 = vshrl.u32 %v1381, 7
      %v1383 = vsub.s32 0, %v1382
      %v1384 = vrot.slane %v420, %v1383
      %v1385 = vlaneseq
      %v1386 = vshrl.u32 %v1385, 7
      %v1387 = vsub.s32 0, %v1386
      %v1388 = vrot.slane %v421, %v1387
      %v1389 = vlaneseq
      %v1390 = vshrl.u32 %v1389, 7
      %v1391 = vsub.s32 0, %v1390
      %v1392 = vrot.slane %v422, %v1391
      %v1393 = vlaneseq
      %v1394 = vshrl.u32 %v1393, 7
      %v1395 = vsub.s32 0, %v1394
      %v1396 = vrot.slane %v423, %v1395
      %v1397 = vlaneseq
      %v1398 = vshrl.u32 %v1397, 7
      %v1399 = vsub.s32 0, %v1398
      %v1400 = vrot.slane %v424, %v1399
      %v1401 = vlaneseq
      %v1402 = vshrl.u32 %v1401, 7
      %v1403 = vsub.s32 0, %v1402
      %v1404 = vrot.slane %v425, %v1403
      %v1405 = vlaneseq
      %v1406 = vshrl.u32 %v1405, 7
      %v1407 = vsub.s32 0, %v1406
      %v1408 = vrot.slane %v426, %v1407
      %v1409 = vlaneseq
      %v1410 = vshrl.u32 %v1409, 7
      %v1411 = vsub.s32 0, %v1410
      %v1412 = vrot.slane %v427, %v1411
      %v1413 = vlaneseq
      %v1414 = vshrl.u32 %v1413, 7
      %v1415 = vsub.s32 0, %v1414
      %v1416 = vrot.slane %v428, %v1415
      %v1417 = vlaneseq
      %v1418 = vshrl.u32 %v1417, 7
      %v1419 = vsub.s32 0, %v1418
      %v1420 = vrot.slane %v429, %v1419
      %v1421 = vlaneseq
      %v1422 = vshrl.u32 %v1421, 7
      %v1423 = vsub.s32 0, %v1422
      %v1424 = vrot.slane %v430, %v1423
      %v1425 = vlaneseq
      %v1426 = vshrl.u32 %v1425, 7
      %v1427 = vsub.s32 0, %v1426
      %v1428 = vrot.slane %v431, %v1427
      %v1429 = vlaneseq
      %v1430 = vshrl.u32 %v1429, 7
      %v1431 = vsub.s32 0, %v1430
      %v1432 = vrot.slane %v432, %v1431
      %v1433 = vlaneseq
      %v1434 = vshrl.u32 %v1433, 7
      %v1435 = vsub.s32 0, %v1434
      %v1436 = vrot.slane %v433, %v1435
      %v1437 = vlaneseq
      %v1438 = vshrl.u32 %v1437, 7
      %v1439 = vsub.s32 0, %v1438
      %v1440 = vrot.slane %v434, %v1439
      %v1441 = vlaneseq
      %v1442 = vshrl.u32 %v1441, 7
      %v1443 = vsub.s32 0, %v1442
      %v1444 = vrot.slane %v435, %v1443
      %v1445 = vlaneseq
      %v1446 = vshrl.u32 %v1445, 7
      %v1447 = vsub.s32 0, %v1446
      %v1448 = vrot.slane %v436, %v1447
      %v1449 = vlaneseq
      %v1450 = vshrl.u32 %v1449, 7
      %v1451 = vsub.s32 0, %v1450
      %v1452 = vrot.slane %v437, %v1451
      %v1453 = vlaneseq
      %v1454 = vshrl.u32 %v1453, 7
      %v1455 = vsub.s32 0, %v1454
      %v1456 = vrot.slane %v438, %v1455
      %v1457 = vlaneseq
      %v1458 = vshrl.u32 %v1457, 7
      %v1459 = vsub.s32 0, %v1458
      %v1460 = vrot.slane %v439, %v1459
      %v1461 = vlaneseq
      %v1462 = vshrl.u32 %v1461, 7
      %v1463 = vsub.s32 0, %v1462
      %v1464 = vrot.slane %v440, %v1463
      %v1465 = vadd.f32 %v1145, %v1212
      %v1466 = vadd.f32 %v1146, %v1216
      %v1467 = vadd.f32 %v1147, %v1220
      %v1468 = vadd.f32 %v1148, %v1224
      %v1469 = vadd.f32 %v1149, %v1228
      %v1470 = vadd.f32 %v1150, %v1232
      %v1471 = vadd.f32 %v1151, %v1236
      %v1472 = vadd.f32 %v1152, %v1240
      %v1473 = vadd.f32 %v1153, %v1244
      %v1474 = vadd.f32 %v1154, %v1248
      %v1475 = vadd.f32 %v1155, %v1252
      %v1476 = vadd.f32 %v1156, %v1256
      %v1477 = vadd.f32 %v1157, %v1260
      %v1478 = vadd.f32 %v1158, %v1264
      %v1479 = vadd.f32 %v1159, %v1268
      %v1480 = vadd.f32 %v1160, %v1272
      %v1481 = vadd.f32 %v1161, %v1276
      %v1482 = vadd.f32 %v1162, %v1280
      %v1483 = vadd.f32 %v1163, %v1284
      %v1484 = vadd.f32 %v1164, %v1288
      %v1485 = vadd.f32 %v1165, %v1292
      %v1486 = vadd.f32 %v1166, %v1296
      %v1487 = vadd.f32 %v1167, %v1300
      %v1488 = vadd.f32 %v1168, %v1304
      %v1489 = vadd.f32 %v1169, %v1308
      %v1490 = vadd.f32 %v1170, %v1312
      %v1491 = vadd.f32 %v1171, %v1316
      %v1492 = vadd.f32 %v1172, %v1320
      %v1493 = vadd.f32 %v1173, %v1324
      %v1494 = vadd.f32 %v1174, %v1328
      %v1495 = vadd.f32 %v1175, %v1332
      %v1496 = vadd.f32 %v1176, %v1336
      %v1497 = vadd.f32 %v1177, %v1340
      %v1498 = vadd.f32 %v1178, %v1344
      %v1499 = vadd.f32 %v1179, %v1348
      %v1500 = vadd.f32 %v1180, %v1352
      %v1501 = vadd.f32 %v1181, %v1356
      %v1502 = vadd.f32 %v1182, %v1360
      %v1503 = vadd.f32 %v1183, %v1364
      %v1504 = vadd.f32 %v1184, %v1368
      %v1505 = vadd.f32 %v1185, %v1372
      %v1506 = vadd.f32 %v1186, %v1376
      %v1507 = vadd.f32 %v1187, %v1380
      %v1508 = vadd.f32 %v1188, %v1384
      %v1509 = vadd.f32 %v1189, %v1388
      %v1510 = vadd.f32 %v1190, %v1392
      %v1511 = vadd.f32 %v1191, %v1396
      %v1512 = vadd.f32 %v1192, %v1400
      %v1513 = vadd.f32 %v1193, %v1404
      %v1514 = vadd.f32 %v1194, %v1408
      %v1515 = vadd.f32 %v1195, %v1412
      %v1516 = vadd.f32 %v1196, %v1416
      %v1517 = vadd.f32 %v1197, %v1420
      %v1518 = vadd.f32 %v1198, %v1424
      %v1519 = vadd.f32 %v1199, %v1428
      %v1520 = vadd.f32 %v1200, %v1432
      %v1521 = vadd.f32 %v1201, %v1436
      %v1522 = vadd.f32 %v1202, %v1440
      %v1523 = vadd.f32 %v1203, %v1444
      %v1524 = vadd.f32 %v1204, %v1448
      %v1525 = vadd.f32 %v1205, %v1452
      %v1526 = vadd.f32 %v1206, %v1456
      %v1527 = vadd.f32 %v1207, %v1460
      %v1528 = vadd.f32 %v1208, %v1464
      %v1529 = vmax.f32 %v1465, 0.0
      %v1530 = vmax.f32 %v1466, 0.0
      %v1531 = vmax.f32 %v1467, 0.0
      %v1532 = vmax.f32 %v1468, 0.0
      %v1533 = vmax.f32 %v1469, 0.0
      %v1534 = vmax.f32 %v1470, 0.0
      %v1535 = vmax.f32 %v1471, 0.0
      %v1536 = vmax.f32 %v1472, 0.0
      %v1537 = vmax.f32 %v1473, 0.0
      %v1538 = vmax.f32 %v1474, 0.0
      %v1539 = vmax.f32 %v1475, 0.0
      %v1540 = vmax.f32 %v1476, 0.0
      %v1541 = vmax.f32 %v1477, 0.0
      %v1542 = vmax.f32 %v1478, 0.0
      %v1543 = vmax.f32 %v1479, 0.0
      %v1544 = vmax.f32 %v1480, 0.0
      %v1545 = vmax.f32 %v1481, 0.0
      %v1546 = vmax.f32 %v1482, 0.0
      %v1547 = vmax.f32 %v1483, 0.0
      %v1548 = vmax.f32 %v1484, 0.0
      %v1549 = vmax.f32 %v1485, 0.0
      %v1550 = vmax.f32 %v1486, 0.0
      %v1551 = vmax.f32 %v1487, 0.0
      %v1552 = vmax.f32 %v1488, 0.0
      %v1553 = vmax.f32 %v1489, 0.0
      %v1554 = vmax.f32 %v1490, 0.0
      %v1555 = vmax.f32 %v1491, 0.0
      %v1556 = vmax.f32 %v1492, 0.0
      %v1557 = vmax.f32 %v1493, 0.0
      %v1558 = vmax.f32 %v1494, 0.0
      %v1559 = vmax.f32 %v1495, 0.0
      %v1560 = vmax.f32 %v1496, 0.0
      %v1561 = vmax.f32 %v1497, 0.0
      %v1562 = vmax.f32 %v1498, 0.0
      %v1563 = vmax.f32 %v1499, 0.0
      %v1564 = vmax.f32 %v1500, 0.0
      %v1565 = vmax.f32 %v1501, 0.0
      %v1566 = vmax.f32 %v1502, 0.0
      %v1567 = vmax.f32 %v1503, 0.0
      %v1568 = vmax.f32 %v1504, 0.0
      %v1569 = vmax.f32 %v1505, 0.0
      %v1570 = vmax.f32 %v1506, 0.0
      %v1571 = vmax.f32 %v1507, 0.0
      %v1572 = vmax.f32 %v1508, 0.0
      %v1573 = vmax.f32 %v1509, 0.0
      %v1574 = vmax.f32 %v1510, 0.0
      %v1575 = vmax.f32 %v1511, 0.0
      %v1576 = vmax.f32 %v1512, 0.0
      %v1577 = vmax.f32 %v1513, 0.0
      %v1578 = vmax.f32 %v1514, 0.0
      %v1579 = vmax.f32 %v1515, 0.0
      %v1580 = vmax.f32 %v1516, 0.0
      %v1581 = vmax.f32 %v1517, 0.0
      %v1582 = vmax.f32 %v1518, 0.0
      %v1583 = vmax.f32 %v1519, 0.0
      %v1584 = vmax.f32 %v1520, 0.0
      %v1585 = vmax.f32 %v1521, 0.0
      %v1586 = vmax.f32 %v1522, 0.0
      %v1587 = vmax.f32 %v1523, 0.0
      %v1588 = vmax.f32 %v1524, 0.0
      %v1589 = vmax.f32 %v1525, 0.0
      %v1590 = vmax.f32 %v1526, 0.0
      %v1591 = vmax.f32 %v1527, 0.0
      %v1592 = vmax.f32 %v1528, 0.0
      %v1593 = vld [vmem:[%s231] sm:$0xf]
      %v1594 = vld [vmem:[%s231 + $0x4] sm:$0xf]
      %v1595 = vld [vmem:[%s231 + $0x8] sm:$0xf]
      %v1596 = vld [vmem:[%s231 + $0xc] sm:$0xf]
      %v1597 = vld [vmem:[%s231 + $0x10] sm:$0xf]
      %v1598 = vld [vmem:[%s231 + $0x14] sm:$0xf]
      %v1599 = vld [vmem:[%s231 + $0x18] sm:$0xf]
      %v1600 = vld [vmem:[%s231 + $0x1c] sm:$0xf]
      %v1601 = vld [vmem:[%s231 + $0x20] sm:$0xf]
      %v1602 = vld [vmem:[%s231 + $0x24] sm:$0xf]
      %v1603 = vld [vmem:[%s231 + $0x28] sm:$0xf]
      %v1604 = vld [vmem:[%s231 + $0x2c] sm:$0xf]
      %v1605 = vld [vmem:[%s231 + $0x30] sm:$0xf]
      %v1606 = vld [vmem:[%s231 + $0x34] sm:$0xf]
      %v1607 = vld [vmem:[%s231 + $0x38] sm:$0xf]
      %v1608 = vld [vmem:[%s231 + $0x3c] sm:$0xf]
      %v1609 = vld [vmem:[%s231 + $0x40] sm:$0xf]
      %v1610 = vld [vmem:[%s231 + $0x44] sm:$0xf]
      %v1611 = vld [vmem:[%s231 + $0x48] sm:$0xf]
      %v1612 = vld [vmem:[%s231 + $0x4c] sm:$0xf]
      %v1613 = vld [vmem:[%s231 + $0x50] sm:$0xf]
      %v1614 = vld [vmem:[%s231 + $0x54] sm:$0xf]
      %v1615 = vld [vmem:[%s231 + $0x58] sm:$0xf]
      %v1616 = vld [vmem:[%s231 + $0x5c] sm:$0xf]
      %v1617 = vld [vmem:[%s231 + $0x60] sm:$0xf]
      %v1618 = vld [vmem:[%s231 + $0x64] sm:$0xf]
      %v1619 = vld [vmem:[%s231 + $0x68] sm:$0xf]
      %v1620 = vld [vmem:[%s231 + $0x6c] sm:$0xf]
      %v1621 = vld [vmem:[%s231 + $0x70] sm:$0xf]
      %v1622 = vld [vmem:[%s231 + $0x74] sm:$0xf]
      %v1623 = vld [vmem:[%s231 + $0x78] sm:$0xf]
      %v1624 = vld [vmem:[%s231 + $0x7c] sm:$0xf]
      %v1625 = vld [vmem:[%s231 + $0x80] sm:$0xf]
      %v1626 = vld [vmem:[%s231 + $0x84] sm:$0xf]
      %v1627 = vld [vmem:[%s231 + $0x88] sm:$0xf]
      %v1628 = vld [vmem:[%s231 + $0x8c] sm:$0xf]
      %v1629 = vld [vmem:[%s231 + $0x90] sm:$0xf]
      %v1630 = vld [vmem:[%s231 + $0x94] sm:$0xf]
      %v1631 = vld [vmem:[%s231 + $0x98] sm:$0xf]
      %v1632 = vld [vmem:[%s231 + $0x9c] sm:$0xf]
      %v1633 = vld [vmem:[%s231 + $0xa0] sm:$0xf]
      %v1634 = vld [vmem:[%s231 + $0xa4] sm:$0xf]
      %v1635 = vld [vmem:[%s231 + $0xa8] sm:$0xf]
      %v1636 = vld [vmem:[%s231 + $0xac] sm:$0xf]
      %v1637 = vld [vmem:[%s231 + $0xb0] sm:$0xf]
      %v1638 = vld [vmem:[%s231 + $0xb4] sm:$0xf]
      %v1639 = vld [vmem:[%s231 + $0xb8] sm:$0xf]
      %v1640 = vld [vmem:[%s231 + $0xbc] sm:$0xf]
      %v1641 = vld [vmem:[%s231 + $0xc0] sm:$0xf]
      %v1642 = vld [vmem:[%s231 + $0xc4] sm:$0xf]
      %v1643 = vld [vmem:[%s231 + $0xc8] sm:$0xf]
      %v1644 = vld [vmem:[%s231 + $0xcc] sm:$0xf]
      %v1645 = vld [vmem:[%s231 + $0xd0] sm:$0xf]
      %v1646 = vld [vmem:[%s231 + $0xd4] sm:$0xf]
      %v1647 = vld [vmem:[%s231 + $0xd8] sm:$0xf]
      %v1648 = vld [vmem:[%s231 + $0xdc] sm:$0xf]
      %v1649 = vld [vmem:[%s231 + $0xe0] sm:$0xf]
      %v1650 = vld [vmem:[%s231 + $0xe4] sm:$0xf]
      %v1651 = vld [vmem:[%s231 + $0xe8] sm:$0xf]
      %v1652 = vld [vmem:[%s231 + $0xec] sm:$0xf]
      %v1653 = vld [vmem:[%s231 + $0xf0] sm:$0xf]
      %v1654 = vld [vmem:[%s231 + $0xf4] sm:$0xf]
      %v1655 = vld [vmem:[%s231 + $0xf8] sm:$0xf]
      %v1656 = vld [vmem:[%s231 + $0xfc] sm:$0xf]
      %v1657 = vld [vmem:[%s231 + $0x100] sm:$0xf]
      %v1658 = vld [vmem:[%s231 + $0x104] sm:$0xf]
      %v1659 = vld [vmem:[%s231 + $0x108] sm:$0xf]
      %v1660 = vld [vmem:[%s231 + $0x10c] sm:$0xf]
      %v1661 = vld [vmem:[%s231 + $0x110] sm:$0xf]
      %v1662 = vld [vmem:[%s231 + $0x114] sm:$0xf]
      %v1663 = vld [vmem:[%s231 + $0x118] sm:$0xf]
      %v1664 = vld [vmem:[%s231 + $0x11c] sm:$0xf]
      %v1665 = vld [vmem:[%s231 + $0x120] sm:$0xf]
      %v1666 = vld [vmem:[%s231 + $0x124] sm:$0xf]
      %v1667 = vld [vmem:[%s231 + $0x128] sm:$0xf]
      %v1668 = vld [vmem:[%s231 + $0x12c] sm:$0xf]
      %v1669 = vld [vmem:[%s231 + $0x130] sm:$0xf]
      %v1670 = vld [vmem:[%s231 + $0x134] sm:$0xf]
      %v1671 = vld [vmem:[%s231 + $0x138] sm:$0xf]
      %v1672 = vld [vmem:[%s231 + $0x13c] sm:$0xf]
      %v1673 = vld [vmem:[%s231 + $0x140] sm:$0xf]
      %v1674 = vld [vmem:[%s231 + $0x144] sm:$0xf]
      %v1675 = vld [vmem:[%s231 + $0x148] sm:$0xf]
      %v1676 = vld [vmem:[%s231 + $0x14c] sm:$0xf]
      %v1677 = vld [vmem:[%s231 + $0x150] sm:$0xf]
      %v1678 = vld [vmem:[%s231 + $0x154] sm:$0xf]
      %v1679 = vld [vmem:[%s231 + $0x158] sm:$0xf]
      %v1680 = vld [vmem:[%s231 + $0x15c] sm:$0xf]
      %v1681 = vld [vmem:[%s231 + $0x160] sm:$0xf]
      %v1682 = vld [vmem:[%s231 + $0x164] sm:$0xf]
      %v1683 = vld [vmem:[%s231 + $0x168] sm:$0xf]
      %v1684 = vld [vmem:[%s231 + $0x16c] sm:$0xf]
      %v1685 = vld [vmem:[%s231 + $0x170] sm:$0xf]
      %v1686 = vld [vmem:[%s231 + $0x174] sm:$0xf]
      %v1687 = vld [vmem:[%s231 + $0x178] sm:$0xf]
      %v1688 = vld [vmem:[%s231 + $0x17c] sm:$0xf]
      %v1689 = vld [vmem:[%s231 + $0x180] sm:$0xf]
      %v1690 = vld [vmem:[%s231 + $0x184] sm:$0xf]
      %v1691 = vld [vmem:[%s231 + $0x188] sm:$0xf]
      %v1692 = vld [vmem:[%s231 + $0x18c] sm:$0xf]
      %v1693 = vld [vmem:[%s231 + $0x190] sm:$0xf]
      %v1694 = vld [vmem:[%s231 + $0x194] sm:$0xf]
      %v1695 = vld [vmem:[%s231 + $0x198] sm:$0xf]
      %v1696 = vld [vmem:[%s231 + $0x19c] sm:$0xf]
      %v1697 = vld [vmem:[%s231 + $0x1a0] sm:$0xf]
      %v1698 = vld [vmem:[%s231 + $0x1a4] sm:$0xf]
      %v1699 = vld [vmem:[%s231 + $0x1a8] sm:$0xf]
      %v1700 = vld [vmem:[%s231 + $0x1ac] sm:$0xf]
      %v1701 = vld [vmem:[%s231 + $0x1b0] sm:$0xf]
      %v1702 = vld [vmem:[%s231 + $0x1b4] sm:$0xf]
      %v1703 = vld [vmem:[%s231 + $0x1b8] sm:$0xf]
      %v1704 = vld [vmem:[%s231 + $0x1bc] sm:$0xf]
      %v1705 = vld [vmem:[%s231 + $0x1c0] sm:$0xf]
      %v1706 = vld [vmem:[%s231 + $0x1c4] sm:$0xf]
      %v1707 = vld [vmem:[%s231 + $0x1c8] sm:$0xf]
      %v1708 = vld [vmem:[%s231 + $0x1cc] sm:$0xf]
      %v1709 = vld [vmem:[%s231 + $0x1d0] sm:$0xf]
      %v1710 = vld [vmem:[%s231 + $0x1d4] sm:$0xf]
      %v1711 = vld [vmem:[%s231 + $0x1d8] sm:$0xf]
      %v1712 = vld [vmem:[%s231 + $0x1dc] sm:$0xf]
      %v1713 = vld [vmem:[%s231 + $0x1e0] sm:$0xf]
      %v1714 = vld [vmem:[%s231 + $0x1e4] sm:$0xf]
      %v1715 = vld [vmem:[%s231 + $0x1e8] sm:$0xf]
      %v1716 = vld [vmem:[%s231 + $0x1ec] sm:$0xf]
      %v1717 = vld [vmem:[%s231 + $0x1f0] sm:$0xf]
      %v1718 = vld [vmem:[%s231 + $0x1f4] sm:$0xf]
      %v1719 = vld [vmem:[%s231 + $0x1f8] sm:$0xf]
      %v1720 = vld [vmem:[%s231 + $0x1fc] sm:$0xf]
      %v1721 = vld [vmem:[%s231 + $0x200] sm:$0xf]
      %v1722 = vld [vmem:[%s231 + $0x204] sm:$0xf]
      %v1723 = vld [vmem:[%s231 + $0x208] sm:$0xf]
      %v1724 = vld [vmem:[%s231 + $0x20c] sm:$0xf]
      %v1725 = vld [vmem:[%s231 + $0x210] sm:$0xf]
      %v1726 = vld [vmem:[%s231 + $0x214] sm:$0xf]
      %v1727 = vld [vmem:[%s231 + $0x218] sm:$0xf]
      %v1728 = vld [vmem:[%s231 + $0x21c] sm:$0xf]
      %v1729 = vld [vmem:[%s231 + $0x220] sm:$0xf]
      %v1730 = vld [vmem:[%s231 + $0x224] sm:$0xf]
      %v1731 = vld [vmem:[%s231 + $0x228] sm:$0xf]
      %v1732 = vld [vmem:[%s231 + $0x22c] sm:$0xf]
      %v1733 = vld [vmem:[%s231 + $0x230] sm:$0xf]
      %v1734 = vld [vmem:[%s231 + $0x234] sm:$0xf]
      %v1735 = vld [vmem:[%s231 + $0x238] sm:$0xf]
      %v1736 = vld [vmem:[%s231 + $0x23c] sm:$0xf]
      %v1737 = vld [vmem:[%s231 + $0x240] sm:$0xf]
      %v1738 = vld [vmem:[%s231 + $0x244] sm:$0xf]
      %v1739 = vld [vmem:[%s231 + $0x248] sm:$0xf]
      %v1740 = vld [vmem:[%s231 + $0x24c] sm:$0xf]
      %v1741 = vld [vmem:[%s231 + $0x250] sm:$0xf]
      %v1742 = vld [vmem:[%s231 + $0x254] sm:$0xf]
      %v1743 = vld [vmem:[%s231 + $0x258] sm:$0xf]
      %v1744 = vld [vmem:[%s231 + $0x25c] sm:$0xf]
      %v1745 = vld [vmem:[%s231 + $0x260] sm:$0xf]
      %v1746 = vld [vmem:[%s231 + $0x264] sm:$0xf]
      %v1747 = vld [vmem:[%s231 + $0x268] sm:$0xf]
      %v1748 = vld [vmem:[%s231 + $0x26c] sm:$0xf]
      %v1749 = vld [vmem:[%s231 + $0x270] sm:$0xf]
      %v1750 = vld [vmem:[%s231 + $0x274] sm:$0xf]
      %v1751 = vld [vmem:[%s231 + $0x278] sm:$0xf]
      %v1752 = vld [vmem:[%s231 + $0x27c] sm:$0xf]
      %v1753 = vld [vmem:[%s231 + $0x280] sm:$0xf]
      %v1754 = vld [vmem:[%s231 + $0x284] sm:$0xf]
      %v1755 = vld [vmem:[%s231 + $0x288] sm:$0xf]
      %v1756 = vld [vmem:[%s231 + $0x28c] sm:$0xf]
      %v1757 = vld [vmem:[%s231 + $0x290] sm:$0xf]
      %v1758 = vld [vmem:[%s231 + $0x294] sm:$0xf]
      %v1759 = vld [vmem:[%s231 + $0x298] sm:$0xf]
      %v1760 = vld [vmem:[%s231 + $0x29c] sm:$0xf]
      %v1761 = vld [vmem:[%s231 + $0x2a0] sm:$0xf]
      %v1762 = vld [vmem:[%s231 + $0x2a4] sm:$0xf]
      %v1763 = vld [vmem:[%s231 + $0x2a8] sm:$0xf]
      %v1764 = vld [vmem:[%s231 + $0x2ac] sm:$0xf]
      %v1765 = vld [vmem:[%s231 + $0x2b0] sm:$0xf]
      %v1766 = vld [vmem:[%s231 + $0x2b4] sm:$0xf]
      %v1767 = vld [vmem:[%s231 + $0x2b8] sm:$0xf]
      %v1768 = vld [vmem:[%s231 + $0x2bc] sm:$0xf]
      %v1769 = vld [vmem:[%s231 + $0x2c0] sm:$0xf]
      %v1770 = vld [vmem:[%s231 + $0x2c4] sm:$0xf]
      %v1771 = vld [vmem:[%s231 + $0x2c8] sm:$0xf]
      %v1772 = vld [vmem:[%s231 + $0x2cc] sm:$0xf]
      %v1773 = vld [vmem:[%s231 + $0x2d0] sm:$0xf]
      %v1774 = vld [vmem:[%s231 + $0x2d4] sm:$0xf]
      %v1775 = vld [vmem:[%s231 + $0x2d8] sm:$0xf]
      %v1776 = vld [vmem:[%s231 + $0x2dc] sm:$0xf]
      %v1777 = vld [vmem:[%s231 + $0x2e0] sm:$0xf]
      %v1778 = vld [vmem:[%s231 + $0x2e4] sm:$0xf]
      %v1779 = vld [vmem:[%s231 + $0x2e8] sm:$0xf]
      %v1780 = vld [vmem:[%s231 + $0x2ec] sm:$0xf]
      %v1781 = vld [vmem:[%s231 + $0x2f0] sm:$0xf]
      %v1782 = vld [vmem:[%s231 + $0x2f4] sm:$0xf]
      %v1783 = vld [vmem:[%s231 + $0x2f8] sm:$0xf]
      %v1784 = vld [vmem:[%s231 + $0x2fc] sm:$0xf]
      %v1785 = vld [vmem:[%s231 + $0x300] sm:$0xf]
      %v1786 = vld [vmem:[%s231 + $0x304] sm:$0xf]
      %v1787 = vld [vmem:[%s231 + $0x308] sm:$0xf]
      %v1788 = vld [vmem:[%s231 + $0x30c] sm:$0xf]
      %v1789 = vld [vmem:[%s231 + $0x310] sm:$0xf]
      %v1790 = vld [vmem:[%s231 + $0x314] sm:$0xf]
      %v1791 = vld [vmem:[%s231 + $0x318] sm:$0xf]
      %v1792 = vld [vmem:[%s231 + $0x31c] sm:$0xf]
      %v1793 = vld [vmem:[%s231 + $0x320] sm:$0xf]
      %v1794 = vld [vmem:[%s231 + $0x324] sm:$0xf]
      %v1795 = vld [vmem:[%s231 + $0x328] sm:$0xf]
      %v1796 = vld [vmem:[%s231 + $0x32c] sm:$0xf]
      %v1797 = vld [vmem:[%s231 + $0x330] sm:$0xf]
      %v1798 = vld [vmem:[%s231 + $0x334] sm:$0xf]
      %v1799 = vld [vmem:[%s231 + $0x338] sm:$0xf]
      %v1800 = vld [vmem:[%s231 + $0x33c] sm:$0xf]
      %v1801 = vld [vmem:[%s231 + $0x340] sm:$0xf]
      %v1802 = vld [vmem:[%s231 + $0x344] sm:$0xf]
      %v1803 = vld [vmem:[%s231 + $0x348] sm:$0xf]
      %v1804 = vld [vmem:[%s231 + $0x34c] sm:$0xf]
      %v1805 = vld [vmem:[%s231 + $0x350] sm:$0xf]
      %v1806 = vld [vmem:[%s231 + $0x354] sm:$0xf]
      %v1807 = vld [vmem:[%s231 + $0x358] sm:$0xf]
      %v1808 = vld [vmem:[%s231 + $0x35c] sm:$0xf]
      %v1809 = vld [vmem:[%s231 + $0x360] sm:$0xf]
      %v1810 = vld [vmem:[%s231 + $0x364] sm:$0xf]
      %v1811 = vld [vmem:[%s231 + $0x368] sm:$0xf]
      %v1812 = vld [vmem:[%s231 + $0x36c] sm:$0xf]
      %v1813 = vld [vmem:[%s231 + $0x370] sm:$0xf]
      %v1814 = vld [vmem:[%s231 + $0x374] sm:$0xf]
      %v1815 = vld [vmem:[%s231 + $0x378] sm:$0xf]
      %v1816 = vld [vmem:[%s231 + $0x37c] sm:$0xf]
      %v1817 = vld [vmem:[%s231 + $0x380] sm:$0xf]
      %v1818 = vld [vmem:[%s231 + $0x384] sm:$0xf]
      %v1819 = vld [vmem:[%s231 + $0x388] sm:$0xf]
      %v1820 = vld [vmem:[%s231 + $0x38c] sm:$0xf]
      %v1821 = vld [vmem:[%s231 + $0x390] sm:$0xf]
      %v1822 = vld [vmem:[%s231 + $0x394] sm:$0xf]
      %v1823 = vld [vmem:[%s231 + $0x398] sm:$0xf]
      %v1824 = vld [vmem:[%s231 + $0x39c] sm:$0xf]
      %v1825 = vld [vmem:[%s231 + $0x3a0] sm:$0xf]
      %v1826 = vld [vmem:[%s231 + $0x3a4] sm:$0xf]
      %v1827 = vld [vmem:[%s231 + $0x3a8] sm:$0xf]
      %v1828 = vld [vmem:[%s231 + $0x3ac] sm:$0xf]
      %v1829 = vld [vmem:[%s231 + $0x3b0] sm:$0xf]
      %v1830 = vld [vmem:[%s231 + $0x3b4] sm:$0xf]
      %v1831 = vld [vmem:[%s231 + $0x3b8] sm:$0xf]
      %v1832 = vld [vmem:[%s231 + $0x3bc] sm:$0xf]
      %v1833 = vld [vmem:[%s231 + $0x3c0] sm:$0xf]
      %v1834 = vld [vmem:[%s231 + $0x3c4] sm:$0xf]
      %v1835 = vld [vmem:[%s231 + $0x3c8] sm:$0xf]
      %v1836 = vld [vmem:[%s231 + $0x3cc] sm:$0xf]
      %v1837 = vld [vmem:[%s231 + $0x3d0] sm:$0xf]
      %v1838 = vld [vmem:[%s231 + $0x3d4] sm:$0xf]
      %v1839 = vld [vmem:[%s231 + $0x3d8] sm:$0xf]
      %v1840 = vld [vmem:[%s231 + $0x3dc] sm:$0xf]
      %v1841 = vld [vmem:[%s231 + $0x3e0] sm:$0xf]
      %v1842 = vld [vmem:[%s231 + $0x3e4] sm:$0xf]
      %v1843 = vld [vmem:[%s231 + $0x3e8] sm:$0xf]
      %v1844 = vld [vmem:[%s231 + $0x3ec] sm:$0xf]
      %v1845 = vld [vmem:[%s231 + $0x3f0] sm:$0xf]
      %v1846 = vld [vmem:[%s231 + $0x3f4] sm:$0xf]
      %v1847 = vld [vmem:[%s231 + $0x3f8] sm:$0xf]
      %v1848 = vld [vmem:[%s231 + $0x3fc] sm:$0xf]
      %v1849 = vld [vmem:[%s231 + $0x400] sm:$0xf]
      %v1850 = vld [vmem:[%s231 + $0x404] sm:$0xf]
      %v1851 = vld [vmem:[%s231 + $0x408] sm:$0xf]
      %v1852 = vld [vmem:[%s231 + $0x40c] sm:$0xf]
      %v1853 = vld [vmem:[%s231 + $0x410] sm:$0xf]
      %v1854 = vld [vmem:[%s231 + $0x414] sm:$0xf]
      %v1855 = vld [vmem:[%s231 + $0x418] sm:$0xf]
      %v1856 = vld [vmem:[%s231 + $0x41c] sm:$0xf]
      %v1857 = vld [vmem:[%s231 + $0x420] sm:$0xf]
      %v1858 = vld [vmem:[%s231 + $0x424] sm:$0xf]
      %v1859 = vld [vmem:[%s231 + $0x428] sm:$0xf]
      %v1860 = vld [vmem:[%s231 + $0x42c] sm:$0xf]
      %v1861 = vld [vmem:[%s231 + $0x430] sm:$0xf]
      %v1862 = vld [vmem:[%s231 + $0x434] sm:$0xf]
      %v1863 = vld [vmem:[%s231 + $0x438] sm:$0xf]
      %v1864 = vld [vmem:[%s231 + $0x43c] sm:$0xf]
      %v1865 = vld [vmem:[%s231 + $0x440] sm:$0xf]
      %v1866 = vld [vmem:[%s231 + $0x444] sm:$0xf]
      %v1867 = vld [vmem:[%s231 + $0x448] sm:$0xf]
      %v1868 = vld [vmem:[%s231 + $0x44c] sm:$0xf]
      %v1869 = vld [vmem:[%s231 + $0x450] sm:$0xf]
      %v1870 = vld [vmem:[%s231 + $0x454] sm:$0xf]
      %v1871 = vld [vmem:[%s231 + $0x458] sm:$0xf]
      %v1872 = vld [vmem:[%s231 + $0x45c] sm:$0xf]
      %v1873 = vld [vmem:[%s231 + $0x460] sm:$0xf]
      %v1874 = vld [vmem:[%s231 + $0x464] sm:$0xf]
      %v1875 = vld [vmem:[%s231 + $0x468] sm:$0xf]
      %v1876 = vld [vmem:[%s231 + $0x46c] sm:$0xf]
      %v1877 = vld [vmem:[%s231 + $0x470] sm:$0xf]
      %v1878 = vld [vmem:[%s231 + $0x474] sm:$0xf]
      %v1879 = vld [vmem:[%s231 + $0x478] sm:$0xf]
      %v1880 = vld [vmem:[%s231 + $0x47c] sm:$0xf]
      %v1881 = vld [vmem:[%s231 + $0x480] sm:$0xf]
      %v1882 = vld [vmem:[%s231 + $0x484] sm:$0xf]
      %v1883 = vld [vmem:[%s231 + $0x488] sm:$0xf]
      %v1884 = vld [vmem:[%s231 + $0x48c] sm:$0xf]
      %v1885 = vld [vmem:[%s231 + $0x490] sm:$0xf]
      %v1886 = vld [vmem:[%s231 + $0x494] sm:$0xf]
      %v1887 = vld [vmem:[%s231 + $0x498] sm:$0xf]
      %v1888 = vld [vmem:[%s231 + $0x49c] sm:$0xf]
      %v1889 = vld [vmem:[%s231 + $0x4a0] sm:$0xf]
      %v1890 = vld [vmem:[%s231 + $0x4a4] sm:$0xf]
      %v1891 = vld [vmem:[%s231 + $0x4a8] sm:$0xf]
      %v1892 = vld [vmem:[%s231 + $0x4ac] sm:$0xf]
      %v1893 = vld [vmem:[%s231 + $0x4b0] sm:$0xf]
      %v1894 = vld [vmem:[%s231 + $0x4b4] sm:$0xf]
      %v1895 = vld [vmem:[%s231 + $0x4b8] sm:$0xf]
      %v1896 = vld [vmem:[%s231 + $0x4bc] sm:$0xf]
      %v1897 = vld [vmem:[%s231 + $0x4c0] sm:$0xf]
      %v1898 = vld [vmem:[%s231 + $0x4c4] sm:$0xf]
      %v1899 = vld [vmem:[%s231 + $0x4c8] sm:$0xf]
      %v1900 = vld [vmem:[%s231 + $0x4cc] sm:$0xf]
      %v1901 = vld [vmem:[%s231 + $0x4d0] sm:$0xf]
      %v1902 = vld [vmem:[%s231 + $0x4d4] sm:$0xf]
      %v1903 = vld [vmem:[%s231 + $0x4d8] sm:$0xf]
      %v1904 = vld [vmem:[%s231 + $0x4dc] sm:$0xf]
      %v1905 = vld [vmem:[%s231 + $0x4e0] sm:$0xf]
      %v1906 = vld [vmem:[%s231 + $0x4e4] sm:$0xf]
      %v1907 = vld [vmem:[%s231 + $0x4e8] sm:$0xf]
      %v1908 = vld [vmem:[%s231 + $0x4ec] sm:$0xf]
      %v1909 = vld [vmem:[%s231 + $0x4f0] sm:$0xf]
      %v1910 = vld [vmem:[%s231 + $0x4f4] sm:$0xf]
      %v1911 = vld [vmem:[%s231 + $0x4f8] sm:$0xf]
      %v1912 = vld [vmem:[%s231 + $0x4fc] sm:$0xf]
      %v1913 = vld [vmem:[%s231 + $0x500] sm:$0xf]
      %v1914 = vld [vmem:[%s231 + $0x504] sm:$0xf]
      %v1915 = vld [vmem:[%s231 + $0x508] sm:$0xf]
      %v1916 = vld [vmem:[%s231 + $0x50c] sm:$0xf]
      %v1917 = vld [vmem:[%s231 + $0x510] sm:$0xf]
      %v1918 = vld [vmem:[%s231 + $0x514] sm:$0xf]
      %v1919 = vld [vmem:[%s231 + $0x518] sm:$0xf]
      %v1920 = vld [vmem:[%s231 + $0x51c] sm:$0xf]
      %v1921 = vld [vmem:[%s231 + $0x520] sm:$0xf]
      %v1922 = vld [vmem:[%s231 + $0x524] sm:$0xf]
      %v1923 = vld [vmem:[%s231 + $0x528] sm:$0xf]
      %v1924 = vld [vmem:[%s231 + $0x52c] sm:$0xf]
      %v1925 = vld [vmem:[%s231 + $0x530] sm:$0xf]
      %v1926 = vld [vmem:[%s231 + $0x534] sm:$0xf]
      %v1927 = vld [vmem:[%s231 + $0x538] sm:$0xf]
      %v1928 = vld [vmem:[%s231 + $0x53c] sm:$0xf]
      %v1929 = vld [vmem:[%s231 + $0x540] sm:$0xf]
      %v1930 = vld [vmem:[%s231 + $0x544] sm:$0xf]
      %v1931 = vld [vmem:[%s231 + $0x548] sm:$0xf]
      %v1932 = vld [vmem:[%s231 + $0x54c] sm:$0xf]
      %v1933 = vld [vmem:[%s231 + $0x550] sm:$0xf]
      %v1934 = vld [vmem:[%s231 + $0x554] sm:$0xf]
      %v1935 = vld [vmem:[%s231 + $0x558] sm:$0xf]
      %v1936 = vld [vmem:[%s231 + $0x55c] sm:$0xf]
      %v1937 = vld [vmem:[%s231 + $0x560] sm:$0xf]
      %v1938 = vld [vmem:[%s231 + $0x564] sm:$0xf]
      %v1939 = vld [vmem:[%s231 + $0x568] sm:$0xf]
      %v1940 = vld [vmem:[%s231 + $0x56c] sm:$0xf]
      %v1941 = vld [vmem:[%s231 + $0x570] sm:$0xf]
      %v1942 = vld [vmem:[%s231 + $0x574] sm:$0xf]
      %v1943 = vld [vmem:[%s231 + $0x578] sm:$0xf]
      %v1944 = vld [vmem:[%s231 + $0x57c] sm:$0xf]
      %v1945 = vld [vmem:[%s231 + $0x580] sm:$0xf]
      %v1946 = vld [vmem:[%s231 + $0x584] sm:$0xf]
      %v1947 = vld [vmem:[%s231 + $0x588] sm:$0xf]
      %v1948 = vld [vmem:[%s231 + $0x58c] sm:$0xf]
      %v1949 = vld [vmem:[%s231 + $0x590] sm:$0xf]
      %v1950 = vld [vmem:[%s231 + $0x594] sm:$0xf]
      %v1951 = vld [vmem:[%s231 + $0x598] sm:$0xf]
      %v1952 = vld [vmem:[%s231 + $0x59c] sm:$0xf]
      %v1953 = vld [vmem:[%s231 + $0x5a0] sm:$0xf]
      %v1954 = vld [vmem:[%s231 + $0x5a4] sm:$0xf]
      %v1955 = vld [vmem:[%s231 + $0x5a8] sm:$0xf]
      %v1956 = vld [vmem:[%s231 + $0x5ac] sm:$0xf]
      %v1957 = vld [vmem:[%s231 + $0x5b0] sm:$0xf]
      %v1958 = vld [vmem:[%s231 + $0x5b4] sm:$0xf]
      %v1959 = vld [vmem:[%s231 + $0x5b8] sm:$0xf]
      %v1960 = vld [vmem:[%s231 + $0x5bc] sm:$0xf]
      %v1961 = vld [vmem:[%s231 + $0x5c0] sm:$0xf]
      %v1962 = vld [vmem:[%s231 + $0x5c4] sm:$0xf]
      %v1963 = vld [vmem:[%s231 + $0x5c8] sm:$0xf]
      %v1964 = vld [vmem:[%s231 + $0x5cc] sm:$0xf]
      %v1965 = vld [vmem:[%s231 + $0x5d0] sm:$0xf]
      %v1966 = vld [vmem:[%s231 + $0x5d4] sm:$0xf]
      %v1967 = vld [vmem:[%s231 + $0x5d8] sm:$0xf]
      %v1968 = vld [vmem:[%s231 + $0x5dc] sm:$0xf]
      %v1969 = vld [vmem:[%s231 + $0x5e0] sm:$0xf]
      %v1970 = vld [vmem:[%s231 + $0x5e4] sm:$0xf]
      %v1971 = vld [vmem:[%s231 + $0x5e8] sm:$0xf]
      %v1972 = vld [vmem:[%s231 + $0x5ec] sm:$0xf]
      %v1973 = vld [vmem:[%s231 + $0x5f0] sm:$0xf]
      %v1974 = vld [vmem:[%s231 + $0x5f4] sm:$0xf]
      %v1975 = vld [vmem:[%s231 + $0x5f8] sm:$0xf]
      %v1976 = vld [vmem:[%s231 + $0x5fc] sm:$0xf]
      %v1977 = vld [vmem:[%s231 + $0x600] sm:$0xf]
      %v1978 = vld [vmem:[%s231 + $0x604] sm:$0xf]
      %v1979 = vld [vmem:[%s231 + $0x608] sm:$0xf]
      %v1980 = vld [vmem:[%s231 + $0x60c] sm:$0xf]
      %v1981 = vld [vmem:[%s231 + $0x610] sm:$0xf]
      %v1982 = vld [vmem:[%s231 + $0x614] sm:$0xf]
      %v1983 = vld [vmem:[%s231 + $0x618] sm:$0xf]
      %v1984 = vld [vmem:[%s231 + $0x61c] sm:$0xf]
      %v1985 = vld [vmem:[%s231 + $0x620] sm:$0xf]
      %v1986 = vld [vmem:[%s231 + $0x624] sm:$0xf]
      %v1987 = vld [vmem:[%s231 + $0x628] sm:$0xf]
      %v1988 = vld [vmem:[%s231 + $0x62c] sm:$0xf]
      %v1989 = vld [vmem:[%s231 + $0x630] sm:$0xf]
      %v1990 = vld [vmem:[%s231 + $0x634] sm:$0xf]
      %v1991 = vld [vmem:[%s231 + $0x638] sm:$0xf]
      %v1992 = vld [vmem:[%s231 + $0x63c] sm:$0xf]
      %v1993 = vld [vmem:[%s231 + $0x640] sm:$0xf]
      %v1994 = vld [vmem:[%s231 + $0x644] sm:$0xf]
      %v1995 = vld [vmem:[%s231 + $0x648] sm:$0xf]
      %v1996 = vld [vmem:[%s231 + $0x64c] sm:$0xf]
      %v1997 = vld [vmem:[%s231 + $0x650] sm:$0xf]
      %v1998 = vld [vmem:[%s231 + $0x654] sm:$0xf]
      %v1999 = vld [vmem:[%s231 + $0x658] sm:$0xf]
      %v2000 = vld [vmem:[%s231 + $0x65c] sm:$0xf]
      %v2001 = vld [vmem:[%s231 + $0x660] sm:$0xf]
      %v2002 = vld [vmem:[%s231 + $0x664] sm:$0xf]
      %v2003 = vld [vmem:[%s231 + $0x668] sm:$0xf]
      %v2004 = vld [vmem:[%s231 + $0x66c] sm:$0xf]
      %v2005 = vld [vmem:[%s231 + $0x670] sm:$0xf]
      %v2006 = vld [vmem:[%s231 + $0x674] sm:$0xf]
      %v2007 = vld [vmem:[%s231 + $0x678] sm:$0xf]
      %v2008 = vld [vmem:[%s231 + $0x67c] sm:$0xf]
      %v2009 = vld [vmem:[%s231 + $0x680] sm:$0xf]
      %v2010 = vld [vmem:[%s231 + $0x684] sm:$0xf]
      %v2011 = vld [vmem:[%s231 + $0x688] sm:$0xf]
      %v2012 = vld [vmem:[%s231 + $0x68c] sm:$0xf]
      %v2013 = vld [vmem:[%s231 + $0x690] sm:$0xf]
      %v2014 = vld [vmem:[%s231 + $0x694] sm:$0xf]
      %v2015 = vld [vmem:[%s231 + $0x698] sm:$0xf]
      %v2016 = vld [vmem:[%s231 + $0x69c] sm:$0xf]
      %v2017 = vld [vmem:[%s231 + $0x6a0] sm:$0xf]
      %v2018 = vld [vmem:[%s231 + $0x6a4] sm:$0xf]
      %v2019 = vld [vmem:[%s231 + $0x6a8] sm:$0xf]
      %v2020 = vld [vmem:[%s231 + $0x6ac] sm:$0xf]
      %v2021 = vld [vmem:[%s231 + $0x6b0] sm:$0xf]
      %v2022 = vld [vmem:[%s231 + $0x6b4] sm:$0xf]
      %v2023 = vld [vmem:[%s231 + $0x6b8] sm:$0xf]
      %v2024 = vld [vmem:[%s231 + $0x6bc] sm:$0xf]
      %v2025 = vld [vmem:[%s231 + $0x6c0] sm:$0xf]
      %v2026 = vld [vmem:[%s231 + $0x6c4] sm:$0xf]
      %v2027 = vld [vmem:[%s231 + $0x6c8] sm:$0xf]
      %v2028 = vld [vmem:[%s231 + $0x6cc] sm:$0xf]
      %v2029 = vld [vmem:[%s231 + $0x6d0] sm:$0xf]
      %v2030 = vld [vmem:[%s231 + $0x6d4] sm:$0xf]
      %v2031 = vld [vmem:[%s231 + $0x6d8] sm:$0xf]
      %v2032 = vld [vmem:[%s231 + $0x6dc] sm:$0xf]
      %v2033 = vld [vmem:[%s231 + $0x6e0] sm:$0xf]
      %v2034 = vld [vmem:[%s231 + $0x6e4] sm:$0xf]
      %v2035 = vld [vmem:[%s231 + $0x6e8] sm:$0xf]
      %v2036 = vld [vmem:[%s231 + $0x6ec] sm:$0xf]
      %v2037 = vld [vmem:[%s231 + $0x6f0] sm:$0xf]
      %v2038 = vld [vmem:[%s231 + $0x6f4] sm:$0xf]
      %v2039 = vld [vmem:[%s231 + $0x6f8] sm:$0xf]
      %v2040 = vld [vmem:[%s231 + $0x6fc] sm:$0xf]
      %v2041 = vld [vmem:[%s231 + $0x700] sm:$0xf]
      %v2042 = vld [vmem:[%s231 + $0x704] sm:$0xf]
      %v2043 = vld [vmem:[%s231 + $0x708] sm:$0xf]
      %v2044 = vld [vmem:[%s231 + $0x70c] sm:$0xf]
      %v2045 = vld [vmem:[%s231 + $0x710] sm:$0xf]
      %v2046 = vld [vmem:[%s231 + $0x714] sm:$0xf]
      %v2047 = vld [vmem:[%s231 + $0x718] sm:$0xf]
      %v2048 = vld [vmem:[%s231 + $0x71c] sm:$0xf]
      %v2049 = vld [vmem:[%s231 + $0x720] sm:$0xf]
      %v2050 = vld [vmem:[%s231 + $0x724] sm:$0xf]
      %v2051 = vld [vmem:[%s231 + $0x728] sm:$0xf]
      %v2052 = vld [vmem:[%s231 + $0x72c] sm:$0xf]
      %v2053 = vld [vmem:[%s231 + $0x730] sm:$0xf]
      %v2054 = vld [vmem:[%s231 + $0x734] sm:$0xf]
      %v2055 = vld [vmem:[%s231 + $0x738] sm:$0xf]
      %v2056 = vld [vmem:[%s231 + $0x73c] sm:$0xf]
      %v2057 = vld [vmem:[%s231 + $0x740] sm:$0xf]
      %v2058 = vld [vmem:[%s231 + $0x744] sm:$0xf]
      %v2059 = vld [vmem:[%s231 + $0x748] sm:$0xf]
      %v2060 = vld [vmem:[%s231 + $0x74c] sm:$0xf]
      %v2061 = vld [vmem:[%s231 + $0x750] sm:$0xf]
      %v2062 = vld [vmem:[%s231 + $0x754] sm:$0xf]
      %v2063 = vld [vmem:[%s231 + $0x758] sm:$0xf]
      %v2064 = vld [vmem:[%s231 + $0x75c] sm:$0xf]
      %v2065 = vld [vmem:[%s231 + $0x760] sm:$0xf]
      %v2066 = vld [vmem:[%s231 + $0x764] sm:$0xf]
      %v2067 = vld [vmem:[%s231 + $0x768] sm:$0xf]
      %v2068 = vld [vmem:[%s231 + $0x76c] sm:$0xf]
      %v2069 = vld [vmem:[%s231 + $0x770] sm:$0xf]
      %v2070 = vld [vmem:[%s231 + $0x774] sm:$0xf]
      %v2071 = vld [vmem:[%s231 + $0x778] sm:$0xf]
      %v2072 = vld [vmem:[%s231 + $0x77c] sm:$0xf]
      %v2073 = vld [vmem:[%s231 + $0x780] sm:$0xf]
      %v2074 = vld [vmem:[%s231 + $0x784] sm:$0xf]
      %v2075 = vld [vmem:[%s231 + $0x788] sm:$0xf]
      %v2076 = vld [vmem:[%s231 + $0x78c] sm:$0xf]
      %v2077 = vld [vmem:[%s231 + $0x790] sm:$0xf]
      %v2078 = vld [vmem:[%s231 + $0x794] sm:$0xf]
      %v2079 = vld [vmem:[%s231 + $0x798] sm:$0xf]
      %v2080 = vld [vmem:[%s231 + $0x79c] sm:$0xf]
      %v2081 = vld [vmem:[%s231 + $0x7a0] sm:$0xf]
      %v2082 = vld [vmem:[%s231 + $0x7a4] sm:$0xf]
      %v2083 = vld [vmem:[%s231 + $0x7a8] sm:$0xf]
      %v2084 = vld [vmem:[%s231 + $0x7ac] sm:$0xf]
      %v2085 = vld [vmem:[%s231 + $0x7b0] sm:$0xf]
      %v2086 = vld [vmem:[%s231 + $0x7b4] sm:$0xf]
      %v2087 = vld [vmem:[%s231 + $0x7b8] sm:$0xf]
      %v2088 = vld [vmem:[%s231 + $0x7bc] sm:$0xf]
      %v2089 = vld [vmem:[%s231 + $0x7c0] sm:$0xf]
      %v2090 = vld [vmem:[%s231 + $0x7c4] sm:$0xf]
      %v2091 = vld [vmem:[%s231 + $0x7c8] sm:$0xf]
      %v2092 = vld [vmem:[%s231 + $0x7cc] sm:$0xf]
      %v2093 = vld [vmem:[%s231 + $0x7d0] sm:$0xf]
      %v2094 = vld [vmem:[%s231 + $0x7d4] sm:$0xf]
      %v2095 = vld [vmem:[%s231 + $0x7d8] sm:$0xf]
      %v2096 = vld [vmem:[%s231 + $0x7dc] sm:$0xf]
      %v2097 = vld [vmem:[%s231 + $0x7e0] sm:$0xf]
      %v2098 = vld [vmem:[%s231 + $0x7e4] sm:$0xf]
      %v2099 = vld [vmem:[%s231 + $0x7e8] sm:$0xf]
      %v2100 = vld [vmem:[%s231 + $0x7ec] sm:$0xf]
      %v2101 = vld [vmem:[%s231 + $0x7f0] sm:$0xf]
      %v2102 = vld [vmem:[%s231 + $0x7f4] sm:$0xf]
      %v2103 = vld [vmem:[%s231 + $0x7f8] sm:$0xf]
      %v2104 = vld [vmem:[%s231 + $0x7fc] sm:$0xf]
      %v2105 = vpack.c.bf16 %v1529, %v1529
      %v2106 = vpack.c.bf16 %v1530, %v1530
      %v2107 = vpack.c.bf16 %v1531, %v1531
      %v2108 = vpack.c.bf16 %v1532, %v1532
      %v2109 = vpack.c.bf16 %v1533, %v1533
      %v2110 = vpack.c.bf16 %v1534, %v1534
      %v2111 = vpack.c.bf16 %v1535, %v1535
      %v2112 = vpack.c.bf16 %v1536, %v1536
      %v2113 = vpack.c.bf16 %v1537, %v1537
      %v2114 = vpack.c.bf16 %v1538, %v1538
      %v2115 = vpack.c.bf16 %v1539, %v1539
      %v2116 = vpack.c.bf16 %v1540, %v1540
      %v2117 = vpack.c.bf16 %v1541, %v1541
      %v2118 = vpack.c.bf16 %v1542, %v1542
      %v2119 = vpack.c.bf16 %v1543, %v1543
      %v2120 = vpack.c.bf16 %v1544, %v1544
      %v2121 = vpack.c.bf16 %v1545, %v1545
      %v2122 = vpack.c.bf16 %v1546, %v1546
      %v2123 = vpack.c.bf16 %v1547, %v1547
      %v2124 = vpack.c.bf16 %v1548, %v1548
      %v2125 = vpack.c.bf16 %v1549, %v1549
      %v2126 = vpack.c.bf16 %v1550, %v1550
      %v2127 = vpack.c.bf16 %v1551, %v1551
      %v2128 = vpack.c.bf16 %v1552, %v1552
      %v2129 = vpack.c.bf16 %v1553, %v1553
      %v2130 = vpack.c.bf16 %v1554, %v1554
      %v2131 = vpack.c.bf16 %v1555, %v1555
      %v2132 = vpack.c.bf16 %v1556, %v1556
      %v2133 = vpack.c.bf16 %v1557, %v1557
      %v2134 = vpack.c.bf16 %v1558, %v1558
      %v2135 = vpack.c.bf16 %v1559, %v1559
      %v2136 = vpack.c.bf16 %v1560, %v1560
      %v2137 = vpack.c.bf16 %v1561, %v1561
      %v2138 = vpack.c.bf16 %v1562, %v1562
      %v2139 = vpack.c.bf16 %v1563, %v1563
      %v2140 = vpack.c.bf16 %v1564, %v1564
      %v2141 = vpack.c.bf16 %v1565, %v1565
      %v2142 = vpack.c.bf16 %v1566, %v1566
      %v2143 = vpack.c.bf16 %v1567, %v1567
      %v2144 = vpack.c.bf16 %v1568, %v1568
      %v2145 = vpack.c.bf16 %v1569, %v1569
      %v2146 = vpack.c.bf16 %v1570, %v1570
      %v2147 = vpack.c.bf16 %v1571, %v1571
      %v2148 = vpack.c.bf16 %v1572, %v1572
      %v2149 = vpack.c.bf16 %v1573, %v1573
      %v2150 = vpack.c.bf16 %v1574, %v1574
      %v2151 = vpack.c.bf16 %v1575, %v1575
      %v2152 = vpack.c.bf16 %v1576, %v1576
      %v2153 = vpack.c.bf16 %v1577, %v1577
      %v2154 = vpack.c.bf16 %v1578, %v1578
      %v2155 = vpack.c.bf16 %v1579, %v1579
      %v2156 = vpack.c.bf16 %v1580, %v1580
      %v2157 = vpack.c.bf16 %v1581, %v1581
      %v2158 = vpack.c.bf16 %v1582, %v1582
      %v2159 = vpack.c.bf16 %v1583, %v1583
      %v2160 = vpack.c.bf16 %v1584, %v1584
      %v2161 = vpack.c.bf16 %v1585, %v1585
      %v2162 = vpack.c.bf16 %v1586, %v1586
      %v2163 = vpack.c.bf16 %v1587, %v1587
      %v2164 = vpack.c.bf16 %v1588, %v1588
      %v2165 = vpack.c.bf16 %v1589, %v1589
      %v2166 = vpack.c.bf16 %v1590, %v1590
      %v2167 = vpack.c.bf16 %v1591, %v1591
      %v2168 = vpack.c.bf16 %v1592, %v1592
      %v2169 = vlaneseq
      %v2170 = vshrl.u32 %v2169, 7
      %v2171 = vsub.s32 1, %v2170
      %v2172 = vrot.slane %v377, %v2171
      %v2173 = vlaneseq
      %v2174 = vshrl.u32 %v2173, 7
      %v2175 = vsub.s32 1, %v2174
      %v2176 = vrot.slane %v378, %v2175
      %v2177 = vlaneseq
      %v2178 = vshrl.u32 %v2177, 7
      %v2179 = vsub.s32 1, %v2178
      %v2180 = vrot.slane %v379, %v2179
      %v2181 = vlaneseq
      %v2182 = vshrl.u32 %v2181, 7
      %v2183 = vsub.s32 1, %v2182
      %v2184 = vrot.slane %v380, %v2183
      %v2185 = vlaneseq
      %v2186 = vshrl.u32 %v2185, 7
      %v2187 = vsub.s32 1, %v2186
      %v2188 = vrot.slane %v381, %v2187
      %v2189 = vlaneseq
      %v2190 = vshrl.u32 %v2189, 7
      %v2191 = vsub.s32 1, %v2190
      %v2192 = vrot.slane %v382, %v2191
      %v2193 = vlaneseq
      %v2194 = vshrl.u32 %v2193, 7
      %v2195 = vsub.s32 1, %v2194
      %v2196 = vrot.slane %v383, %v2195
      %v2197 = vlaneseq
      %v2198 = vshrl.u32 %v2197, 7
      %v2199 = vsub.s32 1, %v2198
      %v2200 = vrot.slane %v384, %v2199
      %v2201 = vlaneseq
      %v2202 = vshrl.u32 %v2201, 7
      %v2203 = vsub.s32 1, %v2202
      %v2204 = vrot.slane %v385, %v2203
      %v2205 = vlaneseq
      %v2206 = vshrl.u32 %v2205, 7
      %v2207 = vsub.s32 1, %v2206
      %v2208 = vrot.slane %v386, %v2207
      %v2209 = vlaneseq
      %v2210 = vshrl.u32 %v2209, 7
      %v2211 = vsub.s32 1, %v2210
      %v2212 = vrot.slane %v387, %v2211
      %v2213 = vlaneseq
      %v2214 = vshrl.u32 %v2213, 7
      %v2215 = vsub.s32 1, %v2214
      %v2216 = vrot.slane %v388, %v2215
      %v2217 = vlaneseq
      %v2218 = vshrl.u32 %v2217, 7
      %v2219 = vsub.s32 1, %v2218
      %v2220 = vrot.slane %v389, %v2219
      %v2221 = vlaneseq
      %v2222 = vshrl.u32 %v2221, 7
      %v2223 = vsub.s32 1, %v2222
      %v2224 = vrot.slane %v390, %v2223
      %v2225 = vlaneseq
      %v2226 = vshrl.u32 %v2225, 7
      %v2227 = vsub.s32 1, %v2226
      %v2228 = vrot.slane %v391, %v2227
      %v2229 = vlaneseq
      %v2230 = vshrl.u32 %v2229, 7
      %v2231 = vsub.s32 1, %v2230
      %v2232 = vrot.slane %v392, %v2231
      %v2233 = vlaneseq
      %v2234 = vshrl.u32 %v2233, 7
      %v2235 = vsub.s32 1, %v2234
      %v2236 = vrot.slane %v393, %v2235
      %v2237 = vlaneseq
      %v2238 = vshrl.u32 %v2237, 7
      %v2239 = vsub.s32 1, %v2238
      %v2240 = vrot.slane %v394, %v2239
      %v2241 = vlaneseq
      %v2242 = vshrl.u32 %v2241, 7
      %v2243 = vsub.s32 1, %v2242
      %v2244 = vrot.slane %v395, %v2243
      %v2245 = vlaneseq
      %v2246 = vshrl.u32 %v2245, 7
      %v2247 = vsub.s32 1, %v2246
      %v2248 = vrot.slane %v396, %v2247
      %v2249 = vlaneseq
      %v2250 = vshrl.u32 %v2249, 7
      %v2251 = vsub.s32 1, %v2250
      %v2252 = vrot.slane %v397, %v2251
      %v2253 = vlaneseq
      %v2254 = vshrl.u32 %v2253, 7
      %v2255 = vsub.s32 1, %v2254
      %v2256 = vrot.slane %v398, %v2255
      %v2257 = vlaneseq
      %v2258 = vshrl.u32 %v2257, 7
      %v2259 = vsub.s32 1, %v2258
      %v2260 = vrot.slane %v399, %v2259
      %v2261 = vlaneseq
      %v2262 = vshrl.u32 %v2261, 7
      %v2263 = vsub.s32 1, %v2262
      %v2264 = vrot.slane %v400, %v2263
      %v2265 = vlaneseq
      %v2266 = vshrl.u32 %v2265, 7
      %v2267 = vsub.s32 1, %v2266
      %v2268 = vrot.slane %v401, %v2267
      %v2269 = vlaneseq
      %v2270 = vshrl.u32 %v2269, 7
      %v2271 = vsub.s32 1, %v2270
      %v2272 = vrot.slane %v402, %v2271
      %v2273 = vlaneseq
      %v2274 = vshrl.u32 %v2273, 7
      %v2275 = vsub.s32 1, %v2274
      %v2276 = vrot.slane %v403, %v2275
      %v2277 = vlaneseq
      %v2278 = vshrl.u32 %v2277, 7
      %v2279 = vsub.s32 1, %v2278
      %v2280 = vrot.slane %v404, %v2279
      %v2281 = vlaneseq
      %v2282 = vshrl.u32 %v2281, 7
      %v2283 = vsub.s32 1, %v2282
      %v2284 = vrot.slane %v405, %v2283
      %v2285 = vlaneseq
      %v2286 = vshrl.u32 %v2285, 7
      %v2287 = vsub.s32 1, %v2286
      %v2288 = vrot.slane %v406, %v2287
      %v2289 = vlaneseq
      %v2290 = vshrl.u32 %v2289, 7
      %v2291 = vsub.s32 1, %v2290
      %v2292 = vrot.slane %v407, %v2291
      %v2293 = vlaneseq
      %v2294 = vshrl.u32 %v2293, 7
      %v2295 = vsub.s32 1, %v2294
      %v2296 = vrot.slane %v408, %v2295
      %v2297 = vlaneseq
      %v2298 = vshrl.u32 %v2297, 7
      %v2299 = vsub.s32 1, %v2298
      %v2300 = vrot.slane %v409, %v2299
      %v2301 = vlaneseq
      %v2302 = vshrl.u32 %v2301, 7
      %v2303 = vsub.s32 1, %v2302
      %v2304 = vrot.slane %v410, %v2303
      %v2305 = vlaneseq
      %v2306 = vshrl.u32 %v2305, 7
      %v2307 = vsub.s32 1, %v2306
      %v2308 = vrot.slane %v411, %v2307
      %v2309 = vlaneseq
      %v2310 = vshrl.u32 %v2309, 7
      %v2311 = vsub.s32 1, %v2310
      %v2312 = vrot.slane %v412, %v2311
      %v2313 = vlaneseq
      %v2314 = vshrl.u32 %v2313, 7
      %v2315 = vsub.s32 1, %v2314
      %v2316 = vrot.slane %v413, %v2315
      %v2317 = vlaneseq
      %v2318 = vshrl.u32 %v2317, 7
      %v2319 = vsub.s32 1, %v2318
      %v2320 = vrot.slane %v414, %v2319
      %v2321 = vlaneseq
      %v2322 = vshrl.u32 %v2321, 7
      %v2323 = vsub.s32 1, %v2322
      %v2324 = vrot.slane %v415, %v2323
      %v2325 = vlaneseq
      %v2326 = vshrl.u32 %v2325, 7
      %v2327 = vsub.s32 1, %v2326
      %v2328 = vrot.slane %v416, %v2327
      %v2329 = vlaneseq
      %v2330 = vshrl.u32 %v2329, 7
      %v2331 = vsub.s32 1, %v2330
      %v2332 = vrot.slane %v417, %v2331
      %v2333 = vlaneseq
      %v2334 = vshrl.u32 %v2333, 7
      %v2335 = vsub.s32 1, %v2334
      %v2336 = vrot.slane %v418, %v2335
      %v2337 = vlaneseq
      %v2338 = vshrl.u32 %v2337, 7
      %v2339 = vsub.s32 1, %v2338
      %v2340 = vrot.slane %v419, %v2339
      %v2341 = vlaneseq
      %v2342 = vshrl.u32 %v2341, 7
      %v2343 = vsub.s32 1, %v2342
      %v2344 = vrot.slane %v420, %v2343
      %v2345 = vlaneseq
      %v2346 = vshrl.u32 %v2345, 7
      %v2347 = vsub.s32 1, %v2346
      %v2348 = vrot.slane %v421, %v2347
      %v2349 = vlaneseq
      %v2350 = vshrl.u32 %v2349, 7
      %v2351 = vsub.s32 1, %v2350
      %v2352 = vrot.slane %v422, %v2351
      %v2353 = vlaneseq
      %v2354 = vshrl.u32 %v2353, 7
      %v2355 = vsub.s32 1, %v2354
      %v2356 = vrot.slane %v423, %v2355
      %v2357 = vlaneseq
      %v2358 = vshrl.u32 %v2357, 7
      %v2359 = vsub.s32 1, %v2358
      %v2360 = vrot.slane %v424, %v2359
      %v2361 = vlaneseq
      %v2362 = vshrl.u32 %v2361, 7
      %v2363 = vsub.s32 1, %v2362
      %v2364 = vrot.slane %v425, %v2363
      %v2365 = vlaneseq
      %v2366 = vshrl.u32 %v2365, 7
      %v2367 = vsub.s32 1, %v2366
      %v2368 = vrot.slane %v426, %v2367
      %v2369 = vlaneseq
      %v2370 = vshrl.u32 %v2369, 7
      %v2371 = vsub.s32 1, %v2370
      %v2372 = vrot.slane %v427, %v2371
      %v2373 = vlaneseq
      %v2374 = vshrl.u32 %v2373, 7
      %v2375 = vsub.s32 1, %v2374
      %v2376 = vrot.slane %v428, %v2375
      %v2377 = vlaneseq
      %v2378 = vshrl.u32 %v2377, 7
      %v2379 = vsub.s32 1, %v2378
      %v2380 = vrot.slane %v429, %v2379
      %v2381 = vlaneseq
      %v2382 = vshrl.u32 %v2381, 7
      %v2383 = vsub.s32 1, %v2382
      %v2384 = vrot.slane %v430, %v2383
      %v2385 = vlaneseq
      %v2386 = vshrl.u32 %v2385, 7
      %v2387 = vsub.s32 1, %v2386
      %v2388 = vrot.slane %v431, %v2387
      %v2389 = vlaneseq
      %v2390 = vshrl.u32 %v2389, 7
      %v2391 = vsub.s32 1, %v2390
      %v2392 = vrot.slane %v432, %v2391
      %v2393 = vlaneseq
      %v2394 = vshrl.u32 %v2393, 7
      %v2395 = vsub.s32 1, %v2394
      %v2396 = vrot.slane %v433, %v2395
      %v2397 = vlaneseq
      %v2398 = vshrl.u32 %v2397, 7
      %v2399 = vsub.s32 1, %v2398
      %v2400 = vrot.slane %v434, %v2399
      %v2401 = vlaneseq
      %v2402 = vshrl.u32 %v2401, 7
      %v2403 = vsub.s32 1, %v2402
      %v2404 = vrot.slane %v435, %v2403
      %v2405 = vlaneseq
      %v2406 = vshrl.u32 %v2405, 7
      %v2407 = vsub.s32 1, %v2406
      %v2408 = vrot.slane %v436, %v2407
      %v2409 = vlaneseq
      %v2410 = vshrl.u32 %v2409, 7
      %v2411 = vsub.s32 1, %v2410
      %v2412 = vrot.slane %v437, %v2411
      %v2413 = vlaneseq
      %v2414 = vshrl.u32 %v2413, 7
      %v2415 = vsub.s32 1, %v2414
      %v2416 = vrot.slane %v438, %v2415
      %v2417 = vlaneseq
      %v2418 = vshrl.u32 %v2417, 7
      %v2419 = vsub.s32 1, %v2418
      %v2420 = vrot.slane %v439, %v2419
      %v2421 = vlaneseq
      %v2422 = vshrl.u32 %v2421, 7
      %v2423 = vsub.s32 1, %v2422
      %v2424 = vrot.slane %v440, %v2423
      %v2433 = vunpack.c.l.b16 %v1593
      %v2434 = vunpack.c.l.b16 %v1594
      %v2435 = vunpack.c.l.b16 %v1595
      %v2436 = vunpack.c.l.b16 %v1596
      %v2437 = vunpack.c.l.b16 %v1597
      %v2438 = vunpack.c.l.b16 %v1598
      %v2439 = vunpack.c.l.b16 %v1599
      %v2440 = vunpack.c.l.b16 %v1600
      %v2441 = vpack.c.b16 %v2434, %v2433
      %v2442 = vpack.c.b16 %v2436, %v2435
      %v2443 = vpack.c.b16 %v2438, %v2437
      %v2444 = vpack.c.b16 %v2440, %v2439
      %vm2449 = vcmask 523264
      %v2451 = vsel %vm2449, %v2105, 0
      %2453 = vmatprep.subr.bf16.mxu0 0
      %2454 = vmatpush1.bf16.msra.mxu0 %v2441
      %2455 = vmatprep.subr.bf16.mxu0 0
      %2456 = vmatpush1.bf16.msra.mxu0 %v2442
      %2457 = vmatprep.subr.bf16.mxu0 0
      %2458 = vmatpush1.bf16.msra.mxu0 %v2443
      %2459 = vmatprep.subr.bf16.mxu0 0
      %2460 = vmatpush1.bf16.msra.mxu0 %v2444
      %2461 = vmatprep.subr.bf16.mxu0 0
      %2462 = vmatpush1.bf16.msra.mxu0 0
      %2463 = vmatprep.subr.bf16.mxu0 0
      %2464 = vmatpush1.bf16.msra.mxu0 0
      %2465 = vmatprep.subr.bf16.mxu0 0
      %2466 = vmatpush1.bf16.msra.mxu0 0
      %2467 = vmatprep.subr.bf16.mxu0 0
      %2468 = vmatpush1.bf16.msra.mxu0 0
      %2469 = vmatprep.subr.bf16.mxu0 0
      %2470 = vmatpush1.bf16.msra.mxu0 0
      %2471 = vmatprep.subr.bf16.mxu0 0
      %2472 = vmatpush1.bf16.msra.mxu0 0
      %2473 = vmatprep.subr.bf16.mxu0 0
      %2474 = vmatpush1.bf16.msra.mxu0 0
      %2475 = vmatprep.subr.bf16.mxu0 0
      %2476 = vmatpush1.bf16.msra.mxu0 0
      %2477 = vmatprep.subr.bf16.mxu0 0
      %2478 = vmatpush1.bf16.msra.mxu0 0
      %2479 = vmatprep.subr.bf16.mxu0 0
      %2480 = vmatpush1.bf16.msra.mxu0 0
      %2481 = vmatprep.subr.bf16.mxu0 0
      %2482 = vmatpush1.bf16.msra.mxu0 0
      %2483 = vmatprep.subr.bf16.mxu0 0
      %2484 = vmatpush1.bf16.msra.mxu0 0
      %2485 = vmatprep.mubr.bf16.mxu0 0
      %2486 = vmatmul.mubr.bf16.gmra.mrb[0].mxu0 %v2451
      %v2487 = vpop.f32.mrb[0].mxu0
      %v2488 = vadd.f32 %v2172, %v2487
      %v2489 = vpop.f32.mrb[0].mxu0
      %v2490 = vpop.f32.mrb[0].mxu0
      %v2491 = vpop.f32.mrb[0].mxu0
      %2492 = vdwg.mxu0
      %v2501 = vunpack.c.l.b16 %v1601
      %v2502 = vunpack.c.l.b16 %v1602
      %v2503 = vunpack.c.l.b16 %v1603
      %v2504 = vunpack.c.l.b16 %v1604
      %v2505 = vunpack.c.l.b16 %v1605
      %v2506 = vunpack.c.l.b16 %v1606
      %v2507 = vunpack.c.l.b16 %v1607
      %v2508 = vunpack.c.l.b16 %v1608
      %v2509 = vpack.c.b16 %v2502, %v2501
      %v2510 = vpack.c.b16 %v2504, %v2503
      %v2511 = vpack.c.b16 %v2506, %v2505
      %v2512 = vpack.c.b16 %v2508, %v2507
      %v2518 = vsel %vm2449, %v2106, 0
      %2520 = vmatprep.subr.bf16.mxu0 0
      %2521 = vmatpush1.bf16.msra.mxu0 %v2509
      %2522 = vmatprep.subr.bf16.mxu0 0
      %2523 = vmatpush1.bf16.msra.mxu0 %v2510
      %2524 = vmatprep.subr.bf16.mxu0 0
      %2525 = vmatpush1.bf16.msra.mxu0 %v2511
      %2526 = vmatprep.subr.bf16.mxu0 0
      %2527 = vmatpush1.bf16.msra.mxu0 %v2512
      %2528 = vmatprep.subr.bf16.mxu0 0
      %2529 = vmatpush1.bf16.msra.mxu0 0
      %2530 = vmatprep.subr.bf16.mxu0 0
      %2531 = vmatpush1.bf16.msra.mxu0 0
      %2532 = vmatprep.subr.bf16.mxu0 0
      %2533 = vmatpush1.bf16.msra.mxu0 0
      %2534 = vmatprep.subr.bf16.mxu0 0
      %2535 = vmatpush1.bf16.msra.mxu0 0
      %2536 = vmatprep.subr.bf16.mxu0 0
      %2537 = vmatpush1.bf16.msra.mxu0 0
      %2538 = vmatprep.subr.bf16.mxu0 0
      %2539 = vmatpush1.bf16.msra.mxu0 0
      %2540 = vmatprep.subr.bf16.mxu0 0
      %2541 = vmatpush1.bf16.msra.mxu0 0
      %2542 = vmatprep.subr.bf16.mxu0 0
      %2543 = vmatpush1.bf16.msra.mxu0 0
      %2544 = vmatprep.subr.bf16.mxu0 0
      %2545 = vmatpush1.bf16.msra.mxu0 0
      %2546 = vmatprep.subr.bf16.mxu0 0
      %2547 = vmatpush1.bf16.msra.mxu0 0
      %2548 = vmatprep.subr.bf16.mxu0 0
      %2549 = vmatpush1.bf16.msra.mxu0 0
      %2550 = vmatprep.subr.bf16.mxu0 0
      %2551 = vmatpush1.bf16.msra.mxu0 0
      %2552 = vmatprep.mubr.bf16.mxu0 0
      %2553 = vmatmul.mubr.bf16.gmra.mrb[0].mxu0 %v2518
      %v2554 = vpop.f32.mrb[0].mxu0
      %v2555 = vadd.f32 %v2176, %v2554
      %v2556 = vpop.f32.mrb[0].mxu0
      %v2557 = vpop.f32.mrb[0].mxu0
      %v2558 = vpop.f32.mrb[0].mxu0
      %2559 = vdwg.mxu0
      %v2568 = vunpack.c.l.b16 %v1609
      %v2569 = vunpack.c.l.b16 %v1610
      %v2570 = vunpack.c.l.b16 %v1611
      %v2571 = vunpack.c.l.b16 %v1612
      %v2572 = vunpack.c.l.b16 %v1613
      %v2573 = vunpack.c.l.b16 %v1614
      %v2574 = vunpack.c.l.b16 %v1615
      %v2575 = vunpack.c.l.b16 %v1616
      %v2576 = vpack.c.b16 %v2569, %v2568
      %v2577 = vpack.c.b16 %v2571, %v2570
      %v2578 = vpack.c.b16 %v2573, %v2572
      %v2579 = vpack.c.b16 %v2575, %v2574
      %v2585 = vsel %vm2449, %v2107, 0
      %2587 = vmatprep.subr.bf16.mxu0 0
      %2588 = vmatpush1.bf16.msra.mxu0 %v2576
      %2589 = vmatprep.subr.bf16.mxu0 0
      %2590 = vmatpush1.bf16.msra.mxu0 %v2577
      %2591 = vmatprep.subr.bf16.mxu0 0
      %2592 = vmatpush1.bf16.msra.mxu0 %v2578
      %2593 = vmatprep.subr.bf16.mxu0 0
      %2594 = vmatpush1.bf16.msra.mxu0 %v2579
      %2595 = vmatprep.subr.bf16.mxu0 0
      %2596 = vmatpush1.bf16.msra.mxu0 0
      %2597 = vmatprep.subr.bf16.mxu0 0
      %2598 = vmatpush1.bf16.msra.mxu0 0
      %2599 = vmatprep.subr.bf16.mxu0 0
      %2600 = vmatpush1.bf16.msra.mxu0 0
      %2601 = vmatprep.subr.bf16.mxu0 0
      %2602 = vmatpush1.bf16.msra.mxu0 0
      %2603 = vmatprep.subr.bf16.mxu0 0
      %2604 = vmatpush1.bf16.msra.mxu0 0
      %2605 = vmatprep.subr.bf16.mxu0 0
      %2606 = vmatpush1.bf16.msra.mxu0 0
      %2607 = vmatprep.subr.bf16.mxu0 0
      %2608 = vmatpush1.bf16.msra.mxu0 0
      %2609 = vmatprep.subr.bf16.mxu0 0
      %2610 = vmatpush1.bf16.msra.mxu0 0
      %2611 = vmatprep.subr.bf16.mxu0 0
      %2612 = vmatpush1.bf16.msra.mxu0 0
      %2613 = vmatprep.subr.bf16.mxu0 0
      %2614 = vmatpush1.bf16.msra.mxu0 0
      %2615 = vmatprep.subr.bf16.mxu0 0
      %2616 = vmatpush1.bf16.msra.mxu0 0
      %2617 = vmatprep.subr.bf16.mxu0 0
      %2618 = vmatpush1.bf16.msra.mxu0 0
      %2619 = vmatprep.mubr.bf16.mxu0 0
      %2620 = vmatmul.mubr.bf16.gmra.mrb[0].mxu0 %v2585
      %v2621 = vpop.f32.mrb[0].mxu0
      %v2622 = vadd.f32 %v2180, %v2621
      %v2623 = vpop.f32.mrb[0].mxu0
      %v2624 = vpop.f32.mrb[0].mxu0
      %v2625 = vpop.f32.mrb[0].mxu0
      %2626 = vdwg.mxu0
      %v2635 = vunpack.c.l.b16 %v1617
      %v2636 = vunpack.c.l.b16 %v1618
      %v2637 = vunpack.c.l.b16 %v1619
      %v2638 = vunpack.c.l.b16 %v1620
      %v2639 = vunpack.c.l.b16 %v1621
      %v2640 = vunpack.c.l.b16 %v1622
      %v2641 = vunpack.c.l.b16 %v1623
      %v2642 = vunpack.c.l.b16 %v1624
      %v2643 = vpack.c.b16 %v2636, %v2635
      %v2644 = vpack.c.b16 %v2638, %v2637
      %v2645 = vpack.c.b16 %v2640, %v2639
      %v2646 = vpack.c.b16 %v2642, %v2641
      %v2652 = vsel %vm2449, %v2108, 0
      %2654 = vmatprep.subr.bf16.mxu0 0
      %2655 = vmatpush1.bf16.msra.mxu0 %v2643
      %2656 = vmatprep.subr.bf16.mxu0 0
      %2657 = vmatpush1.bf16.msra.mxu0 %v2644
      %2658 = vmatprep.subr.bf16.mxu0 0
      %2659 = vmatpush1.bf16.msra.mxu0 %v2645
      %2660 = vmatprep.subr.bf16.mxu0 0
      %2661 = vmatpush1.bf16.msra.mxu0 %v2646
      %2662 = vmatprep.subr.bf16.mxu0 0
      %2663 = vmatpush1.bf16.msra.mxu0 0
      %2664 = vmatprep.subr.bf16.mxu0 0
      %2665 = vmatpush1.bf16.msra.mxu0 0
      %2666 = vmatprep.subr.bf16.mxu0 0
      %2667 = vmatpush1.bf16.msra.mxu0 0
      %2668 = vmatprep.subr.bf16.mxu0 0
      %2669 = vmatpush1.bf16.msra.mxu0 0
      %2670 = vmatprep.subr.bf16.mxu0 0
      %2671 = vmatpush1.bf16.msra.mxu0 0
      %2672 = vmatprep.subr.bf16.mxu0 0
      %2673 = vmatpush1.bf16.msra.mxu0 0
      %2674 = vmatprep.subr.bf16.mxu0 0
      %2675 = vmatpush1.bf16.msra.mxu0 0
      %2676 = vmatprep.subr.bf16.mxu0 0
      %2677 = vmatpush1.bf16.msra.mxu0 0
      %2678 = vmatprep.subr.bf16.mxu0 0
      %2679 = vmatpush1.bf16.msra.mxu0 0
      %2680 = vmatprep.subr.bf16.mxu0 0
      %2681 = vmatpush1.bf16.msra.mxu0 0
      %2682 = vmatprep.subr.bf16.mxu0 0
      %2683 = vmatpush1.bf16.msra.mxu0 0
      %2684 = vmatprep.subr.bf16.mxu0 0
      %2685 = vmatpush1.bf16.msra.mxu0 0
      %2686 = vmatprep.mubr.bf16.mxu0 0
      %2687 = vmatmul.mubr.bf16.gmra.mrb[0].mxu0 %v2652
      %v2688 = vpop.f32.mrb[0].mxu0
      %v2689 = vadd.f32 %v2184, %v2688
      %v2690 = vpop.f32.mrb[0].mxu0
      %v2691 = vpop.f32.mrb[0].mxu0
      %v2692 = vpop.f32.mrb[0].mxu0
      %2693 = vdwg.mxu0
      %v2702 = vunpack.c.l.b16 %v1625
      %v2703 = vunpack.c.l.b16 %v1626
      %v2704 = vunpack.c.l.b16 %v1627
      %v2705 = vunpack.c.l.b16 %v1628
      %v2706 = vunpack.c.l.b16 %v1629
      %v2707 = vunpack.c.l.b16 %v1630
      %v2708 = vunpack.c.l.b16 %v1631
      %v2709 = vunpack.c.l.b16 %v1632
      %v2710 = vpack.c.b16 %v2703, %v2702
      %v2711 = vpack.c.b16 %v2705, %v2704
      %v2712 = vpack.c.b16 %v2707, %v2706
      %v2713 = vpack.c.b16 %v2709, %v2708
      %v2719 = vsel %vm2449, %v2109, 0
      %2721 = vmatprep.subr.bf16.mxu0 0
      %2722 = vmatpush1.bf16.msra.mxu0 %v2710
      %2723 = vmatprep.subr.bf16.mxu0 0
      %2724 = vmatpush1.bf16.msra.mxu0 %v2711
      %2725 = vmatprep.subr.bf16.mxu0 0
      %2726 = vmatpush1.bf16.msra.mxu0 %v2712
      %2727 = vmatprep.subr.bf16.mxu0 0
      %2728 = vmatpush1.bf16.msra.mxu0 %v2713
      %2729 = vmatprep.subr.bf16.mxu0 0
      %2730 = vmatpush1.bf16.msra.mxu0 0
      %2731 = vmatprep.subr.bf16.mxu0 0
      %2732 = vmatpush1.bf16.msra.mxu0 0
      %2733 = vmatprep.subr.bf16.mxu0 0
      %2734 = vmatpush1.bf16.msra.mxu0 0
      %2735 = vmatprep.subr.bf16.mxu0 0
      %2736 = vmatpush1.bf16.msra.mxu0 0
      %2737 = vmatprep.subr.bf16.mxu0 0
      %2738 = vmatpush1.bf16.msra.mxu0 0
      %2739 = vmatprep.subr.bf16.mxu0 0
      %2740 = vmatpush1.bf16.msra.mxu0 0
      %2741 = vmatprep.subr.bf16.mxu0 0
      %2742 = vmatpush1.bf16.msra.mxu0 0
      %2743 = vmatprep.subr.bf16.mxu0 0
      %2744 = vmatpush1.bf16.msra.mxu0 0
      %2745 = vmatprep.subr.bf16.mxu0 0
      %2746 = vmatpush1.bf16.msra.mxu0 0
      %2747 = vmatprep.subr.bf16.mxu0 0
      %2748 = vmatpush1.bf16.msra.mxu0 0
      %2749 = vmatprep.subr.bf16.mxu0 0
      %2750 = vmatpush1.bf16.msra.mxu0 0
      %2751 = vmatprep.subr.bf16.mxu0 0
      %2752 = vmatpush1.bf16.msra.mxu0 0
      %2753 = vmatprep.mubr.bf16.mxu0 0
      %2754 = vmatmul.mubr.bf16.gmra.mrb[0].mxu0 %v2719
      %v2755 = vpop.f32.mrb[0].mxu0
      %v2756 = vadd.f32 %v2188, %v2755
      %v2757 = vpop.f32.mrb[0].mxu0
      %v2758 = vpop.f32.mrb[0].mxu0
      %v2759 = vpop.f32.mrb[0].mxu0
      %2760 = vdwg.mxu0
      %v2769 = vunpack.c.l.b16 %v1633
      %v2770 = vunpack.c.l.b16 %v1634
      %v2771 = vunpack.c.l.b16 %v1635
      %v2772 = vunpack.c.l.b16 %v1636
      %v2773 = vunpack.c.l.b16 %v1637
      %v2774 = vunpack.c.l.b16 %v1638
      %v2775 = vunpack.c.l.b16 %v1639
      %v2776 = vunpack.c.l.b16 %v1640
      %v2777 = vpack.c.b16 %v2770, %v2769
      %v2778 = vpack.c.b16 %v2772, %v2771
      %v2779 = vpack.c.b16 %v2774, %v2773
      %v2780 = vpack.c.b16 %v2776, %v2775
      %v2786 = vsel %vm2449, %v2110, 0
      %2788 = vmatprep.subr.bf16.mxu0 0
      %2789 = vmatpush1.bf16.msra.mxu0 %v2777
      %2790 = vmatprep.subr.bf16.mxu0 0
      %2791 = vmatpush1.bf16.msra.mxu0 %v2778
      %2792 = vmatprep.subr.bf16.mxu0 0
      %2793 = vmatpush1.bf16.msra.mxu0 %v2779
      %2794 = vmatprep.subr.bf16.mxu0 0
      %2795 = vmatpush1.bf16.msra.mxu0 %v2780
      %2796 = vmatprep.subr.bf16.mxu0 0
      %2797 = vmatpush1.bf16.msra.mxu0 0
      %2798 = vmatprep.subr.bf16.mxu0 0
      %2799 = vmatpush1.bf16.msra.mxu0 0
      %2800 = vmatprep.subr.bf16.mxu0 0
      %2801 = vmatpush1.bf16.msra.mxu0 0
      %2802 = vmatprep.subr.bf16.mxu0 0
      %2803 = vmatpush1.bf16.msra.mxu0 0
      %2804 = vmatprep.subr.bf16.mxu0 0
      %2805 = vmatpush1.bf16.msra.mxu0 0
      %2806 = vmatprep.subr.bf16.mxu0 0
      %2807 = vmatpush1.bf16.msra.mxu0 0
      %2808 = vmatprep.subr.bf16.mxu0 0
      %2809 = vmatpush1.bf16.msra.mxu0 0
      %2810 = vmatprep.subr.bf16.mxu0 0
      %2811 = vmatpush1.bf16.msra.mxu0 0
      %2812 = vmatprep.subr.bf16.mxu0 0
      %2813 = vmatpush1.bf16.msra.mxu0 0
      %2814 = vmatprep.subr.bf16.mxu0 0
      %2815 = vmatpush1.bf16.msra.mxu0 0
      %2816 = vmatprep.subr.bf16.mxu0 0
      %2817 = vmatpush1.bf16.msra.mxu0 0
      %2818 = vmatprep.subr.bf16.mxu0 0
      %2819 = vmatpush1.bf16.msra.mxu0 0
      %2820 = vmatprep.mubr.bf16.mxu0 0
      %2821 = vmatmul.mubr.bf16.gmra.mrb[0].mxu0 %v2786
      %v2822 = vpop.f32.mrb[0].mxu0
      %v2823 = vadd.f32 %v2192, %v2822
      %v2824 = vpop.f32.mrb[0].mxu0
      %v2825 = vpop.f32.mrb[0].mxu0
      %v2826 = vpop.f32.mrb[0].mxu0
      %2827 = vdwg.mxu0
      %v2836 = vunpack.c.l.b16 %v1641
      %v2837 = vunpack.c.l.b16 %v1642
      %v2838 = vunpack.c.l.b16 %v1643
      %v2839 = vunpack.c.l.b16 %v1644
      %v2840 = vunpack.c.l.b16 %v1645
      %v2841 = vunpack.c.l.b16 %v1646
      %v2842 = vunpack.c.l.b16 %v1647
      %v2843 = vunpack.c.l.b16 %v1648
      %v2844 = vpack.c.b16 %v2837, %v2836
      %v2845 = vpack.c.b16 %v2839, %v2838
      %v2846 = vpack.c.b16 %v2841, %v2840
      %v2847 = vpack.c.b16 %v2843, %v2842
      %v2853 = vsel %vm2449, %v2111, 0
      %2855 = vmatprep.subr.bf16.mxu0 0
      %2856 = vmatpush1.bf16.msra.mxu0 %v2844
      %2857 = vmatprep.subr.bf16.mxu0 0
      %2858 = vmatpush1.bf16.msra.mxu0 %v2845
      %2859 = vmatprep.subr.bf16.mxu0 0
      %2860 = vmatpush1.bf16.msra.mxu0 %v2846
      %2861 = vmatprep.subr.bf16.mxu0 0
      %2862 = vmatpush1.bf16.msra.mxu0 %v2847
      %2863 = vmatprep.subr.bf16.mxu0 0
      %2864 = vmatpush1.bf16.msra.mxu0 0
      %2865 = vmatprep.subr.bf16.mxu0 0
      %2866 = vmatpush1.bf16.msra.mxu0 0
      %2867 = vmatprep.subr.bf16.mxu0 0
      %2868 = vmatpush1.bf16.msra.mxu0 0
      %2869 = vmatprep.subr.bf16.mxu0 0
      %2870 = vmatpush1.bf16.msra.mxu0 0
      %2871 = vmatprep.subr.bf16.mxu0 0
      %2872 = vmatpush1.bf16.msra.mxu0 0
      %2873 = vmatprep.subr.bf16.mxu0 0
      %2874 = vmatpush1.bf16.msra.mxu0 0
      %2875 = vmatprep.subr.bf16.mxu0 0
      %2876 = vmatpush1.bf16.msra.mxu0 0
      %2877 = vmatprep.subr.bf16.mxu0 0
      %2878 = vmatpush1.bf16.msra.mxu0 0
      %2879 = vmatprep.subr.bf16.mxu0 0
      %2880 = vmatpush1.bf16.msra.mxu0 0
      %2881 = vmatprep.subr.bf16.mxu0 0
      %2882 = vmatpush1.bf16.msra.mxu0 0
      %2883 = vmatprep.subr.bf16.mxu0 0
      %2884 = vmatpush1.bf16.msra.mxu0 0
      %2885 = vmatprep.subr.bf16.mxu0 0
      %2886 = vmatpush1.bf16.msra.mxu0 0
      %2887 = vmatprep.mubr.bf16.mxu0 0
      %2888 = vmatmul.mubr.bf16.gmra.mrb[0].mxu0 %v2853
      %v2889 = vpop.f32.mrb[0].mxu0
      %v2890 = vadd.f32 %v2196, %v2889
      %v2891 = vpop.f32.mrb[0].mxu0
      %v2892 = vpop.f32.mrb[0].mxu0
      %v2893 = vpop.f32.mrb[0].mxu0
      %2894 = vdwg.mxu0
      %v2903 = vunpack.c.l.b16 %v1649
      %v2904 = vunpack.c.l.b16 %v1650
      %v2905 = vunpack.c.l.b16 %v1651
      %v2906 = vunpack.c.l.b16 %v1652
      %v2907 = vunpack.c.l.b16 %v1653
      %v2908 = vunpack.c.l.b16 %v1654
      %v2909 = vunpack.c.l.b16 %v1655
      %v2910 = vunpack.c.l.b16 %v1656
      %v2911 = vpack.c.b16 %v2904, %v2903
      %v2912 = vpack.c.b16 %v2906, %v2905
      %v2913 = vpack.c.b16 %v2908, %v2907
      %v2914 = vpack.c.b16 %v2910, %v2909
      %v2920 = vsel %vm2449, %v2112, 0
      %2922 = vmatprep.subr.bf16.mxu0 0
      %2923 = vmatpush1.bf16.msra.mxu0 %v2911
      %2924 = vmatprep.subr.bf16.mxu0 0
      %2925 = vmatpush1.bf16.msra.mxu0 %v2912
      %2926 = vmatprep.subr.bf16.mxu0 0
      %2927 = vmatpush1.bf16.msra.mxu0 %v2913
      %2928 = vmatprep.subr.bf16.mxu0 0
      %2929 = vmatpush1.bf16.msra.mxu0 %v2914
      %2930 = vmatprep.subr.bf16.mxu0 0
      %2931 = vmatpush1.bf16.msra.mxu0 0
      %2932 = vmatprep.subr.bf16.mxu0 0
      %2933 = vmatpush1.bf16.msra.mxu0 0
      %2934 = vmatprep.subr.bf16.mxu0 0
      %2935 = vmatpush1.bf16.msra.mxu0 0
      %2936 = vmatprep.subr.bf16.mxu0 0
      %2937 = vmatpush1.bf16.msra.mxu0 0
      %2938 = vmatprep.subr.bf16.mxu0 0
      %2939 = vmatpush1.bf16.msra.mxu0 0
      %2940 = vmatprep.subr.bf16.mxu0 0
      %2941 = vmatpush1.bf16.msra.mxu0 0
      %2942 = vmatprep.subr.bf16.mxu0 0
      %2943 = vmatpush1.bf16.msra.mxu0 0
      %2944 = vmatprep.subr.bf16.mxu0 0
      %2945 = vmatpush1.bf16.msra.mxu0 0
      %2946 = vmatprep.subr.bf16.mxu0 0
      %2947 = vmatpush1.bf16.msra.mxu0 0
      %2948 = vmatprep.subr.bf16.mxu0 0
      %2949 = vmatpush1.bf16.msra.mxu0 0
      %2950 = vmatprep.subr.bf16.mxu0 0
      %2951 = vmatpush1.bf16.msra.mxu0 0
      %2952 = vmatprep.subr.bf16.mxu0 0
      %2953 = vmatpush1.bf16.msra.mxu0 0
      %2954 = vmatprep.mubr.bf16.mxu0 0
      %2955 = vmatmul.mubr.bf16.gmra.mrb[0].mxu0 %v2920
      %v2956 = vpop.f32.mrb[0].mxu0
      %v2957 = vadd.f32 %v2200, %v2956
      %v2958 = vpop.f32.mrb[0].mxu0
      %v2959 = vpop.f32.mrb[0].mxu0
      %v2960 = vpop.f32.mrb[0].mxu0
      %2961 = vdwg.mxu0
      %v2970 = vunpack.c.l.b16 %v1657
      %v2971 = vunpack.c.l.b16 %v1658
      %v2972 = vunpack.c.l.b16 %v1659
      %v2973 = vunpack.c.l.b16 %v1660
      %v2974 = vunpack.c.l.b16 %v1661
      %v2975 = vunpack.c.l.b16 %v1662
      %v2976 = vunpack.c.l.b16 %v1663
      %v2977 = vunpack.c.l.b16 %v1664
      %v2978 = vpack.c.b16 %v2971, %v2970
      %v2979 = vpack.c.b16 %v2973, %v2972
      %v2980 = vpack.c.b16 %v2975, %v2974
      %v2981 = vpack.c.b16 %v2977, %v2976
      %v2987 = vsel %vm2449, %v2113, 0
      %2989 = vmatprep.subr.bf16.mxu0 0
      %2990 = vmatpush1.bf16.msra.mxu0 %v2978
      %2991 = vmatprep.subr.bf16.mxu0 0
      %2992 = vmatpush1.bf16.msra.mxu0 %v2979
      %2993 = vmatprep.subr.bf16.mxu0 0
      %2994 = vmatpush1.bf16.msra.mxu0 %v2980
      %2995 = vmatprep.subr.bf16.mxu0 0
      %2996 = vmatpush1.bf16.msra.mxu0 %v2981
      %2997 = vmatprep.subr.bf16.mxu0 0
      %2998 = vmatpush1.bf16.msra.mxu0 0
      %2999 = vmatprep.subr.bf16.mxu0 0
      %3000 = vmatpush1.bf16.msra.mxu0 0
      %3001 = vmatprep.subr.bf16.mxu0 0
      %3002 = vmatpush1.bf16.msra.mxu0 0
      %3003 = vmatprep.subr.bf16.mxu0 0
      %3004 = vmatpush1.bf16.msra.mxu0 0
      %3005 = vmatprep.subr.bf16.mxu0 0
      %3006 = vmatpush1.bf16.msra.mxu0 0
      %3007 = vmatprep.subr.bf16.mxu0 0
      %3008 = vmatpush1.bf16.msra.mxu0 0
      %3009 = vmatprep.subr.bf16.mxu0 0
      %3010 = vmatpush1.bf16.msra.mxu0 0
      %3011 = vmatprep.subr.bf16.mxu0 0
      %3012 = vmatpush1.bf16.msra.mxu0 0
      %3013 = vmatprep.subr.bf16.mxu0 0
      %3014 = vmatpush1.bf16.msra.mxu0 0
      %3015 = vmatprep.subr.bf16.mxu0 0
      %3016 = vmatpush1.bf16.msra.mxu0 0
      %3017 = vmatprep.subr.bf16.mxu0 0
      %3018 = vmatpush1.bf16.msra.mxu0 0
      %3019 = vmatprep.subr.bf16.mxu0 0
      %3020 = vmatpush1.bf16.msra.mxu0 0
      %3021 = vmatprep.mubr.bf16.mxu0 0
      %3022 = vmatmul.mubr.bf16.gmra.mrb[0].mxu0 %v2987
      %v3023 = vpop.f32.mrb[0].mxu0
      %v3024 = vadd.f32 %v2204, %v3023
      %v3025 = vpop.f32.mrb[0].mxu0
      %v3026 = vpop.f32.mrb[0].mxu0
      %v3027 = vpop.f32.mrb[0].mxu0
      %3028 = vdwg.mxu0
      %v3037 = vunpack.c.l.b16 %v1665
      %v3038 = vunpack.c.l.b16 %v1666
      %v3039 = vunpack.c.l.b16 %v1667
      %v3040 = vunpack.c.l.b16 %v1668
      %v3041 = vunpack.c.l.b16 %v1669
      %v3042 = vunpack.c.l.b16 %v1670
      %v3043 = vunpack.c.l.b16 %v1671
      %v3044 = vunpack.c.l.b16 %v1672
      %v3045 = vpack.c.b16 %v3038, %v3037
      %v3046 = vpack.c.b16 %v3040, %v3039
      %v3047 = vpack.c.b16 %v3042, %v3041
      %v3048 = vpack.c.b16 %v3044, %v3043
      %v3054 = vsel %vm2449, %v2114, 0
      %3056 = vmatprep.subr.bf16.mxu0 0
      %3057 = vmatpush1.bf16.msra.mxu0 %v3045
      %3058 = vmatprep.subr.bf16.mxu0 0
      %3059 = vmatpush1.bf16.msra.mxu0 %v3046
      %3060 = vmatprep.subr.bf16.mxu0 0
      %3061 = vmatpush1.bf16.msra.mxu0 %v3047
      %3062 = vmatprep.subr.bf16.mxu0 0
      %3063 = vmatpush1.bf16.msra.mxu0 %v3048
      %3064 = vmatprep.subr.bf16.mxu0 0
      %3065 = vmatpush1.bf16.msra.mxu0 0
      %3066 = vmatprep.subr.bf16.mxu0 0
      %3067 = vmatpush1.bf16.msra.mxu0 0
      %3068 = vmatprep.subr.bf16.mxu0 0
      %3069 = vmatpush1.bf16.msra.mxu0 0
      %3070 = vmatprep.subr.bf16.mxu0 0
      %3071 = vmatpush1.bf16.msra.mxu0 0
      %3072 = vmatprep.subr.bf16.mxu0 0
      %3073 = vmatpush1.bf16.msra.mxu0 0
      %3074 = vmatprep.subr.bf16.mxu0 0
      %3075 = vmatpush1.bf16.msra.mxu0 0
      %3076 = vmatprep.subr.bf16.mxu0 0
      %3077 = vmatpush1.bf16.msra.mxu0 0
      %3078 = vmatprep.subr.bf16.mxu0 0
      %3079 = vmatpush1.bf16.msra.mxu0 0
      %3080 = vmatprep.subr.bf16.mxu0 0
      %3081 = vmatpush1.bf16.msra.mxu0 0
      %3082 = vmatprep.subr.bf16.mxu0 0
      %3083 = vmatpush1.bf16.msra.mxu0 0
      %3084 = vmatprep.subr.bf16.mxu0 0
      %3085 = vmatpush1.bf16.msra.mxu0 0
      %3086 = vmatprep.subr.bf16.mxu0 0
      %3087 = vmatpush1.bf16.msra.mxu0 0
      %3088 = vmatprep.mubr.bf16.mxu0 0
      %3089 = vmatmul.mubr.bf16.gmra.mrb[0].mxu0 %v3054
      %v3090 = vpop.f32.mrb[0].mxu0
      %v3091 = vadd.f32 %v2208, %v3090
      %v3092 = vpop.f32.mrb[0].mxu0
      %v3093 = vpop.f32.mrb[0].mxu0
      %v3094 = vpop.f32.mrb[0].mxu0
      %3095 = vdwg.mxu0
      %v3104 = vunpack.c.l.b16 %v1673
      %v3105 = vunpack.c.l.b16 %v1674
      %v3106 = vunpack.c.l.b16 %v1675
      %v3107 = vunpack.c.l.b16 %v1676
      %v3108 = vunpack.c.l.b16 %v1677
      %v3109 = vunpack.c.l.b16 %v1678
      %v3110 = vunpack.c.l.b16 %v1679
      %v3111 = vunpack.c.l.b16 %v1680
      %v3112 = vpack.c.b16 %v3105, %v3104
      %v3113 = vpack.c.b16 %v3107, %v3106
      %v3114 = vpack.c.b16 %v3109, %v3108
      %v3115 = vpack.c.b16 %v3111, %v3110
      %v3121 = vsel %vm2449, %v2115, 0
      %3123 = vmatprep.subr.bf16.mxu0 0
      %3124 = vmatpush1.bf16.msra.mxu0 %v3112
      %3125 = vmatprep.subr.bf16.mxu0 0
      %3126 = vmatpush1.bf16.msra.mxu0 %v3113
      %3127 = vmatprep.subr.bf16.mxu0 0
      %3128 = vmatpush1.bf16.msra.mxu0 %v3114
      %3129 = vmatprep.subr.bf16.mxu0 0
      %3130 = vmatpush1.bf16.msra.mxu0 %v3115
      %3131 = vmatprep.subr.bf16.mxu0 0
      %3132 = vmatpush1.bf16.msra.mxu0 0
      %3133 = vmatprep.subr.bf16.mxu0 0
      %3134 = vmatpush1.bf16.msra.mxu0 0
      %3135 = vmatprep.subr.bf16.mxu0 0
      %3136 = vmatpush1.bf16.msra.mxu0 0
      %3137 = vmatprep.subr.bf16.mxu0 0
      %3138 = vmatpush1.bf16.msra.mxu0 0
      %3139 = vmatprep.subr.bf16.mxu0 0
      %3140 = vmatpush1.bf16.msra.mxu0 0
      %3141 = vmatprep.subr.bf16.mxu0 0
      %3142 = vmatpush1.bf16.msra.mxu0 0
      %3143 = vmatprep.subr.bf16.mxu0 0
      %3144 = vmatpush1.bf16.msra.mxu0 0
      %3145 = vmatprep.subr.bf16.mxu0 0
      %3146 = vmatpush1.bf16.msra.mxu0 0
      %3147 = vmatprep.subr.bf16.mxu0 0
      %3148 = vmatpush1.bf16.msra.mxu0 0
      %3149 = vmatprep.subr.bf16.mxu0 0
      %3150 = vmatpush1.bf16.msra.mxu0 0
      %3151 = vmatprep.subr.bf16.mxu0 0
      %3152 = vmatpush1.bf16.msra.mxu0 0
      %3153 = vmatprep.subr.bf16.mxu0 0
      %3154 = vmatpush1.bf16.msra.mxu0 0
      %3155 = vmatprep.mubr.bf16.mxu0 0
      %3156 = vmatmul.mubr.bf16.gmra.mrb[0].mxu0 %v3121
      %v3157 = vpop.f32.mrb[0].mxu0
      %v3158 = vadd.f32 %v2212, %v3157
      %v3159 = vpop.f32.mrb[0].mxu0
      %v3160 = vpop.f32.mrb[0].mxu0
      %v3161 = vpop.f32.mrb[0].mxu0
      %3162 = vdwg.mxu0
      %v3171 = vunpack.c.l.b16 %v1681
      %v3172 = vunpack.c.l.b16 %v1682
      %v3173 = vunpack.c.l.b16 %v1683
      %v3174 = vunpack.c.l.b16 %v1684
      %v3175 = vunpack.c.l.b16 %v1685
      %v3176 = vunpack.c.l.b16 %v1686
      %v3177 = vunpack.c.l.b16 %v1687
      %v3178 = vunpack.c.l.b16 %v1688
      %v3179 = vpack.c.b16 %v3172, %v3171
      %v3180 = vpack.c.b16 %v3174, %v3173
      %v3181 = vpack.c.b16 %v3176, %v3175
      %v3182 = vpack.c.b16 %v3178, %v3177
      %v3188 = vsel %vm2449, %v2116, 0
      %3190 = vmatprep.subr.bf16.mxu0 0
      %3191 = vmatpush1.bf16.msra.mxu0 %v3179
      %3192 = vmatprep.subr.bf16.mxu0 0
      %3193 = vmatpush1.bf16.msra.mxu0 %v3180
      %3194 = vmatprep.subr.bf16.mxu0 0
      %3195 = vmatpush1.bf16.msra.mxu0 %v3181
      %3196 = vmatprep.subr.bf16.mxu0 0
      %3197 = vmatpush1.bf16.msra.mxu0 %v3182
      %3198 = vmatprep.subr.bf16.mxu0 0
      %3199 = vmatpush1.bf16.msra.mxu0 0
      %3200 = vmatprep.subr.bf16.mxu0 0
      %3201 = vmatpush1.bf16.msra.mxu0 0
      %3202 = vmatprep.subr.bf16.mxu0 0
      %3203 = vmatpush1.bf16.msra.mxu0 0
      %3204 = vmatprep.subr.bf16.mxu0 0
      %3205 = vmatpush1.bf16.msra.mxu0 0
      %3206 = vmatprep.subr.bf16.mxu0 0
      %3207 = vmatpush1.bf16.msra.mxu0 0
      %3208 = vmatprep.subr.bf16.mxu0 0
      %3209 = vmatpush1.bf16.msra.mxu0 0
      %3210 = vmatprep.subr.bf16.mxu0 0
      %3211 = vmatpush1.bf16.msra.mxu0 0
      %3212 = vmatprep.subr.bf16.mxu0 0
      %3213 = vmatpush1.bf16.msra.mxu0 0
      %3214 = vmatprep.subr.bf16.mxu0 0
      %3215 = vmatpush1.bf16.msra.mxu0 0
      %3216 = vmatprep.subr.bf16.mxu0 0
      %3217 = vmatpush1.bf16.msra.mxu0 0
      %3218 = vmatprep.subr.bf16.mxu0 0
      %3219 = vmatpush1.bf16.msra.mxu0 0
      %3220 = vmatprep.subr.bf16.mxu0 0
      %3221 = vmatpush1.bf16.msra.mxu0 0
      %3222 = vmatprep.mubr.bf16.mxu0 0
      %3223 = vmatmul.mubr.bf16.gmra.mrb[0].mxu0 %v3188
      %v3224 = vpop.f32.mrb[0].mxu0
      %v3225 = vadd.f32 %v2216, %v3224
      %v3226 = vpop.f32.mrb[0].mxu0
      %v3227 = vpop.f32.mrb[0].mxu0
      %v3228 = vpop.f32.mrb[0].mxu0
      %3229 = vdwg.mxu0
      %v3238 = vunpack.c.l.b16 %v1689
      %v3239 = vunpack.c.l.b16 %v1690
      %v3240 = vunpack.c.l.b16 %v1691
      %v3241 = vunpack.c.l.b16 %v1692
      %v3242 = vunpack.c.l.b16 %v1693
      %v3243 = vunpack.c.l.b16 %v1694
      %v3244 = vunpack.c.l.b16 %v1695
      %v3245 = vunpack.c.l.b16 %v1696
      %v3246 = vpack.c.b16 %v3239, %v3238
      %v3247 = vpack.c.b16 %v3241, %v3240
      %v3248 = vpack.c.b16 %v3243, %v3242
      %v3249 = vpack.c.b16 %v3245, %v3244
      %v3255 = vsel %vm2449, %v2117, 0
      %3257 = vmatprep.subr.bf16.mxu0 0
      %3258 = vmatpush1.bf16.msra.mxu0 %v3246
      %3259 = vmatprep.subr.bf16.mxu0 0
      %3260 = vmatpush1.bf16.msra.mxu0 %v3247
      %3261 = vmatprep.subr.bf16.mxu0 0
      %3262 = vmatpush1.bf16.msra.mxu0 %v3248
      %3263 = vmatprep.subr.bf16.mxu0 0
      %3264 = vmatpush1.bf16.msra.mxu0 %v3249
      %3265 = vmatprep.subr.bf16.mxu0 0
      %3266 = vmatpush1.bf16.msra.mxu0 0
      %3267 = vmatprep.subr.bf16.mxu0 0
      %3268 = vmatpush1.bf16.msra.mxu0 0
      %3269 = vmatprep.subr.bf16.mxu0 0
      %3270 = vmatpush1.bf16.msra.mxu0 0
      %3271 = vmatprep.subr.bf16.mxu0 0
      %3272 = vmatpush1.bf16.msra.mxu0 0
      %3273 = vmatprep.subr.bf16.mxu0 0
      %3274 = vmatpush1.bf16.msra.mxu0 0
      %3275 = vmatprep.subr.bf16.mxu0 0
      %3276 = vmatpush1.bf16.msra.mxu0 0
      %3277 = vmatprep.subr.bf16.mxu0 0
      %3278 = vmatpush1.bf16.msra.mxu0 0
      %3279 = vmatprep.subr.bf16.mxu0 0
      %3280 = vmatpush1.bf16.msra.mxu0 0
      %3281 = vmatprep.subr.bf16.mxu0 0
      %3282 = vmatpush1.bf16.msra.mxu0 0
      %3283 = vmatprep.subr.bf16.mxu0 0
      %3284 = vmatpush1.bf16.msra.mxu0 0
      %3285 = vmatprep.subr.bf16.mxu0 0
      %3286 = vmatpush1.bf16.msra.mxu0 0
      %3287 = vmatprep.subr.bf16.mxu0 0
      %3288 = vmatpush1.bf16.msra.mxu0 0
      %3289 = vmatprep.mubr.bf16.mxu0 0
      %3290 = vmatmul.mubr.bf16.gmra.mrb[0].mxu0 %v3255
      %v3291 = vpop.f32.mrb[0].mxu0
      %v3292 = vadd.f32 %v2220, %v3291
      %v3293 = vpop.f32.mrb[0].mxu0
      %v3294 = vpop.f32.mrb[0].mxu0
      %v3295 = vpop.f32.mrb[0].mxu0
      %3296 = vdwg.mxu0
      %v3305 = vunpack.c.l.b16 %v1697
      %v3306 = vunpack.c.l.b16 %v1698
      %v3307 = vunpack.c.l.b16 %v1699
      %v3308 = vunpack.c.l.b16 %v1700
      %v3309 = vunpack.c.l.b16 %v1701
      %v3310 = vunpack.c.l.b16 %v1702
      %v3311 = vunpack.c.l.b16 %v1703
      %v3312 = vunpack.c.l.b16 %v1704
      %v3313 = vpack.c.b16 %v3306, %v3305
      %v3314 = vpack.c.b16 %v3308, %v3307
      %v3315 = vpack.c.b16 %v3310, %v3309
      %v3316 = vpack.c.b16 %v3312, %v3311
      %v3322 = vsel %vm2449, %v2118, 0
      %3324 = vmatprep.subr.bf16.mxu0 0
      %3325 = vmatpush1.bf16.msra.mxu0 %v3313
      %3326 = vmatprep.subr.bf16.mxu0 0
      %3327 = vmatpush1.bf16.msra.mxu0 %v3314
      %3328 = vmatprep.subr.bf16.mxu0 0
      %3329 = vmatpush1.bf16.msra.mxu0 %v3315
      %3330 = vmatprep.subr.bf16.mxu0 0
      %3331 = vmatpush1.bf16.msra.mxu0 %v3316
      %3332 = vmatprep.subr.bf16.mxu0 0
      %3333 = vmatpush1.bf16.msra.mxu0 0
      %3334 = vmatprep.subr.bf16.mxu0 0
      %3335 = vmatpush1.bf16.msra.mxu0 0
      %3336 = vmatprep.subr.bf16.mxu0 0
      %3337 = vmatpush1.bf16.msra.mxu0 0
      %3338 = vmatprep.subr.bf16.mxu0 0
      %3339 = vmatpush1.bf16.msra.mxu0 0
      %3340 = vmatprep.subr.bf16.mxu0 0
      %3341 = vmatpush1.bf16.msra.mxu0 0
      %3342 = vmatprep.subr.bf16.mxu0 0
      %3343 = vmatpush1.bf16.msra.mxu0 0
      %3344 = vmatprep.subr.bf16.mxu0 0
      %3345 = vmatpush1.bf16.msra.mxu0 0
      %3346 = vmatprep.subr.bf16.mxu0 0
      %3347 = vmatpush1.bf16.msra.mxu0 0
      %3348 = vmatprep.subr.bf16.mxu0 0
      %3349 = vmatpush1.bf16.msra.mxu0 0
      %3350 = vmatprep.subr.bf16.mxu0 0
      %3351 = vmatpush1.bf16.msra.mxu0 0
      %3352 = vmatprep.subr.bf16.mxu0 0
      %3353 = vmatpush1.bf16.msra.mxu0 0
      %3354 = vmatprep.subr.bf16.mxu0 0
      %3355 = vmatpush1.bf16.msra.mxu0 0
      %3356 = vmatprep.mubr.bf16.mxu0 0
      %3357 = vmatmul.mubr.bf16.gmra.mrb[0].mxu0 %v3322
      %v3358 = vpop.f32.mrb[0].mxu0
      %v3359 = vadd.f32 %v2224, %v3358
      %v3360 = vpop.f32.mrb[0].mxu0
      %v3361 = vpop.f32.mrb[0].mxu0
      %v3362 = vpop.f32.mrb[0].mxu0
      %3363 = vdwg.mxu0
      %v3372 = vunpack.c.l.b16 %v1705
      %v3373 = vunpack.c.l.b16 %v1706
      %v3374 = vunpack.c.l.b16 %v1707
      %v3375 = vunpack.c.l.b16 %v1708
      %v3376 = vunpack.c.l.b16 %v1709
      %v3377 = vunpack.c.l.b16 %v1710
      %v3378 = vunpack.c.l.b16 %v1711
      %v3379 = vunpack.c.l.b16 %v1712
      %v3380 = vpack.c.b16 %v3373, %v3372
      %v3381 = vpack.c.b16 %v3375, %v3374
      %v3382 = vpack.c.b16 %v3377, %v3376
      %v3383 = vpack.c.b16 %v3379, %v3378
      %v3389 = vsel %vm2449, %v2119, 0
      %3391 = vmatprep.subr.bf16.mxu0 0
      %3392 = vmatpush1.bf16.msra.mxu0 %v3380
      %3393 = vmatprep.subr.bf16.mxu0 0
      %3394 = vmatpush1.bf16.msra.mxu0 %v3381
      %3395 = vmatprep.subr.bf16.mxu0 0
      %3396 = vmatpush1.bf16.msra.mxu0 %v3382
      %3397 = vmatprep.subr.bf16.mxu0 0
      %3398 = vmatpush1.bf16.msra.mxu0 %v3383
      %3399 = vmatprep.subr.bf16.mxu0 0
      %3400 = vmatpush1.bf16.msra.mxu0 0
      %3401 = vmatprep.subr.bf16.mxu0 0
      %3402 = vmatpush1.bf16.msra.mxu0 0
      %3403 = vmatprep.subr.bf16.mxu0 0
      %3404 = vmatpush1.bf16.msra.mxu0 0
      %3405 = vmatprep.subr.bf16.mxu0 0
      %3406 = vmatpush1.bf16.msra.mxu0 0
      %3407 = vmatprep.subr.bf16.mxu0 0
      %3408 = vmatpush1.bf16.msra.mxu0 0
      %3409 = vmatprep.subr.bf16.mxu0 0
      %3410 = vmatpush1.bf16.msra.mxu0 0
      %3411 = vmatprep.subr.bf16.mxu0 0
      %3412 = vmatpush1.bf16.msra.mxu0 0
      %3413 = vmatprep.subr.bf16.mxu0 0
      %3414 = vmatpush1.bf16.msra.mxu0 0
      %3415 = vmatprep.subr.bf16.mxu0 0
      %3416 = vmatpush1.bf16.msra.mxu0 0
      %3417 = vmatprep.subr.bf16.mxu0 0
      %3418 = vmatpush1.bf16.msra.mxu0 0
      %3419 = vmatprep.subr.bf16.mxu0 0
      %3420 = vmatpush1.bf16.msra.mxu0 0
      %3421 = vmatprep.subr.bf16.mxu0 0
      %3422 = vmatpush1.bf16.msra.mxu0 0
      %3423 = vmatprep.mubr.bf16.mxu0 0
      %3424 = vmatmul.mubr.bf16.gmra.mrb[0].mxu0 %v3389
      %v3425 = vpop.f32.mrb[0].mxu0
      %v3426 = vadd.f32 %v2228, %v3425
      %v3427 = vpop.f32.mrb[0].mxu0
      %v3428 = vpop.f32.mrb[0].mxu0
      %v3429 = vpop.f32.mrb[0].mxu0
      %3430 = vdwg.mxu0
      %v3439 = vunpack.c.l.b16 %v1713
      %v3440 = vunpack.c.l.b16 %v1714
      %v3441 = vunpack.c.l.b16 %v1715
      %v3442 = vunpack.c.l.b16 %v1716
      %v3443 = vunpack.c.l.b16 %v1717
      %v3444 = vunpack.c.l.b16 %v1718
      %v3445 = vunpack.c.l.b16 %v1719
      %v3446 = vunpack.c.l.b16 %v1720
      %v3447 = vpack.c.b16 %v3440, %v3439
      %v3448 = vpack.c.b16 %v3442, %v3441
      %v3449 = vpack.c.b16 %v3444, %v3443
      %v3450 = vpack.c.b16 %v3446, %v3445
      %v3456 = vsel %vm2449, %v2120, 0
      %3458 = vmatprep.subr.bf16.mxu0 0
      %3459 = vmatpush1.bf16.msra.mxu0 %v3447
      %3460 = vmatprep.subr.bf16.mxu0 0
      %3461 = vmatpush1.bf16.msra.mxu0 %v3448
      %3462 = vmatprep.subr.bf16.mxu0 0
      %3463 = vmatpush1.bf16.msra.mxu0 %v3449
      %3464 = vmatprep.subr.bf16.mxu0 0
      %3465 = vmatpush1.bf16.msra.mxu0 %v3450
      %3466 = vmatprep.subr.bf16.mxu0 0
      %3467 = vmatpush1.bf16.msra.mxu0 0
      %3468 = vmatprep.subr.bf16.mxu0 0
      %3469 = vmatpush1.bf16.msra.mxu0 0
      %3470 = vmatprep.subr.bf16.mxu0 0
      %3471 = vmatpush1.bf16.msra.mxu0 0
      %3472 = vmatprep.subr.bf16.mxu0 0
      %3473 = vmatpush1.bf16.msra.mxu0 0
      %3474 = vmatprep.subr.bf16.mxu0 0
      %3475 = vmatpush1.bf16.msra.mxu0 0
      %3476 = vmatprep.subr.bf16.mxu0 0
      %3477 = vmatpush1.bf16.msra.mxu0 0
      %3478 = vmatprep.subr.bf16.mxu0 0
      %3479 = vmatpush1.bf16.msra.mxu0 0
      %3480 = vmatprep.subr.bf16.mxu0 0
      %3481 = vmatpush1.bf16.msra.mxu0 0
      %3482 = vmatprep.subr.bf16.mxu0 0
      %3483 = vmatpush1.bf16.msra.mxu0 0
      %3484 = vmatprep.subr.bf16.mxu0 0
      %3485 = vmatpush1.bf16.msra.mxu0 0
      %3486 = vmatprep.subr.bf16.mxu0 0
      %3487 = vmatpush1.bf16.msra.mxu0 0
      %3488 = vmatprep.subr.bf16.mxu0 0
      %3489 = vmatpush1.bf16.msra.mxu0 0
      %3490 = vmatprep.mubr.bf16.mxu0 0
      %3491 = vmatmul.mubr.bf16.gmra.mrb[0].mxu0 %v3456
      %v3492 = vpop.f32.mrb[0].mxu0
      %v3493 = vadd.f32 %v2232, %v3492
      %v3494 = vpop.f32.mrb[0].mxu0
      %v3495 = vpop.f32.mrb[0].mxu0
      %v3496 = vpop.f32.mrb[0].mxu0
      %3497 = vdwg.mxu0
      %v3506 = vunpack.c.l.b16 %v1721
      %v3507 = vunpack.c.l.b16 %v1722
      %v3508 = vunpack.c.l.b16 %v1723
      %v3509 = vunpack.c.l.b16 %v1724
      %v3510 = vunpack.c.l.b16 %v1725
      %v3511 = vunpack.c.l.b16 %v1726
      %v3512 = vunpack.c.l.b16 %v1727
      %v3513 = vunpack.c.l.b16 %v1728
      %v3514 = vpack.c.b16 %v3507, %v3506
      %v3515 = vpack.c.b16 %v3509, %v3508
      %v3516 = vpack.c.b16 %v3511, %v3510
      %v3517 = vpack.c.b16 %v3513, %v3512
      %v3523 = vsel %vm2449, %v2121, 0
      %3525 = vmatprep.subr.bf16.mxu0 0
      %3526 = vmatpush1.bf16.msra.mxu0 %v3514
      %3527 = vmatprep.subr.bf16.mxu0 0
      %3528 = vmatpush1.bf16.msra.mxu0 %v3515
      %3529 = vmatprep.subr.bf16.mxu0 0
      %3530 = vmatpush1.bf16.msra.mxu0 %v3516
      %3531 = vmatprep.subr.bf16.mxu0 0
      %3532 = vmatpush1.bf16.msra.mxu0 %v3517
      %3533 = vmatprep.subr.bf16.mxu0 0
      %3534 = vmatpush1.bf16.msra.mxu0 0
      %3535 = vmatprep.subr.bf16.mxu0 0
      %3536 = vmatpush1.bf16.msra.mxu0 0
      %3537 = vmatprep.subr.bf16.mxu0 0
      %3538 = vmatpush1.bf16.msra.mxu0 0
      %3539 = vmatprep.subr.bf16.mxu0 0
      %3540 = vmatpush1.bf16.msra.mxu0 0
      %3541 = vmatprep.subr.bf16.mxu0 0
      %3542 = vmatpush1.bf16.msra.mxu0 0
      %3543 = vmatprep.subr.bf16.mxu0 0
      %3544 = vmatpush1.bf16.msra.mxu0 0
      %3545 = vmatprep.subr.bf16.mxu0 0
      %3546 = vmatpush1.bf16.msra.mxu0 0
      %3547 = vmatprep.subr.bf16.mxu0 0
      %3548 = vmatpush1.bf16.msra.mxu0 0
      %3549 = vmatprep.subr.bf16.mxu0 0
      %3550 = vmatpush1.bf16.msra.mxu0 0
      %3551 = vmatprep.subr.bf16.mxu0 0
      %3552 = vmatpush1.bf16.msra.mxu0 0
      %3553 = vmatprep.subr.bf16.mxu0 0
      %3554 = vmatpush1.bf16.msra.mxu0 0
      %3555 = vmatprep.subr.bf16.mxu0 0
      %3556 = vmatpush1.bf16.msra.mxu0 0
      %3557 = vmatprep.mubr.bf16.mxu0 0
      %3558 = vmatmul.mubr.bf16.gmra.mrb[0].mxu0 %v3523
      %v3559 = vpop.f32.mrb[0].mxu0
      %v3560 = vadd.f32 %v2236, %v3559
      %v3561 = vpop.f32.mrb[0].mxu0
      %v3562 = vpop.f32.mrb[0].mxu0
      %v3563 = vpop.f32.mrb[0].mxu0
      %3564 = vdwg.mxu0
      %v3573 = vunpack.c.l.b16 %v1729
      %v3574 = vunpack.c.l.b16 %v1730
      %v3575 = vunpack.c.l.b16 %v1731
      %v3576 = vunpack.c.l.b16 %v1732
      %v3577 = vunpack.c.l.b16 %v1733
      %v3578 = vunpack.c.l.b16 %v1734
      %v3579 = vunpack.c.l.b16 %v1735
      %v3580 = vunpack.c.l.b16 %v1736
      %v3581 = vpack.c.b16 %v3574, %v3573
      %v3582 = vpack.c.b16 %v3576, %v3575
      %v3583 = vpack.c.b16 %v3578, %v3577
      %v3584 = vpack.c.b16 %v3580, %v3579
      %v3590 = vsel %vm2449, %v2122, 0
      %3592 = vmatprep.subr.bf16.mxu0 0
      %3593 = vmatpush1.bf16.msra.mxu0 %v3581
      %3594 = vmatprep.subr.bf16.mxu0 0
      %3595 = vmatpush1.bf16.msra.mxu0 %v3582
      %3596 = vmatprep.subr.bf16.mxu0 0
      %3597 = vmatpush1.bf16.msra.mxu0 %v3583
      %3598 = vmatprep.subr.bf16.mxu0 0
      %3599 = vmatpush1.bf16.msra.mxu0 %v3584
      %3600 = vmatprep.subr.bf16.mxu0 0
      %3601 = vmatpush1.bf16.msra.mxu0 0
      %3602 = vmatprep.subr.bf16.mxu0 0
      %3603 = vmatpush1.bf16.msra.mxu0 0
      %3604 = vmatprep.subr.bf16.mxu0 0
      %3605 = vmatpush1.bf16.msra.mxu0 0
      %3606 = vmatprep.subr.bf16.mxu0 0
      %3607 = vmatpush1.bf16.msra.mxu0 0
      %3608 = vmatprep.subr.bf16.mxu0 0
      %3609 = vmatpush1.bf16.msra.mxu0 0
      %3610 = vmatprep.subr.bf16.mxu0 0
      %3611 = vmatpush1.bf16.msra.mxu0 0
      %3612 = vmatprep.subr.bf16.mxu0 0
      %3613 = vmatpush1.bf16.msra.mxu0 0
      %3614 = vmatprep.subr.bf16.mxu0 0
      %3615 = vmatpush1.bf16.msra.mxu0 0
      %3616 = vmatprep.subr.bf16.mxu0 0
      %3617 = vmatpush1.bf16.msra.mxu0 0
      %3618 = vmatprep.subr.bf16.mxu0 0
      %3619 = vmatpush1.bf16.msra.mxu0 0
      %3620 = vmatprep.subr.bf16.mxu0 0
      %3621 = vmatpush1.bf16.msra.mxu0 0
      %3622 = vmatprep.subr.bf16.mxu0 0
      %3623 = vmatpush1.bf16.msra.mxu0 0
      %3624 = vmatprep.mubr.bf16.mxu0 0
      %3625 = vmatmul.mubr.bf16.gmra.mrb[0].mxu0 %v3590
      %v3626 = vpop.f32.mrb[0].mxu0
      %v3627 = vadd.f32 %v2240, %v3626
      %v3628 = vpop.f32.mrb[0].mxu0
      %v3629 = vpop.f32.mrb[0].mxu0
      %v3630 = vpop.f32.mrb[0].mxu0
      %3631 = vdwg.mxu0
      %v3640 = vunpack.c.l.b16 %v1737
      %v3641 = vunpack.c.l.b16 %v1738
      %v3642 = vunpack.c.l.b16 %v1739
      %v3643 = vunpack.c.l.b16 %v1740
      %v3644 = vunpack.c.l.b16 %v1741
      %v3645 = vunpack.c.l.b16 %v1742
      %v3646 = vunpack.c.l.b16 %v1743
      %v3647 = vunpack.c.l.b16 %v1744
      %v3648 = vpack.c.b16 %v3641, %v3640
      %v3649 = vpack.c.b16 %v3643, %v3642
      %v3650 = vpack.c.b16 %v3645, %v3644
      %v3651 = vpack.c.b16 %v3647, %v3646
      %v3657 = vsel %vm2449, %v2123, 0
      %3659 = vmatprep.subr.bf16.mxu0 0
      %3660 = vmatpush1.bf16.msra.mxu0 %v3648
      %3661 = vmatprep.subr.bf16.mxu0 0
      %3662 = vmatpush1.bf16.msra.mxu0 %v3649
      %3663 = vmatprep.subr.bf16.mxu0 0
      %3664 = vmatpush1.bf16.msra.mxu0 %v3650
      %3665 = vmatprep.subr.bf16.mxu0 0
      %3666 = vmatpush1.bf16.msra.mxu0 %v3651
      %3667 = vmatprep.subr.bf16.mxu0 0
      %3668 = vmatpush1.bf16.msra.mxu0 0
      %3669 = vmatprep.subr.bf16.mxu0 0
      %3670 = vmatpush1.bf16.msra.mxu0 0
      %3671 = vmatprep.subr.bf16.mxu0 0
      %3672 = vmatpush1.bf16.msra.mxu0 0
      %3673 = vmatprep.subr.bf16.mxu0 0
      %3674 = vmatpush1.bf16.msra.mxu0 0
      %3675 = vmatprep.subr.bf16.mxu0 0
      %3676 = vmatpush1.bf16.msra.mxu0 0
      %3677 = vmatprep.subr.bf16.mxu0 0
      %3678 = vmatpush1.bf16.msra.mxu0 0
      %3679 = vmatprep.subr.bf16.mxu0 0
      %3680 = vmatpush1.bf16.msra.mxu0 0
      %3681 = vmatprep.subr.bf16.mxu0 0
      %3682 = vmatpush1.bf16.msra.mxu0 0
      %3683 = vmatprep.subr.bf16.mxu0 0
      %3684 = vmatpush1.bf16.msra.mxu0 0
      %3685 = vmatprep.subr.bf16.mxu0 0
      %3686 = vmatpush1.bf16.msra.mxu0 0
      %3687 = vmatprep.subr.bf16.mxu0 0
      %3688 = vmatpush1.bf16.msra.mxu0 0
      %3689 = vmatprep.subr.bf16.mxu0 0
      %3690 = vmatpush1.bf16.msra.mxu0 0
      %3691 = vmatprep.mubr.bf16.mxu0 0
      %3692 = vmatmul.mubr.bf16.gmra.mrb[0].mxu0 %v3657
      %v3693 = vpop.f32.mrb[0].mxu0
      %v3694 = vadd.f32 %v2244, %v3693
      %v3695 = vpop.f32.mrb[0].mxu0
      %v3696 = vpop.f32.mrb[0].mxu0
      %v3697 = vpop.f32.mrb[0].mxu0
      %3698 = vdwg.mxu0
      %v3707 = vunpack.c.l.b16 %v1745
      %v3708 = vunpack.c.l.b16 %v1746
      %v3709 = vunpack.c.l.b16 %v1747
      %v3710 = vunpack.c.l.b16 %v1748
      %v3711 = vunpack.c.l.b16 %v1749
      %v3712 = vunpack.c.l.b16 %v1750
      %v3713 = vunpack.c.l.b16 %v1751
      %v3714 = vunpack.c.l.b16 %v1752
      %v3715 = vpack.c.b16 %v3708, %v3707
      %v3716 = vpack.c.b16 %v3710, %v3709
      %v3717 = vpack.c.b16 %v3712, %v3711
      %v3718 = vpack.c.b16 %v3714, %v3713
      %v3724 = vsel %vm2449, %v2124, 0
      %3726 = vmatprep.subr.bf16.mxu0 0
      %3727 = vmatpush1.bf16.msra.mxu0 %v3715
      %3728 = vmatprep.subr.bf16.mxu0 0
      %3729 = vmatpush1.bf16.msra.mxu0 %v3716
      %3730 = vmatprep.subr.bf16.mxu0 0
      %3731 = vmatpush1.bf16.msra.mxu0 %v3717
      %3732 = vmatprep.subr.bf16.mxu0 0
      %3733 = vmatpush1.bf16.msra.mxu0 %v3718
      %3734 = vmatprep.subr.bf16.mxu0 0
      %3735 = vmatpush1.bf16.msra.mxu0 0
      %3736 = vmatprep.subr.bf16.mxu0 0
      %3737 = vmatpush1.bf16.msra.mxu0 0
      %3738 = vmatprep.subr.bf16.mxu0 0
      %3739 = vmatpush1.bf16.msra.mxu0 0
      %3740 = vmatprep.subr.bf16.mxu0 0
      %3741 = vmatpush1.bf16.msra.mxu0 0
      %3742 = vmatprep.subr.bf16.mxu0 0
      %3743 = vmatpush1.bf16.msra.mxu0 0
      %3744 = vmatprep.subr.bf16.mxu0 0
      %3745 = vmatpush1.bf16.msra.mxu0 0
      %3746 = vmatprep.subr.bf16.mxu0 0
      %3747 = vmatpush1.bf16.msra.mxu0 0
      %3748 = vmatprep.subr.bf16.mxu0 0
      %3749 = vmatpush1.bf16.msra.mxu0 0
      %3750 = vmatprep.subr.bf16.mxu0 0
      %3751 = vmatpush1.bf16.msra.mxu0 0
      %3752 = vmatprep.subr.bf16.mxu0 0
      %3753 = vmatpush1.bf16.msra.mxu0 0
      %3754 = vmatprep.subr.bf16.mxu0 0
      %3755 = vmatpush1.bf16.msra.mxu0 0
      %3756 = vmatprep.subr.bf16.mxu0 0
      %3757 = vmatpush1.bf16.msra.mxu0 0
      %3758 = vmatprep.mubr.bf16.mxu0 0
      %3759 = vmatmul.mubr.bf16.gmra.mrb[0].mxu0 %v3724
      %v3760 = vpop.f32.mrb[0].mxu0
      %v3761 = vadd.f32 %v2248, %v3760
      %v3762 = vpop.f32.mrb[0].mxu0
      %v3763 = vpop.f32.mrb[0].mxu0
      %v3764 = vpop.f32.mrb[0].mxu0
      %3765 = vdwg.mxu0
      %v3774 = vunpack.c.l.b16 %v1753
      %v3775 = vunpack.c.l.b16 %v1754
      %v3776 = vunpack.c.l.b16 %v1755
      %v3777 = vunpack.c.l.b16 %v1756
      %v3778 = vunpack.c.l.b16 %v1757
      %v3779 = vunpack.c.l.b16 %v1758
      %v3780 = vunpack.c.l.b16 %v1759
      %v3781 = vunpack.c.l.b16 %v1760
      %v3782 = vpack.c.b16 %v3775, %v3774
      %v3783 = vpack.c.b16 %v3777, %v3776
      %v3784 = vpack.c.b16 %v3779, %v3778
      %v3785 = vpack.c.b16 %v3781, %v3780
      %v3791 = vsel %vm2449, %v2125, 0
      %3793 = vmatprep.subr.bf16.mxu0 0
      %3794 = vmatpush1.bf16.msra.mxu0 %v3782
      %3795 = vmatprep.subr.bf16.mxu0 0
      %3796 = vmatpush1.bf16.msra.mxu0 %v3783
      %3797 = vmatprep.subr.bf16.mxu0 0
      %3798 = vmatpush1.bf16.msra.mxu0 %v3784
      %3799 = vmatprep.subr.bf16.mxu0 0
      %3800 = vmatpush1.bf16.msra.mxu0 %v3785
      %3801 = vmatprep.subr.bf16.mxu0 0
      %3802 = vmatpush1.bf16.msra.mxu0 0
      %3803 = vmatprep.subr.bf16.mxu0 0
      %3804 = vmatpush1.bf16.msra.mxu0 0
      %3805 = vmatprep.subr.bf16.mxu0 0
      %3806 = vmatpush1.bf16.msra.mxu0 0
      %3807 = vmatprep.subr.bf16.mxu0 0
      %3808 = vmatpush1.bf16.msra.mxu0 0
      %3809 = vmatprep.subr.bf16.mxu0 0
      %3810 = vmatpush1.bf16.msra.mxu0 0
      %3811 = vmatprep.subr.bf16.mxu0 0
      %3812 = vmatpush1.bf16.msra.mxu0 0
      %3813 = vmatprep.subr.bf16.mxu0 0
      %3814 = vmatpush1.bf16.msra.mxu0 0
      %3815 = vmatprep.subr.bf16.mxu0 0
      %3816 = vmatpush1.bf16.msra.mxu0 0
      %3817 = vmatprep.subr.bf16.mxu0 0
      %3818 = vmatpush1.bf16.msra.mxu0 0
      %3819 = vmatprep.subr.bf16.mxu0 0
      %3820 = vmatpush1.bf16.msra.mxu0 0
      %3821 = vmatprep.subr.bf16.mxu0 0
      %3822 = vmatpush1.bf16.msra.mxu0 0
      %3823 = vmatprep.subr.bf16.mxu0 0
      %3824 = vmatpush1.bf16.msra.mxu0 0
      %3825 = vmatprep.mubr.bf16.mxu0 0
      %3826 = vmatmul.mubr.bf16.gmra.mrb[0].mxu0 %v3791
      %v3827 = vpop.f32.mrb[0].mxu0
      %v3828 = vadd.f32 %v2252, %v3827
      %v3829 = vpop.f32.mrb[0].mxu0
      %v3830 = vpop.f32.mrb[0].mxu0
      %v3831 = vpop.f32.mrb[0].mxu0
      %3832 = vdwg.mxu0
      %v3841 = vunpack.c.l.b16 %v1761
      %v3842 = vunpack.c.l.b16 %v1762
      %v3843 = vunpack.c.l.b16 %v1763
      %v3844 = vunpack.c.l.b16 %v1764
      %v3845 = vunpack.c.l.b16 %v1765
      %v3846 = vunpack.c.l.b16 %v1766
      %v3847 = vunpack.c.l.b16 %v1767
      %v3848 = vunpack.c.l.b16 %v1768
      %v3849 = vpack.c.b16 %v3842, %v3841
      %v3850 = vpack.c.b16 %v3844, %v3843
      %v3851 = vpack.c.b16 %v3846, %v3845
      %v3852 = vpack.c.b16 %v3848, %v3847
      %v3858 = vsel %vm2449, %v2126, 0
      %3860 = vmatprep.subr.bf16.mxu0 0
      %3861 = vmatpush1.bf16.msra.mxu0 %v3849
      %3862 = vmatprep.subr.bf16.mxu0 0
      %3863 = vmatpush1.bf16.msra.mxu0 %v3850
      %3864 = vmatprep.subr.bf16.mxu0 0
      %3865 = vmatpush1.bf16.msra.mxu0 %v3851
      %3866 = vmatprep.subr.bf16.mxu0 0
      %3867 = vmatpush1.bf16.msra.mxu0 %v3852
      %3868 = vmatprep.subr.bf16.mxu0 0
      %3869 = vmatpush1.bf16.msra.mxu0 0
      %3870 = vmatprep.subr.bf16.mxu0 0
      %3871 = vmatpush1.bf16.msra.mxu0 0
      %3872 = vmatprep.subr.bf16.mxu0 0
      %3873 = vmatpush1.bf16.msra.mxu0 0
      %3874 = vmatprep.subr.bf16.mxu0 0
      %3875 = vmatpush1.bf16.msra.mxu0 0
      %3876 = vmatprep.subr.bf16.mxu0 0
      %3877 = vmatpush1.bf16.msra.mxu0 0
      %3878 = vmatprep.subr.bf16.mxu0 0
      %3879 = vmatpush1.bf16.msra.mxu0 0
      %3880 = vmatprep.subr.bf16.mxu0 0
      %3881 = vmatpush1.bf16.msra.mxu0 0
      %3882 = vmatprep.subr.bf16.mxu0 0
      %3883 = vmatpush1.bf16.msra.mxu0 0
      %3884 = vmatprep.subr.bf16.mxu0 0
      %3885 = vmatpush1.bf16.msra.mxu0 0
      %3886 = vmatprep.subr.bf16.mxu0 0
      %3887 = vmatpush1.bf16.msra.mxu0 0
      %3888 = vmatprep.subr.bf16.mxu0 0
      %3889 = vmatpush1.bf16.msra.mxu0 0
      %3890 = vmatprep.subr.bf16.mxu0 0
      %3891 = vmatpush1.bf16.msra.mxu0 0
      %3892 = vmatprep.mubr.bf16.mxu0 0
      %3893 = vmatmul.mubr.bf16.gmra.mrb[0].mxu0 %v3858
      %v3894 = vpop.f32.mrb[0].mxu0
      %v3895 = vadd.f32 %v2256, %v3894
      %v3896 = vpop.f32.mrb[0].mxu0
      %v3897 = vpop.f32.mrb[0].mxu0
      %v3898 = vpop.f32.mrb[0].mxu0
      %3899 = vdwg.mxu0
      %v3908 = vunpack.c.l.b16 %v1769
      %v3909 = vunpack.c.l.b16 %v1770
      %v3910 = vunpack.c.l.b16 %v1771
      %v3911 = vunpack.c.l.b16 %v1772
      %v3912 = vunpack.c.l.b16 %v1773
      %v3913 = vunpack.c.l.b16 %v1774
      %v3914 = vunpack.c.l.b16 %v1775
      %v3915 = vunpack.c.l.b16 %v1776
      %v3916 = vpack.c.b16 %v3909, %v3908
      %v3917 = vpack.c.b16 %v3911, %v3910
      %v3918 = vpack.c.b16 %v3913, %v3912
      %v3919 = vpack.c.b16 %v3915, %v3914
      %v3925 = vsel %vm2449, %v2127, 0
      %3927 = vmatprep.subr.bf16.mxu0 0
      %3928 = vmatpush1.bf16.msra.mxu0 %v3916
      %3929 = vmatprep.subr.bf16.mxu0 0
      %3930 = vmatpush1.bf16.msra.mxu0 %v3917
      %3931 = vmatprep.subr.bf16.mxu0 0
      %3932 = vmatpush1.bf16.msra.mxu0 %v3918
      %3933 = vmatprep.subr.bf16.mxu0 0
      %3934 = vmatpush1.bf16.msra.mxu0 %v3919
      %3935 = vmatprep.subr.bf16.mxu0 0
      %3936 = vmatpush1.bf16.msra.mxu0 0
      %3937 = vmatprep.subr.bf16.mxu0 0
      %3938 = vmatpush1.bf16.msra.mxu0 0
      %3939 = vmatprep.subr.bf16.mxu0 0
      %3940 = vmatpush1.bf16.msra.mxu0 0
      %3941 = vmatprep.subr.bf16.mxu0 0
      %3942 = vmatpush1.bf16.msra.mxu0 0
      %3943 = vmatprep.subr.bf16.mxu0 0
      %3944 = vmatpush1.bf16.msra.mxu0 0
      %3945 = vmatprep.subr.bf16.mxu0 0
      %3946 = vmatpush1.bf16.msra.mxu0 0
      %3947 = vmatprep.subr.bf16.mxu0 0
      %3948 = vmatpush1.bf16.msra.mxu0 0
      %3949 = vmatprep.subr.bf16.mxu0 0
      %3950 = vmatpush1.bf16.msra.mxu0 0
      %3951 = vmatprep.subr.bf16.mxu0 0
      %3952 = vmatpush1.bf16.msra.mxu0 0
      %3953 = vmatprep.subr.bf16.mxu0 0
      %3954 = vmatpush1.bf16.msra.mxu0 0
      %3955 = vmatprep.subr.bf16.mxu0 0
      %3956 = vmatpush1.bf16.msra.mxu0 0
      %3957 = vmatprep.subr.bf16.mxu0 0
      %3958 = vmatpush1.bf16.msra.mxu0 0
      %3959 = vmatprep.mubr.bf16.mxu0 0
      %3960 = vmatmul.mubr.bf16.gmra.mrb[0].mxu0 %v3925
      %v3961 = vpop.f32.mrb[0].mxu0
      %v3962 = vadd.f32 %v2260, %v3961
      %v3963 = vpop.f32.mrb[0].mxu0
      %v3964 = vpop.f32.mrb[0].mxu0
      %v3965 = vpop.f32.mrb[0].mxu0
      %3966 = vdwg.mxu0
      %v3975 = vunpack.c.l.b16 %v1777
      %v3976 = vunpack.c.l.b16 %v1778
      %v3977 = vunpack.c.l.b16 %v1779
      %v3978 = vunpack.c.l.b16 %v1780
      %v3979 = vunpack.c.l.b16 %v1781
      %v3980 = vunpack.c.l.b16 %v1782
      %v3981 = vunpack.c.l.b16 %v1783
      %v3982 = vunpack.c.l.b16 %v1784
      %v3983 = vpack.c.b16 %v3976, %v3975
      %v3984 = vpack.c.b16 %v3978, %v3977
      %v3985 = vpack.c.b16 %v3980, %v3979
      %v3986 = vpack.c.b16 %v3982, %v3981
      %v3992 = vsel %vm2449, %v2128, 0
      %3994 = vmatprep.subr.bf16.mxu0 0
      %3995 = vmatpush1.bf16.msra.mxu0 %v3983
      %3996 = vmatprep.subr.bf16.mxu0 0
      %3997 = vmatpush1.bf16.msra.mxu0 %v3984
      %3998 = vmatprep.subr.bf16.mxu0 0
      %3999 = vmatpush1.bf16.msra.mxu0 %v3985
      %4000 = vmatprep.subr.bf16.mxu0 0
      %4001 = vmatpush1.bf16.msra.mxu0 %v3986
      %4002 = vmatprep.subr.bf16.mxu0 0
      %4003 = vmatpush1.bf16.msra.mxu0 0
      %4004 = vmatprep.subr.bf16.mxu0 0
      %4005 = vmatpush1.bf16.msra.mxu0 0
      %4006 = vmatprep.subr.bf16.mxu0 0
      %4007 = vmatpush1.bf16.msra.mxu0 0
      %4008 = vmatprep.subr.bf16.mxu0 0
      %4009 = vmatpush1.bf16.msra.mxu0 0
      %4010 = vmatprep.subr.bf16.mxu0 0
      %4011 = vmatpush1.bf16.msra.mxu0 0
      %4012 = vmatprep.subr.bf16.mxu0 0
      %4013 = vmatpush1.bf16.msra.mxu0 0
      %4014 = vmatprep.subr.bf16.mxu0 0
      %4015 = vmatpush1.bf16.msra.mxu0 0
      %4016 = vmatprep.subr.bf16.mxu0 0
      %4017 = vmatpush1.bf16.msra.mxu0 0
      %4018 = vmatprep.subr.bf16.mxu0 0
      %4019 = vmatpush1.bf16.msra.mxu0 0
      %4020 = vmatprep.subr.bf16.mxu0 0
      %4021 = vmatpush1.bf16.msra.mxu0 0
      %4022 = vmatprep.subr.bf16.mxu0 0
      %4023 = vmatpush1.bf16.msra.mxu0 0
      %4024 = vmatprep.subr.bf16.mxu0 0
      %4025 = vmatpush1.bf16.msra.mxu0 0
      %4026 = vmatprep.mubr.bf16.mxu0 0
      %4027 = vmatmul.mubr.bf16.gmra.mrb[0].mxu0 %v3992
      %v4028 = vpop.f32.mrb[0].mxu0
      %v4029 = vadd.f32 %v2264, %v4028
      %v4030 = vpop.f32.mrb[0].mxu0
      %v4031 = vpop.f32.mrb[0].mxu0
      %v4032 = vpop.f32.mrb[0].mxu0
      %4033 = vdwg.mxu0
      %v4042 = vunpack.c.l.b16 %v1785
      %v4043 = vunpack.c.l.b16 %v1786
      %v4044 = vunpack.c.l.b16 %v1787
      %v4045 = vunpack.c.l.b16 %v1788
      %v4046 = vunpack.c.l.b16 %v1789
      %v4047 = vunpack.c.l.b16 %v1790
      %v4048 = vunpack.c.l.b16 %v1791
      %v4049 = vunpack.c.l.b16 %v1792
      %v4050 = vpack.c.b16 %v4043, %v4042
      %v4051 = vpack.c.b16 %v4045, %v4044
      %v4052 = vpack.c.b16 %v4047, %v4046
      %v4053 = vpack.c.b16 %v4049, %v4048
      %v4059 = vsel %vm2449, %v2129, 0
      %4061 = vmatprep.subr.bf16.mxu0 0
      %4062 = vmatpush1.bf16.msra.mxu0 %v4050
      %4063 = vmatprep.subr.bf16.mxu0 0
      %4064 = vmatpush1.bf16.msra.mxu0 %v4051
      %4065 = vmatprep.subr.bf16.mxu0 0
      %4066 = vmatpush1.bf16.msra.mxu0 %v4052
      %4067 = vmatprep.subr.bf16.mxu0 0
      %4068 = vmatpush1.bf16.msra.mxu0 %v4053
      %4069 = vmatprep.subr.bf16.mxu0 0
      %4070 = vmatpush1.bf16.msra.mxu0 0
      %4071 = vmatprep.subr.bf16.mxu0 0
      %4072 = vmatpush1.bf16.msra.mxu0 0
      %4073 = vmatprep.subr.bf16.mxu0 0
      %4074 = vmatpush1.bf16.msra.mxu0 0
      %4075 = vmatprep.subr.bf16.mxu0 0
      %4076 = vmatpush1.bf16.msra.mxu0 0
      %4077 = vmatprep.subr.bf16.mxu0 0
      %4078 = vmatpush1.bf16.msra.mxu0 0
      %4079 = vmatprep.subr.bf16.mxu0 0
      %4080 = vmatpush1.bf16.msra.mxu0 0
      %4081 = vmatprep.subr.bf16.mxu0 0
      %4082 = vmatpush1.bf16.msra.mxu0 0
      %4083 = vmatprep.subr.bf16.mxu0 0
      %4084 = vmatpush1.bf16.msra.mxu0 0
      %4085 = vmatprep.subr.bf16.mxu0 0
      %4086 = vmatpush1.bf16.msra.mxu0 0
      %4087 = vmatprep.subr.bf16.mxu0 0
      %4088 = vmatpush1.bf16.msra.mxu0 0
      %4089 = vmatprep.subr.bf16.mxu0 0
      %4090 = vmatpush1.bf16.msra.mxu0 0
      %4091 = vmatprep.subr.bf16.mxu0 0
      %4092 = vmatpush1.bf16.msra.mxu0 0
      %4093 = vmatprep.mubr.bf16.mxu0 0
      %4094 = vmatmul.mubr.bf16.gmra.mrb[0].mxu0 %v4059
      %v4095 = vpop.f32.mrb[0].mxu0
      %v4096 = vadd.f32 %v2268, %v4095
      %v4097 = vpop.f32.mrb[0].mxu0
      %v4098 = vpop.f32.mrb[0].mxu0
      %v4099 = vpop.f32.mrb[0].mxu0
      %4100 = vdwg.mxu0
      %v4109 = vunpack.c.l.b16 %v1793
      %v4110 = vunpack.c.l.b16 %v1794
      %v4111 = vunpack.c.l.b16 %v1795
      %v4112 = vunpack.c.l.b16 %v1796
      %v4113 = vunpack.c.l.b16 %v1797
      %v4114 = vunpack.c.l.b16 %v1798
      %v4115 = vunpack.c.l.b16 %v1799
      %v4116 = vunpack.c.l.b16 %v1800
      %v4117 = vpack.c.b16 %v4110, %v4109
      %v4118 = vpack.c.b16 %v4112, %v4111
      %v4119 = vpack.c.b16 %v4114, %v4113
      %v4120 = vpack.c.b16 %v4116, %v4115
      %v4126 = vsel %vm2449, %v2130, 0
      %4128 = vmatprep.subr.bf16.mxu0 0
      %4129 = vmatpush1.bf16.msra.mxu0 %v4117
      %4130 = vmatprep.subr.bf16.mxu0 0
      %4131 = vmatpush1.bf16.msra.mxu0 %v4118
      %4132 = vmatprep.subr.bf16.mxu0 0
      %4133 = vmatpush1.bf16.msra.mxu0 %v4119
      %4134 = vmatprep.subr.bf16.mxu0 0
      %4135 = vmatpush1.bf16.msra.mxu0 %v4120
      %4136 = vmatprep.subr.bf16.mxu0 0
      %4137 = vmatpush1.bf16.msra.mxu0 0
      %4138 = vmatprep.subr.bf16.mxu0 0
      %4139 = vmatpush1.bf16.msra.mxu0 0
      %4140 = vmatprep.subr.bf16.mxu0 0
      %4141 = vmatpush1.bf16.msra.mxu0 0
      %4142 = vmatprep.subr.bf16.mxu0 0
      %4143 = vmatpush1.bf16.msra.mxu0 0
      %4144 = vmatprep.subr.bf16.mxu0 0
      %4145 = vmatpush1.bf16.msra.mxu0 0
      %4146 = vmatprep.subr.bf16.mxu0 0
      %4147 = vmatpush1.bf16.msra.mxu0 0
      %4148 = vmatprep.subr.bf16.mxu0 0
      %4149 = vmatpush1.bf16.msra.mxu0 0
      %4150 = vmatprep.subr.bf16.mxu0 0
      %4151 = vmatpush1.bf16.msra.mxu0 0
      %4152 = vmatprep.subr.bf16.mxu0 0
      %4153 = vmatpush1.bf16.msra.mxu0 0
      %4154 = vmatprep.subr.bf16.mxu0 0
      %4155 = vmatpush1.bf16.msra.mxu0 0
      %4156 = vmatprep.subr.bf16.mxu0 0
      %4157 = vmatpush1.bf16.msra.mxu0 0
      %4158 = vmatprep.subr.bf16.mxu0 0
      %4159 = vmatpush1.bf16.msra.mxu0 0
      %4160 = vmatprep.mubr.bf16.mxu0 0
      %4161 = vmatmul.mubr.bf16.gmra.mrb[0].mxu0 %v4126
      %v4162 = vpop.f32.mrb[0].mxu0
      %v4163 = vadd.f32 %v2272, %v4162
      %v4164 = vpop.f32.mrb[0].mxu0
      %v4165 = vpop.f32.mrb[0].mxu0
      %v4166 = vpop.f32.mrb[0].mxu0
      %4167 = vdwg.mxu0
      %v4176 = vunpack.c.l.b16 %v1801
      %v4177 = vunpack.c.l.b16 %v1802
      %v4178 = vunpack.c.l.b16 %v1803
      %v4179 = vunpack.c.l.b16 %v1804
      %v4180 = vunpack.c.l.b16 %v1805
      %v4181 = vunpack.c.l.b16 %v1806
      %v4182 = vunpack.c.l.b16 %v1807
      %v4183 = vunpack.c.l.b16 %v1808
      %v4184 = vpack.c.b16 %v4177, %v4176
      %v4185 = vpack.c.b16 %v4179, %v4178
      %v4186 = vpack.c.b16 %v4181, %v4180
      %v4187 = vpack.c.b16 %v4183, %v4182
      %v4193 = vsel %vm2449, %v2131, 0
      %4195 = vmatprep.subr.bf16.mxu0 0
      %4196 = vmatpush1.bf16.msra.mxu0 %v4184
      %4197 = vmatprep.subr.bf16.mxu0 0
      %4198 = vmatpush1.bf16.msra.mxu0 %v4185
      %4199 = vmatprep.subr.bf16.mxu0 0
      %4200 = vmatpush1.bf16.msra.mxu0 %v4186
      %4201 = vmatprep.subr.bf16.mxu0 0
      %4202 = vmatpush1.bf16.msra.mxu0 %v4187
      %4203 = vmatprep.subr.bf16.mxu0 0
      %4204 = vmatpush1.bf16.msra.mxu0 0
      %4205 = vmatprep.subr.bf16.mxu0 0
      %4206 = vmatpush1.bf16.msra.mxu0 0
      %4207 = vmatprep.subr.bf16.mxu0 0
      %4208 = vmatpush1.bf16.msra.mxu0 0
      %4209 = vmatprep.subr.bf16.mxu0 0
      %4210 = vmatpush1.bf16.msra.mxu0 0
      %4211 = vmatprep.subr.bf16.mxu0 0
      %4212 = vmatpush1.bf16.msra.mxu0 0
      %4213 = vmatprep.subr.bf16.mxu0 0
      %4214 = vmatpush1.bf16.msra.mxu0 0
      %4215 = vmatprep.subr.bf16.mxu0 0
      %4216 = vmatpush1.bf16.msra.mxu0 0
      %4217 = vmatprep.subr.bf16.mxu0 0
      %4218 = vmatpush1.bf16.msra.mxu0 0
      %4219 = vmatprep.subr.bf16.mxu0 0
      %4220 = vmatpush1.bf16.msra.mxu0 0
      %4221 = vmatprep.subr.bf16.mxu0 0
      %4222 = vmatpush1.bf16.msra.mxu0 0
      %4223 = vmatprep.subr.bf16.mxu0 0
      %4224 = vmatpush1.bf16.msra.mxu0 0
      %4225 = vmatprep.subr.bf16.mxu0 0
      %4226 = vmatpush1.bf16.msra.mxu0 0
      %4227 = vmatprep.mubr.bf16.mxu0 0
      %4228 = vmatmul.mubr.bf16.gmra.mrb[0].mxu0 %v4193
      %v4229 = vpop.f32.mrb[0].mxu0
      %v4230 = vadd.f32 %v2276, %v4229
      %v4231 = vpop.f32.mrb[0].mxu0
      %v4232 = vpop.f32.mrb[0].mxu0
      %v4233 = vpop.f32.mrb[0].mxu0
      %4234 = vdwg.mxu0
      %v4243 = vunpack.c.l.b16 %v1809
      %v4244 = vunpack.c.l.b16 %v1810
      %v4245 = vunpack.c.l.b16 %v1811
      %v4246 = vunpack.c.l.b16 %v1812
      %v4247 = vunpack.c.l.b16 %v1813
      %v4248 = vunpack.c.l.b16 %v1814
      %v4249 = vunpack.c.l.b16 %v1815
      %v4250 = vunpack.c.l.b16 %v1816
      %v4251 = vpack.c.b16 %v4244, %v4243
      %v4252 = vpack.c.b16 %v4246, %v4245
      %v4253 = vpack.c.b16 %v4248, %v4247
      %v4254 = vpack.c.b16 %v4250, %v4249
      %v4260 = vsel %vm2449, %v2132, 0
      %4262 = vmatprep.subr.bf16.mxu0 0
      %4263 = vmatpush1.bf16.msra.mxu0 %v4251
      %4264 = vmatprep.subr.bf16.mxu0 0
      %4265 = vmatpush1.bf16.msra.mxu0 %v4252
      %4266 = vmatprep.subr.bf16.mxu0 0
      %4267 = vmatpush1.bf16.msra.mxu0 %v4253
      %4268 = vmatprep.subr.bf16.mxu0 0
      %4269 = vmatpush1.bf16.msra.mxu0 %v4254
      %4270 = vmatprep.subr.bf16.mxu0 0
      %4271 = vmatpush1.bf16.msra.mxu0 0
      %4272 = vmatprep.subr.bf16.mxu0 0
      %4273 = vmatpush1.bf16.msra.mxu0 0
      %4274 = vmatprep.subr.bf16.mxu0 0
      %4275 = vmatpush1.bf16.msra.mxu0 0
      %4276 = vmatprep.subr.bf16.mxu0 0
      %4277 = vmatpush1.bf16.msra.mxu0 0
      %4278 = vmatprep.subr.bf16.mxu0 0
      %4279 = vmatpush1.bf16.msra.mxu0 0
      %4280 = vmatprep.subr.bf16.mxu0 0
      %4281 = vmatpush1.bf16.msra.mxu0 0
      %4282 = vmatprep.subr.bf16.mxu0 0
      %4283 = vmatpush1.bf16.msra.mxu0 0
      %4284 = vmatprep.subr.bf16.mxu0 0
      %4285 = vmatpush1.bf16.msra.mxu0 0
      %4286 = vmatprep.subr.bf16.mxu0 0
      %4287 = vmatpush1.bf16.msra.mxu0 0
      %4288 = vmatprep.subr.bf16.mxu0 0
      %4289 = vmatpush1.bf16.msra.mxu0 0
      %4290 = vmatprep.subr.bf16.mxu0 0
      %4291 = vmatpush1.bf16.msra.mxu0 0
      %4292 = vmatprep.subr.bf16.mxu0 0
      %4293 = vmatpush1.bf16.msra.mxu0 0
      %4294 = vmatprep.mubr.bf16.mxu0 0
      %4295 = vmatmul.mubr.bf16.gmra.mrb[0].mxu0 %v4260
      %v4296 = vpop.f32.mrb[0].mxu0
      %v4297 = vadd.f32 %v2280, %v4296
      %v4298 = vpop.f32.mrb[0].mxu0
      %v4299 = vpop.f32.mrb[0].mxu0
      %v4300 = vpop.f32.mrb[0].mxu0
      %4301 = vdwg.mxu0
      %v4310 = vunpack.c.l.b16 %v1817
      %v4311 = vunpack.c.l.b16 %v1818
      %v4312 = vunpack.c.l.b16 %v1819
      %v4313 = vunpack.c.l.b16 %v1820
      %v4314 = vunpack.c.l.b16 %v1821
      %v4315 = vunpack.c.l.b16 %v1822
      %v4316 = vunpack.c.l.b16 %v1823
      %v4317 = vunpack.c.l.b16 %v1824
      %v4318 = vpack.c.b16 %v4311, %v4310
      %v4319 = vpack.c.b16 %v4313, %v4312
      %v4320 = vpack.c.b16 %v4315, %v4314
      %v4321 = vpack.c.b16 %v4317, %v4316
      %v4327 = vsel %vm2449, %v2133, 0
      %4329 = vmatprep.subr.bf16.mxu0 0
      %4330 = vmatpush1.bf16.msra.mxu0 %v4318
      %4331 = vmatprep.subr.bf16.mxu0 0
      %4332 = vmatpush1.bf16.msra.mxu0 %v4319
      %4333 = vmatprep.subr.bf16.mxu0 0
      %4334 = vmatpush1.bf16.msra.mxu0 %v4320
      %4335 = vmatprep.subr.bf16.mxu0 0
      %4336 = vmatpush1.bf16.msra.mxu0 %v4321
      %4337 = vmatprep.subr.bf16.mxu0 0
      %4338 = vmatpush1.bf16.msra.mxu0 0
      %4339 = vmatprep.subr.bf16.mxu0 0
      %4340 = vmatpush1.bf16.msra.mxu0 0
      %4341 = vmatprep.subr.bf16.mxu0 0
      %4342 = vmatpush1.bf16.msra.mxu0 0
      %4343 = vmatprep.subr.bf16.mxu0 0
      %4344 = vmatpush1.bf16.msra.mxu0 0
      %4345 = vmatprep.subr.bf16.mxu0 0
      %4346 = vmatpush1.bf16.msra.mxu0 0
      %4347 = vmatprep.subr.bf16.mxu0 0
      %4348 = vmatpush1.bf16.msra.mxu0 0
      %4349 = vmatprep.subr.bf16.mxu0 0
      %4350 = vmatpush1.bf16.msra.mxu0 0
      %4351 = vmatprep.subr.bf16.mxu0 0
      %4352 = vmatpush1.bf16.msra.mxu0 0
      %4353 = vmatprep.subr.bf16.mxu0 0
      %4354 = vmatpush1.bf16.msra.mxu0 0
      %4355 = vmatprep.subr.bf16.mxu0 0
      %4356 = vmatpush1.bf16.msra.mxu0 0
      %4357 = vmatprep.subr.bf16.mxu0 0
      %4358 = vmatpush1.bf16.msra.mxu0 0
      %4359 = vmatprep.subr.bf16.mxu0 0
      %4360 = vmatpush1.bf16.msra.mxu0 0
      %4361 = vmatprep.mubr.bf16.mxu0 0
      %4362 = vmatmul.mubr.bf16.gmra.mrb[0].mxu0 %v4327
      %v4363 = vpop.f32.mrb[0].mxu0
      %v4364 = vadd.f32 %v2284, %v4363
      %v4365 = vpop.f32.mrb[0].mxu0
      %v4366 = vpop.f32.mrb[0].mxu0
      %v4367 = vpop.f32.mrb[0].mxu0
      %4368 = vdwg.mxu0
      %v4377 = vunpack.c.l.b16 %v1825
      %v4378 = vunpack.c.l.b16 %v1826
      %v4379 = vunpack.c.l.b16 %v1827
      %v4380 = vunpack.c.l.b16 %v1828
      %v4381 = vunpack.c.l.b16 %v1829
      %v4382 = vunpack.c.l.b16 %v1830
      %v4383 = vunpack.c.l.b16 %v1831
      %v4384 = vunpack.c.l.b16 %v1832
      %v4385 = vpack.c.b16 %v4378, %v4377
      %v4386 = vpack.c.b16 %v4380, %v4379
      %v4387 = vpack.c.b16 %v4382, %v4381
      %v4388 = vpack.c.b16 %v4384, %v4383
      %v4394 = vsel %vm2449, %v2134, 0
      %4396 = vmatprep.subr.bf16.mxu0 0
      %4397 = vmatpush1.bf16.msra.mxu0 %v4385
      %4398 = vmatprep.subr.bf16.mxu0 0
      %4399 = vmatpush1.bf16.msra.mxu0 %v4386
      %4400 = vmatprep.subr.bf16.mxu0 0
      %4401 = vmatpush1.bf16.msra.mxu0 %v4387
      %4402 = vmatprep.subr.bf16.mxu0 0
      %4403 = vmatpush1.bf16.msra.mxu0 %v4388
      %4404 = vmatprep.subr.bf16.mxu0 0
      %4405 = vmatpush1.bf16.msra.mxu0 0
      %4406 = vmatprep.subr.bf16.mxu0 0
      %4407 = vmatpush1.bf16.msra.mxu0 0
      %4408 = vmatprep.subr.bf16.mxu0 0
      %4409 = vmatpush1.bf16.msra.mxu0 0
      %4410 = vmatprep.subr.bf16.mxu0 0
      %4411 = vmatpush1.bf16.msra.mxu0 0
      %4412 = vmatprep.subr.bf16.mxu0 0
      %4413 = vmatpush1.bf16.msra.mxu0 0
      %4414 = vmatprep.subr.bf16.mxu0 0
      %4415 = vmatpush1.bf16.msra.mxu0 0
      %4416 = vmatprep.subr.bf16.mxu0 0
      %4417 = vmatpush1.bf16.msra.mxu0 0
      %4418 = vmatprep.subr.bf16.mxu0 0
      %4419 = vmatpush1.bf16.msra.mxu0 0
      %4420 = vmatprep.subr.bf16.mxu0 0
      %4421 = vmatpush1.bf16.msra.mxu0 0
      %4422 = vmatprep.subr.bf16.mxu0 0
      %4423 = vmatpush1.bf16.msra.mxu0 0
      %4424 = vmatprep.subr.bf16.mxu0 0
      %4425 = vmatpush1.bf16.msra.mxu0 0
      %4426 = vmatprep.subr.bf16.mxu0 0
      %4427 = vmatpush1.bf16.msra.mxu0 0
      %4428 = vmatprep.mubr.bf16.mxu0 0
      %4429 = vmatmul.mubr.bf16.gmra.mrb[0].mxu0 %v4394
      %v4430 = vpop.f32.mrb[0].mxu0
      %v4431 = vadd.f32 %v2288, %v4430
      %v4432 = vpop.f32.mrb[0].mxu0
      %v4433 = vpop.f32.mrb[0].mxu0
      %v4434 = vpop.f32.mrb[0].mxu0
      %4435 = vdwg.mxu0
      %v4444 = vunpack.c.l.b16 %v1833
      %v4445 = vunpack.c.l.b16 %v1834
      %v4446 = vunpack.c.l.b16 %v1835
      %v4447 = vunpack.c.l.b16 %v1836
      %v4448 = vunpack.c.l.b16 %v1837
      %v4449 = vunpack.c.l.b16 %v1838
      %v4450 = vunpack.c.l.b16 %v1839
      %v4451 = vunpack.c.l.b16 %v1840
      %v4452 = vpack.c.b16 %v4445, %v4444
      %v4453 = vpack.c.b16 %v4447, %v4446
      %v4454 = vpack.c.b16 %v4449, %v4448
      %v4455 = vpack.c.b16 %v4451, %v4450
      %v4461 = vsel %vm2449, %v2135, 0
      %4463 = vmatprep.subr.bf16.mxu0 0
      %4464 = vmatpush1.bf16.msra.mxu0 %v4452
      %4465 = vmatprep.subr.bf16.mxu0 0
      %4466 = vmatpush1.bf16.msra.mxu0 %v4453
      %4467 = vmatprep.subr.bf16.mxu0 0
      %4468 = vmatpush1.bf16.msra.mxu0 %v4454
      %4469 = vmatprep.subr.bf16.mxu0 0
      %4470 = vmatpush1.bf16.msra.mxu0 %v4455
      %4471 = vmatprep.subr.bf16.mxu0 0
      %4472 = vmatpush1.bf16.msra.mxu0 0
      %4473 = vmatprep.subr.bf16.mxu0 0
      %4474 = vmatpush1.bf16.msra.mxu0 0
      %4475 = vmatprep.subr.bf16.mxu0 0
      %4476 = vmatpush1.bf16.msra.mxu0 0
      %4477 = vmatprep.subr.bf16.mxu0 0
      %4478 = vmatpush1.bf16.msra.mxu0 0
      %4479 = vmatprep.subr.bf16.mxu0 0
      %4480 = vmatpush1.bf16.msra.mxu0 0
      %4481 = vmatprep.subr.bf16.mxu0 0
      %4482 = vmatpush1.bf16.msra.mxu0 0
      %4483 = vmatprep.subr.bf16.mxu0 0
      %4484 = vmatpush1.bf16.msra.mxu0 0
      %4485 = vmatprep.subr.bf16.mxu0 0
      %4486 = vmatpush1.bf16.msra.mxu0 0
      %4487 = vmatprep.subr.bf16.mxu0 0
      %4488 = vmatpush1.bf16.msra.mxu0 0
      %4489 = vmatprep.subr.bf16.mxu0 0
      %4490 = vmatpush1.bf16.msra.mxu0 0
      %4491 = vmatprep.subr.bf16.mxu0 0
      %4492 = vmatpush1.bf16.msra.mxu0 0
      %4493 = vmatprep.subr.bf16.mxu0 0
      %4494 = vmatpush1.bf16.msra.mxu0 0
      %4495 = vmatprep.mubr.bf16.mxu0 0
      %4496 = vmatmul.mubr.bf16.gmra.mrb[0].mxu0 %v4461
      %v4497 = vpop.f32.mrb[0].mxu0
      %v4498 = vadd.f32 %v2292, %v4497
      %v4499 = vpop.f32.mrb[0].mxu0
      %v4500 = vpop.f32.mrb[0].mxu0
      %v4501 = vpop.f32.mrb[0].mxu0
      %4502 = vdwg.mxu0
      %v4511 = vunpack.c.l.b16 %v1841
      %v4512 = vunpack.c.l.b16 %v1842
      %v4513 = vunpack.c.l.b16 %v1843
      %v4514 = vunpack.c.l.b16 %v1844
      %v4515 = vunpack.c.l.b16 %v1845
      %v4516 = vunpack.c.l.b16 %v1846
      %v4517 = vunpack.c.l.b16 %v1847
      %v4518 = vunpack.c.l.b16 %v1848
      %v4519 = vpack.c.b16 %v4512, %v4511
      %v4520 = vpack.c.b16 %v4514, %v4513
      %v4521 = vpack.c.b16 %v4516, %v4515
      %v4522 = vpack.c.b16 %v4518, %v4517
      %v4528 = vsel %vm2449, %v2136, 0
      %4530 = vmatprep.subr.bf16.mxu0 0
      %4531 = vmatpush1.bf16.msra.mxu0 %v4519
      %4532 = vmatprep.subr.bf16.mxu0 0
      %4533 = vmatpush1.bf16.msra.mxu0 %v4520
      %4534 = vmatprep.subr.bf16.mxu0 0
      %4535 = vmatpush1.bf16.msra.mxu0 %v4521
      %4536 = vmatprep.subr.bf16.mxu0 0
      %4537 = vmatpush1.bf16.msra.mxu0 %v4522
      %4538 = vmatprep.subr.bf16.mxu0 0
      %4539 = vmatpush1.bf16.msra.mxu0 0
      %4540 = vmatprep.subr.bf16.mxu0 0
      %4541 = vmatpush1.bf16.msra.mxu0 0
      %4542 = vmatprep.subr.bf16.mxu0 0
      %4543 = vmatpush1.bf16.msra.mxu0 0
      %4544 = vmatprep.subr.bf16.mxu0 0
      %4545 = vmatpush1.bf16.msra.mxu0 0
      %4546 = vmatprep.subr.bf16.mxu0 0
      %4547 = vmatpush1.bf16.msra.mxu0 0
      %4548 = vmatprep.subr.bf16.mxu0 0
      %4549 = vmatpush1.bf16.msra.mxu0 0
      %4550 = vmatprep.subr.bf16.mxu0 0
      %4551 = vmatpush1.bf16.msra.mxu0 0
      %4552 = vmatprep.subr.bf16.mxu0 0
      %4553 = vmatpush1.bf16.msra.mxu0 0
      %4554 = vmatprep.subr.bf16.mxu0 0
      %4555 = vmatpush1.bf16.msra.mxu0 0
      %4556 = vmatprep.subr.bf16.mxu0 0
      %4557 = vmatpush1.bf16.msra.mxu0 0
      %4558 = vmatprep.subr.bf16.mxu0 0
      %4559 = vmatpush1.bf16.msra.mxu0 0
      %4560 = vmatprep.subr.bf16.mxu0 0
      %4561 = vmatpush1.bf16.msra.mxu0 0
      %4562 = vmatprep.mubr.bf16.mxu0 0
      %4563 = vmatmul.mubr.bf16.gmra.mrb[0].mxu0 %v4528
      %v4564 = vpop.f32.mrb[0].mxu0
      %v4565 = vadd.f32 %v2296, %v4564
      %v4566 = vpop.f32.mrb[0].mxu0
      %v4567 = vpop.f32.mrb[0].mxu0
      %v4568 = vpop.f32.mrb[0].mxu0
      %4569 = vdwg.mxu0
      %v4578 = vunpack.c.l.b16 %v1849
      %v4579 = vunpack.c.l.b16 %v1850
      %v4580 = vunpack.c.l.b16 %v1851
      %v4581 = vunpack.c.l.b16 %v1852
      %v4582 = vunpack.c.l.b16 %v1853
      %v4583 = vunpack.c.l.b16 %v1854
      %v4584 = vunpack.c.l.b16 %v1855
      %v4585 = vunpack.c.l.b16 %v1856
      %v4586 = vpack.c.b16 %v4579, %v4578
      %v4587 = vpack.c.b16 %v4581, %v4580
      %v4588 = vpack.c.b16 %v4583, %v4582
      %v4589 = vpack.c.b16 %v4585, %v4584
      %v4595 = vsel %vm2449, %v2137, 0
      %4597 = vmatprep.subr.bf16.mxu0 0
      %4598 = vmatpush1.bf16.msra.mxu0 %v4586
      %4599 = vmatprep.subr.bf16.mxu0 0
      %4600 = vmatpush1.bf16.msra.mxu0 %v4587
      %4601 = vmatprep.subr.bf16.mxu0 0
      %4602 = vmatpush1.bf16.msra.mxu0 %v4588
      %4603 = vmatprep.subr.bf16.mxu0 0
      %4604 = vmatpush1.bf16.msra.mxu0 %v4589
      %4605 = vmatprep.subr.bf16.mxu0 0
      %4606 = vmatpush1.bf16.msra.mxu0 0
      %4607 = vmatprep.subr.bf16.mxu0 0
      %4608 = vmatpush1.bf16.msra.mxu0 0
      %4609 = vmatprep.subr.bf16.mxu0 0
      %4610 = vmatpush1.bf16.msra.mxu0 0
      %4611 = vmatprep.subr.bf16.mxu0 0
      %4612 = vmatpush1.bf16.msra.mxu0 0
      %4613 = vmatprep.subr.bf16.mxu0 0
      %4614 = vmatpush1.bf16.msra.mxu0 0
      %4615 = vmatprep.subr.bf16.mxu0 0
      %4616 = vmatpush1.bf16.msra.mxu0 0
      %4617 = vmatprep.subr.bf16.mxu0 0
      %4618 = vmatpush1.bf16.msra.mxu0 0
      %4619 = vmatprep.subr.bf16.mxu0 0
      %4620 = vmatpush1.bf16.msra.mxu0 0
      %4621 = vmatprep.subr.bf16.mxu0 0
      %4622 = vmatpush1.bf16.msra.mxu0 0
      %4623 = vmatprep.subr.bf16.mxu0 0
      %4624 = vmatpush1.bf16.msra.mxu0 0
      %4625 = vmatprep.subr.bf16.mxu0 0
      %4626 = vmatpush1.bf16.msra.mxu0 0
      %4627 = vmatprep.subr.bf16.mxu0 0
      %4628 = vmatpush1.bf16.msra.mxu0 0
      %4629 = vmatprep.mubr.bf16.mxu0 0
      %4630 = vmatmul.mubr.bf16.gmra.mrb[0].mxu0 %v4595
      %v4631 = vpop.f32.mrb[0].mxu0
      %v4632 = vadd.f32 %v2300, %v4631
      %v4633 = vpop.f32.mrb[0].mxu0
      %v4634 = vpop.f32.mrb[0].mxu0
      %v4635 = vpop.f32.mrb[0].mxu0
      %4636 = vdwg.mxu0
      %v4645 = vunpack.c.l.b16 %v1857
      %v4646 = vunpack.c.l.b16 %v1858
      %v4647 = vunpack.c.l.b16 %v1859
      %v4648 = vunpack.c.l.b16 %v1860
      %v4649 = vunpack.c.l.b16 %v1861
      %v4650 = vunpack.c.l.b16 %v1862
      %v4651 = vunpack.c.l.b16 %v1863
      %v4652 = vunpack.c.l.b16 %v1864
      %v4653 = vpack.c.b16 %v4646, %v4645
      %v4654 = vpack.c.b16 %v4648, %v4647
      %v4655 = vpack.c.b16 %v4650, %v4649
      %v4656 = vpack.c.b16 %v4652, %v4651
      %v4662 = vsel %vm2449, %v2138, 0
      %4664 = vmatprep.subr.bf16.mxu0 0
      %4665 = vmatpush1.bf16.msra.mxu0 %v4653
      %4666 = vmatprep.subr.bf16.mxu0 0
      %4667 = vmatpush1.bf16.msra.mxu0 %v4654
      %4668 = vmatprep.subr.bf16.mxu0 0
      %4669 = vmatpush1.bf16.msra.mxu0 %v4655
      %4670 = vmatprep.subr.bf16.mxu0 0
      %4671 = vmatpush1.bf16.msra.mxu0 %v4656
      %4672 = vmatprep.subr.bf16.mxu0 0
      %4673 = vmatpush1.bf16.msra.mxu0 0
      %4674 = vmatprep.subr.bf16.mxu0 0
      %4675 = vmatpush1.bf16.msra.mxu0 0
      %4676 = vmatprep.subr.bf16.mxu0 0
      %4677 = vmatpush1.bf16.msra.mxu0 0
      %4678 = vmatprep.subr.bf16.mxu0 0
      %4679 = vmatpush1.bf16.msra.mxu0 0
      %4680 = vmatprep.subr.bf16.mxu0 0
      %4681 = vmatpush1.bf16.msra.mxu0 0
      %4682 = vmatprep.subr.bf16.mxu0 0
      %4683 = vmatpush1.bf16.msra.mxu0 0
      %4684 = vmatprep.subr.bf16.mxu0 0
      %4685 = vmatpush1.bf16.msra.mxu0 0
      %4686 = vmatprep.subr.bf16.mxu0 0
      %4687 = vmatpush1.bf16.msra.mxu0 0
      %4688 = vmatprep.subr.bf16.mxu0 0
      %4689 = vmatpush1.bf16.msra.mxu0 0
      %4690 = vmatprep.subr.bf16.mxu0 0
      %4691 = vmatpush1.bf16.msra.mxu0 0
      %4692 = vmatprep.subr.bf16.mxu0 0
      %4693 = vmatpush1.bf16.msra.mxu0 0
      %4694 = vmatprep.subr.bf16.mxu0 0
      %4695 = vmatpush1.bf16.msra.mxu0 0
      %4696 = vmatprep.mubr.bf16.mxu0 0
      %4697 = vmatmul.mubr.bf16.gmra.mrb[0].mxu0 %v4662
      %v4698 = vpop.f32.mrb[0].mxu0
      %v4699 = vadd.f32 %v2304, %v4698
      %v4700 = vpop.f32.mrb[0].mxu0
      %v4701 = vpop.f32.mrb[0].mxu0
      %v4702 = vpop.f32.mrb[0].mxu0
      %4703 = vdwg.mxu0
      %v4712 = vunpack.c.l.b16 %v1865
      %v4713 = vunpack.c.l.b16 %v1866
      %v4714 = vunpack.c.l.b16 %v1867
      %v4715 = vunpack.c.l.b16 %v1868
      %v4716 = vunpack.c.l.b16 %v1869
      %v4717 = vunpack.c.l.b16 %v1870
      %v4718 = vunpack.c.l.b16 %v1871
      %v4719 = vunpack.c.l.b16 %v1872
      %v4720 = vpack.c.b16 %v4713, %v4712
      %v4721 = vpack.c.b16 %v4715, %v4714
      %v4722 = vpack.c.b16 %v4717, %v4716
      %v4723 = vpack.c.b16 %v4719, %v4718
      %v4729 = vsel %vm2449, %v2139, 0
      %4731 = vmatprep.subr.bf16.mxu0 0
      %4732 = vmatpush1.bf16.msra.mxu0 %v4720
      %4733 = vmatprep.subr.bf16.mxu0 0
      %4734 = vmatpush1.bf16.msra.mxu0 %v4721
      %4735 = vmatprep.subr.bf16.mxu0 0
      %4736 = vmatpush1.bf16.msra.mxu0 %v4722
      %4737 = vmatprep.subr.bf16.mxu0 0
      %4738 = vmatpush1.bf16.msra.mxu0 %v4723
      %4739 = vmatprep.subr.bf16.mxu0 0
      %4740 = vmatpush1.bf16.msra.mxu0 0
      %4741 = vmatprep.subr.bf16.mxu0 0
      %4742 = vmatpush1.bf16.msra.mxu0 0
      %4743 = vmatprep.subr.bf16.mxu0 0
      %4744 = vmatpush1.bf16.msra.mxu0 0
      %4745 = vmatprep.subr.bf16.mxu0 0
      %4746 = vmatpush1.bf16.msra.mxu0 0
      %4747 = vmatprep.subr.bf16.mxu0 0
      %4748 = vmatpush1.bf16.msra.mxu0 0
      %4749 = vmatprep.subr.bf16.mxu0 0
      %4750 = vmatpush1.bf16.msra.mxu0 0
      %4751 = vmatprep.subr.bf16.mxu0 0
      %4752 = vmatpush1.bf16.msra.mxu0 0
      %4753 = vmatprep.subr.bf16.mxu0 0
      %4754 = vmatpush1.bf16.msra.mxu0 0
      %4755 = vmatprep.subr.bf16.mxu0 0
      %4756 = vmatpush1.bf16.msra.mxu0 0
      %4757 = vmatprep.subr.bf16.mxu0 0
      %4758 = vmatpush1.bf16.msra.mxu0 0
      %4759 = vmatprep.subr.bf16.mxu0 0
      %4760 = vmatpush1.bf16.msra.mxu0 0
      %4761 = vmatprep.subr.bf16.mxu0 0
      %4762 = vmatpush1.bf16.msra.mxu0 0
      %4763 = vmatprep.mubr.bf16.mxu0 0
      %4764 = vmatmul.mubr.bf16.gmra.mrb[0].mxu0 %v4729
      %v4765 = vpop.f32.mrb[0].mxu0
      %v4766 = vadd.f32 %v2308, %v4765
      %v4767 = vpop.f32.mrb[0].mxu0
      %v4768 = vpop.f32.mrb[0].mxu0
      %v4769 = vpop.f32.mrb[0].mxu0
      %4770 = vdwg.mxu0
      %v4779 = vunpack.c.l.b16 %v1873
      %v4780 = vunpack.c.l.b16 %v1874
      %v4781 = vunpack.c.l.b16 %v1875
      %v4782 = vunpack.c.l.b16 %v1876
      %v4783 = vunpack.c.l.b16 %v1877
      %v4784 = vunpack.c.l.b16 %v1878
      %v4785 = vunpack.c.l.b16 %v1879
      %v4786 = vunpack.c.l.b16 %v1880
      %v4787 = vpack.c.b16 %v4780, %v4779
      %v4788 = vpack.c.b16 %v4782, %v4781
      %v4789 = vpack.c.b16 %v4784, %v4783
      %v4790 = vpack.c.b16 %v4786, %v4785
      %v4796 = vsel %vm2449, %v2140, 0
      %4798 = vmatprep.subr.bf16.mxu0 0
      %4799 = vmatpush1.bf16.msra.mxu0 %v4787
      %4800 = vmatprep.subr.bf16.mxu0 0
      %4801 = vmatpush1.bf16.msra.mxu0 %v4788
      %4802 = vmatprep.subr.bf16.mxu0 0
      %4803 = vmatpush1.bf16.msra.mxu0 %v4789
      %4804 = vmatprep.subr.bf16.mxu0 0
      %4805 = vmatpush1.bf16.msra.mxu0 %v4790
      %4806 = vmatprep.subr.bf16.mxu0 0
      %4807 = vmatpush1.bf16.msra.mxu0 0
      %4808 = vmatprep.subr.bf16.mxu0 0
      %4809 = vmatpush1.bf16.msra.mxu0 0
      %4810 = vmatprep.subr.bf16.mxu0 0
      %4811 = vmatpush1.bf16.msra.mxu0 0
      %4812 = vmatprep.subr.bf16.mxu0 0
      %4813 = vmatpush1.bf16.msra.mxu0 0
      %4814 = vmatprep.subr.bf16.mxu0 0
      %4815 = vmatpush1.bf16.msra.mxu0 0
      %4816 = vmatprep.subr.bf16.mxu0 0
      %4817 = vmatpush1.bf16.msra.mxu0 0
      %4818 = vmatprep.subr.bf16.mxu0 0
      %4819 = vmatpush1.bf16.msra.mxu0 0
      %4820 = vmatprep.subr.bf16.mxu0 0
      %4821 = vmatpush1.bf16.msra.mxu0 0
      %4822 = vmatprep.subr.bf16.mxu0 0
      %4823 = vmatpush1.bf16.msra.mxu0 0
      %4824 = vmatprep.subr.bf16.mxu0 0
      %4825 = vmatpush1.bf16.msra.mxu0 0
      %4826 = vmatprep.subr.bf16.mxu0 0
      %4827 = vmatpush1.bf16.msra.mxu0 0
      %4828 = vmatprep.subr.bf16.mxu0 0
      %4829 = vmatpush1.bf16.msra.mxu0 0
      %4830 = vmatprep.mubr.bf16.mxu0 0
      %4831 = vmatmul.mubr.bf16.gmra.mrb[0].mxu0 %v4796
      %v4832 = vpop.f32.mrb[0].mxu0
      %v4833 = vadd.f32 %v2312, %v4832
      %v4834 = vpop.f32.mrb[0].mxu0
      %v4835 = vpop.f32.mrb[0].mxu0
      %v4836 = vpop.f32.mrb[0].mxu0
      %4837 = vdwg.mxu0
      %v4846 = vunpack.c.l.b16 %v1881
      %v4847 = vunpack.c.l.b16 %v1882
      %v4848 = vunpack.c.l.b16 %v1883
      %v4849 = vunpack.c.l.b16 %v1884
      %v4850 = vunpack.c.l.b16 %v1885
      %v4851 = vunpack.c.l.b16 %v1886
      %v4852 = vunpack.c.l.b16 %v1887
      %v4853 = vunpack.c.l.b16 %v1888
      %v4854 = vpack.c.b16 %v4847, %v4846
      %v4855 = vpack.c.b16 %v4849, %v4848
      %v4856 = vpack.c.b16 %v4851, %v4850
      %v4857 = vpack.c.b16 %v4853, %v4852
      %v4863 = vsel %vm2449, %v2141, 0
      %4865 = vmatprep.subr.bf16.mxu0 0
      %4866 = vmatpush1.bf16.msra.mxu0 %v4854
      %4867 = vmatprep.subr.bf16.mxu0 0
      %4868 = vmatpush1.bf16.msra.mxu0 %v4855
      %4869 = vmatprep.subr.bf16.mxu0 0
      %4870 = vmatpush1.bf16.msra.mxu0 %v4856
      %4871 = vmatprep.subr.bf16.mxu0 0
      %4872 = vmatpush1.bf16.msra.mxu0 %v4857
      %4873 = vmatprep.subr.bf16.mxu0 0
      %4874 = vmatpush1.bf16.msra.mxu0 0
      %4875 = vmatprep.subr.bf16.mxu0 0
      %4876 = vmatpush1.bf16.msra.mxu0 0
      %4877 = vmatprep.subr.bf16.mxu0 0
      %4878 = vmatpush1.bf16.msra.mxu0 0
      %4879 = vmatprep.subr.bf16.mxu0 0
      %4880 = vmatpush1.bf16.msra.mxu0 0
      %4881 = vmatprep.subr.bf16.mxu0 0
      %4882 = vmatpush1.bf16.msra.mxu0 0
      %4883 = vmatprep.subr.bf16.mxu0 0
      %4884 = vmatpush1.bf16.msra.mxu0 0
      %4885 = vmatprep.subr.bf16.mxu0 0
      %4886 = vmatpush1.bf16.msra.mxu0 0
      %4887 = vmatprep.subr.bf16.mxu0 0
      %4888 = vmatpush1.bf16.msra.mxu0 0
      %4889 = vmatprep.subr.bf16.mxu0 0
      %4890 = vmatpush1.bf16.msra.mxu0 0
      %4891 = vmatprep.subr.bf16.mxu0 0
      %4892 = vmatpush1.bf16.msra.mxu0 0
      %4893 = vmatprep.subr.bf16.mxu0 0
      %4894 = vmatpush1.bf16.msra.mxu0 0
      %4895 = vmatprep.subr.bf16.mxu0 0
      %4896 = vmatpush1.bf16.msra.mxu0 0
      %4897 = vmatprep.mubr.bf16.mxu0 0
      %4898 = vmatmul.mubr.bf16.gmra.mrb[0].mxu0 %v4863
      %v4899 = vpop.f32.mrb[0].mxu0
      %v4900 = vadd.f32 %v2316, %v4899
      %v4901 = vpop.f32.mrb[0].mxu0
      %v4902 = vpop.f32.mrb[0].mxu0
      %v4903 = vpop.f32.mrb[0].mxu0
      %4904 = vdwg.mxu0
      %v4913 = vunpack.c.l.b16 %v1889
      %v4914 = vunpack.c.l.b16 %v1890
      %v4915 = vunpack.c.l.b16 %v1891
      %v4916 = vunpack.c.l.b16 %v1892
      %v4917 = vunpack.c.l.b16 %v1893
      %v4918 = vunpack.c.l.b16 %v1894
      %v4919 = vunpack.c.l.b16 %v1895
      %v4920 = vunpack.c.l.b16 %v1896
      %v4921 = vpack.c.b16 %v4914, %v4913
      %v4922 = vpack.c.b16 %v4916, %v4915
      %v4923 = vpack.c.b16 %v4918, %v4917
      %v4924 = vpack.c.b16 %v4920, %v4919
      %v4930 = vsel %vm2449, %v2142, 0
      %4932 = vmatprep.subr.bf16.mxu0 0
      %4933 = vmatpush1.bf16.msra.mxu0 %v4921
      %4934 = vmatprep.subr.bf16.mxu0 0
      %4935 = vmatpush1.bf16.msra.mxu0 %v4922
      %4936 = vmatprep.subr.bf16.mxu0 0
      %4937 = vmatpush1.bf16.msra.mxu0 %v4923
      %4938 = vmatprep.subr.bf16.mxu0 0
      %4939 = vmatpush1.bf16.msra.mxu0 %v4924
      %4940 = vmatprep.subr.bf16.mxu0 0
      %4941 = vmatpush1.bf16.msra.mxu0 0
      %4942 = vmatprep.subr.bf16.mxu0 0
      %4943 = vmatpush1.bf16.msra.mxu0 0
      %4944 = vmatprep.subr.bf16.mxu0 0
      %4945 = vmatpush1.bf16.msra.mxu0 0
      %4946 = vmatprep.subr.bf16.mxu0 0
      %4947 = vmatpush1.bf16.msra.mxu0 0
      %4948 = vmatprep.subr.bf16.mxu0 0
      %4949 = vmatpush1.bf16.msra.mxu0 0
      %4950 = vmatprep.subr.bf16.mxu0 0
      %4951 = vmatpush1.bf16.msra.mxu0 0
      %4952 = vmatprep.subr.bf16.mxu0 0
      %4953 = vmatpush1.bf16.msra.mxu0 0
      %4954 = vmatprep.subr.bf16.mxu0 0
      %4955 = vmatpush1.bf16.msra.mxu0 0
      %4956 = vmatprep.subr.bf16.mxu0 0
      %4957 = vmatpush1.bf16.msra.mxu0 0
      %4958 = vmatprep.subr.bf16.mxu0 0
      %4959 = vmatpush1.bf16.msra.mxu0 0
      %4960 = vmatprep.subr.bf16.mxu0 0
      %4961 = vmatpush1.bf16.msra.mxu0 0
      %4962 = vmatprep.subr.bf16.mxu0 0
      %4963 = vmatpush1.bf16.msra.mxu0 0
      %4964 = vmatprep.mubr.bf16.mxu0 0
      %4965 = vmatmul.mubr.bf16.gmra.mrb[0].mxu0 %v4930
      %v4966 = vpop.f32.mrb[0].mxu0
      %v4967 = vadd.f32 %v2320, %v4966
      %v4968 = vpop.f32.mrb[0].mxu0
      %v4969 = vpop.f32.mrb[0].mxu0
      %v4970 = vpop.f32.mrb[0].mxu0
      %4971 = vdwg.mxu0
      %v4980 = vunpack.c.l.b16 %v1897
      %v4981 = vunpack.c.l.b16 %v1898
      %v4982 = vunpack.c.l.b16 %v1899
      %v4983 = vunpack.c.l.b16 %v1900
      %v4984 = vunpack.c.l.b16 %v1901
      %v4985 = vunpack.c.l.b16 %v1902
      %v4986 = vunpack.c.l.b16 %v1903
      %v4987 = vunpack.c.l.b16 %v1904
      %v4988 = vpack.c.b16 %v4981, %v4980
      %v4989 = vpack.c.b16 %v4983, %v4982
      %v4990 = vpack.c.b16 %v4985, %v4984
      %v4991 = vpack.c.b16 %v4987, %v4986
      %v4997 = vsel %vm2449, %v2143, 0
      %4999 = vmatprep.subr.bf16.mxu0 0
      %5000 = vmatpush1.bf16.msra.mxu0 %v4988
      %5001 = vmatprep.subr.bf16.mxu0 0
      %5002 = vmatpush1.bf16.msra.mxu0 %v4989
      %5003 = vmatprep.subr.bf16.mxu0 0
      %5004 = vmatpush1.bf16.msra.mxu0 %v4990
      %5005 = vmatprep.subr.bf16.mxu0 0
      %5006 = vmatpush1.bf16.msra.mxu0 %v4991
      %5007 = vmatprep.subr.bf16.mxu0 0
      %5008 = vmatpush1.bf16.msra.mxu0 0
      %5009 = vmatprep.subr.bf16.mxu0 0
      %5010 = vmatpush1.bf16.msra.mxu0 0
      %5011 = vmatprep.subr.bf16.mxu0 0
      %5012 = vmatpush1.bf16.msra.mxu0 0
      %5013 = vmatprep.subr.bf16.mxu0 0
      %5014 = vmatpush1.bf16.msra.mxu0 0
      %5015 = vmatprep.subr.bf16.mxu0 0
      %5016 = vmatpush1.bf16.msra.mxu0 0
      %5017 = vmatprep.subr.bf16.mxu0 0
      %5018 = vmatpush1.bf16.msra.mxu0 0
      %5019 = vmatprep.subr.bf16.mxu0 0
      %5020 = vmatpush1.bf16.msra.mxu0 0
      %5021 = vmatprep.subr.bf16.mxu0 0
      %5022 = vmatpush1.bf16.msra.mxu0 0
      %5023 = vmatprep.subr.bf16.mxu0 0
      %5024 = vmatpush1.bf16.msra.mxu0 0
      %5025 = vmatprep.subr.bf16.mxu0 0
      %5026 = vmatpush1.bf16.msra.mxu0 0
      %5027 = vmatprep.subr.bf16.mxu0 0
      %5028 = vmatpush1.bf16.msra.mxu0 0
      %5029 = vmatprep.subr.bf16.mxu0 0
      %5030 = vmatpush1.bf16.msra.mxu0 0
      %5031 = vmatprep.mubr.bf16.mxu0 0
      %5032 = vmatmul.mubr.bf16.gmra.mrb[0].mxu0 %v4997
      %v5033 = vpop.f32.mrb[0].mxu0
      %v5034 = vadd.f32 %v2324, %v5033
      %v5035 = vpop.f32.mrb[0].mxu0
      %v5036 = vpop.f32.mrb[0].mxu0
      %v5037 = vpop.f32.mrb[0].mxu0
      %5038 = vdwg.mxu0
      %v5047 = vunpack.c.l.b16 %v1905
      %v5048 = vunpack.c.l.b16 %v1906
      %v5049 = vunpack.c.l.b16 %v1907
      %v5050 = vunpack.c.l.b16 %v1908
      %v5051 = vunpack.c.l.b16 %v1909
      %v5052 = vunpack.c.l.b16 %v1910
      %v5053 = vunpack.c.l.b16 %v1911
      %v5054 = vunpack.c.l.b16 %v1912
      %v5055 = vpack.c.b16 %v5048, %v5047
      %v5056 = vpack.c.b16 %v5050, %v5049
      %v5057 = vpack.c.b16 %v5052, %v5051
      %v5058 = vpack.c.b16 %v5054, %v5053
      %v5064 = vsel %vm2449, %v2144, 0
      %5066 = vmatprep.subr.bf16.mxu0 0
      %5067 = vmatpush1.bf16.msra.mxu0 %v5055
      %5068 = vmatprep.subr.bf16.mxu0 0
      %5069 = vmatpush1.bf16.msra.mxu0 %v5056
      %5070 = vmatprep.subr.bf16.mxu0 0
      %5071 = vmatpush1.bf16.msra.mxu0 %v5057
      %5072 = vmatprep.subr.bf16.mxu0 0
      %5073 = vmatpush1.bf16.msra.mxu0 %v5058
      %5074 = vmatprep.subr.bf16.mxu0 0
      %5075 = vmatpush1.bf16.msra.mxu0 0
      %5076 = vmatprep.subr.bf16.mxu0 0
      %5077 = vmatpush1.bf16.msra.mxu0 0
      %5078 = vmatprep.subr.bf16.mxu0 0
      %5079 = vmatpush1.bf16.msra.mxu0 0
      %5080 = vmatprep.subr.bf16.mxu0 0
      %5081 = vmatpush1.bf16.msra.mxu0 0
      %5082 = vmatprep.subr.bf16.mxu0 0
      %5083 = vmatpush1.bf16.msra.mxu0 0
      %5084 = vmatprep.subr.bf16.mxu0 0
      %5085 = vmatpush1.bf16.msra.mxu0 0
      %5086 = vmatprep.subr.bf16.mxu0 0
      %5087 = vmatpush1.bf16.msra.mxu0 0
      %5088 = vmatprep.subr.bf16.mxu0 0
      %5089 = vmatpush1.bf16.msra.mxu0 0
      %5090 = vmatprep.subr.bf16.mxu0 0
      %5091 = vmatpush1.bf16.msra.mxu0 0
      %5092 = vmatprep.subr.bf16.mxu0 0
      %5093 = vmatpush1.bf16.msra.mxu0 0
      %5094 = vmatprep.subr.bf16.mxu0 0
      %5095 = vmatpush1.bf16.msra.mxu0 0
      %5096 = vmatprep.subr.bf16.mxu0 0
      %5097 = vmatpush1.bf16.msra.mxu0 0
      %5098 = vmatprep.mubr.bf16.mxu0 0
      %5099 = vmatmul.mubr.bf16.gmra.mrb[0].mxu0 %v5064
      %v5100 = vpop.f32.mrb[0].mxu0
      %v5101 = vadd.f32 %v2328, %v5100
      %v5102 = vpop.f32.mrb[0].mxu0
      %v5103 = vpop.f32.mrb[0].mxu0
      %v5104 = vpop.f32.mrb[0].mxu0
      %5105 = vdwg.mxu0
      %v5114 = vunpack.c.l.b16 %v1913
      %v5115 = vunpack.c.l.b16 %v1914
      %v5116 = vunpack.c.l.b16 %v1915
      %v5117 = vunpack.c.l.b16 %v1916
      %v5118 = vunpack.c.l.b16 %v1917
      %v5119 = vunpack.c.l.b16 %v1918
      %v5120 = vunpack.c.l.b16 %v1919
      %v5121 = vunpack.c.l.b16 %v1920
      %v5122 = vpack.c.b16 %v5115, %v5114
      %v5123 = vpack.c.b16 %v5117, %v5116
      %v5124 = vpack.c.b16 %v5119, %v5118
      %v5125 = vpack.c.b16 %v5121, %v5120
      %v5131 = vsel %vm2449, %v2145, 0
      %5133 = vmatprep.subr.bf16.mxu0 0
      %5134 = vmatpush1.bf16.msra.mxu0 %v5122
      %5135 = vmatprep.subr.bf16.mxu0 0
      %5136 = vmatpush1.bf16.msra.mxu0 %v5123
      %5137 = vmatprep.subr.bf16.mxu0 0
      %5138 = vmatpush1.bf16.msra.mxu0 %v5124
      %5139 = vmatprep.subr.bf16.mxu0 0
      %5140 = vmatpush1.bf16.msra.mxu0 %v5125
      %5141 = vmatprep.subr.bf16.mxu0 0
      %5142 = vmatpush1.bf16.msra.mxu0 0
      %5143 = vmatprep.subr.bf16.mxu0 0
      %5144 = vmatpush1.bf16.msra.mxu0 0
      %5145 = vmatprep.subr.bf16.mxu0 0
      %5146 = vmatpush1.bf16.msra.mxu0 0
      %5147 = vmatprep.subr.bf16.mxu0 0
      %5148 = vmatpush1.bf16.msra.mxu0 0
      %5149 = vmatprep.subr.bf16.mxu0 0
      %5150 = vmatpush1.bf16.msra.mxu0 0
      %5151 = vmatprep.subr.bf16.mxu0 0
      %5152 = vmatpush1.bf16.msra.mxu0 0
      %5153 = vmatprep.subr.bf16.mxu0 0
      %5154 = vmatpush1.bf16.msra.mxu0 0
      %5155 = vmatprep.subr.bf16.mxu0 0
      %5156 = vmatpush1.bf16.msra.mxu0 0
      %5157 = vmatprep.subr.bf16.mxu0 0
      %5158 = vmatpush1.bf16.msra.mxu0 0
      %5159 = vmatprep.subr.bf16.mxu0 0
      %5160 = vmatpush1.bf16.msra.mxu0 0
      %5161 = vmatprep.subr.bf16.mxu0 0
      %5162 = vmatpush1.bf16.msra.mxu0 0
      %5163 = vmatprep.subr.bf16.mxu0 0
      %5164 = vmatpush1.bf16.msra.mxu0 0
      %5165 = vmatprep.mubr.bf16.mxu0 0
      %5166 = vmatmul.mubr.bf16.gmra.mrb[0].mxu0 %v5131
      %v5167 = vpop.f32.mrb[0].mxu0
      %v5168 = vadd.f32 %v2332, %v5167
      %v5169 = vpop.f32.mrb[0].mxu0
      %v5170 = vpop.f32.mrb[0].mxu0
      %v5171 = vpop.f32.mrb[0].mxu0
      %5172 = vdwg.mxu0
      %v5181 = vunpack.c.l.b16 %v1921
      %v5182 = vunpack.c.l.b16 %v1922
      %v5183 = vunpack.c.l.b16 %v1923
      %v5184 = vunpack.c.l.b16 %v1924
      %v5185 = vunpack.c.l.b16 %v1925
      %v5186 = vunpack.c.l.b16 %v1926
      %v5187 = vunpack.c.l.b16 %v1927
      %v5188 = vunpack.c.l.b16 %v1928
      %v5189 = vpack.c.b16 %v5182, %v5181
      %v5190 = vpack.c.b16 %v5184, %v5183
      %v5191 = vpack.c.b16 %v5186, %v5185
      %v5192 = vpack.c.b16 %v5188, %v5187
      %v5198 = vsel %vm2449, %v2146, 0
      %5200 = vmatprep.subr.bf16.mxu0 0
      %5201 = vmatpush1.bf16.msra.mxu0 %v5189
      %5202 = vmatprep.subr.bf16.mxu0 0
      %5203 = vmatpush1.bf16.msra.mxu0 %v5190
      %5204 = vmatprep.subr.bf16.mxu0 0
      %5205 = vmatpush1.bf16.msra.mxu0 %v5191
      %5206 = vmatprep.subr.bf16.mxu0 0
      %5207 = vmatpush1.bf16.msra.mxu0 %v5192
      %5208 = vmatprep.subr.bf16.mxu0 0
      %5209 = vmatpush1.bf16.msra.mxu0 0
      %5210 = vmatprep.subr.bf16.mxu0 0
      %5211 = vmatpush1.bf16.msra.mxu0 0
      %5212 = vmatprep.subr.bf16.mxu0 0
      %5213 = vmatpush1.bf16.msra.mxu0 0
      %5214 = vmatprep.subr.bf16.mxu0 0
      %5215 = vmatpush1.bf16.msra.mxu0 0
      %5216 = vmatprep.subr.bf16.mxu0 0
      %5217 = vmatpush1.bf16.msra.mxu0 0
      %5218 = vmatprep.subr.bf16.mxu0 0
      %5219 = vmatpush1.bf16.msra.mxu0 0
      %5220 = vmatprep.subr.bf16.mxu0 0
      %5221 = vmatpush1.bf16.msra.mxu0 0
      %5222 = vmatprep.subr.bf16.mxu0 0
      %5223 = vmatpush1.bf16.msra.mxu0 0
      %5224 = vmatprep.subr.bf16.mxu0 0
      %5225 = vmatpush1.bf16.msra.mxu0 0
      %5226 = vmatprep.subr.bf16.mxu0 0
      %5227 = vmatpush1.bf16.msra.mxu0 0
      %5228 = vmatprep.subr.bf16.mxu0 0
      %5229 = vmatpush1.bf16.msra.mxu0 0
      %5230 = vmatprep.subr.bf16.mxu0 0
      %5231 = vmatpush1.bf16.msra.mxu0 0
      %5232 = vmatprep.mubr.bf16.mxu0 0
      %5233 = vmatmul.mubr.bf16.gmra.mrb[0].mxu0 %v5198
      %v5234 = vpop.f32.mrb[0].mxu0
      %v5235 = vadd.f32 %v2336, %v5234
      %v5236 = vpop.f32.mrb[0].mxu0
      %v5237 = vpop.f32.mrb[0].mxu0
      %v5238 = vpop.f32.mrb[0].mxu0
      %5239 = vdwg.mxu0
      %v5248 = vunpack.c.l.b16 %v1929
      %v5249 = vunpack.c.l.b16 %v1930
      %v5250 = vunpack.c.l.b16 %v1931
      %v5251 = vunpack.c.l.b16 %v1932
      %v5252 = vunpack.c.l.b16 %v1933
      %v5253 = vunpack.c.l.b16 %v1934
      %v5254 = vunpack.c.l.b16 %v1935
      %v5255 = vunpack.c.l.b16 %v1936
      %v5256 = vpack.c.b16 %v5249, %v5248
      %v5257 = vpack.c.b16 %v5251, %v5250
      %v5258 = vpack.c.b16 %v5253, %v5252
      %v5259 = vpack.c.b16 %v5255, %v5254
      %v5265 = vsel %vm2449, %v2147, 0
      %5267 = vmatprep.subr.bf16.mxu0 0
      %5268 = vmatpush1.bf16.msra.mxu0 %v5256
      %5269 = vmatprep.subr.bf16.mxu0 0
      %5270 = vmatpush1.bf16.msra.mxu0 %v5257
      %5271 = vmatprep.subr.bf16.mxu0 0
      %5272 = vmatpush1.bf16.msra.mxu0 %v5258
      %5273 = vmatprep.subr.bf16.mxu0 0
      %5274 = vmatpush1.bf16.msra.mxu0 %v5259
      %5275 = vmatprep.subr.bf16.mxu0 0
      %5276 = vmatpush1.bf16.msra.mxu0 0
      %5277 = vmatprep.subr.bf16.mxu0 0
      %5278 = vmatpush1.bf16.msra.mxu0 0
      %5279 = vmatprep.subr.bf16.mxu0 0
      %5280 = vmatpush1.bf16.msra.mxu0 0
      %5281 = vmatprep.subr.bf16.mxu0 0
      %5282 = vmatpush1.bf16.msra.mxu0 0
      %5283 = vmatprep.subr.bf16.mxu0 0
      %5284 = vmatpush1.bf16.msra.mxu0 0
      %5285 = vmatprep.subr.bf16.mxu0 0
      %5286 = vmatpush1.bf16.msra.mxu0 0
      %5287 = vmatprep.subr.bf16.mxu0 0
      %5288 = vmatpush1.bf16.msra.mxu0 0
      %5289 = vmatprep.subr.bf16.mxu0 0
      %5290 = vmatpush1.bf16.msra.mxu0 0
      %5291 = vmatprep.subr.bf16.mxu0 0
      %5292 = vmatpush1.bf16.msra.mxu0 0
      %5293 = vmatprep.subr.bf16.mxu0 0
      %5294 = vmatpush1.bf16.msra.mxu0 0
      %5295 = vmatprep.subr.bf16.mxu0 0
      %5296 = vmatpush1.bf16.msra.mxu0 0
      %5297 = vmatprep.subr.bf16.mxu0 0
      %5298 = vmatpush1.bf16.msra.mxu0 0
      %5299 = vmatprep.mubr.bf16.mxu0 0
      %5300 = vmatmul.mubr.bf16.gmra.mrb[0].mxu0 %v5265
      %v5301 = vpop.f32.mrb[0].mxu0
      %v5302 = vadd.f32 %v2340, %v5301
      %v5303 = vpop.f32.mrb[0].mxu0
      %v5304 = vpop.f32.mrb[0].mxu0
      %v5305 = vpop.f32.mrb[0].mxu0
      %5306 = vdwg.mxu0
      %v5315 = vunpack.c.l.b16 %v1937
      %v5316 = vunpack.c.l.b16 %v1938
      %v5317 = vunpack.c.l.b16 %v1939
      %v5318 = vunpack.c.l.b16 %v1940
      %v5319 = vunpack.c.l.b16 %v1941
      %v5320 = vunpack.c.l.b16 %v1942
      %v5321 = vunpack.c.l.b16 %v1943
      %v5322 = vunpack.c.l.b16 %v1944
      %v5323 = vpack.c.b16 %v5316, %v5315
      %v5324 = vpack.c.b16 %v5318, %v5317
      %v5325 = vpack.c.b16 %v5320, %v5319
      %v5326 = vpack.c.b16 %v5322, %v5321
      %v5332 = vsel %vm2449, %v2148, 0
      %5334 = vmatprep.subr.bf16.mxu0 0
      %5335 = vmatpush1.bf16.msra.mxu0 %v5323
      %5336 = vmatprep.subr.bf16.mxu0 0
      %5337 = vmatpush1.bf16.msra.mxu0 %v5324
      %5338 = vmatprep.subr.bf16.mxu0 0
      %5339 = vmatpush1.bf16.msra.mxu0 %v5325
      %5340 = vmatprep.subr.bf16.mxu0 0
      %5341 = vmatpush1.bf16.msra.mxu0 %v5326
      %5342 = vmatprep.subr.bf16.mxu0 0
      %5343 = vmatpush1.bf16.msra.mxu0 0
      %5344 = vmatprep.subr.bf16.mxu0 0
      %5345 = vmatpush1.bf16.msra.mxu0 0
      %5346 = vmatprep.subr.bf16.mxu0 0
      %5347 = vmatpush1.bf16.msra.mxu0 0
      %5348 = vmatprep.subr.bf16.mxu0 0
      %5349 = vmatpush1.bf16.msra.mxu0 0
      %5350 = vmatprep.subr.bf16.mxu0 0
      %5351 = vmatpush1.bf16.msra.mxu0 0
      %5352 = vmatprep.subr.bf16.mxu0 0
      %5353 = vmatpush1.bf16.msra.mxu0 0
      %5354 = vmatprep.subr.bf16.mxu0 0
      %5355 = vmatpush1.bf16.msra.mxu0 0
      %5356 = vmatprep.subr.bf16.mxu0 0
      %5357 = vmatpush1.bf16.msra.mxu0 0
      %5358 = vmatprep.subr.bf16.mxu0 0
      %5359 = vmatpush1.bf16.msra.mxu0 0
      %5360 = vmatprep.subr.bf16.mxu0 0
      %5361 = vmatpush1.bf16.msra.mxu0 0
      %5362 = vmatprep.subr.bf16.mxu0 0
      %5363 = vmatpush1.bf16.msra.mxu0 0
      %5364 = vmatprep.subr.bf16.mxu0 0
      %5365 = vmatpush1.bf16.msra.mxu0 0
      %5366 = vmatprep.mubr.bf16.mxu0 0
      %5367 = vmatmul.mubr.bf16.gmra.mrb[0].mxu0 %v5332
      %v5368 = vpop.f32.mrb[0].mxu0
      %v5369 = vadd.f32 %v2344, %v5368
      %v5370 = vpop.f32.mrb[0].mxu0
      %v5371 = vpop.f32.mrb[0].mxu0
      %v5372 = vpop.f32.mrb[0].mxu0
      %5373 = vdwg.mxu0
      %v5382 = vunpack.c.l.b16 %v1945
      %v5383 = vunpack.c.l.b16 %v1946
      %v5384 = vunpack.c.l.b16 %v1947
      %v5385 = vunpack.c.l.b16 %v1948
      %v5386 = vunpack.c.l.b16 %v1949
      %v5387 = vunpack.c.l.b16 %v1950
      %v5388 = vunpack.c.l.b16 %v1951
      %v5389 = vunpack.c.l.b16 %v1952
      %v5390 = vpack.c.b16 %v5383, %v5382
      %v5391 = vpack.c.b16 %v5385, %v5384
      %v5392 = vpack.c.b16 %v5387, %v5386
      %v5393 = vpack.c.b16 %v5389, %v5388
      %v5399 = vsel %vm2449, %v2149, 0
      %5401 = vmatprep.subr.bf16.mxu0 0
      %5402 = vmatpush1.bf16.msra.mxu0 %v5390
      %5403 = vmatprep.subr.bf16.mxu0 0
      %5404 = vmatpush1.bf16.msra.mxu0 %v5391
      %5405 = vmatprep.subr.bf16.mxu0 0
      %5406 = vmatpush1.bf16.msra.mxu0 %v5392
      %5407 = vmatprep.subr.bf16.mxu0 0
      %5408 = vmatpush1.bf16.msra.mxu0 %v5393
      %5409 = vmatprep.subr.bf16.mxu0 0
      %5410 = vmatpush1.bf16.msra.mxu0 0
      %5411 = vmatprep.subr.bf16.mxu0 0
      %5412 = vmatpush1.bf16.msra.mxu0 0
      %5413 = vmatprep.subr.bf16.mxu0 0
      %5414 = vmatpush1.bf16.msra.mxu0 0
      %5415 = vmatprep.subr.bf16.mxu0 0
      %5416 = vmatpush1.bf16.msra.mxu0 0
      %5417 = vmatprep.subr.bf16.mxu0 0
      %5418 = vmatpush1.bf16.msra.mxu0 0
      %5419 = vmatprep.subr.bf16.mxu0 0
      %5420 = vmatpush1.bf16.msra.mxu0 0
      %5421 = vmatprep.subr.bf16.mxu0 0
      %5422 = vmatpush1.bf16.msra.mxu0 0
      %5423 = vmatprep.subr.bf16.mxu0 0
      %5424 = vmatpush1.bf16.msra.mxu0 0
      %5425 = vmatprep.subr.bf16.mxu0 0
      %5426 = vmatpush1.bf16.msra.mxu0 0
      %5427 = vmatprep.subr.bf16.mxu0 0
      %5428 = vmatpush1.bf16.msra.mxu0 0
      %5429 = vmatprep.subr.bf16.mxu0 0
      %5430 = vmatpush1.bf16.msra.mxu0 0
      %5431 = vmatprep.subr.bf16.mxu0 0
      %5432 = vmatpush1.bf16.msra.mxu0 0
      %5433 = vmatprep.mubr.bf16.mxu0 0
      %5434 = vmatmul.mubr.bf16.gmra.mrb[0].mxu0 %v5399
      %v5435 = vpop.f32.mrb[0].mxu0
      %v5436 = vadd.f32 %v2348, %v5435
      %v5437 = vpop.f32.mrb[0].mxu0
      %v5438 = vpop.f32.mrb[0].mxu0
      %v5439 = vpop.f32.mrb[0].mxu0
      %5440 = vdwg.mxu0
      %v5449 = vunpack.c.l.b16 %v1953
      %v5450 = vunpack.c.l.b16 %v1954
      %v5451 = vunpack.c.l.b16 %v1955
      %v5452 = vunpack.c.l.b16 %v1956
      %v5453 = vunpack.c.l.b16 %v1957
      %v5454 = vunpack.c.l.b16 %v1958
      %v5455 = vunpack.c.l.b16 %v1959
      %v5456 = vunpack.c.l.b16 %v1960
      %v5457 = vpack.c.b16 %v5450, %v5449
      %v5458 = vpack.c.b16 %v5452, %v5451
      %v5459 = vpack.c.b16 %v5454, %v5453
      %v5460 = vpack.c.b16 %v5456, %v5455
      %v5466 = vsel %vm2449, %v2150, 0
      %5468 = vmatprep.subr.bf16.mxu0 0
      %5469 = vmatpush1.bf16.msra.mxu0 %v5457
      %5470 = vmatprep.subr.bf16.mxu0 0
      %5471 = vmatpush1.bf16.msra.mxu0 %v5458
      %5472 = vmatprep.subr.bf16.mxu0 0
      %5473 = vmatpush1.bf16.msra.mxu0 %v5459
      %5474 = vmatprep.subr.bf16.mxu0 0
      %5475 = vmatpush1.bf16.msra.mxu0 %v5460
      %5476 = vmatprep.subr.bf16.mxu0 0
      %5477 = vmatpush1.bf16.msra.mxu0 0
      %5478 = vmatprep.subr.bf16.mxu0 0
      %5479 = vmatpush1.bf16.msra.mxu0 0
      %5480 = vmatprep.subr.bf16.mxu0 0
      %5481 = vmatpush1.bf16.msra.mxu0 0
      %5482 = vmatprep.subr.bf16.mxu0 0
      %5483 = vmatpush1.bf16.msra.mxu0 0
      %5484 = vmatprep.subr.bf16.mxu0 0
      %5485 = vmatpush1.bf16.msra.mxu0 0
      %5486 = vmatprep.subr.bf16.mxu0 0
      %5487 = vmatpush1.bf16.msra.mxu0 0
      %5488 = vmatprep.subr.bf16.mxu0 0
      %5489 = vmatpush1.bf16.msra.mxu0 0
      %5490 = vmatprep.subr.bf16.mxu0 0
      %5491 = vmatpush1.bf16.msra.mxu0 0
      %5492 = vmatprep.subr.bf16.mxu0 0
      %5493 = vmatpush1.bf16.msra.mxu0 0
      %5494 = vmatprep.subr.bf16.mxu0 0
      %5495 = vmatpush1.bf16.msra.mxu0 0
      %5496 = vmatprep.subr.bf16.mxu0 0
      %5497 = vmatpush1.bf16.msra.mxu0 0
      %5498 = vmatprep.subr.bf16.mxu0 0
      %5499 = vmatpush1.bf16.msra.mxu0 0
      %5500 = vmatprep.mubr.bf16.mxu0 0
      %5501 = vmatmul.mubr.bf16.gmra.mrb[0].mxu0 %v5466
      %v5502 = vpop.f32.mrb[0].mxu0
      %v5503 = vadd.f32 %v2352, %v5502
      %v5504 = vpop.f32.mrb[0].mxu0
      %v5505 = vpop.f32.mrb[0].mxu0
      %v5506 = vpop.f32.mrb[0].mxu0
      %5507 = vdwg.mxu0
      %v5516 = vunpack.c.l.b16 %v1961
      %v5517 = vunpack.c.l.b16 %v1962
      %v5518 = vunpack.c.l.b16 %v1963
      %v5519 = vunpack.c.l.b16 %v1964
      %v5520 = vunpack.c.l.b16 %v1965
      %v5521 = vunpack.c.l.b16 %v1966
      %v5522 = vunpack.c.l.b16 %v1967
      %v5523 = vunpack.c.l.b16 %v1968
      %v5524 = vpack.c.b16 %v5517, %v5516
      %v5525 = vpack.c.b16 %v5519, %v5518
      %v5526 = vpack.c.b16 %v5521, %v5520
      %v5527 = vpack.c.b16 %v5523, %v5522
      %v5533 = vsel %vm2449, %v2151, 0
      %5535 = vmatprep.subr.bf16.mxu0 0
      %5536 = vmatpush1.bf16.msra.mxu0 %v5524
      %5537 = vmatprep.subr.bf16.mxu0 0
      %5538 = vmatpush1.bf16.msra.mxu0 %v5525
      %5539 = vmatprep.subr.bf16.mxu0 0
      %5540 = vmatpush1.bf16.msra.mxu0 %v5526
      %5541 = vmatprep.subr.bf16.mxu0 0
      %5542 = vmatpush1.bf16.msra.mxu0 %v5527
      %5543 = vmatprep.subr.bf16.mxu0 0
      %5544 = vmatpush1.bf16.msra.mxu0 0
      %5545 = vmatprep.subr.bf16.mxu0 0
      %5546 = vmatpush1.bf16.msra.mxu0 0
      %5547 = vmatprep.subr.bf16.mxu0 0
      %5548 = vmatpush1.bf16.msra.mxu0 0
      %5549 = vmatprep.subr.bf16.mxu0 0
      %5550 = vmatpush1.bf16.msra.mxu0 0
      %5551 = vmatprep.subr.bf16.mxu0 0
      %5552 = vmatpush1.bf16.msra.mxu0 0
      %5553 = vmatprep.subr.bf16.mxu0 0
      %5554 = vmatpush1.bf16.msra.mxu0 0
      %5555 = vmatprep.subr.bf16.mxu0 0
      %5556 = vmatpush1.bf16.msra.mxu0 0
      %5557 = vmatprep.subr.bf16.mxu0 0
      %5558 = vmatpush1.bf16.msra.mxu0 0
      %5559 = vmatprep.subr.bf16.mxu0 0
      %5560 = vmatpush1.bf16.msra.mxu0 0
      %5561 = vmatprep.subr.bf16.mxu0 0
      %5562 = vmatpush1.bf16.msra.mxu0 0
      %5563 = vmatprep.subr.bf16.mxu0 0
      %5564 = vmatpush1.bf16.msra.mxu0 0
      %5565 = vmatprep.subr.bf16.mxu0 0
      %5566 = vmatpush1.bf16.msra.mxu0 0
      %5567 = vmatprep.mubr.bf16.mxu0 0
      %5568 = vmatmul.mubr.bf16.gmra.mrb[0].mxu0 %v5533
      %v5569 = vpop.f32.mrb[0].mxu0
      %v5570 = vadd.f32 %v2356, %v5569
      %v5571 = vpop.f32.mrb[0].mxu0
      %v5572 = vpop.f32.mrb[0].mxu0
      %v5573 = vpop.f32.mrb[0].mxu0
      %5574 = vdwg.mxu0
      %v5583 = vunpack.c.l.b16 %v1969
      %v5584 = vunpack.c.l.b16 %v1970
      %v5585 = vunpack.c.l.b16 %v1971
      %v5586 = vunpack.c.l.b16 %v1972
      %v5587 = vunpack.c.l.b16 %v1973
      %v5588 = vunpack.c.l.b16 %v1974
      %v5589 = vunpack.c.l.b16 %v1975
      %v5590 = vunpack.c.l.b16 %v1976
      %v5591 = vpack.c.b16 %v5584, %v5583
      %v5592 = vpack.c.b16 %v5586, %v5585
      %v5593 = vpack.c.b16 %v5588, %v5587
      %v5594 = vpack.c.b16 %v5590, %v5589
      %v5600 = vsel %vm2449, %v2152, 0
      %5602 = vmatprep.subr.bf16.mxu0 0
      %5603 = vmatpush1.bf16.msra.mxu0 %v5591
      %5604 = vmatprep.subr.bf16.mxu0 0
      %5605 = vmatpush1.bf16.msra.mxu0 %v5592
      %5606 = vmatprep.subr.bf16.mxu0 0
      %5607 = vmatpush1.bf16.msra.mxu0 %v5593
      %5608 = vmatprep.subr.bf16.mxu0 0
      %5609 = vmatpush1.bf16.msra.mxu0 %v5594
      %5610 = vmatprep.subr.bf16.mxu0 0
      %5611 = vmatpush1.bf16.msra.mxu0 0
      %5612 = vmatprep.subr.bf16.mxu0 0
      %5613 = vmatpush1.bf16.msra.mxu0 0
      %5614 = vmatprep.subr.bf16.mxu0 0
      %5615 = vmatpush1.bf16.msra.mxu0 0
      %5616 = vmatprep.subr.bf16.mxu0 0
      %5617 = vmatpush1.bf16.msra.mxu0 0
      %5618 = vmatprep.subr.bf16.mxu0 0
      %5619 = vmatpush1.bf16.msra.mxu0 0
      %5620 = vmatprep.subr.bf16.mxu0 0
      %5621 = vmatpush1.bf16.msra.mxu0 0
      %5622 = vmatprep.subr.bf16.mxu0 0
      %5623 = vmatpush1.bf16.msra.mxu0 0
      %5624 = vmatprep.subr.bf16.mxu0 0
      %5625 = vmatpush1.bf16.msra.mxu0 0
      %5626 = vmatprep.subr.bf16.mxu0 0
      %5627 = vmatpush1.bf16.msra.mxu0 0
      %5628 = vmatprep.subr.bf16.mxu0 0
      %5629 = vmatpush1.bf16.msra.mxu0 0
      %5630 = vmatprep.subr.bf16.mxu0 0
      %5631 = vmatpush1.bf16.msra.mxu0 0
      %5632 = vmatprep.subr.bf16.mxu0 0
      %5633 = vmatpush1.bf16.msra.mxu0 0
      %5634 = vmatprep.mubr.bf16.mxu0 0
      %5635 = vmatmul.mubr.bf16.gmra.mrb[0].mxu0 %v5600
      %v5636 = vpop.f32.mrb[0].mxu0
      %v5637 = vadd.f32 %v2360, %v5636
      %v5638 = vpop.f32.mrb[0].mxu0
      %v5639 = vpop.f32.mrb[0].mxu0
      %v5640 = vpop.f32.mrb[0].mxu0
      %5641 = vdwg.mxu0
      %v5650 = vunpack.c.l.b16 %v1977
      %v5651 = vunpack.c.l.b16 %v1978
      %v5652 = vunpack.c.l.b16 %v1979
      %v5653 = vunpack.c.l.b16 %v1980
      %v5654 = vunpack.c.l.b16 %v1981
      %v5655 = vunpack.c.l.b16 %v1982
      %v5656 = vunpack.c.l.b16 %v1983
      %v5657 = vunpack.c.l.b16 %v1984
      %v5658 = vpack.c.b16 %v5651, %v5650
      %v5659 = vpack.c.b16 %v5653, %v5652
      %v5660 = vpack.c.b16 %v5655, %v5654
      %v5661 = vpack.c.b16 %v5657, %v5656
      %v5667 = vsel %vm2449, %v2153, 0
      %5669 = vmatprep.subr.bf16.mxu0 0
      %5670 = vmatpush1.bf16.msra.mxu0 %v5658
      %5671 = vmatprep.subr.bf16.mxu0 0
      %5672 = vmatpush1.bf16.msra.mxu0 %v5659
      %5673 = vmatprep.subr.bf16.mxu0 0
      %5674 = vmatpush1.bf16.msra.mxu0 %v5660
      %5675 = vmatprep.subr.bf16.mxu0 0
      %5676 = vmatpush1.bf16.msra.mxu0 %v5661
      %5677 = vmatprep.subr.bf16.mxu0 0
      %5678 = vmatpush1.bf16.msra.mxu0 0
      %5679 = vmatprep.subr.bf16.mxu0 0
      %5680 = vmatpush1.bf16.msra.mxu0 0
      %5681 = vmatprep.subr.bf16.mxu0 0
      %5682 = vmatpush1.bf16.msra.mxu0 0
      %5683 = vmatprep.subr.bf16.mxu0 0
      %5684 = vmatpush1.bf16.msra.mxu0 0
      %5685 = vmatprep.subr.bf16.mxu0 0
      %5686 = vmatpush1.bf16.msra.mxu0 0
      %5687 = vmatprep.subr.bf16.mxu0 0
      %5688 = vmatpush1.bf16.msra.mxu0 0
      %5689 = vmatprep.subr.bf16.mxu0 0
      %5690 = vmatpush1.bf16.msra.mxu0 0
      %5691 = vmatprep.subr.bf16.mxu0 0
      %5692 = vmatpush1.bf16.msra.mxu0 0
      %5693 = vmatprep.subr.bf16.mxu0 0
      %5694 = vmatpush1.bf16.msra.mxu0 0
      %5695 = vmatprep.subr.bf16.mxu0 0
      %5696 = vmatpush1.bf16.msra.mxu0 0
      %5697 = vmatprep.subr.bf16.mxu0 0
      %5698 = vmatpush1.bf16.msra.mxu0 0
      %5699 = vmatprep.subr.bf16.mxu0 0
      %5700 = vmatpush1.bf16.msra.mxu0 0
      %5701 = vmatprep.mubr.bf16.mxu0 0
      %5702 = vmatmul.mubr.bf16.gmra.mrb[0].mxu0 %v5667
      %v5703 = vpop.f32.mrb[0].mxu0
      %v5704 = vadd.f32 %v2364, %v5703
      %v5705 = vpop.f32.mrb[0].mxu0
      %v5706 = vpop.f32.mrb[0].mxu0
      %v5707 = vpop.f32.mrb[0].mxu0
      %5708 = vdwg.mxu0
      %v5717 = vunpack.c.l.b16 %v1985
      %v5718 = vunpack.c.l.b16 %v1986
      %v5719 = vunpack.c.l.b16 %v1987
      %v5720 = vunpack.c.l.b16 %v1988
      %v5721 = vunpack.c.l.b16 %v1989
      %v5722 = vunpack.c.l.b16 %v1990
      %v5723 = vunpack.c.l.b16 %v1991
      %v5724 = vunpack.c.l.b16 %v1992
      %v5725 = vpack.c.b16 %v5718, %v5717
      %v5726 = vpack.c.b16 %v5720, %v5719
      %v5727 = vpack.c.b16 %v5722, %v5721
      %v5728 = vpack.c.b16 %v5724, %v5723
      %v5734 = vsel %vm2449, %v2154, 0
      %5736 = vmatprep.subr.bf16.mxu0 0
      %5737 = vmatpush1.bf16.msra.mxu0 %v5725
      %5738 = vmatprep.subr.bf16.mxu0 0
      %5739 = vmatpush1.bf16.msra.mxu0 %v5726
      %5740 = vmatprep.subr.bf16.mxu0 0
      %5741 = vmatpush1.bf16.msra.mxu0 %v5727
      %5742 = vmatprep.subr.bf16.mxu0 0
      %5743 = vmatpush1.bf16.msra.mxu0 %v5728
      %5744 = vmatprep.subr.bf16.mxu0 0
      %5745 = vmatpush1.bf16.msra.mxu0 0
      %5746 = vmatprep.subr.bf16.mxu0 0
      %5747 = vmatpush1.bf16.msra.mxu0 0
      %5748 = vmatprep.subr.bf16.mxu0 0
      %5749 = vmatpush1.bf16.msra.mxu0 0
      %5750 = vmatprep.subr.bf16.mxu0 0
      %5751 = vmatpush1.bf16.msra.mxu0 0
      %5752 = vmatprep.subr.bf16.mxu0 0
      %5753 = vmatpush1.bf16.msra.mxu0 0
      %5754 = vmatprep.subr.bf16.mxu0 0
      %5755 = vmatpush1.bf16.msra.mxu0 0
      %5756 = vmatprep.subr.bf16.mxu0 0
      %5757 = vmatpush1.bf16.msra.mxu0 0
      %5758 = vmatprep.subr.bf16.mxu0 0
      %5759 = vmatpush1.bf16.msra.mxu0 0
      %5760 = vmatprep.subr.bf16.mxu0 0
      %5761 = vmatpush1.bf16.msra.mxu0 0
      %5762 = vmatprep.subr.bf16.mxu0 0
      %5763 = vmatpush1.bf16.msra.mxu0 0
      %5764 = vmatprep.subr.bf16.mxu0 0
      %5765 = vmatpush1.bf16.msra.mxu0 0
      %5766 = vmatprep.subr.bf16.mxu0 0
      %5767 = vmatpush1.bf16.msra.mxu0 0
      %5768 = vmatprep.mubr.bf16.mxu0 0
      %5769 = vmatmul.mubr.bf16.gmra.mrb[0].mxu0 %v5734
      %v5770 = vpop.f32.mrb[0].mxu0
      %v5771 = vadd.f32 %v2368, %v5770
      %v5772 = vpop.f32.mrb[0].mxu0
      %v5773 = vpop.f32.mrb[0].mxu0
      %v5774 = vpop.f32.mrb[0].mxu0
      %5775 = vdwg.mxu0
      %v5784 = vunpack.c.l.b16 %v1993
      %v5785 = vunpack.c.l.b16 %v1994
      %v5786 = vunpack.c.l.b16 %v1995
      %v5787 = vunpack.c.l.b16 %v1996
      %v5788 = vunpack.c.l.b16 %v1997
      %v5789 = vunpack.c.l.b16 %v1998
      %v5790 = vunpack.c.l.b16 %v1999
      %v5791 = vunpack.c.l.b16 %v2000
      %v5792 = vpack.c.b16 %v5785, %v5784
      %v5793 = vpack.c.b16 %v5787, %v5786
      %v5794 = vpack.c.b16 %v5789, %v5788
      %v5795 = vpack.c.b16 %v5791, %v5790
      %v5801 = vsel %vm2449, %v2155, 0
      %5803 = vmatprep.subr.bf16.mxu0 0
      %5804 = vmatpush1.bf16.msra.mxu0 %v5792
      %5805 = vmatprep.subr.bf16.mxu0 0
      %5806 = vmatpush1.bf16.msra.mxu0 %v5793
      %5807 = vmatprep.subr.bf16.mxu0 0
      %5808 = vmatpush1.bf16.msra.mxu0 %v5794
      %5809 = vmatprep.subr.bf16.mxu0 0
      %5810 = vmatpush1.bf16.msra.mxu0 %v5795
      %5811 = vmatprep.subr.bf16.mxu0 0
      %5812 = vmatpush1.bf16.msra.mxu0 0
      %5813 = vmatprep.subr.bf16.mxu0 0
      %5814 = vmatpush1.bf16.msra.mxu0 0
      %5815 = vmatprep.subr.bf16.mxu0 0
      %5816 = vmatpush1.bf16.msra.mxu0 0
      %5817 = vmatprep.subr.bf16.mxu0 0
      %5818 = vmatpush1.bf16.msra.mxu0 0
      %5819 = vmatprep.subr.bf16.mxu0 0
      %5820 = vmatpush1.bf16.msra.mxu0 0
      %5821 = vmatprep.subr.bf16.mxu0 0
      %5822 = vmatpush1.bf16.msra.mxu0 0
      %5823 = vmatprep.subr.bf16.mxu0 0
      %5824 = vmatpush1.bf16.msra.mxu0 0
      %5825 = vmatprep.subr.bf16.mxu0 0
      %5826 = vmatpush1.bf16.msra.mxu0 0
      %5827 = vmatprep.subr.bf16.mxu0 0
      %5828 = vmatpush1.bf16.msra.mxu0 0
      %5829 = vmatprep.subr.bf16.mxu0 0
      %5830 = vmatpush1.bf16.msra.mxu0 0
      %5831 = vmatprep.subr.bf16.mxu0 0
      %5832 = vmatpush1.bf16.msra.mxu0 0
      %5833 = vmatprep.subr.bf16.mxu0 0
      %5834 = vmatpush1.bf16.msra.mxu0 0
      %5835 = vmatprep.mubr.bf16.mxu0 0
      %5836 = vmatmul.mubr.bf16.gmra.mrb[0].mxu0 %v5801
      %v5837 = vpop.f32.mrb[0].mxu0
      %v5838 = vadd.f32 %v2372, %v5837
      %v5839 = vpop.f32.mrb[0].mxu0
      %v5840 = vpop.f32.mrb[0].mxu0
      %v5841 = vpop.f32.mrb[0].mxu0
      %5842 = vdwg.mxu0
      %v5851 = vunpack.c.l.b16 %v2001
      %v5852 = vunpack.c.l.b16 %v2002
      %v5853 = vunpack.c.l.b16 %v2003
      %v5854 = vunpack.c.l.b16 %v2004
      %v5855 = vunpack.c.l.b16 %v2005
      %v5856 = vunpack.c.l.b16 %v2006
      %v5857 = vunpack.c.l.b16 %v2007
      %v5858 = vunpack.c.l.b16 %v2008
      %v5859 = vpack.c.b16 %v5852, %v5851
      %v5860 = vpack.c.b16 %v5854, %v5853
      %v5861 = vpack.c.b16 %v5856, %v5855
      %v5862 = vpack.c.b16 %v5858, %v5857
      %v5868 = vsel %vm2449, %v2156, 0
      %5870 = vmatprep.subr.bf16.mxu0 0
      %5871 = vmatpush1.bf16.msra.mxu0 %v5859
      %5872 = vmatprep.subr.bf16.mxu0 0
      %5873 = vmatpush1.bf16.msra.mxu0 %v5860
      %5874 = vmatprep.subr.bf16.mxu0 0
      %5875 = vmatpush1.bf16.msra.mxu0 %v5861
      %5876 = vmatprep.subr.bf16.mxu0 0
      %5877 = vmatpush1.bf16.msra.mxu0 %v5862
      %5878 = vmatprep.subr.bf16.mxu0 0
      %5879 = vmatpush1.bf16.msra.mxu0 0
      %5880 = vmatprep.subr.bf16.mxu0 0
      %5881 = vmatpush1.bf16.msra.mxu0 0
      %5882 = vmatprep.subr.bf16.mxu0 0
      %5883 = vmatpush1.bf16.msra.mxu0 0
      %5884 = vmatprep.subr.bf16.mxu0 0
      %5885 = vmatpush1.bf16.msra.mxu0 0
      %5886 = vmatprep.subr.bf16.mxu0 0
      %5887 = vmatpush1.bf16.msra.mxu0 0
      %5888 = vmatprep.subr.bf16.mxu0 0
      %5889 = vmatpush1.bf16.msra.mxu0 0
      %5890 = vmatprep.subr.bf16.mxu0 0
      %5891 = vmatpush1.bf16.msra.mxu0 0
      %5892 = vmatprep.subr.bf16.mxu0 0
      %5893 = vmatpush1.bf16.msra.mxu0 0
      %5894 = vmatprep.subr.bf16.mxu0 0
      %5895 = vmatpush1.bf16.msra.mxu0 0
      %5896 = vmatprep.subr.bf16.mxu0 0
      %5897 = vmatpush1.bf16.msra.mxu0 0
      %5898 = vmatprep.subr.bf16.mxu0 0
      %5899 = vmatpush1.bf16.msra.mxu0 0
      %5900 = vmatprep.subr.bf16.mxu0 0
      %5901 = vmatpush1.bf16.msra.mxu0 0
      %5902 = vmatprep.mubr.bf16.mxu0 0
      %5903 = vmatmul.mubr.bf16.gmra.mrb[0].mxu0 %v5868
      %v5904 = vpop.f32.mrb[0].mxu0
      %v5905 = vadd.f32 %v2376, %v5904
      %v5906 = vpop.f32.mrb[0].mxu0
      %v5907 = vpop.f32.mrb[0].mxu0
      %v5908 = vpop.f32.mrb[0].mxu0
      %5909 = vdwg.mxu0
      %v5918 = vunpack.c.l.b16 %v2009
      %v5919 = vunpack.c.l.b16 %v2010
      %v5920 = vunpack.c.l.b16 %v2011
      %v5921 = vunpack.c.l.b16 %v2012
      %v5922 = vunpack.c.l.b16 %v2013
      %v5923 = vunpack.c.l.b16 %v2014
      %v5924 = vunpack.c.l.b16 %v2015
      %v5925 = vunpack.c.l.b16 %v2016
      %v5926 = vpack.c.b16 %v5919, %v5918
      %v5927 = vpack.c.b16 %v5921, %v5920
      %v5928 = vpack.c.b16 %v5923, %v5922
      %v5929 = vpack.c.b16 %v5925, %v5924
      %v5935 = vsel %vm2449, %v2157, 0
      %5937 = vmatprep.subr.bf16.mxu0 0
      %5938 = vmatpush1.bf16.msra.mxu0 %v5926
      %5939 = vmatprep.subr.bf16.mxu0 0
      %5940 = vmatpush1.bf16.msra.mxu0 %v5927
      %5941 = vmatprep.subr.bf16.mxu0 0
      %5942 = vmatpush1.bf16.msra.mxu0 %v5928
      %5943 = vmatprep.subr.bf16.mxu0 0
      %5944 = vmatpush1.bf16.msra.mxu0 %v5929
      %5945 = vmatprep.subr.bf16.mxu0 0
      %5946 = vmatpush1.bf16.msra.mxu0 0
      %5947 = vmatprep.subr.bf16.mxu0 0
      %5948 = vmatpush1.bf16.msra.mxu0 0
      %5949 = vmatprep.subr.bf16.mxu0 0
      %5950 = vmatpush1.bf16.msra.mxu0 0
      %5951 = vmatprep.subr.bf16.mxu0 0
      %5952 = vmatpush1.bf16.msra.mxu0 0
      %5953 = vmatprep.subr.bf16.mxu0 0
      %5954 = vmatpush1.bf16.msra.mxu0 0
      %5955 = vmatprep.subr.bf16.mxu0 0
      %5956 = vmatpush1.bf16.msra.mxu0 0
      %5957 = vmatprep.subr.bf16.mxu0 0
      %5958 = vmatpush1.bf16.msra.mxu0 0
      %5959 = vmatprep.subr.bf16.mxu0 0
      %5960 = vmatpush1.bf16.msra.mxu0 0
      %5961 = vmatprep.subr.bf16.mxu0 0
      %5962 = vmatpush1.bf16.msra.mxu0 0
      %5963 = vmatprep.subr.bf16.mxu0 0
      %5964 = vmatpush1.bf16.msra.mxu0 0
      %5965 = vmatprep.subr.bf16.mxu0 0
      %5966 = vmatpush1.bf16.msra.mxu0 0
      %5967 = vmatprep.subr.bf16.mxu0 0
      %5968 = vmatpush1.bf16.msra.mxu0 0
      %5969 = vmatprep.mubr.bf16.mxu0 0
      %5970 = vmatmul.mubr.bf16.gmra.mrb[0].mxu0 %v5935
      %v5971 = vpop.f32.mrb[0].mxu0
      %v5972 = vadd.f32 %v2380, %v5971
      %v5973 = vpop.f32.mrb[0].mxu0
      %v5974 = vpop.f32.mrb[0].mxu0
      %v5975 = vpop.f32.mrb[0].mxu0
      %5976 = vdwg.mxu0
      %v5985 = vunpack.c.l.b16 %v2017
      %v5986 = vunpack.c.l.b16 %v2018
      %v5987 = vunpack.c.l.b16 %v2019
      %v5988 = vunpack.c.l.b16 %v2020
      %v5989 = vunpack.c.l.b16 %v2021
      %v5990 = vunpack.c.l.b16 %v2022
      %v5991 = vunpack.c.l.b16 %v2023
      %v5992 = vunpack.c.l.b16 %v2024
      %v5993 = vpack.c.b16 %v5986, %v5985
      %v5994 = vpack.c.b16 %v5988, %v5987
      %v5995 = vpack.c.b16 %v5990, %v5989
      %v5996 = vpack.c.b16 %v5992, %v5991
      %v6002 = vsel %vm2449, %v2158, 0
      %6004 = vmatprep.subr.bf16.mxu0 0
      %6005 = vmatpush1.bf16.msra.mxu0 %v5993
      %6006 = vmatprep.subr.bf16.mxu0 0
      %6007 = vmatpush1.bf16.msra.mxu0 %v5994
      %6008 = vmatprep.subr.bf16.mxu0 0
      %6009 = vmatpush1.bf16.msra.mxu0 %v5995
      %6010 = vmatprep.subr.bf16.mxu0 0
      %6011 = vmatpush1.bf16.msra.mxu0 %v5996
      %6012 = vmatprep.subr.bf16.mxu0 0
      %6013 = vmatpush1.bf16.msra.mxu0 0
      %6014 = vmatprep.subr.bf16.mxu0 0
      %6015 = vmatpush1.bf16.msra.mxu0 0
      %6016 = vmatprep.subr.bf16.mxu0 0
      %6017 = vmatpush1.bf16.msra.mxu0 0
      %6018 = vmatprep.subr.bf16.mxu0 0
      %6019 = vmatpush1.bf16.msra.mxu0 0
      %6020 = vmatprep.subr.bf16.mxu0 0
      %6021 = vmatpush1.bf16.msra.mxu0 0
      %6022 = vmatprep.subr.bf16.mxu0 0
      %6023 = vmatpush1.bf16.msra.mxu0 0
      %6024 = vmatprep.subr.bf16.mxu0 0
      %6025 = vmatpush1.bf16.msra.mxu0 0
      %6026 = vmatprep.subr.bf16.mxu0 0
      %6027 = vmatpush1.bf16.msra.mxu0 0
      %6028 = vmatprep.subr.bf16.mxu0 0
      %6029 = vmatpush1.bf16.msra.mxu0 0
      %6030 = vmatprep.subr.bf16.mxu0 0
      %6031 = vmatpush1.bf16.msra.mxu0 0
      %6032 = vmatprep.subr.bf16.mxu0 0
      %6033 = vmatpush1.bf16.msra.mxu0 0
      %6034 = vmatprep.subr.bf16.mxu0 0
      %6035 = vmatpush1.bf16.msra.mxu0 0
      %6036 = vmatprep.mubr.bf16.mxu0 0
      %6037 = vmatmul.mubr.bf16.gmra.mrb[0].mxu0 %v6002
      %v6038 = vpop.f32.mrb[0].mxu0
      %v6039 = vadd.f32 %v2384, %v6038
      %v6040 = vpop.f32.mrb[0].mxu0
      %v6041 = vpop.f32.mrb[0].mxu0
      %v6042 = vpop.f32.mrb[0].mxu0
      %6043 = vdwg.mxu0
      %v6052 = vunpack.c.l.b16 %v2025
      %v6053 = vunpack.c.l.b16 %v2026
      %v6054 = vunpack.c.l.b16 %v2027
      %v6055 = vunpack.c.l.b16 %v2028
      %v6056 = vunpack.c.l.b16 %v2029
      %v6057 = vunpack.c.l.b16 %v2030
      %v6058 = vunpack.c.l.b16 %v2031
      %v6059 = vunpack.c.l.b16 %v2032
      %v6060 = vpack.c.b16 %v6053, %v6052
      %v6061 = vpack.c.b16 %v6055, %v6054
      %v6062 = vpack.c.b16 %v6057, %v6056
      %v6063 = vpack.c.b16 %v6059, %v6058
      %v6069 = vsel %vm2449, %v2159, 0
      %6071 = vmatprep.subr.bf16.mxu0 0
      %6072 = vmatpush1.bf16.msra.mxu0 %v6060
      %6073 = vmatprep.subr.bf16.mxu0 0
      %6074 = vmatpush1.bf16.msra.mxu0 %v6061
      %6075 = vmatprep.subr.bf16.mxu0 0
      %6076 = vmatpush1.bf16.msra.mxu0 %v6062
      %6077 = vmatprep.subr.bf16.mxu0 0
      %6078 = vmatpush1.bf16.msra.mxu0 %v6063
      %6079 = vmatprep.subr.bf16.mxu0 0
      %6080 = vmatpush1.bf16.msra.mxu0 0
      %6081 = vmatprep.subr.bf16.mxu0 0
      %6082 = vmatpush1.bf16.msra.mxu0 0
      %6083 = vmatprep.subr.bf16.mxu0 0
      %6084 = vmatpush1.bf16.msra.mxu0 0
      %6085 = vmatprep.subr.bf16.mxu0 0
      %6086 = vmatpush1.bf16.msra.mxu0 0
      %6087 = vmatprep.subr.bf16.mxu0 0
      %6088 = vmatpush1.bf16.msra.mxu0 0
      %6089 = vmatprep.subr.bf16.mxu0 0
      %6090 = vmatpush1.bf16.msra.mxu0 0
      %6091 = vmatprep.subr.bf16.mxu0 0
      %6092 = vmatpush1.bf16.msra.mxu0 0
      %6093 = vmatprep.subr.bf16.mxu0 0
      %6094 = vmatpush1.bf16.msra.mxu0 0
      %6095 = vmatprep.subr.bf16.mxu0 0
      %6096 = vmatpush1.bf16.msra.mxu0 0
      %6097 = vmatprep.subr.bf16.mxu0 0
      %6098 = vmatpush1.bf16.msra.mxu0 0
      %6099 = vmatprep.subr.bf16.mxu0 0
      %6100 = vmatpush1.bf16.msra.mxu0 0
      %6101 = vmatprep.subr.bf16.mxu0 0
      %6102 = vmatpush1.bf16.msra.mxu0 0
      %6103 = vmatprep.mubr.bf16.mxu0 0
      %6104 = vmatmul.mubr.bf16.gmra.mrb[0].mxu0 %v6069
      %v6105 = vpop.f32.mrb[0].mxu0
      %v6106 = vadd.f32 %v2388, %v6105
      %v6107 = vpop.f32.mrb[0].mxu0
      %v6108 = vpop.f32.mrb[0].mxu0
      %v6109 = vpop.f32.mrb[0].mxu0
      %6110 = vdwg.mxu0
      %v6119 = vunpack.c.l.b16 %v2033
      %v6120 = vunpack.c.l.b16 %v2034
      %v6121 = vunpack.c.l.b16 %v2035
      %v6122 = vunpack.c.l.b16 %v2036
      %v6123 = vunpack.c.l.b16 %v2037
      %v6124 = vunpack.c.l.b16 %v2038
      %v6125 = vunpack.c.l.b16 %v2039
      %v6126 = vunpack.c.l.b16 %v2040
      %v6127 = vpack.c.b16 %v6120, %v6119
      %v6128 = vpack.c.b16 %v6122, %v6121
      %v6129 = vpack.c.b16 %v6124, %v6123
      %v6130 = vpack.c.b16 %v6126, %v6125
      %v6136 = vsel %vm2449, %v2160, 0
      %6138 = vmatprep.subr.bf16.mxu0 0
      %6139 = vmatpush1.bf16.msra.mxu0 %v6127
      %6140 = vmatprep.subr.bf16.mxu0 0
      %6141 = vmatpush1.bf16.msra.mxu0 %v6128
      %6142 = vmatprep.subr.bf16.mxu0 0
      %6143 = vmatpush1.bf16.msra.mxu0 %v6129
      %6144 = vmatprep.subr.bf16.mxu0 0
      %6145 = vmatpush1.bf16.msra.mxu0 %v6130
      %6146 = vmatprep.subr.bf16.mxu0 0
      %6147 = vmatpush1.bf16.msra.mxu0 0
      %6148 = vmatprep.subr.bf16.mxu0 0
      %6149 = vmatpush1.bf16.msra.mxu0 0
      %6150 = vmatprep.subr.bf16.mxu0 0
      %6151 = vmatpush1.bf16.msra.mxu0 0
      %6152 = vmatprep.subr.bf16.mxu0 0
      %6153 = vmatpush1.bf16.msra.mxu0 0
      %6154 = vmatprep.subr.bf16.mxu0 0
      %6155 = vmatpush1.bf16.msra.mxu0 0
      %6156 = vmatprep.subr.bf16.mxu0 0
      %6157 = vmatpush1.bf16.msra.mxu0 0
      %6158 = vmatprep.subr.bf16.mxu0 0
      %6159 = vmatpush1.bf16.msra.mxu0 0
      %6160 = vmatprep.subr.bf16.mxu0 0
      %6161 = vmatpush1.bf16.msra.mxu0 0
      %6162 = vmatprep.subr.bf16.mxu0 0
      %6163 = vmatpush1.bf16.msra.mxu0 0
      %6164 = vmatprep.subr.bf16.mxu0 0
      %6165 = vmatpush1.bf16.msra.mxu0 0
      %6166 = vmatprep.subr.bf16.mxu0 0
      %6167 = vmatpush1.bf16.msra.mxu0 0
      %6168 = vmatprep.subr.bf16.mxu0 0
      %6169 = vmatpush1.bf16.msra.mxu0 0
      %6170 = vmatprep.mubr.bf16.mxu0 0
      %6171 = vmatmul.mubr.bf16.gmra.mrb[0].mxu0 %v6136
      %v6172 = vpop.f32.mrb[0].mxu0
      %v6173 = vadd.f32 %v2392, %v6172
      %v6174 = vpop.f32.mrb[0].mxu0
      %v6175 = vpop.f32.mrb[0].mxu0
      %v6176 = vpop.f32.mrb[0].mxu0
      %6177 = vdwg.mxu0
      %v6186 = vunpack.c.l.b16 %v2041
      %v6187 = vunpack.c.l.b16 %v2042
      %v6188 = vunpack.c.l.b16 %v2043
      %v6189 = vunpack.c.l.b16 %v2044
      %v6190 = vunpack.c.l.b16 %v2045
      %v6191 = vunpack.c.l.b16 %v2046
      %v6192 = vunpack.c.l.b16 %v2047
      %v6193 = vunpack.c.l.b16 %v2048
      %v6194 = vpack.c.b16 %v6187, %v6186
      %v6195 = vpack.c.b16 %v6189, %v6188
      %v6196 = vpack.c.b16 %v6191, %v6190
      %v6197 = vpack.c.b16 %v6193, %v6192
      %v6203 = vsel %vm2449, %v2161, 0
      %6205 = vmatprep.subr.bf16.mxu0 0
      %6206 = vmatpush1.bf16.msra.mxu0 %v6194
      %6207 = vmatprep.subr.bf16.mxu0 0
      %6208 = vmatpush1.bf16.msra.mxu0 %v6195
      %6209 = vmatprep.subr.bf16.mxu0 0
      %6210 = vmatpush1.bf16.msra.mxu0 %v6196
      %6211 = vmatprep.subr.bf16.mxu0 0
      %6212 = vmatpush1.bf16.msra.mxu0 %v6197
      %6213 = vmatprep.subr.bf16.mxu0 0
      %6214 = vmatpush1.bf16.msra.mxu0 0
      %6215 = vmatprep.subr.bf16.mxu0 0
      %6216 = vmatpush1.bf16.msra.mxu0 0
      %6217 = vmatprep.subr.bf16.mxu0 0
      %6218 = vmatpush1.bf16.msra.mxu0 0
      %6219 = vmatprep.subr.bf16.mxu0 0
      %6220 = vmatpush1.bf16.msra.mxu0 0
      %6221 = vmatprep.subr.bf16.mxu0 0
      %6222 = vmatpush1.bf16.msra.mxu0 0
      %6223 = vmatprep.subr.bf16.mxu0 0
      %6224 = vmatpush1.bf16.msra.mxu0 0
      %6225 = vmatprep.subr.bf16.mxu0 0
      %6226 = vmatpush1.bf16.msra.mxu0 0
      %6227 = vmatprep.subr.bf16.mxu0 0
      %6228 = vmatpush1.bf16.msra.mxu0 0
      %6229 = vmatprep.subr.bf16.mxu0 0
      %6230 = vmatpush1.bf16.msra.mxu0 0
      %6231 = vmatprep.subr.bf16.mxu0 0
      %6232 = vmatpush1.bf16.msra.mxu0 0
      %6233 = vmatprep.subr.bf16.mxu0 0
      %6234 = vmatpush1.bf16.msra.mxu0 0
      %6235 = vmatprep.subr.bf16.mxu0 0
      %6236 = vmatpush1.bf16.msra.mxu0 0
      %6237 = vmatprep.mubr.bf16.mxu0 0
      %6238 = vmatmul.mubr.bf16.gmra.mrb[0].mxu0 %v6203
      %v6239 = vpop.f32.mrb[0].mxu0
      %v6240 = vadd.f32 %v2396, %v6239
      %v6241 = vpop.f32.mrb[0].mxu0
      %v6242 = vpop.f32.mrb[0].mxu0
      %v6243 = vpop.f32.mrb[0].mxu0
      %6244 = vdwg.mxu0
      %v6253 = vunpack.c.l.b16 %v2049
      %v6254 = vunpack.c.l.b16 %v2050
      %v6255 = vunpack.c.l.b16 %v2051
      %v6256 = vunpack.c.l.b16 %v2052
      %v6257 = vunpack.c.l.b16 %v2053
      %v6258 = vunpack.c.l.b16 %v2054
      %v6259 = vunpack.c.l.b16 %v2055
      %v6260 = vunpack.c.l.b16 %v2056
      %v6261 = vpack.c.b16 %v6254, %v6253
      %v6262 = vpack.c.b16 %v6256, %v6255
      %v6263 = vpack.c.b16 %v6258, %v6257
      %v6264 = vpack.c.b16 %v6260, %v6259
      %v6270 = vsel %vm2449, %v2162, 0
      %6272 = vmatprep.subr.bf16.mxu0 0
      %6273 = vmatpush1.bf16.msra.mxu0 %v6261
      %6274 = vmatprep.subr.bf16.mxu0 0
      %6275 = vmatpush1.bf16.msra.mxu0 %v6262
      %6276 = vmatprep.subr.bf16.mxu0 0
      %6277 = vmatpush1.bf16.msra.mxu0 %v6263
      %6278 = vmatprep.subr.bf16.mxu0 0
      %6279 = vmatpush1.bf16.msra.mxu0 %v6264
      %6280 = vmatprep.subr.bf16.mxu0 0
      %6281 = vmatpush1.bf16.msra.mxu0 0
      %6282 = vmatprep.subr.bf16.mxu0 0
      %6283 = vmatpush1.bf16.msra.mxu0 0
      %6284 = vmatprep.subr.bf16.mxu0 0
      %6285 = vmatpush1.bf16.msra.mxu0 0
      %6286 = vmatprep.subr.bf16.mxu0 0
      %6287 = vmatpush1.bf16.msra.mxu0 0
      %6288 = vmatprep.subr.bf16.mxu0 0
      %6289 = vmatpush1.bf16.msra.mxu0 0
      %6290 = vmatprep.subr.bf16.mxu0 0
      %6291 = vmatpush1.bf16.msra.mxu0 0
      %6292 = vmatprep.subr.bf16.mxu0 0
      %6293 = vmatpush1.bf16.msra.mxu0 0
      %6294 = vmatprep.subr.bf16.mxu0 0
      %6295 = vmatpush1.bf16.msra.mxu0 0
      %6296 = vmatprep.subr.bf16.mxu0 0
      %6297 = vmatpush1.bf16.msra.mxu0 0
      %6298 = vmatprep.subr.bf16.mxu0 0
      %6299 = vmatpush1.bf16.msra.mxu0 0
      %6300 = vmatprep.subr.bf16.mxu0 0
      %6301 = vmatpush1.bf16.msra.mxu0 0
      %6302 = vmatprep.subr.bf16.mxu0 0
      %6303 = vmatpush1.bf16.msra.mxu0 0
      %6304 = vmatprep.mubr.bf16.mxu0 0
      %6305 = vmatmul.mubr.bf16.gmra.mrb[0].mxu0 %v6270
      %v6306 = vpop.f32.mrb[0].mxu0
      %v6307 = vadd.f32 %v2400, %v6306
      %v6308 = vpop.f32.mrb[0].mxu0
      %v6309 = vpop.f32.mrb[0].mxu0
      %v6310 = vpop.f32.mrb[0].mxu0
      %6311 = vdwg.mxu0
      %v6320 = vunpack.c.l.b16 %v2057
      %v6321 = vunpack.c.l.b16 %v2058
      %v6322 = vunpack.c.l.b16 %v2059
      %v6323 = vunpack.c.l.b16 %v2060
      %v6324 = vunpack.c.l.b16 %v2061
      %v6325 = vunpack.c.l.b16 %v2062
      %v6326 = vunpack.c.l.b16 %v2063
      %v6327 = vunpack.c.l.b16 %v2064
      %v6328 = vpack.c.b16 %v6321, %v6320
      %v6329 = vpack.c.b16 %v6323, %v6322
      %v6330 = vpack.c.b16 %v6325, %v6324
      %v6331 = vpack.c.b16 %v6327, %v6326
      %v6337 = vsel %vm2449, %v2163, 0
      %6339 = vmatprep.subr.bf16.mxu0 0
      %6340 = vmatpush1.bf16.msra.mxu0 %v6328
      %6341 = vmatprep.subr.bf16.mxu0 0
      %6342 = vmatpush1.bf16.msra.mxu0 %v6329
      %6343 = vmatprep.subr.bf16.mxu0 0
      %6344 = vmatpush1.bf16.msra.mxu0 %v6330
      %6345 = vmatprep.subr.bf16.mxu0 0
      %6346 = vmatpush1.bf16.msra.mxu0 %v6331
      %6347 = vmatprep.subr.bf16.mxu0 0
      %6348 = vmatpush1.bf16.msra.mxu0 0
      %6349 = vmatprep.subr.bf16.mxu0 0
      %6350 = vmatpush1.bf16.msra.mxu0 0
      %6351 = vmatprep.subr.bf16.mxu0 0
      %6352 = vmatpush1.bf16.msra.mxu0 0
      %6353 = vmatprep.subr.bf16.mxu0 0
      %6354 = vmatpush1.bf16.msra.mxu0 0
      %6355 = vmatprep.subr.bf16.mxu0 0
      %6356 = vmatpush1.bf16.msra.mxu0 0
      %6357 = vmatprep.subr.bf16.mxu0 0
      %6358 = vmatpush1.bf16.msra.mxu0 0
      %6359 = vmatprep.subr.bf16.mxu0 0
      %6360 = vmatpush1.bf16.msra.mxu0 0
      %6361 = vmatprep.subr.bf16.mxu0 0
      %6362 = vmatpush1.bf16.msra.mxu0 0
      %6363 = vmatprep.subr.bf16.mxu0 0
      %6364 = vmatpush1.bf16.msra.mxu0 0
      %6365 = vmatprep.subr.bf16.mxu0 0
      %6366 = vmatpush1.bf16.msra.mxu0 0
      %6367 = vmatprep.subr.bf16.mxu0 0
      %6368 = vmatpush1.bf16.msra.mxu0 0
      %6369 = vmatprep.subr.bf16.mxu0 0
      %6370 = vmatpush1.bf16.msra.mxu0 0
      %6371 = vmatprep.mubr.bf16.mxu0 0
      %6372 = vmatmul.mubr.bf16.gmra.mrb[0].mxu0 %v6337
      %v6373 = vpop.f32.mrb[0].mxu0
      %v6374 = vadd.f32 %v2404, %v6373
      %v6375 = vpop.f32.mrb[0].mxu0
      %v6376 = vpop.f32.mrb[0].mxu0
      %v6377 = vpop.f32.mrb[0].mxu0
      %6378 = vdwg.mxu0
      %v6387 = vunpack.c.l.b16 %v2065
      %v6388 = vunpack.c.l.b16 %v2066
      %v6389 = vunpack.c.l.b16 %v2067
      %v6390 = vunpack.c.l.b16 %v2068
      %v6391 = vunpack.c.l.b16 %v2069
      %v6392 = vunpack.c.l.b16 %v2070
      %v6393 = vunpack.c.l.b16 %v2071
      %v6394 = vunpack.c.l.b16 %v2072
      %v6395 = vpack.c.b16 %v6388, %v6387
      %v6396 = vpack.c.b16 %v6390, %v6389
      %v6397 = vpack.c.b16 %v6392, %v6391
      %v6398 = vpack.c.b16 %v6394, %v6393
      %v6404 = vsel %vm2449, %v2164, 0
      %6406 = vmatprep.subr.bf16.mxu0 0
      %6407 = vmatpush1.bf16.msra.mxu0 %v6395
      %6408 = vmatprep.subr.bf16.mxu0 0
      %6409 = vmatpush1.bf16.msra.mxu0 %v6396
      %6410 = vmatprep.subr.bf16.mxu0 0
      %6411 = vmatpush1.bf16.msra.mxu0 %v6397
      %6412 = vmatprep.subr.bf16.mxu0 0
      %6413 = vmatpush1.bf16.msra.mxu0 %v6398
      %6414 = vmatprep.subr.bf16.mxu0 0
      %6415 = vmatpush1.bf16.msra.mxu0 0
      %6416 = vmatprep.subr.bf16.mxu0 0
      %6417 = vmatpush1.bf16.msra.mxu0 0
      %6418 = vmatprep.subr.bf16.mxu0 0
      %6419 = vmatpush1.bf16.msra.mxu0 0
      %6420 = vmatprep.subr.bf16.mxu0 0
      %6421 = vmatpush1.bf16.msra.mxu0 0
      %6422 = vmatprep.subr.bf16.mxu0 0
      %6423 = vmatpush1.bf16.msra.mxu0 0
      %6424 = vmatprep.subr.bf16.mxu0 0
      %6425 = vmatpush1.bf16.msra.mxu0 0
      %6426 = vmatprep.subr.bf16.mxu0 0
      %6427 = vmatpush1.bf16.msra.mxu0 0
      %6428 = vmatprep.subr.bf16.mxu0 0
      %6429 = vmatpush1.bf16.msra.mxu0 0
      %6430 = vmatprep.subr.bf16.mxu0 0
      %6431 = vmatpush1.bf16.msra.mxu0 0
      %6432 = vmatprep.subr.bf16.mxu0 0
      %6433 = vmatpush1.bf16.msra.mxu0 0
      %6434 = vmatprep.subr.bf16.mxu0 0
      %6435 = vmatpush1.bf16.msra.mxu0 0
      %6436 = vmatprep.subr.bf16.mxu0 0
      %6437 = vmatpush1.bf16.msra.mxu0 0
      %6438 = vmatprep.mubr.bf16.mxu0 0
      %6439 = vmatmul.mubr.bf16.gmra.mrb[0].mxu0 %v6404
      %v6440 = vpop.f32.mrb[0].mxu0
      %v6441 = vadd.f32 %v2408, %v6440
      %v6442 = vpop.f32.mrb[0].mxu0
      %v6443 = vpop.f32.mrb[0].mxu0
      %v6444 = vpop.f32.mrb[0].mxu0
      %6445 = vdwg.mxu0
      %v6454 = vunpack.c.l.b16 %v2073
      %v6455 = vunpack.c.l.b16 %v2074
      %v6456 = vunpack.c.l.b16 %v2075
      %v6457 = vunpack.c.l.b16 %v2076
      %v6458 = vunpack.c.l.b16 %v2077
      %v6459 = vunpack.c.l.b16 %v2078
      %v6460 = vunpack.c.l.b16 %v2079
      %v6461 = vunpack.c.l.b16 %v2080
      %v6462 = vpack.c.b16 %v6455, %v6454
      %v6463 = vpack.c.b16 %v6457, %v6456
      %v6464 = vpack.c.b16 %v6459, %v6458
      %v6465 = vpack.c.b16 %v6461, %v6460
      %v6471 = vsel %vm2449, %v2165, 0
      %6473 = vmatprep.subr.bf16.mxu0 0
      %6474 = vmatpush1.bf16.msra.mxu0 %v6462
      %6475 = vmatprep.subr.bf16.mxu0 0
      %6476 = vmatpush1.bf16.msra.mxu0 %v6463
      %6477 = vmatprep.subr.bf16.mxu0 0
      %6478 = vmatpush1.bf16.msra.mxu0 %v6464
      %6479 = vmatprep.subr.bf16.mxu0 0
      %6480 = vmatpush1.bf16.msra.mxu0 %v6465
      %6481 = vmatprep.subr.bf16.mxu0 0
      %6482 = vmatpush1.bf16.msra.mxu0 0
      %6483 = vmatprep.subr.bf16.mxu0 0
      %6484 = vmatpush1.bf16.msra.mxu0 0
      %6485 = vmatprep.subr.bf16.mxu0 0
      %6486 = vmatpush1.bf16.msra.mxu0 0
      %6487 = vmatprep.subr.bf16.mxu0 0
      %6488 = vmatpush1.bf16.msra.mxu0 0
      %6489 = vmatprep.subr.bf16.mxu0 0
      %6490 = vmatpush1.bf16.msra.mxu0 0
      %6491 = vmatprep.subr.bf16.mxu0 0
      %6492 = vmatpush1.bf16.msra.mxu0 0
      %6493 = vmatprep.subr.bf16.mxu0 0
      %6494 = vmatpush1.bf16.msra.mxu0 0
      %6495 = vmatprep.subr.bf16.mxu0 0
      %6496 = vmatpush1.bf16.msra.mxu0 0
      %6497 = vmatprep.subr.bf16.mxu0 0
      %6498 = vmatpush1.bf16.msra.mxu0 0
      %6499 = vmatprep.subr.bf16.mxu0 0
      %6500 = vmatpush1.bf16.msra.mxu0 0
      %6501 = vmatprep.subr.bf16.mxu0 0
      %6502 = vmatpush1.bf16.msra.mxu0 0
      %6503 = vmatprep.subr.bf16.mxu0 0
      %6504 = vmatpush1.bf16.msra.mxu0 0
      %6505 = vmatprep.mubr.bf16.mxu0 0
      %6506 = vmatmul.mubr.bf16.gmra.mrb[0].mxu0 %v6471
      %v6507 = vpop.f32.mrb[0].mxu0
      %v6508 = vadd.f32 %v2412, %v6507
      %v6509 = vpop.f32.mrb[0].mxu0
      %v6510 = vpop.f32.mrb[0].mxu0
      %v6511 = vpop.f32.mrb[0].mxu0
      %6512 = vdwg.mxu0
      %v6521 = vunpack.c.l.b16 %v2081
      %v6522 = vunpack.c.l.b16 %v2082
      %v6523 = vunpack.c.l.b16 %v2083
      %v6524 = vunpack.c.l.b16 %v2084
      %v6525 = vunpack.c.l.b16 %v2085
      %v6526 = vunpack.c.l.b16 %v2086
      %v6527 = vunpack.c.l.b16 %v2087
      %v6528 = vunpack.c.l.b16 %v2088
      %v6529 = vpack.c.b16 %v6522, %v6521
      %v6530 = vpack.c.b16 %v6524, %v6523
      %v6531 = vpack.c.b16 %v6526, %v6525
      %v6532 = vpack.c.b16 %v6528, %v6527
      %v6538 = vsel %vm2449, %v2166, 0
      %6540 = vmatprep.subr.bf16.mxu0 0
      %6541 = vmatpush1.bf16.msra.mxu0 %v6529
      %6542 = vmatprep.subr.bf16.mxu0 0
      %6543 = vmatpush1.bf16.msra.mxu0 %v6530
      %6544 = vmatprep.subr.bf16.mxu0 0
      %6545 = vmatpush1.bf16.msra.mxu0 %v6531
      %6546 = vmatprep.subr.bf16.mxu0 0
      %6547 = vmatpush1.bf16.msra.mxu0 %v6532
      %6548 = vmatprep.subr.bf16.mxu0 0
      %6549 = vmatpush1.bf16.msra.mxu0 0
      %6550 = vmatprep.subr.bf16.mxu0 0
      %6551 = vmatpush1.bf16.msra.mxu0 0
      %6552 = vmatprep.subr.bf16.mxu0 0
      %6553 = vmatpush1.bf16.msra.mxu0 0
      %6554 = vmatprep.subr.bf16.mxu0 0
      %6555 = vmatpush1.bf16.msra.mxu0 0
      %6556 = vmatprep.subr.bf16.mxu0 0
      %6557 = vmatpush1.bf16.msra.mxu0 0
      %6558 = vmatprep.subr.bf16.mxu0 0
      %6559 = vmatpush1.bf16.msra.mxu0 0
      %6560 = vmatprep.subr.bf16.mxu0 0
      %6561 = vmatpush1.bf16.msra.mxu0 0
      %6562 = vmatprep.subr.bf16.mxu0 0
      %6563 = vmatpush1.bf16.msra.mxu0 0
      %6564 = vmatprep.subr.bf16.mxu0 0
      %6565 = vmatpush1.bf16.msra.mxu0 0
      %6566 = vmatprep.subr.bf16.mxu0 0
      %6567 = vmatpush1.bf16.msra.mxu0 0
      %6568 = vmatprep.subr.bf16.mxu0 0
      %6569 = vmatpush1.bf16.msra.mxu0 0
      %6570 = vmatprep.subr.bf16.mxu0 0
      %6571 = vmatpush1.bf16.msra.mxu0 0
      %6572 = vmatprep.mubr.bf16.mxu0 0
      %6573 = vmatmul.mubr.bf16.gmra.mrb[0].mxu0 %v6538
      %v6574 = vpop.f32.mrb[0].mxu0
      %v6575 = vadd.f32 %v2416, %v6574
      %v6576 = vpop.f32.mrb[0].mxu0
      %v6577 = vpop.f32.mrb[0].mxu0
      %v6578 = vpop.f32.mrb[0].mxu0
      %6579 = vdwg.mxu0
      %v6588 = vunpack.c.l.b16 %v2089
      %v6589 = vunpack.c.l.b16 %v2090
      %v6590 = vunpack.c.l.b16 %v2091
      %v6591 = vunpack.c.l.b16 %v2092
      %v6592 = vunpack.c.l.b16 %v2093
      %v6593 = vunpack.c.l.b16 %v2094
      %v6594 = vunpack.c.l.b16 %v2095
      %v6595 = vunpack.c.l.b16 %v2096
      %v6596 = vpack.c.b16 %v6589, %v6588
      %v6597 = vpack.c.b16 %v6591, %v6590
      %v6598 = vpack.c.b16 %v6593, %v6592
      %v6599 = vpack.c.b16 %v6595, %v6594
      %v6605 = vsel %vm2449, %v2167, 0
      %6607 = vmatprep.subr.bf16.mxu0 0
      %6608 = vmatpush1.bf16.msra.mxu0 %v6596
      %6609 = vmatprep.subr.bf16.mxu0 0
      %6610 = vmatpush1.bf16.msra.mxu0 %v6597
      %6611 = vmatprep.subr.bf16.mxu0 0
      %6612 = vmatpush1.bf16.msra.mxu0 %v6598
      %6613 = vmatprep.subr.bf16.mxu0 0
      %6614 = vmatpush1.bf16.msra.mxu0 %v6599
      %6615 = vmatprep.subr.bf16.mxu0 0
      %6616 = vmatpush1.bf16.msra.mxu0 0
      %6617 = vmatprep.subr.bf16.mxu0 0
      %6618 = vmatpush1.bf16.msra.mxu0 0
      %6619 = vmatprep.subr.bf16.mxu0 0
      %6620 = vmatpush1.bf16.msra.mxu0 0
      %6621 = vmatprep.subr.bf16.mxu0 0
      %6622 = vmatpush1.bf16.msra.mxu0 0
      %6623 = vmatprep.subr.bf16.mxu0 0
      %6624 = vmatpush1.bf16.msra.mxu0 0
      %6625 = vmatprep.subr.bf16.mxu0 0
      %6626 = vmatpush1.bf16.msra.mxu0 0
      %6627 = vmatprep.subr.bf16.mxu0 0
      %6628 = vmatpush1.bf16.msra.mxu0 0
      %6629 = vmatprep.subr.bf16.mxu0 0
      %6630 = vmatpush1.bf16.msra.mxu0 0
      %6631 = vmatprep.subr.bf16.mxu0 0
      %6632 = vmatpush1.bf16.msra.mxu0 0
      %6633 = vmatprep.subr.bf16.mxu0 0
      %6634 = vmatpush1.bf16.msra.mxu0 0
      %6635 = vmatprep.subr.bf16.mxu0 0
      %6636 = vmatpush1.bf16.msra.mxu0 0
      %6637 = vmatprep.subr.bf16.mxu0 0
      %6638 = vmatpush1.bf16.msra.mxu0 0
      %6639 = vmatprep.mubr.bf16.mxu0 0
      %6640 = vmatmul.mubr.bf16.gmra.mrb[0].mxu0 %v6605
      %v6641 = vpop.f32.mrb[0].mxu0
      %v6642 = vadd.f32 %v2420, %v6641
      %v6643 = vpop.f32.mrb[0].mxu0
      %v6644 = vpop.f32.mrb[0].mxu0
      %v6645 = vpop.f32.mrb[0].mxu0
      %6646 = vdwg.mxu0
      %v6655 = vunpack.c.l.b16 %v2097
      %v6656 = vunpack.c.l.b16 %v2098
      %v6657 = vunpack.c.l.b16 %v2099
      %v6658 = vunpack.c.l.b16 %v2100
      %v6659 = vunpack.c.l.b16 %v2101
      %v6660 = vunpack.c.l.b16 %v2102
      %v6661 = vunpack.c.l.b16 %v2103
      %v6662 = vunpack.c.l.b16 %v2104
      %v6663 = vpack.c.b16 %v6656, %v6655
      %v6664 = vpack.c.b16 %v6658, %v6657
      %v6665 = vpack.c.b16 %v6660, %v6659
      %v6666 = vpack.c.b16 %v6662, %v6661
      %v6672 = vsel %vm2449, %v2168, 0
      %6674 = vmatprep.subr.bf16.mxu0 0
      %6675 = vmatpush1.bf16.msra.mxu0 %v6663
      %6676 = vmatprep.subr.bf16.mxu0 0
      %6677 = vmatpush1.bf16.msra.mxu0 %v6664
      %6678 = vmatprep.subr.bf16.mxu0 0
      %6679 = vmatpush1.bf16.msra.mxu0 %v6665
      %6680 = vmatprep.subr.bf16.mxu0 0
      %6681 = vmatpush1.bf16.msra.mxu0 %v6666
      %6682 = vmatprep.subr.bf16.mxu0 0
      %6683 = vmatpush1.bf16.msra.mxu0 0
      %6684 = vmatprep.subr.bf16.mxu0 0
      %6685 = vmatpush1.bf16.msra.mxu0 0
      %6686 = vmatprep.subr.bf16.mxu0 0
      %6687 = vmatpush1.bf16.msra.mxu0 0
      %6688 = vmatprep.subr.bf16.mxu0 0
      %6689 = vmatpush1.bf16.msra.mxu0 0
      %6690 = vmatprep.subr.bf16.mxu0 0
      %6691 = vmatpush1.bf16.msra.mxu0 0
      %6692 = vmatprep.subr.bf16.mxu0 0
      %6693 = vmatpush1.bf16.msra.mxu0 0
      %6694 = vmatprep.subr.bf16.mxu0 0
      %6695 = vmatpush1.bf16.msra.mxu0 0
      %6696 = vmatprep.subr.bf16.mxu0 0
      %6697 = vmatpush1.bf16.msra.mxu0 0
      %6698 = vmatprep.subr.bf16.mxu0 0
      %6699 = vmatpush1.bf16.msra.mxu0 0
      %6700 = vmatprep.subr.bf16.mxu0 0
      %6701 = vmatpush1.bf16.msra.mxu0 0
      %6702 = vmatprep.subr.bf16.mxu0 0
      %6703 = vmatpush1.bf16.msra.mxu0 0
      %6704 = vmatprep.subr.bf16.mxu0 0
      %6705 = vmatpush1.bf16.msra.mxu0 0
      %6706 = vmatprep.mubr.bf16.mxu0 0
      %6707 = vmatmul.mubr.bf16.gmra.mrb[0].mxu0 %v6672
      %v6708 = vpop.f32.mrb[0].mxu0
      %v6709 = vadd.f32 %v2424, %v6708
      %v6710 = vpop.f32.mrb[0].mxu0
      %v6711 = vpop.f32.mrb[0].mxu0
      %v6712 = vpop.f32.mrb[0].mxu0
      %6713 = vdwg.mxu0
      %v6714 = vmax.f32 %v2488, 0.0
      %v6715 = vmax.f32 %v2555, 0.0
      %v6716 = vmax.f32 %v2622, 0.0
      %v6717 = vmax.f32 %v2689, 0.0
      %v6718 = vmax.f32 %v2756, 0.0
      %v6719 = vmax.f32 %v2823, 0.0
      %v6720 = vmax.f32 %v2890, 0.0
      %v6721 = vmax.f32 %v2957, 0.0
      %v6722 = vmax.f32 %v3024, 0.0
      %v6723 = vmax.f32 %v3091, 0.0
      %v6724 = vmax.f32 %v3158, 0.0
      %v6725 = vmax.f32 %v3225, 0.0
      %v6726 = vmax.f32 %v3292, 0.0
      %v6727 = vmax.f32 %v3359, 0.0
      %v6728 = vmax.f32 %v3426, 0.0
      %v6729 = vmax.f32 %v3493, 0.0
      %v6730 = vmax.f32 %v3560, 0.0
      %v6731 = vmax.f32 %v3627, 0.0
      %v6732 = vmax.f32 %v3694, 0.0
      %v6733 = vmax.f32 %v3761, 0.0
      %v6734 = vmax.f32 %v3828, 0.0
      %v6735 = vmax.f32 %v3895, 0.0
      %v6736 = vmax.f32 %v3962, 0.0
      %v6737 = vmax.f32 %v4029, 0.0
      %v6738 = vmax.f32 %v4096, 0.0
      %v6739 = vmax.f32 %v4163, 0.0
      %v6740 = vmax.f32 %v4230, 0.0
      %v6741 = vmax.f32 %v4297, 0.0
      %v6742 = vmax.f32 %v4364, 0.0
      %v6743 = vmax.f32 %v4431, 0.0
      %v6744 = vmax.f32 %v4498, 0.0
      %v6745 = vmax.f32 %v4565, 0.0
      %v6746 = vmax.f32 %v4632, 0.0
      %v6747 = vmax.f32 %v4699, 0.0
      %v6748 = vmax.f32 %v4766, 0.0
      %v6749 = vmax.f32 %v4833, 0.0
      %v6750 = vmax.f32 %v4900, 0.0
      %v6751 = vmax.f32 %v4967, 0.0
      %v6752 = vmax.f32 %v5034, 0.0
      %v6753 = vmax.f32 %v5101, 0.0
      %v6754 = vmax.f32 %v5168, 0.0
      %v6755 = vmax.f32 %v5235, 0.0
      %v6756 = vmax.f32 %v5302, 0.0
      %v6757 = vmax.f32 %v5369, 0.0
      %v6758 = vmax.f32 %v5436, 0.0
      %v6759 = vmax.f32 %v5503, 0.0
      %v6760 = vmax.f32 %v5570, 0.0
      %v6761 = vmax.f32 %v5637, 0.0
      %v6762 = vmax.f32 %v5704, 0.0
      %v6763 = vmax.f32 %v5771, 0.0
      %v6764 = vmax.f32 %v5838, 0.0
      %v6765 = vmax.f32 %v5905, 0.0
      %v6766 = vmax.f32 %v5972, 0.0
      %v6767 = vmax.f32 %v6039, 0.0
      %v6768 = vmax.f32 %v6106, 0.0
      %v6769 = vmax.f32 %v6173, 0.0
      %v6770 = vmax.f32 %v6240, 0.0
      %v6771 = vmax.f32 %v6307, 0.0
      %v6772 = vmax.f32 %v6374, 0.0
      %v6773 = vmax.f32 %v6441, 0.0
      %v6774 = vmax.f32 %v6508, 0.0
      %v6775 = vmax.f32 %v6575, 0.0
      %v6776 = vmax.f32 %v6642, 0.0
      %v6777 = vmax.f32 %v6709, 0.0
      %v6778 = vlaneseq
      %v6779 = vshrl.u32 %v6778, 7
      %v6780 = vsub.s32 2, %v6779
      %v6781 = vrot.slane %v377, %v6780
      %v6782 = vlaneseq
      %v6783 = vshrl.u32 %v6782, 7
      %v6784 = vsub.s32 2, %v6783
      %v6785 = vrot.slane %v378, %v6784
      %v6786 = vlaneseq
      %v6787 = vshrl.u32 %v6786, 7
      %v6788 = vsub.s32 2, %v6787
      %v6789 = vrot.slane %v379, %v6788
      %v6790 = vlaneseq
      %v6791 = vshrl.u32 %v6790, 7
      %v6792 = vsub.s32 2, %v6791
      %v6793 = vrot.slane %v380, %v6792
      %v6794 = vlaneseq
      %v6795 = vshrl.u32 %v6794, 7
      %v6796 = vsub.s32 2, %v6795
      %v6797 = vrot.slane %v381, %v6796
      %v6798 = vlaneseq
      %v6799 = vshrl.u32 %v6798, 7
      %v6800 = vsub.s32 2, %v6799
      %v6801 = vrot.slane %v382, %v6800
      %v6802 = vlaneseq
      %v6803 = vshrl.u32 %v6802, 7
      %v6804 = vsub.s32 2, %v6803
      %v6805 = vrot.slane %v383, %v6804
      %v6806 = vlaneseq
      %v6807 = vshrl.u32 %v6806, 7
      %v6808 = vsub.s32 2, %v6807
      %v6809 = vrot.slane %v384, %v6808
      %v6810 = vlaneseq
      %v6811 = vshrl.u32 %v6810, 7
      %v6812 = vsub.s32 2, %v6811
      %v6813 = vrot.slane %v385, %v6812
      %v6814 = vlaneseq
      %v6815 = vshrl.u32 %v6814, 7
      %v6816 = vsub.s32 2, %v6815
      %v6817 = vrot.slane %v386, %v6816
      %v6818 = vlaneseq
      %v6819 = vshrl.u32 %v6818, 7
      %v6820 = vsub.s32 2, %v6819
      %v6821 = vrot.slane %v387, %v6820
      %v6822 = vlaneseq
      %v6823 = vshrl.u32 %v6822, 7
      %v6824 = vsub.s32 2, %v6823
      %v6825 = vrot.slane %v388, %v6824
      %v6826 = vlaneseq
      %v6827 = vshrl.u32 %v6826, 7
      %v6828 = vsub.s32 2, %v6827
      %v6829 = vrot.slane %v389, %v6828
      %v6830 = vlaneseq
      %v6831 = vshrl.u32 %v6830, 7
      %v6832 = vsub.s32 2, %v6831
      %v6833 = vrot.slane %v390, %v6832
      %v6834 = vlaneseq
      %v6835 = vshrl.u32 %v6834, 7
      %v6836 = vsub.s32 2, %v6835
      %v6837 = vrot.slane %v391, %v6836
      %v6838 = vlaneseq
      %v6839 = vshrl.u32 %v6838, 7
      %v6840 = vsub.s32 2, %v6839
      %v6841 = vrot.slane %v392, %v6840
      %v6842 = vlaneseq
      %v6843 = vshrl.u32 %v6842, 7
      %v6844 = vsub.s32 2, %v6843
      %v6845 = vrot.slane %v393, %v6844
      %v6846 = vlaneseq
      %v6847 = vshrl.u32 %v6846, 7
      %v6848 = vsub.s32 2, %v6847
      %v6849 = vrot.slane %v394, %v6848
      %v6850 = vlaneseq
      %v6851 = vshrl.u32 %v6850, 7
      %v6852 = vsub.s32 2, %v6851
      %v6853 = vrot.slane %v395, %v6852
      %v6854 = vlaneseq
      %v6855 = vshrl.u32 %v6854, 7
      %v6856 = vsub.s32 2, %v6855
      %v6857 = vrot.slane %v396, %v6856
      %v6858 = vlaneseq
      %v6859 = vshrl.u32 %v6858, 7
      %v6860 = vsub.s32 2, %v6859
      %v6861 = vrot.slane %v397, %v6860
      %v6862 = vlaneseq
      %v6863 = vshrl.u32 %v6862, 7
      %v6864 = vsub.s32 2, %v6863
      %v6865 = vrot.slane %v398, %v6864
      %v6866 = vlaneseq
      %v6867 = vshrl.u32 %v6866, 7
      %v6868 = vsub.s32 2, %v6867
      %v6869 = vrot.slane %v399, %v6868
      %v6870 = vlaneseq
      %v6871 = vshrl.u32 %v6870, 7
      %v6872 = vsub.s32 2, %v6871
      %v6873 = vrot.slane %v400, %v6872
      %v6874 = vlaneseq
      %v6875 = vshrl.u32 %v6874, 7
      %v6876 = vsub.s32 2, %v6875
      %v6877 = vrot.slane %v401, %v6876
      %v6878 = vlaneseq
      %v6879 = vshrl.u32 %v6878, 7
      %v6880 = vsub.s32 2, %v6879
      %v6881 = vrot.slane %v402, %v6880
      %v6882 = vlaneseq
      %v6883 = vshrl.u32 %v6882, 7
      %v6884 = vsub.s32 2, %v6883
      %v6885 = vrot.slane %v403, %v6884
      %v6886 = vlaneseq
      %v6887 = vshrl.u32 %v6886, 7
      %v6888 = vsub.s32 2, %v6887
      %v6889 = vrot.slane %v404, %v6888
      %v6890 = vlaneseq
      %v6891 = vshrl.u32 %v6890, 7
      %v6892 = vsub.s32 2, %v6891
      %v6893 = vrot.slane %v405, %v6892
      %v6894 = vlaneseq
      %v6895 = vshrl.u32 %v6894, 7
      %v6896 = vsub.s32 2, %v6895
      %v6897 = vrot.slane %v406, %v6896
      %v6898 = vlaneseq
      %v6899 = vshrl.u32 %v6898, 7
      %v6900 = vsub.s32 2, %v6899
      %v6901 = vrot.slane %v407, %v6900
      %v6902 = vlaneseq
      %v6903 = vshrl.u32 %v6902, 7
      %v6904 = vsub.s32 2, %v6903
      %v6905 = vrot.slane %v408, %v6904
      %v6906 = vlaneseq
      %v6907 = vshrl.u32 %v6906, 7
      %v6908 = vsub.s32 2, %v6907
      %v6909 = vrot.slane %v409, %v6908
      %v6910 = vlaneseq
      %v6911 = vshrl.u32 %v6910, 7
      %v6912 = vsub.s32 2, %v6911
      %v6913 = vrot.slane %v410, %v6912
      %v6914 = vlaneseq
      %v6915 = vshrl.u32 %v6914, 7
      %v6916 = vsub.s32 2, %v6915
      %v6917 = vrot.slane %v411, %v6916
      %v6918 = vlaneseq
      %v6919 = vshrl.u32 %v6918, 7
      %v6920 = vsub.s32 2, %v6919
      %v6921 = vrot.slane %v412, %v6920
      %v6922 = vlaneseq
      %v6923 = vshrl.u32 %v6922, 7
      %v6924 = vsub.s32 2, %v6923
      %v6925 = vrot.slane %v413, %v6924
      %v6926 = vlaneseq
      %v6927 = vshrl.u32 %v6926, 7
      %v6928 = vsub.s32 2, %v6927
      %v6929 = vrot.slane %v414, %v6928
      %v6930 = vlaneseq
      %v6931 = vshrl.u32 %v6930, 7
      %v6932 = vsub.s32 2, %v6931
      %v6933 = vrot.slane %v415, %v6932
      %v6934 = vlaneseq
      %v6935 = vshrl.u32 %v6934, 7
      %v6936 = vsub.s32 2, %v6935
      %v6937 = vrot.slane %v416, %v6936
      %v6938 = vlaneseq
      %v6939 = vshrl.u32 %v6938, 7
      %v6940 = vsub.s32 2, %v6939
      %v6941 = vrot.slane %v417, %v6940
      %v6942 = vlaneseq
      %v6943 = vshrl.u32 %v6942, 7
      %v6944 = vsub.s32 2, %v6943
      %v6945 = vrot.slane %v418, %v6944
      %v6946 = vlaneseq
      %v6947 = vshrl.u32 %v6946, 7
      %v6948 = vsub.s32 2, %v6947
      %v6949 = vrot.slane %v419, %v6948
      %v6950 = vlaneseq
      %v6951 = vshrl.u32 %v6950, 7
      %v6952 = vsub.s32 2, %v6951
      %v6953 = vrot.slane %v420, %v6952
      %v6954 = vlaneseq
      %v6955 = vshrl.u32 %v6954, 7
      %v6956 = vsub.s32 2, %v6955
      %v6957 = vrot.slane %v421, %v6956
      %v6958 = vlaneseq
      %v6959 = vshrl.u32 %v6958, 7
      %v6960 = vsub.s32 2, %v6959
      %v6961 = vrot.slane %v422, %v6960
      %v6962 = vlaneseq
      %v6963 = vshrl.u32 %v6962, 7
      %v6964 = vsub.s32 2, %v6963
      %v6965 = vrot.slane %v423, %v6964
      %v6966 = vlaneseq
      %v6967 = vshrl.u32 %v6966, 7
      %v6968 = vsub.s32 2, %v6967
      %v6969 = vrot.slane %v424, %v6968
      %v6970 = vlaneseq
      %v6971 = vshrl.u32 %v6970, 7
      %v6972 = vsub.s32 2, %v6971
      %v6973 = vrot.slane %v425, %v6972
      %v6974 = vlaneseq
      %v6975 = vshrl.u32 %v6974, 7
      %v6976 = vsub.s32 2, %v6975
      %v6977 = vrot.slane %v426, %v6976
      %v6978 = vlaneseq
      %v6979 = vshrl.u32 %v6978, 7
      %v6980 = vsub.s32 2, %v6979
      %v6981 = vrot.slane %v427, %v6980
      %v6982 = vlaneseq
      %v6983 = vshrl.u32 %v6982, 7
      %v6984 = vsub.s32 2, %v6983
      %v6985 = vrot.slane %v428, %v6984
      %v6986 = vlaneseq
      %v6987 = vshrl.u32 %v6986, 7
      %v6988 = vsub.s32 2, %v6987
      %v6989 = vrot.slane %v429, %v6988
      %v6990 = vlaneseq
      %v6991 = vshrl.u32 %v6990, 7
      %v6992 = vsub.s32 2, %v6991
      %v6993 = vrot.slane %v430, %v6992
      %v6994 = vlaneseq
      %v6995 = vshrl.u32 %v6994, 7
      %v6996 = vsub.s32 2, %v6995
      %v6997 = vrot.slane %v431, %v6996
      %v6998 = vlaneseq
      %v6999 = vshrl.u32 %v6998, 7
      %v7000 = vsub.s32 2, %v6999
      %v7001 = vrot.slane %v432, %v7000
      %v7002 = vlaneseq
      %v7003 = vshrl.u32 %v7002, 7
      %v7004 = vsub.s32 2, %v7003
      %v7005 = vrot.slane %v433, %v7004
      %v7006 = vlaneseq
      %v7007 = vshrl.u32 %v7006, 7
      %v7008 = vsub.s32 2, %v7007
      %v7009 = vrot.slane %v434, %v7008
      %v7010 = vlaneseq
      %v7011 = vshrl.u32 %v7010, 7
      %v7012 = vsub.s32 2, %v7011
      %v7013 = vrot.slane %v435, %v7012
      %v7014 = vlaneseq
      %v7015 = vshrl.u32 %v7014, 7
      %v7016 = vsub.s32 2, %v7015
      %v7017 = vrot.slane %v436, %v7016
      %v7018 = vlaneseq
      %v7019 = vshrl.u32 %v7018, 7
      %v7020 = vsub.s32 2, %v7019
      %v7021 = vrot.slane %v437, %v7020
      %v7022 = vlaneseq
      %v7023 = vshrl.u32 %v7022, 7
      %v7024 = vsub.s32 2, %v7023
      %v7025 = vrot.slane %v438, %v7024
      %v7026 = vlaneseq
      %v7027 = vshrl.u32 %v7026, 7
      %v7028 = vsub.s32 2, %v7027
      %v7029 = vrot.slane %v439, %v7028
      %v7030 = vlaneseq
      %v7031 = vshrl.u32 %v7030, 7
      %v7032 = vsub.s32 2, %v7031
      %v7033 = vrot.slane %v440, %v7032
      %v7034 = vmul.f32 %v6714, %v6781
      %v7035 = vmul.f32 %v6715, %v6785
      %v7036 = vmul.f32 %v6716, %v6789
      %v7037 = vmul.f32 %v6717, %v6793
      %v7038 = vmul.f32 %v6718, %v6797
      %v7039 = vmul.f32 %v6719, %v6801
      %v7040 = vmul.f32 %v6720, %v6805
      %v7041 = vmul.f32 %v6721, %v6809
      %v7042 = vmul.f32 %v6722, %v6813
      %v7043 = vmul.f32 %v6723, %v6817
      %v7044 = vmul.f32 %v6724, %v6821
      %v7045 = vmul.f32 %v6725, %v6825
      %v7046 = vmul.f32 %v6726, %v6829
      %v7047 = vmul.f32 %v6727, %v6833
      %v7048 = vmul.f32 %v6728, %v6837
      %v7049 = vmul.f32 %v6729, %v6841
      %v7050 = vmul.f32 %v6730, %v6845
      %v7051 = vmul.f32 %v6731, %v6849
      %v7052 = vmul.f32 %v6732, %v6853
      %v7053 = vmul.f32 %v6733, %v6857
      %v7054 = vmul.f32 %v6734, %v6861
      %v7055 = vmul.f32 %v6735, %v6865
      %v7056 = vmul.f32 %v6736, %v6869
      %v7057 = vmul.f32 %v6737, %v6873
      %v7058 = vmul.f32 %v6738, %v6877
      %v7059 = vmul.f32 %v6739, %v6881
      %v7060 = vmul.f32 %v6740, %v6885
      %v7061 = vmul.f32 %v6741, %v6889
      %v7062 = vmul.f32 %v6742, %v6893
      %v7063 = vmul.f32 %v6743, %v6897
      %v7064 = vmul.f32 %v6744, %v6901
      %v7065 = vmul.f32 %v6745, %v6905
      %v7066 = vmul.f32 %v6746, %v6909
      %v7067 = vmul.f32 %v6747, %v6913
      %v7068 = vmul.f32 %v6748, %v6917
      %v7069 = vmul.f32 %v6749, %v6921
      %v7070 = vmul.f32 %v6750, %v6925
      %v7071 = vmul.f32 %v6751, %v6929
      %v7072 = vmul.f32 %v6752, %v6933
      %v7073 = vmul.f32 %v6753, %v6937
      %v7074 = vmul.f32 %v6754, %v6941
      %v7075 = vmul.f32 %v6755, %v6945
      %v7076 = vmul.f32 %v6756, %v6949
      %v7077 = vmul.f32 %v6757, %v6953
      %v7078 = vmul.f32 %v6758, %v6957
      %v7079 = vmul.f32 %v6759, %v6961
      %v7080 = vmul.f32 %v6760, %v6965
      %v7081 = vmul.f32 %v6761, %v6969
      %v7082 = vmul.f32 %v6762, %v6973
      %v7083 = vmul.f32 %v6763, %v6977
      %v7084 = vmul.f32 %v6764, %v6981
      %v7085 = vmul.f32 %v6765, %v6985
      %v7086 = vmul.f32 %v6766, %v6989
      %v7087 = vmul.f32 %v6767, %v6993
      %v7088 = vmul.f32 %v6768, %v6997
      %v7089 = vmul.f32 %v6769, %v7001
      %v7090 = vmul.f32 %v6770, %v7005
      %v7091 = vmul.f32 %v6771, %v7009
      %v7092 = vmul.f32 %v6772, %v7013
      %v7093 = vmul.f32 %v6773, %v7017
      %v7094 = vmul.f32 %v6774, %v7021
      %v7095 = vmul.f32 %v6775, %v7025
      %v7096 = vmul.f32 %v6776, %v7029
      %v7097 = vmul.f32 %v6777, %v7033
      %v7098 = vsel %vm2449, %v7034, 0.0
      %7099 = vadd.xlane.f32.xlu0 %v7098
      %v7100 = vpop.xlane.xlu0 %7099
      %v7101 = vsel %vm2449, %v7035, 0.0
      %7102 = vadd.xlane.f32.xlu0 %v7101
      %v7103 = vpop.xlane.xlu0 %7102
      %v7104 = vsel %vm2449, %v7036, 0.0
      %7105 = vadd.xlane.f32.xlu0 %v7104
      %v7106 = vpop.xlane.xlu0 %7105
      %v7107 = vsel %vm2449, %v7037, 0.0
      %7108 = vadd.xlane.f32.xlu0 %v7107
      %v7109 = vpop.xlane.xlu0 %7108
      %v7110 = vsel %vm2449, %v7038, 0.0
      %7111 = vadd.xlane.f32.xlu0 %v7110
      %v7112 = vpop.xlane.xlu0 %7111
      %v7113 = vsel %vm2449, %v7039, 0.0
      %7114 = vadd.xlane.f32.xlu0 %v7113
      %v7115 = vpop.xlane.xlu0 %7114
      %v7116 = vsel %vm2449, %v7040, 0.0
      %7117 = vadd.xlane.f32.xlu0 %v7116
      %v7118 = vpop.xlane.xlu0 %7117
      %v7119 = vsel %vm2449, %v7041, 0.0
      %7120 = vadd.xlane.f32.xlu0 %v7119
      %v7121 = vpop.xlane.xlu0 %7120
      %v7122 = vsel %vm2449, %v7042, 0.0
      %7123 = vadd.xlane.f32.xlu0 %v7122
      %v7124 = vpop.xlane.xlu0 %7123
      %v7125 = vsel %vm2449, %v7043, 0.0
      %7126 = vadd.xlane.f32.xlu0 %v7125
      %v7127 = vpop.xlane.xlu0 %7126
      %v7128 = vsel %vm2449, %v7044, 0.0
      %7129 = vadd.xlane.f32.xlu0 %v7128
      %v7130 = vpop.xlane.xlu0 %7129
      %v7131 = vsel %vm2449, %v7045, 0.0
      %7132 = vadd.xlane.f32.xlu0 %v7131
      %v7133 = vpop.xlane.xlu0 %7132
      %v7134 = vsel %vm2449, %v7046, 0.0
      %7135 = vadd.xlane.f32.xlu0 %v7134
      %v7136 = vpop.xlane.xlu0 %7135
      %v7137 = vsel %vm2449, %v7047, 0.0
      %7138 = vadd.xlane.f32.xlu0 %v7137
      %v7139 = vpop.xlane.xlu0 %7138
      %v7140 = vsel %vm2449, %v7048, 0.0
      %7141 = vadd.xlane.f32.xlu0 %v7140
      %v7142 = vpop.xlane.xlu0 %7141
      %v7143 = vsel %vm2449, %v7049, 0.0
      %7144 = vadd.xlane.f32.xlu0 %v7143
      %v7145 = vpop.xlane.xlu0 %7144
      %v7146 = vsel %vm2449, %v7050, 0.0
      %7147 = vadd.xlane.f32.xlu0 %v7146
      %v7148 = vpop.xlane.xlu0 %7147
      %v7149 = vsel %vm2449, %v7051, 0.0
      %7150 = vadd.xlane.f32.xlu0 %v7149
      %v7151 = vpop.xlane.xlu0 %7150
      %v7152 = vsel %vm2449, %v7052, 0.0
      %7153 = vadd.xlane.f32.xlu0 %v7152
      %v7154 = vpop.xlane.xlu0 %7153
      %v7155 = vsel %vm2449, %v7053, 0.0
      %7156 = vadd.xlane.f32.xlu0 %v7155
      %v7157 = vpop.xlane.xlu0 %7156
      %v7158 = vsel %vm2449, %v7054, 0.0
      %7159 = vadd.xlane.f32.xlu0 %v7158
      %v7160 = vpop.xlane.xlu0 %7159
      %v7161 = vsel %vm2449, %v7055, 0.0
      %7162 = vadd.xlane.f32.xlu0 %v7161
      %v7163 = vpop.xlane.xlu0 %7162
      %v7164 = vsel %vm2449, %v7056, 0.0
      %7165 = vadd.xlane.f32.xlu0 %v7164
      %v7166 = vpop.xlane.xlu0 %7165
      %v7167 = vsel %vm2449, %v7057, 0.0
      %7168 = vadd.xlane.f32.xlu0 %v7167
      %v7169 = vpop.xlane.xlu0 %7168
      %v7170 = vsel %vm2449, %v7058, 0.0
      %7171 = vadd.xlane.f32.xlu0 %v7170
      %v7172 = vpop.xlane.xlu0 %7171
      %v7173 = vsel %vm2449, %v7059, 0.0
      %7174 = vadd.xlane.f32.xlu0 %v7173
      %v7175 = vpop.xlane.xlu0 %7174
      %v7176 = vsel %vm2449, %v7060, 0.0
      %7177 = vadd.xlane.f32.xlu0 %v7176
      %v7178 = vpop.xlane.xlu0 %7177
      %v7179 = vsel %vm2449, %v7061, 0.0
      %7180 = vadd.xlane.f32.xlu0 %v7179
      %v7181 = vpop.xlane.xlu0 %7180
      %v7182 = vsel %vm2449, %v7062, 0.0
      %7183 = vadd.xlane.f32.xlu0 %v7182
      %v7184 = vpop.xlane.xlu0 %7183
      %v7185 = vsel %vm2449, %v7063, 0.0
      %7186 = vadd.xlane.f32.xlu0 %v7185
      %v7187 = vpop.xlane.xlu0 %7186
      %v7188 = vsel %vm2449, %v7064, 0.0
      %7189 = vadd.xlane.f32.xlu0 %v7188
      %v7190 = vpop.xlane.xlu0 %7189
      %v7191 = vsel %vm2449, %v7065, 0.0
      %7192 = vadd.xlane.f32.xlu0 %v7191
      %v7193 = vpop.xlane.xlu0 %7192
      %v7194 = vsel %vm2449, %v7066, 0.0
      %7195 = vadd.xlane.f32.xlu0 %v7194
      %v7196 = vpop.xlane.xlu0 %7195
      %v7197 = vsel %vm2449, %v7067, 0.0
      %7198 = vadd.xlane.f32.xlu0 %v7197
      %v7199 = vpop.xlane.xlu0 %7198
      %v7200 = vsel %vm2449, %v7068, 0.0
      %7201 = vadd.xlane.f32.xlu0 %v7200
      %v7202 = vpop.xlane.xlu0 %7201
      %v7203 = vsel %vm2449, %v7069, 0.0
      %7204 = vadd.xlane.f32.xlu0 %v7203
      %v7205 = vpop.xlane.xlu0 %7204
      %v7206 = vsel %vm2449, %v7070, 0.0
      %7207 = vadd.xlane.f32.xlu0 %v7206
      %v7208 = vpop.xlane.xlu0 %7207
      %v7209 = vsel %vm2449, %v7071, 0.0
      %7210 = vadd.xlane.f32.xlu0 %v7209
      %v7211 = vpop.xlane.xlu0 %7210
      %v7212 = vsel %vm2449, %v7072, 0.0
      %7213 = vadd.xlane.f32.xlu0 %v7212
      %v7214 = vpop.xlane.xlu0 %7213
      %v7215 = vsel %vm2449, %v7073, 0.0
      %7216 = vadd.xlane.f32.xlu0 %v7215
      %v7217 = vpop.xlane.xlu0 %7216
      %v7218 = vsel %vm2449, %v7074, 0.0
      %7219 = vadd.xlane.f32.xlu0 %v7218
      %v7220 = vpop.xlane.xlu0 %7219
      %v7221 = vsel %vm2449, %v7075, 0.0
      %7222 = vadd.xlane.f32.xlu0 %v7221
      %v7223 = vpop.xlane.xlu0 %7222
      %v7224 = vsel %vm2449, %v7076, 0.0
      %7225 = vadd.xlane.f32.xlu0 %v7224
      %v7226 = vpop.xlane.xlu0 %7225
      %v7227 = vsel %vm2449, %v7077, 0.0
      %7228 = vadd.xlane.f32.xlu0 %v7227
      %v7229 = vpop.xlane.xlu0 %7228
      %v7230 = vsel %vm2449, %v7078, 0.0
      %7231 = vadd.xlane.f32.xlu0 %v7230
      %v7232 = vpop.xlane.xlu0 %7231
      %v7233 = vsel %vm2449, %v7079, 0.0
      %7234 = vadd.xlane.f32.xlu0 %v7233
      %v7235 = vpop.xlane.xlu0 %7234
      %v7236 = vsel %vm2449, %v7080, 0.0
      %7237 = vadd.xlane.f32.xlu0 %v7236
      %v7238 = vpop.xlane.xlu0 %7237
      %v7239 = vsel %vm2449, %v7081, 0.0
      %7240 = vadd.xlane.f32.xlu0 %v7239
      %v7241 = vpop.xlane.xlu0 %7240
      %v7242 = vsel %vm2449, %v7082, 0.0
      %7243 = vadd.xlane.f32.xlu0 %v7242
      %v7244 = vpop.xlane.xlu0 %7243
      %v7245 = vsel %vm2449, %v7083, 0.0
      %7246 = vadd.xlane.f32.xlu0 %v7245
      %v7247 = vpop.xlane.xlu0 %7246
      %v7248 = vsel %vm2449, %v7084, 0.0
      %7249 = vadd.xlane.f32.xlu0 %v7248
      %v7250 = vpop.xlane.xlu0 %7249
      %v7251 = vsel %vm2449, %v7085, 0.0
      %7252 = vadd.xlane.f32.xlu0 %v7251
      %v7253 = vpop.xlane.xlu0 %7252
      %v7254 = vsel %vm2449, %v7086, 0.0
      %7255 = vadd.xlane.f32.xlu0 %v7254
      %v7256 = vpop.xlane.xlu0 %7255
      %v7257 = vsel %vm2449, %v7087, 0.0
      %7258 = vadd.xlane.f32.xlu0 %v7257
      %v7259 = vpop.xlane.xlu0 %7258
      %v7260 = vsel %vm2449, %v7088, 0.0
      %7261 = vadd.xlane.f32.xlu0 %v7260
      %v7262 = vpop.xlane.xlu0 %7261
      %v7263 = vsel %vm2449, %v7089, 0.0
      %7264 = vadd.xlane.f32.xlu0 %v7263
      %v7265 = vpop.xlane.xlu0 %7264
      %v7266 = vsel %vm2449, %v7090, 0.0
      %7267 = vadd.xlane.f32.xlu0 %v7266
      %v7268 = vpop.xlane.xlu0 %7267
      %v7269 = vsel %vm2449, %v7091, 0.0
      %7270 = vadd.xlane.f32.xlu0 %v7269
      %v7271 = vpop.xlane.xlu0 %7270
      %v7272 = vsel %vm2449, %v7092, 0.0
      %7273 = vadd.xlane.f32.xlu0 %v7272
      %v7274 = vpop.xlane.xlu0 %7273
      %v7275 = vsel %vm2449, %v7093, 0.0
      %7276 = vadd.xlane.f32.xlu0 %v7275
      %v7277 = vpop.xlane.xlu0 %7276
      %v7278 = vsel %vm2449, %v7094, 0.0
      %7279 = vadd.xlane.f32.xlu0 %v7278
      %v7280 = vpop.xlane.xlu0 %7279
      %v7281 = vsel %vm2449, %v7095, 0.0
      %7282 = vadd.xlane.f32.xlu0 %v7281
      %v7283 = vpop.xlane.xlu0 %7282
      %v7284 = vsel %vm2449, %v7096, 0.0
      %7285 = vadd.xlane.f32.xlu0 %v7284
      %v7286 = vpop.xlane.xlu0 %7285
      %v7287 = vsel %vm2449, %v7097, 0.0
      %7288 = vadd.xlane.f32.xlu0 %v7287
      %v7289 = vpop.xlane.xlu0 %7288
      %7291 = vset.pattern.permute.xlu0 0
      %7292 = vperm.xlu0 %7291, %v377
      %v7293 = vpop.permute.xlu0 %7292
      %7295 = vset.pattern.permute.xlu0 0
      %7296 = vperm.xlu0 %7295, %v378
      %v7297 = vpop.permute.xlu0 %7296
      %7299 = vset.pattern.permute.xlu0 0
      %7300 = vperm.xlu0 %7299, %v379
      %v7301 = vpop.permute.xlu0 %7300
      %7303 = vset.pattern.permute.xlu0 0
      %7304 = vperm.xlu0 %7303, %v380
      %v7305 = vpop.permute.xlu0 %7304
      %7307 = vset.pattern.permute.xlu0 0
      %7308 = vperm.xlu0 %7307, %v381
      %v7309 = vpop.permute.xlu0 %7308
      %7311 = vset.pattern.permute.xlu0 0
      %7312 = vperm.xlu0 %7311, %v382
      %v7313 = vpop.permute.xlu0 %7312
      %7315 = vset.pattern.permute.xlu0 0
      %7316 = vperm.xlu0 %7315, %v383
      %v7317 = vpop.permute.xlu0 %7316
      %7319 = vset.pattern.permute.xlu0 0
      %7320 = vperm.xlu0 %7319, %v384
      %v7321 = vpop.permute.xlu0 %7320
      %7323 = vset.pattern.permute.xlu0 0
      %7324 = vperm.xlu0 %7323, %v385
      %v7325 = vpop.permute.xlu0 %7324
      %7327 = vset.pattern.permute.xlu0 0
      %7328 = vperm.xlu0 %7327, %v386
      %v7329 = vpop.permute.xlu0 %7328
      %7331 = vset.pattern.permute.xlu0 0
      %7332 = vperm.xlu0 %7331, %v387
      %v7333 = vpop.permute.xlu0 %7332
      %7335 = vset.pattern.permute.xlu0 0
      %7336 = vperm.xlu0 %7335, %v388
      %v7337 = vpop.permute.xlu0 %7336
      %7339 = vset.pattern.permute.xlu0 0
      %7340 = vperm.xlu0 %7339, %v389
      %v7341 = vpop.permute.xlu0 %7340
      %7343 = vset.pattern.permute.xlu0 0
      %7344 = vperm.xlu0 %7343, %v390
      %v7345 = vpop.permute.xlu0 %7344
      %7347 = vset.pattern.permute.xlu0 0
      %7348 = vperm.xlu0 %7347, %v391
      %v7349 = vpop.permute.xlu0 %7348
      %7351 = vset.pattern.permute.xlu0 0
      %7352 = vperm.xlu0 %7351, %v392
      %v7353 = vpop.permute.xlu0 %7352
      %7355 = vset.pattern.permute.xlu0 0
      %7356 = vperm.xlu0 %7355, %v393
      %v7357 = vpop.permute.xlu0 %7356
      %7359 = vset.pattern.permute.xlu0 0
      %7360 = vperm.xlu0 %7359, %v394
      %v7361 = vpop.permute.xlu0 %7360
      %7363 = vset.pattern.permute.xlu0 0
      %7364 = vperm.xlu0 %7363, %v395
      %v7365 = vpop.permute.xlu0 %7364
      %7367 = vset.pattern.permute.xlu0 0
      %7368 = vperm.xlu0 %7367, %v396
      %v7369 = vpop.permute.xlu0 %7368
      %7371 = vset.pattern.permute.xlu0 0
      %7372 = vperm.xlu0 %7371, %v397
      %v7373 = vpop.permute.xlu0 %7372
      %7375 = vset.pattern.permute.xlu0 0
      %7376 = vperm.xlu0 %7375, %v398
      %v7377 = vpop.permute.xlu0 %7376
      %7379 = vset.pattern.permute.xlu0 0
      %7380 = vperm.xlu0 %7379, %v399
      %v7381 = vpop.permute.xlu0 %7380
      %7383 = vset.pattern.permute.xlu0 0
      %7384 = vperm.xlu0 %7383, %v400
      %v7385 = vpop.permute.xlu0 %7384
      %7387 = vset.pattern.permute.xlu0 0
      %7388 = vperm.xlu0 %7387, %v401
      %v7389 = vpop.permute.xlu0 %7388
      %7391 = vset.pattern.permute.xlu0 0
      %7392 = vperm.xlu0 %7391, %v402
      %v7393 = vpop.permute.xlu0 %7392
      %7395 = vset.pattern.permute.xlu0 0
      %7396 = vperm.xlu0 %7395, %v403
      %v7397 = vpop.permute.xlu0 %7396
      %7399 = vset.pattern.permute.xlu0 0
      %7400 = vperm.xlu0 %7399, %v404
      %v7401 = vpop.permute.xlu0 %7400
      %7403 = vset.pattern.permute.xlu0 0
      %7404 = vperm.xlu0 %7403, %v405
      %v7405 = vpop.permute.xlu0 %7404
      %7407 = vset.pattern.permute.xlu0 0
      %7408 = vperm.xlu0 %7407, %v406
      %v7409 = vpop.permute.xlu0 %7408
      %7411 = vset.pattern.permute.xlu0 0
      %7412 = vperm.xlu0 %7411, %v407
      %v7413 = vpop.permute.xlu0 %7412
      %7415 = vset.pattern.permute.xlu0 0
      %7416 = vperm.xlu0 %7415, %v408
      %v7417 = vpop.permute.xlu0 %7416
      %7419 = vset.pattern.permute.xlu0 0
      %7420 = vperm.xlu0 %7419, %v409
      %v7421 = vpop.permute.xlu0 %7420
      %7423 = vset.pattern.permute.xlu0 0
      %7424 = vperm.xlu0 %7423, %v410
      %v7425 = vpop.permute.xlu0 %7424
      %7427 = vset.pattern.permute.xlu0 0
      %7428 = vperm.xlu0 %7427, %v411
      %v7429 = vpop.permute.xlu0 %7428
      %7431 = vset.pattern.permute.xlu0 0
      %7432 = vperm.xlu0 %7431, %v412
      %v7433 = vpop.permute.xlu0 %7432
      %7435 = vset.pattern.permute.xlu0 0
      %7436 = vperm.xlu0 %7435, %v413
      %v7437 = vpop.permute.xlu0 %7436
      %7439 = vset.pattern.permute.xlu0 0
      %7440 = vperm.xlu0 %7439, %v414
      %v7441 = vpop.permute.xlu0 %7440
      %7443 = vset.pattern.permute.xlu0 0
      %7444 = vperm.xlu0 %7443, %v415
      %v7445 = vpop.permute.xlu0 %7444
      %7447 = vset.pattern.permute.xlu0 0
      %7448 = vperm.xlu0 %7447, %v416
      %v7449 = vpop.permute.xlu0 %7448
      %7451 = vset.pattern.permute.xlu0 0
      %7452 = vperm.xlu0 %7451, %v417
      %v7453 = vpop.permute.xlu0 %7452
      %7455 = vset.pattern.permute.xlu0 0
      %7456 = vperm.xlu0 %7455, %v418
      %v7457 = vpop.permute.xlu0 %7456
      %7459 = vset.pattern.permute.xlu0 0
      %7460 = vperm.xlu0 %7459, %v419
      %v7461 = vpop.permute.xlu0 %7460
      %7463 = vset.pattern.permute.xlu0 0
      %7464 = vperm.xlu0 %7463, %v420
      %v7465 = vpop.permute.xlu0 %7464
      %7467 = vset.pattern.permute.xlu0 0
      %7468 = vperm.xlu0 %7467, %v421
      %v7469 = vpop.permute.xlu0 %7468
      %7471 = vset.pattern.permute.xlu0 0
      %7472 = vperm.xlu0 %7471, %v422
      %v7473 = vpop.permute.xlu0 %7472
      %7475 = vset.pattern.permute.xlu0 0
      %7476 = vperm.xlu0 %7475, %v423
      %v7477 = vpop.permute.xlu0 %7476
      %7479 = vset.pattern.permute.xlu0 0
      %7480 = vperm.xlu0 %7479, %v424
      %v7481 = vpop.permute.xlu0 %7480
      %7483 = vset.pattern.permute.xlu0 0
      %7484 = vperm.xlu0 %7483, %v425
      %v7485 = vpop.permute.xlu0 %7484
      %7487 = vset.pattern.permute.xlu0 0
      %7488 = vperm.xlu0 %7487, %v426
      %v7489 = vpop.permute.xlu0 %7488
      %7491 = vset.pattern.permute.xlu0 0
      %7492 = vperm.xlu0 %7491, %v427
      %v7493 = vpop.permute.xlu0 %7492
      %7495 = vset.pattern.permute.xlu0 0
      %7496 = vperm.xlu0 %7495, %v428
      %v7497 = vpop.permute.xlu0 %7496
      %7499 = vset.pattern.permute.xlu0 0
      %7500 = vperm.xlu0 %7499, %v429
      %v7501 = vpop.permute.xlu0 %7500
      %7503 = vset.pattern.permute.xlu0 0
      %7504 = vperm.xlu0 %7503, %v430
      %v7505 = vpop.permute.xlu0 %7504
      %7507 = vset.pattern.permute.xlu0 0
      %7508 = vperm.xlu0 %7507, %v431
      %v7509 = vpop.permute.xlu0 %7508
      %7511 = vset.pattern.permute.xlu0 0
      %7512 = vperm.xlu0 %7511, %v432
      %v7513 = vpop.permute.xlu0 %7512
      %7515 = vset.pattern.permute.xlu0 0
      %7516 = vperm.xlu0 %7515, %v433
      %v7517 = vpop.permute.xlu0 %7516
      %7519 = vset.pattern.permute.xlu0 0
      %7520 = vperm.xlu0 %7519, %v434
      %v7521 = vpop.permute.xlu0 %7520
      %7523 = vset.pattern.permute.xlu0 0
      %7524 = vperm.xlu0 %7523, %v435
      %v7525 = vpop.permute.xlu0 %7524
      %7527 = vset.pattern.permute.xlu0 0
      %7528 = vperm.xlu0 %7527, %v436
      %v7529 = vpop.permute.xlu0 %7528
      %7531 = vset.pattern.permute.xlu0 0
      %7532 = vperm.xlu0 %7531, %v437
      %v7533 = vpop.permute.xlu0 %7532
      %7535 = vset.pattern.permute.xlu0 0
      %7536 = vperm.xlu0 %7535, %v438
      %v7537 = vpop.permute.xlu0 %7536
      %7539 = vset.pattern.permute.xlu0 0
      %7540 = vperm.xlu0 %7539, %v439
      %v7541 = vpop.permute.xlu0 %7540
      %7543 = vset.pattern.permute.xlu0 0
      %7544 = vperm.xlu0 %7543, %v440
      %v7545 = vpop.permute.xlu0 %7544
      %v7546 = vlaneseq
      %v7547 = vshrl.u32 %v7546, 7
      %v7548 = vsub.s32 3, %v7547
      %v7549 = vrot.slane %v7293, %v7548
      %v7550 = vlaneseq
      %v7551 = vshrl.u32 %v7550, 7
      %v7552 = vsub.s32 3, %v7551
      %v7553 = vrot.slane %v7297, %v7552
      %v7554 = vlaneseq
      %v7555 = vshrl.u32 %v7554, 7
      %v7556 = vsub.s32 3, %v7555
      %v7557 = vrot.slane %v7301, %v7556
      %v7558 = vlaneseq
      %v7559 = vshrl.u32 %v7558, 7
      %v7560 = vsub.s32 3, %v7559
      %v7561 = vrot.slane %v7305, %v7560
      %v7562 = vlaneseq
      %v7563 = vshrl.u32 %v7562, 7
      %v7564 = vsub.s32 3, %v7563
      %v7565 = vrot.slane %v7309, %v7564
      %v7566 = vlaneseq
      %v7567 = vshrl.u32 %v7566, 7
      %v7568 = vsub.s32 3, %v7567
      %v7569 = vrot.slane %v7313, %v7568
      %v7570 = vlaneseq
      %v7571 = vshrl.u32 %v7570, 7
      %v7572 = vsub.s32 3, %v7571
      %v7573 = vrot.slane %v7317, %v7572
      %v7574 = vlaneseq
      %v7575 = vshrl.u32 %v7574, 7
      %v7576 = vsub.s32 3, %v7575
      %v7577 = vrot.slane %v7321, %v7576
      %v7578 = vlaneseq
      %v7579 = vshrl.u32 %v7578, 7
      %v7580 = vsub.s32 3, %v7579
      %v7581 = vrot.slane %v7325, %v7580
      %v7582 = vlaneseq
      %v7583 = vshrl.u32 %v7582, 7
      %v7584 = vsub.s32 3, %v7583
      %v7585 = vrot.slane %v7329, %v7584
      %v7586 = vlaneseq
      %v7587 = vshrl.u32 %v7586, 7
      %v7588 = vsub.s32 3, %v7587
      %v7589 = vrot.slane %v7333, %v7588
      %v7590 = vlaneseq
      %v7591 = vshrl.u32 %v7590, 7
      %v7592 = vsub.s32 3, %v7591
      %v7593 = vrot.slane %v7337, %v7592
      %v7594 = vlaneseq
      %v7595 = vshrl.u32 %v7594, 7
      %v7596 = vsub.s32 3, %v7595
      %v7597 = vrot.slane %v7341, %v7596
      %v7598 = vlaneseq
      %v7599 = vshrl.u32 %v7598, 7
      %v7600 = vsub.s32 3, %v7599
      %v7601 = vrot.slane %v7345, %v7600
      %v7602 = vlaneseq
      %v7603 = vshrl.u32 %v7602, 7
      %v7604 = vsub.s32 3, %v7603
      %v7605 = vrot.slane %v7349, %v7604
      %v7606 = vlaneseq
      %v7607 = vshrl.u32 %v7606, 7
      %v7608 = vsub.s32 3, %v7607
      %v7609 = vrot.slane %v7353, %v7608
      %v7610 = vlaneseq
      %v7611 = vshrl.u32 %v7610, 7
      %v7612 = vsub.s32 3, %v7611
      %v7613 = vrot.slane %v7357, %v7612
      %v7614 = vlaneseq
      %v7615 = vshrl.u32 %v7614, 7
      %v7616 = vsub.s32 3, %v7615
      %v7617 = vrot.slane %v7361, %v7616
      %v7618 = vlaneseq
      %v7619 = vshrl.u32 %v7618, 7
      %v7620 = vsub.s32 3, %v7619
      %v7621 = vrot.slane %v7365, %v7620
      %v7622 = vlaneseq
      %v7623 = vshrl.u32 %v7622, 7
      %v7624 = vsub.s32 3, %v7623
      %v7625 = vrot.slane %v7369, %v7624
      %v7626 = vlaneseq
      %v7627 = vshrl.u32 %v7626, 7
      %v7628 = vsub.s32 3, %v7627
      %v7629 = vrot.slane %v7373, %v7628
      %v7630 = vlaneseq
      %v7631 = vshrl.u32 %v7630, 7
      %v7632 = vsub.s32 3, %v7631
      %v7633 = vrot.slane %v7377, %v7632
      %v7634 = vlaneseq
      %v7635 = vshrl.u32 %v7634, 7
      %v7636 = vsub.s32 3, %v7635
      %v7637 = vrot.slane %v7381, %v7636
      %v7638 = vlaneseq
      %v7639 = vshrl.u32 %v7638, 7
      %v7640 = vsub.s32 3, %v7639
      %v7641 = vrot.slane %v7385, %v7640
      %v7642 = vlaneseq
      %v7643 = vshrl.u32 %v7642, 7
      %v7644 = vsub.s32 3, %v7643
      %v7645 = vrot.slane %v7389, %v7644
      %v7646 = vlaneseq
      %v7647 = vshrl.u32 %v7646, 7
      %v7648 = vsub.s32 3, %v7647
      %v7649 = vrot.slane %v7393, %v7648
      %v7650 = vlaneseq
      %v7651 = vshrl.u32 %v7650, 7
      %v7652 = vsub.s32 3, %v7651
      %v7653 = vrot.slane %v7397, %v7652
      %v7654 = vlaneseq
      %v7655 = vshrl.u32 %v7654, 7
      %v7656 = vsub.s32 3, %v7655
      %v7657 = vrot.slane %v7401, %v7656
      %v7658 = vlaneseq
      %v7659 = vshrl.u32 %v7658, 7
      %v7660 = vsub.s32 3, %v7659
      %v7661 = vrot.slane %v7405, %v7660
      %v7662 = vlaneseq
      %v7663 = vshrl.u32 %v7662, 7
      %v7664 = vsub.s32 3, %v7663
      %v7665 = vrot.slane %v7409, %v7664
      %v7666 = vlaneseq
      %v7667 = vshrl.u32 %v7666, 7
      %v7668 = vsub.s32 3, %v7667
      %v7669 = vrot.slane %v7413, %v7668
      %v7670 = vlaneseq
      %v7671 = vshrl.u32 %v7670, 7
      %v7672 = vsub.s32 3, %v7671
      %v7673 = vrot.slane %v7417, %v7672
      %v7674 = vlaneseq
      %v7675 = vshrl.u32 %v7674, 7
      %v7676 = vsub.s32 3, %v7675
      %v7677 = vrot.slane %v7421, %v7676
      %v7678 = vlaneseq
      %v7679 = vshrl.u32 %v7678, 7
      %v7680 = vsub.s32 3, %v7679
      %v7681 = vrot.slane %v7425, %v7680
      %v7682 = vlaneseq
      %v7683 = vshrl.u32 %v7682, 7
      %v7684 = vsub.s32 3, %v7683
      %v7685 = vrot.slane %v7429, %v7684
      %v7686 = vlaneseq
      %v7687 = vshrl.u32 %v7686, 7
      %v7688 = vsub.s32 3, %v7687
      %v7689 = vrot.slane %v7433, %v7688
      %v7690 = vlaneseq
      %v7691 = vshrl.u32 %v7690, 7
      %v7692 = vsub.s32 3, %v7691
      %v7693 = vrot.slane %v7437, %v7692
      %v7694 = vlaneseq
      %v7695 = vshrl.u32 %v7694, 7
      %v7696 = vsub.s32 3, %v7695
      %v7697 = vrot.slane %v7441, %v7696
      %v7698 = vlaneseq
      %v7699 = vshrl.u32 %v7698, 7
      %v7700 = vsub.s32 3, %v7699
      %v7701 = vrot.slane %v7445, %v7700
      %v7702 = vlaneseq
      %v7703 = vshrl.u32 %v7702, 7
      %v7704 = vsub.s32 3, %v7703
      %v7705 = vrot.slane %v7449, %v7704
      %v7706 = vlaneseq
      %v7707 = vshrl.u32 %v7706, 7
      %v7708 = vsub.s32 3, %v7707
      %v7709 = vrot.slane %v7453, %v7708
      %v7710 = vlaneseq
      %v7711 = vshrl.u32 %v7710, 7
      %v7712 = vsub.s32 3, %v7711
      %v7713 = vrot.slane %v7457, %v7712
      %v7714 = vlaneseq
      %v7715 = vshrl.u32 %v7714, 7
      %v7716 = vsub.s32 3, %v7715
      %v7717 = vrot.slane %v7461, %v7716
      %v7718 = vlaneseq
      %v7719 = vshrl.u32 %v7718, 7
      %v7720 = vsub.s32 3, %v7719
      %v7721 = vrot.slane %v7465, %v7720
      %v7722 = vlaneseq
      %v7723 = vshrl.u32 %v7722, 7
      %v7724 = vsub.s32 3, %v7723
      %v7725 = vrot.slane %v7469, %v7724
      %v7726 = vlaneseq
      %v7727 = vshrl.u32 %v7726, 7
      %v7728 = vsub.s32 3, %v7727
      %v7729 = vrot.slane %v7473, %v7728
      %v7730 = vlaneseq
      %v7731 = vshrl.u32 %v7730, 7
      %v7732 = vsub.s32 3, %v7731
      %v7733 = vrot.slane %v7477, %v7732
      %v7734 = vlaneseq
      %v7735 = vshrl.u32 %v7734, 7
      %v7736 = vsub.s32 3, %v7735
      %v7737 = vrot.slane %v7481, %v7736
      %v7738 = vlaneseq
      %v7739 = vshrl.u32 %v7738, 7
      %v7740 = vsub.s32 3, %v7739
      %v7741 = vrot.slane %v7485, %v7740
      %v7742 = vlaneseq
      %v7743 = vshrl.u32 %v7742, 7
      %v7744 = vsub.s32 3, %v7743
      %v7745 = vrot.slane %v7489, %v7744
      %v7746 = vlaneseq
      %v7747 = vshrl.u32 %v7746, 7
      %v7748 = vsub.s32 3, %v7747
      %v7749 = vrot.slane %v7493, %v7748
      %v7750 = vlaneseq
      %v7751 = vshrl.u32 %v7750, 7
      %v7752 = vsub.s32 3, %v7751
      %v7753 = vrot.slane %v7497, %v7752
      %v7754 = vlaneseq
      %v7755 = vshrl.u32 %v7754, 7
      %v7756 = vsub.s32 3, %v7755
      %v7757 = vrot.slane %v7501, %v7756
      %v7758 = vlaneseq
      %v7759 = vshrl.u32 %v7758, 7
      %v7760 = vsub.s32 3, %v7759
      %v7761 = vrot.slane %v7505, %v7760
      %v7762 = vlaneseq
      %v7763 = vshrl.u32 %v7762, 7
      %v7764 = vsub.s32 3, %v7763
      %v7765 = vrot.slane %v7509, %v7764
      %v7766 = vlaneseq
      %v7767 = vshrl.u32 %v7766, 7
      %v7768 = vsub.s32 3, %v7767
      %v7769 = vrot.slane %v7513, %v7768
      %v7770 = vlaneseq
      %v7771 = vshrl.u32 %v7770, 7
      %v7772 = vsub.s32 3, %v7771
      %v7773 = vrot.slane %v7517, %v7772
      %v7774 = vlaneseq
      %v7775 = vshrl.u32 %v7774, 7
      %v7776 = vsub.s32 3, %v7775
      %v7777 = vrot.slane %v7521, %v7776
      %v7778 = vlaneseq
      %v7779 = vshrl.u32 %v7778, 7
      %v7780 = vsub.s32 3, %v7779
      %v7781 = vrot.slane %v7525, %v7780
      %v7782 = vlaneseq
      %v7783 = vshrl.u32 %v7782, 7
      %v7784 = vsub.s32 3, %v7783
      %v7785 = vrot.slane %v7529, %v7784
      %v7786 = vlaneseq
      %v7787 = vshrl.u32 %v7786, 7
      %v7788 = vsub.s32 3, %v7787
      %v7789 = vrot.slane %v7533, %v7788
      %v7790 = vlaneseq
      %v7791 = vshrl.u32 %v7790, 7
      %v7792 = vsub.s32 3, %v7791
      %v7793 = vrot.slane %v7537, %v7792
      %v7794 = vlaneseq
      %v7795 = vshrl.u32 %v7794, 7
      %v7796 = vsub.s32 3, %v7795
      %v7797 = vrot.slane %v7541, %v7796
      %v7798 = vlaneseq
      %v7799 = vshrl.u32 %v7798, 7
      %v7800 = vsub.s32 3, %v7799
      %v7801 = vrot.slane %v7545, %v7800
      %v7866 = vadd.f32 %v7100, %v7549
      %v7867 = vadd.f32 %v7103, %v7553
      %v7868 = vadd.f32 %v7106, %v7557
      %v7869 = vadd.f32 %v7109, %v7561
      %v7870 = vadd.f32 %v7112, %v7565
      %v7871 = vadd.f32 %v7115, %v7569
      %v7872 = vadd.f32 %v7118, %v7573
      %v7873 = vadd.f32 %v7121, %v7577
      %v7874 = vadd.f32 %v7124, %v7581
      %v7875 = vadd.f32 %v7127, %v7585
      %v7876 = vadd.f32 %v7130, %v7589
      %v7877 = vadd.f32 %v7133, %v7593
      %v7878 = vadd.f32 %v7136, %v7597
      %v7879 = vadd.f32 %v7139, %v7601
      %v7880 = vadd.f32 %v7142, %v7605
      %v7881 = vadd.f32 %v7145, %v7609
      %v7882 = vadd.f32 %v7148, %v7613
      %v7883 = vadd.f32 %v7151, %v7617
      %v7884 = vadd.f32 %v7154, %v7621
      %v7885 = vadd.f32 %v7157, %v7625
      %v7886 = vadd.f32 %v7160, %v7629
      %v7887 = vadd.f32 %v7163, %v7633
      %v7888 = vadd.f32 %v7166, %v7637
      %v7889 = vadd.f32 %v7169, %v7641
      %v7890 = vadd.f32 %v7172, %v7645
      %v7891 = vadd.f32 %v7175, %v7649
      %v7892 = vadd.f32 %v7178, %v7653
      %v7893 = vadd.f32 %v7181, %v7657
      %v7894 = vadd.f32 %v7184, %v7661
      %v7895 = vadd.f32 %v7187, %v7665
      %v7896 = vadd.f32 %v7190, %v7669
      %v7897 = vadd.f32 %v7193, %v7673
      %v7898 = vadd.f32 %v7196, %v7677
      %v7899 = vadd.f32 %v7199, %v7681
      %v7900 = vadd.f32 %v7202, %v7685
      %v7901 = vadd.f32 %v7205, %v7689
      %v7902 = vadd.f32 %v7208, %v7693
      %v7903 = vadd.f32 %v7211, %v7697
      %v7904 = vadd.f32 %v7214, %v7701
      %v7905 = vadd.f32 %v7217, %v7705
      %v7906 = vadd.f32 %v7220, %v7709
      %v7907 = vadd.f32 %v7223, %v7713
      %v7908 = vadd.f32 %v7226, %v7717
      %v7909 = vadd.f32 %v7229, %v7721
      %v7910 = vadd.f32 %v7232, %v7725
      %v7911 = vadd.f32 %v7235, %v7729
      %v7912 = vadd.f32 %v7238, %v7733
      %v7913 = vadd.f32 %v7241, %v7737
      %v7914 = vadd.f32 %v7244, %v7741
      %v7915 = vadd.f32 %v7247, %v7745
      %v7916 = vadd.f32 %v7250, %v7749
      %v7917 = vadd.f32 %v7253, %v7753
      %v7918 = vadd.f32 %v7256, %v7757
      %v7919 = vadd.f32 %v7259, %v7761
      %v7920 = vadd.f32 %v7262, %v7765
      %v7921 = vadd.f32 %v7265, %v7769
      %v7922 = vadd.f32 %v7268, %v7773
      %v7923 = vadd.f32 %v7271, %v7777
      %v7924 = vadd.f32 %v7274, %v7781
      %v7925 = vadd.f32 %v7277, %v7785
      %v7926 = vadd.f32 %v7280, %v7789
      %v7927 = vadd.f32 %v7283, %v7793
      %v7928 = vadd.f32 %v7286, %v7797
      %v7929 = vadd.f32 %v7289, %v7801
      %7994 = vset.pattern.permute.xlu0 0
      %7995 = vperm.xlu0 %7994, %v7866
      %v7996 = vpop.permute.xlu0 %7995
      %7997 = vset.pattern.permute.xlu0 0
      %7998 = vperm.xlu0 %7997, %v7867
      %v7999 = vpop.permute.xlu0 %7998
      %8000 = vset.pattern.permute.xlu0 0
      %8001 = vperm.xlu0 %8000, %v7868
      %v8002 = vpop.permute.xlu0 %8001
      %8003 = vset.pattern.permute.xlu0 0
      %8004 = vperm.xlu0 %8003, %v7869
      %v8005 = vpop.permute.xlu0 %8004
      %8006 = vset.pattern.permute.xlu0 0
      %8007 = vperm.xlu0 %8006, %v7870
      %v8008 = vpop.permute.xlu0 %8007
      %8009 = vset.pattern.permute.xlu0 0
      %8010 = vperm.xlu0 %8009, %v7871
      %v8011 = vpop.permute.xlu0 %8010
      %8012 = vset.pattern.permute.xlu0 0
      %8013 = vperm.xlu0 %8012, %v7872
      %v8014 = vpop.permute.xlu0 %8013
      %8015 = vset.pattern.permute.xlu0 0
      %8016 = vperm.xlu0 %8015, %v7873
      %v8017 = vpop.permute.xlu0 %8016
      %8018 = vset.pattern.permute.xlu0 0
      %8019 = vperm.xlu0 %8018, %v7874
      %v8020 = vpop.permute.xlu0 %8019
      %8021 = vset.pattern.permute.xlu0 0
      %8022 = vperm.xlu0 %8021, %v7875
      %v8023 = vpop.permute.xlu0 %8022
      %8024 = vset.pattern.permute.xlu0 0
      %8025 = vperm.xlu0 %8024, %v7876
      %v8026 = vpop.permute.xlu0 %8025
      %8027 = vset.pattern.permute.xlu0 0
      %8028 = vperm.xlu0 %8027, %v7877
      %v8029 = vpop.permute.xlu0 %8028
      %8030 = vset.pattern.permute.xlu0 0
      %8031 = vperm.xlu0 %8030, %v7878
      %v8032 = vpop.permute.xlu0 %8031
      %8033 = vset.pattern.permute.xlu0 0
      %8034 = vperm.xlu0 %8033, %v7879
      %v8035 = vpop.permute.xlu0 %8034
      %8036 = vset.pattern.permute.xlu0 0
      %8037 = vperm.xlu0 %8036, %v7880
      %v8038 = vpop.permute.xlu0 %8037
      %8039 = vset.pattern.permute.xlu0 0
      %8040 = vperm.xlu0 %8039, %v7881
      %v8041 = vpop.permute.xlu0 %8040
      %8042 = vset.pattern.permute.xlu0 0
      %8043 = vperm.xlu0 %8042, %v7882
      %v8044 = vpop.permute.xlu0 %8043
      %8045 = vset.pattern.permute.xlu0 0
      %8046 = vperm.xlu0 %8045, %v7883
      %v8047 = vpop.permute.xlu0 %8046
      %8048 = vset.pattern.permute.xlu0 0
      %8049 = vperm.xlu0 %8048, %v7884
      %v8050 = vpop.permute.xlu0 %8049
      %8051 = vset.pattern.permute.xlu0 0
      %8052 = vperm.xlu0 %8051, %v7885
      %v8053 = vpop.permute.xlu0 %8052
      %8054 = vset.pattern.permute.xlu0 0
      %8055 = vperm.xlu0 %8054, %v7886
      %v8056 = vpop.permute.xlu0 %8055
      %8057 = vset.pattern.permute.xlu0 0
      %8058 = vperm.xlu0 %8057, %v7887
      %v8059 = vpop.permute.xlu0 %8058
      %8060 = vset.pattern.permute.xlu0 0
      %8061 = vperm.xlu0 %8060, %v7888
      %v8062 = vpop.permute.xlu0 %8061
      %8063 = vset.pattern.permute.xlu0 0
      %8064 = vperm.xlu0 %8063, %v7889
      %v8065 = vpop.permute.xlu0 %8064
      %8066 = vset.pattern.permute.xlu0 0
      %8067 = vperm.xlu0 %8066, %v7890
      %v8068 = vpop.permute.xlu0 %8067
      %8069 = vset.pattern.permute.xlu0 0
      %8070 = vperm.xlu0 %8069, %v7891
      %v8071 = vpop.permute.xlu0 %8070
      %8072 = vset.pattern.permute.xlu0 0
      %8073 = vperm.xlu0 %8072, %v7892
      %v8074 = vpop.permute.xlu0 %8073
      %8075 = vset.pattern.permute.xlu0 0
      %8076 = vperm.xlu0 %8075, %v7893
      %v8077 = vpop.permute.xlu0 %8076
      %8078 = vset.pattern.permute.xlu0 0
      %8079 = vperm.xlu0 %8078, %v7894
      %v8080 = vpop.permute.xlu0 %8079
      %8081 = vset.pattern.permute.xlu0 0
      %8082 = vperm.xlu0 %8081, %v7895
      %v8083 = vpop.permute.xlu0 %8082
      %8084 = vset.pattern.permute.xlu0 0
      %8085 = vperm.xlu0 %8084, %v7896
      %v8086 = vpop.permute.xlu0 %8085
      %8087 = vset.pattern.permute.xlu0 0
      %8088 = vperm.xlu0 %8087, %v7897
      %v8089 = vpop.permute.xlu0 %8088
      %8090 = vset.pattern.permute.xlu0 0
      %8091 = vperm.xlu0 %8090, %v7898
      %v8092 = vpop.permute.xlu0 %8091
      %8093 = vset.pattern.permute.xlu0 0
      %8094 = vperm.xlu0 %8093, %v7899
      %v8095 = vpop.permute.xlu0 %8094
      %8096 = vset.pattern.permute.xlu0 0
      %8097 = vperm.xlu0 %8096, %v7900
      %v8098 = vpop.permute.xlu0 %8097
      %8099 = vset.pattern.permute.xlu0 0
      %8100 = vperm.xlu0 %8099, %v7901
      %v8101 = vpop.permute.xlu0 %8100
      %8102 = vset.pattern.permute.xlu0 0
      %8103 = vperm.xlu0 %8102, %v7902
      %v8104 = vpop.permute.xlu0 %8103
      %8105 = vset.pattern.permute.xlu0 0
      %8106 = vperm.xlu0 %8105, %v7903
      %v8107 = vpop.permute.xlu0 %8106
      %8108 = vset.pattern.permute.xlu0 0
      %8109 = vperm.xlu0 %8108, %v7904
      %v8110 = vpop.permute.xlu0 %8109
      %8111 = vset.pattern.permute.xlu0 0
      %8112 = vperm.xlu0 %8111, %v7905
      %v8113 = vpop.permute.xlu0 %8112
      %8114 = vset.pattern.permute.xlu0 0
      %8115 = vperm.xlu0 %8114, %v7906
      %v8116 = vpop.permute.xlu0 %8115
      %8117 = vset.pattern.permute.xlu0 0
      %8118 = vperm.xlu0 %8117, %v7907
      %v8119 = vpop.permute.xlu0 %8118
      %8120 = vset.pattern.permute.xlu0 0
      %8121 = vperm.xlu0 %8120, %v7908
      %v8122 = vpop.permute.xlu0 %8121
      %8123 = vset.pattern.permute.xlu0 0
      %8124 = vperm.xlu0 %8123, %v7909
      %v8125 = vpop.permute.xlu0 %8124
      %8126 = vset.pattern.permute.xlu0 0
      %8127 = vperm.xlu0 %8126, %v7910
      %v8128 = vpop.permute.xlu0 %8127
      %8129 = vset.pattern.permute.xlu0 0
      %8130 = vperm.xlu0 %8129, %v7911
      %v8131 = vpop.permute.xlu0 %8130
      %8132 = vset.pattern.permute.xlu0 0
      %8133 = vperm.xlu0 %8132, %v7912
      %v8134 = vpop.permute.xlu0 %8133
      %8135 = vset.pattern.permute.xlu0 0
      %8136 = vperm.xlu0 %8135, %v7913
      %v8137 = vpop.permute.xlu0 %8136
      %8138 = vset.pattern.permute.xlu0 0
      %8139 = vperm.xlu0 %8138, %v7914
      %v8140 = vpop.permute.xlu0 %8139
      %8141 = vset.pattern.permute.xlu0 0
      %8142 = vperm.xlu0 %8141, %v7915
      %v8143 = vpop.permute.xlu0 %8142
      %8144 = vset.pattern.permute.xlu0 0
      %8145 = vperm.xlu0 %8144, %v7916
      %v8146 = vpop.permute.xlu0 %8145
      %8147 = vset.pattern.permute.xlu0 0
      %8148 = vperm.xlu0 %8147, %v7917
      %v8149 = vpop.permute.xlu0 %8148
      %8150 = vset.pattern.permute.xlu0 0
      %8151 = vperm.xlu0 %8150, %v7918
      %v8152 = vpop.permute.xlu0 %8151
      %8153 = vset.pattern.permute.xlu0 0
      %8154 = vperm.xlu0 %8153, %v7919
      %v8155 = vpop.permute.xlu0 %8154
      %8156 = vset.pattern.permute.xlu0 0
      %8157 = vperm.xlu0 %8156, %v7920
      %v8158 = vpop.permute.xlu0 %8157
      %8159 = vset.pattern.permute.xlu0 0
      %8160 = vperm.xlu0 %8159, %v7921
      %v8161 = vpop.permute.xlu0 %8160
      %8162 = vset.pattern.permute.xlu0 0
      %8163 = vperm.xlu0 %8162, %v7922
      %v8164 = vpop.permute.xlu0 %8163
      %8165 = vset.pattern.permute.xlu0 0
      %8166 = vperm.xlu0 %8165, %v7923
      %v8167 = vpop.permute.xlu0 %8166
      %8168 = vset.pattern.permute.xlu0 0
      %8169 = vperm.xlu0 %8168, %v7924
      %v8170 = vpop.permute.xlu0 %8169
      %8171 = vset.pattern.permute.xlu0 0
      %8172 = vperm.xlu0 %8171, %v7925
      %v8173 = vpop.permute.xlu0 %8172
      %8174 = vset.pattern.permute.xlu0 0
      %8175 = vperm.xlu0 %8174, %v7926
      %v8176 = vpop.permute.xlu0 %8175
      %8177 = vset.pattern.permute.xlu0 0
      %8178 = vperm.xlu0 %8177, %v7927
      %v8179 = vpop.permute.xlu0 %8178
      %8180 = vset.pattern.permute.xlu0 0
      %8181 = vperm.xlu0 %8180, %v7928
      %v8182 = vpop.permute.xlu0 %8181
      %8183 = vset.pattern.permute.xlu0 0
      %8184 = vperm.xlu0 %8183, %v7929
      %v8185 = vpop.permute.xlu0 %8184
      %v8186 = vlaneseq
      %v8187 = vand.u32 %v8186, 127
      %v8188 = vlaneseq
      %v8189 = vshrl.u32 %v8188, 7
      %v8190 = vsub.s32 %v8187, %v8189
      %v8191 = vrot.slane %v7996, %v8190
      %v8192 = vlaneseq
      %v8193 = vshrl.u32 %v8192, 7
      %v8194 = vsub.s32 %v8187, %v8193
      %v8195 = vrot.slane %v7999, %v8194
      %v8196 = vlaneseq
      %v8197 = vshrl.u32 %v8196, 7
      %v8198 = vsub.s32 %v8187, %v8197
      %v8199 = vrot.slane %v8002, %v8198
      %v8200 = vlaneseq
      %v8201 = vshrl.u32 %v8200, 7
      %v8202 = vsub.s32 %v8187, %v8201
      %v8203 = vrot.slane %v8005, %v8202
      %v8204 = vlaneseq
      %v8205 = vshrl.u32 %v8204, 7
      %v8206 = vsub.s32 %v8187, %v8205
      %v8207 = vrot.slane %v8008, %v8206
      %v8208 = vlaneseq
      %v8209 = vshrl.u32 %v8208, 7
      %v8210 = vsub.s32 %v8187, %v8209
      %v8211 = vrot.slane %v8011, %v8210
      %v8212 = vlaneseq
      %v8213 = vshrl.u32 %v8212, 7
      %v8214 = vsub.s32 %v8187, %v8213
      %v8215 = vrot.slane %v8014, %v8214
      %v8216 = vlaneseq
      %v8217 = vshrl.u32 %v8216, 7
      %v8218 = vsub.s32 %v8187, %v8217
      %v8219 = vrot.slane %v8017, %v8218
      %v8220 = vlaneseq
      %v8221 = vshrl.u32 %v8220, 7
      %v8222 = vsub.s32 %v8187, %v8221
      %v8223 = vrot.slane %v8020, %v8222
      %v8224 = vlaneseq
      %v8225 = vshrl.u32 %v8224, 7
      %v8226 = vsub.s32 %v8187, %v8225
      %v8227 = vrot.slane %v8023, %v8226
      %v8228 = vlaneseq
      %v8229 = vshrl.u32 %v8228, 7
      %v8230 = vsub.s32 %v8187, %v8229
      %v8231 = vrot.slane %v8026, %v8230
      %v8232 = vlaneseq
      %v8233 = vshrl.u32 %v8232, 7
      %v8234 = vsub.s32 %v8187, %v8233
      %v8235 = vrot.slane %v8029, %v8234
      %v8236 = vlaneseq
      %v8237 = vshrl.u32 %v8236, 7
      %v8238 = vsub.s32 %v8187, %v8237
      %v8239 = vrot.slane %v8032, %v8238
      %v8240 = vlaneseq
      %v8241 = vshrl.u32 %v8240, 7
      %v8242 = vsub.s32 %v8187, %v8241
      %v8243 = vrot.slane %v8035, %v8242
      %v8244 = vlaneseq
      %v8245 = vshrl.u32 %v8244, 7
      %v8246 = vsub.s32 %v8187, %v8245
      %v8247 = vrot.slane %v8038, %v8246
      %v8248 = vlaneseq
      %v8249 = vshrl.u32 %v8248, 7
      %v8250 = vsub.s32 %v8187, %v8249
      %v8251 = vrot.slane %v8041, %v8250
      %v8252 = vlaneseq
      %v8253 = vshrl.u32 %v8252, 7
      %v8254 = vsub.s32 %v8187, %v8253
      %v8255 = vrot.slane %v8044, %v8254
      %v8256 = vlaneseq
      %v8257 = vshrl.u32 %v8256, 7
      %v8258 = vsub.s32 %v8187, %v8257
      %v8259 = vrot.slane %v8047, %v8258
      %v8260 = vlaneseq
      %v8261 = vshrl.u32 %v8260, 7
      %v8262 = vsub.s32 %v8187, %v8261
      %v8263 = vrot.slane %v8050, %v8262
      %v8264 = vlaneseq
      %v8265 = vshrl.u32 %v8264, 7
      %v8266 = vsub.s32 %v8187, %v8265
      %v8267 = vrot.slane %v8053, %v8266
      %v8268 = vlaneseq
      %v8269 = vshrl.u32 %v8268, 7
      %v8270 = vsub.s32 %v8187, %v8269
      %v8271 = vrot.slane %v8056, %v8270
      %v8272 = vlaneseq
      %v8273 = vshrl.u32 %v8272, 7
      %v8274 = vsub.s32 %v8187, %v8273
      %v8275 = vrot.slane %v8059, %v8274
      %v8276 = vlaneseq
      %v8277 = vshrl.u32 %v8276, 7
      %v8278 = vsub.s32 %v8187, %v8277
      %v8279 = vrot.slane %v8062, %v8278
      %v8280 = vlaneseq
      %v8281 = vshrl.u32 %v8280, 7
      %v8282 = vsub.s32 %v8187, %v8281
      %v8283 = vrot.slane %v8065, %v8282
      %v8284 = vlaneseq
      %v8285 = vshrl.u32 %v8284, 7
      %v8286 = vsub.s32 %v8187, %v8285
      %v8287 = vrot.slane %v8068, %v8286
      %v8288 = vlaneseq
      %v8289 = vshrl.u32 %v8288, 7
      %v8290 = vsub.s32 %v8187, %v8289
      %v8291 = vrot.slane %v8071, %v8290
      %v8292 = vlaneseq
      %v8293 = vshrl.u32 %v8292, 7
      %v8294 = vsub.s32 %v8187, %v8293
      %v8295 = vrot.slane %v8074, %v8294
      %v8296 = vlaneseq
      %v8297 = vshrl.u32 %v8296, 7
      %v8298 = vsub.s32 %v8187, %v8297
      %v8299 = vrot.slane %v8077, %v8298
      %v8300 = vlaneseq
      %v8301 = vshrl.u32 %v8300, 7
      %v8302 = vsub.s32 %v8187, %v8301
      %v8303 = vrot.slane %v8080, %v8302
      %v8304 = vlaneseq
      %v8305 = vshrl.u32 %v8304, 7
      %v8306 = vsub.s32 %v8187, %v8305
      %v8307 = vrot.slane %v8083, %v8306
      %v8308 = vlaneseq
      %v8309 = vshrl.u32 %v8308, 7
      %v8310 = vsub.s32 %v8187, %v8309
      %v8311 = vrot.slane %v8086, %v8310
      %v8312 = vlaneseq
      %v8313 = vshrl.u32 %v8312, 7
      %v8314 = vsub.s32 %v8187, %v8313
      %v8315 = vrot.slane %v8089, %v8314
      %v8316 = vlaneseq
      %v8317 = vshrl.u32 %v8316, 7
      %v8318 = vsub.s32 %v8187, %v8317
      %v8319 = vrot.slane %v8092, %v8318
      %v8320 = vlaneseq
      %v8321 = vshrl.u32 %v8320, 7
      %v8322 = vsub.s32 %v8187, %v8321
      %v8323 = vrot.slane %v8095, %v8322
      %v8324 = vlaneseq
      %v8325 = vshrl.u32 %v8324, 7
      %v8326 = vsub.s32 %v8187, %v8325
      %v8327 = vrot.slane %v8098, %v8326
      %v8328 = vlaneseq
      %v8329 = vshrl.u32 %v8328, 7
      %v8330 = vsub.s32 %v8187, %v8329
      %v8331 = vrot.slane %v8101, %v8330
      %v8332 = vlaneseq
      %v8333 = vshrl.u32 %v8332, 7
      %v8334 = vsub.s32 %v8187, %v8333
      %v8335 = vrot.slane %v8104, %v8334
      %v8336 = vlaneseq
      %v8337 = vshrl.u32 %v8336, 7
      %v8338 = vsub.s32 %v8187, %v8337
      %v8339 = vrot.slane %v8107, %v8338
      %v8340 = vlaneseq
      %v8341 = vshrl.u32 %v8340, 7
      %v8342 = vsub.s32 %v8187, %v8341
      %v8343 = vrot.slane %v8110, %v8342
      %v8344 = vlaneseq
      %v8345 = vshrl.u32 %v8344, 7
      %v8346 = vsub.s32 %v8187, %v8345
      %v8347 = vrot.slane %v8113, %v8346
      %v8348 = vlaneseq
      %v8349 = vshrl.u32 %v8348, 7
      %v8350 = vsub.s32 %v8187, %v8349
      %v8351 = vrot.slane %v8116, %v8350
      %v8352 = vlaneseq
      %v8353 = vshrl.u32 %v8352, 7
      %v8354 = vsub.s32 %v8187, %v8353
      %v8355 = vrot.slane %v8119, %v8354
      %v8356 = vlaneseq
      %v8357 = vshrl.u32 %v8356, 7
      %v8358 = vsub.s32 %v8187, %v8357
      %v8359 = vrot.slane %v8122, %v8358
      %v8360 = vlaneseq
      %v8361 = vshrl.u32 %v8360, 7
      %v8362 = vsub.s32 %v8187, %v8361
      %v8363 = vrot.slane %v8125, %v8362
      %v8364 = vlaneseq
      %v8365 = vshrl.u32 %v8364, 7
      %v8366 = vsub.s32 %v8187, %v8365
      %v8367 = vrot.slane %v8128, %v8366
      %v8368 = vlaneseq
      %v8369 = vshrl.u32 %v8368, 7
      %v8370 = vsub.s32 %v8187, %v8369
      %v8371 = vrot.slane %v8131, %v8370
      %v8372 = vlaneseq
      %v8373 = vshrl.u32 %v8372, 7
      %v8374 = vsub.s32 %v8187, %v8373
      %v8375 = vrot.slane %v8134, %v8374
      %v8376 = vlaneseq
      %v8377 = vshrl.u32 %v8376, 7
      %v8378 = vsub.s32 %v8187, %v8377
      %v8379 = vrot.slane %v8137, %v8378
      %v8380 = vlaneseq
      %v8381 = vshrl.u32 %v8380, 7
      %v8382 = vsub.s32 %v8187, %v8381
      %v8383 = vrot.slane %v8140, %v8382
      %v8384 = vlaneseq
      %v8385 = vshrl.u32 %v8384, 7
      %v8386 = vsub.s32 %v8187, %v8385
      %v8387 = vrot.slane %v8143, %v8386
      %v8388 = vlaneseq
      %v8389 = vshrl.u32 %v8388, 7
      %v8390 = vsub.s32 %v8187, %v8389
      %v8391 = vrot.slane %v8146, %v8390
      %v8392 = vlaneseq
      %v8393 = vshrl.u32 %v8392, 7
      %v8394 = vsub.s32 %v8187, %v8393
      %v8395 = vrot.slane %v8149, %v8394
      %v8396 = vlaneseq
      %v8397 = vshrl.u32 %v8396, 7
      %v8398 = vsub.s32 %v8187, %v8397
      %v8399 = vrot.slane %v8152, %v8398
      %v8400 = vlaneseq
      %v8401 = vshrl.u32 %v8400, 7
      %v8402 = vsub.s32 %v8187, %v8401
      %v8403 = vrot.slane %v8155, %v8402
      %v8404 = vlaneseq
      %v8405 = vshrl.u32 %v8404, 7
      %v8406 = vsub.s32 %v8187, %v8405
      %v8407 = vrot.slane %v8158, %v8406
      %v8408 = vlaneseq
      %v8409 = vshrl.u32 %v8408, 7
      %v8410 = vsub.s32 %v8187, %v8409
      %v8411 = vrot.slane %v8161, %v8410
      %v8412 = vlaneseq
      %v8413 = vshrl.u32 %v8412, 7
      %v8414 = vsub.s32 %v8187, %v8413
      %v8415 = vrot.slane %v8164, %v8414
      %v8416 = vlaneseq
      %v8417 = vshrl.u32 %v8416, 7
      %v8418 = vsub.s32 %v8187, %v8417
      %v8419 = vrot.slane %v8167, %v8418
      %v8420 = vlaneseq
      %v8421 = vshrl.u32 %v8420, 7
      %v8422 = vsub.s32 %v8187, %v8421
      %v8423 = vrot.slane %v8170, %v8422
      %v8424 = vlaneseq
      %v8425 = vshrl.u32 %v8424, 7
      %v8426 = vsub.s32 %v8187, %v8425
      %v8427 = vrot.slane %v8173, %v8426
      %v8428 = vlaneseq
      %v8429 = vshrl.u32 %v8428, 7
      %v8430 = vsub.s32 %v8187, %v8429
      %v8431 = vrot.slane %v8176, %v8430
      %v8432 = vlaneseq
      %v8433 = vshrl.u32 %v8432, 7
      %v8434 = vsub.s32 %v8187, %v8433
      %v8435 = vrot.slane %v8179, %v8434
      %v8436 = vlaneseq
      %v8437 = vshrl.u32 %v8436, 7
      %v8438 = vsub.s32 %v8187, %v8437
      %v8439 = vrot.slane %v8182, %v8438
      %v8440 = vlaneseq
      %v8441 = vshrl.u32 %v8440, 7
      %v8442 = vsub.s32 %v8187, %v8441
      %v8443 = vrot.slane %v8185, %v8442
      %vm8444 = vcmask 1041409
      %v8445 = vsel %vm8444, %v8195, %v8191
      %vm8446 = vcmask 1042434
      %v8447 = vsel %vm8446, %v8199, %v8445
      %vm8448 = vcmask 1043459
      %v8449 = vsel %vm8448, %v8203, %v8447
      %vm8450 = vcmask 1044484
      %v8451 = vsel %vm8450, %v8207, %v8449
      %vm8452 = vcmask 1045509
      %v8453 = vsel %vm8452, %v8211, %v8451
      %vm8454 = vcmask 1046534
      %v8455 = vsel %vm8454, %v8215, %v8453
      %vm8456 = vcmask 1047559
      %v8457 = vsel %vm8456, %v8219, %v8455
      %v8458 = vsel %vm8444, %v8227, %v8223
      %v8459 = vsel %vm8446, %v8231, %v8458
      %v8460 = vsel %vm8448, %v8235, %v8459
      %v8461 = vsel %vm8450, %v8239, %v8460
      %v8462 = vsel %vm8452, %v8243, %v8461
      %v8463 = vsel %vm8454, %v8247, %v8462
      %v8464 = vsel %vm8456, %v8251, %v8463
      %v8465 = vsel %vm8444, %v8259, %v8255
      %v8466 = vsel %vm8446, %v8263, %v8465
      %v8467 = vsel %vm8448, %v8267, %v8466
      %v8468 = vsel %vm8450, %v8271, %v8467
      %v8469 = vsel %vm8452, %v8275, %v8468
      %v8470 = vsel %vm8454, %v8279, %v8469
      %v8471 = vsel %vm8456, %v8283, %v8470
      %v8472 = vsel %vm8444, %v8291, %v8287
      %v8473 = vsel %vm8446, %v8295, %v8472
      %v8474 = vsel %vm8448, %v8299, %v8473
      %v8475 = vsel %vm8450, %v8303, %v8474
      %v8476 = vsel %vm8452, %v8307, %v8475
      %v8477 = vsel %vm8454, %v8311, %v8476
      %v8478 = vsel %vm8456, %v8315, %v8477
      %v8479 = vsel %vm8444, %v8323, %v8319
      %v8480 = vsel %vm8446, %v8327, %v8479
      %v8481 = vsel %vm8448, %v8331, %v8480
      %v8482 = vsel %vm8450, %v8335, %v8481
      %v8483 = vsel %vm8452, %v8339, %v8482
      %v8484 = vsel %vm8454, %v8343, %v8483
      %v8485 = vsel %vm8456, %v8347, %v8484
      %v8486 = vsel %vm8444, %v8355, %v8351
      %v8487 = vsel %vm8446, %v8359, %v8486
      %v8488 = vsel %vm8448, %v8363, %v8487
      %v8489 = vsel %vm8450, %v8367, %v8488
      %v8490 = vsel %vm8452, %v8371, %v8489
      %v8491 = vsel %vm8454, %v8375, %v8490
      %v8492 = vsel %vm8456, %v8379, %v8491
      %v8493 = vsel %vm8444, %v8387, %v8383
      %v8494 = vsel %vm8446, %v8391, %v8493
      %v8495 = vsel %vm8448, %v8395, %v8494
      %v8496 = vsel %vm8450, %v8399, %v8495
      %v8497 = vsel %vm8452, %v8403, %v8496
      %v8498 = vsel %vm8454, %v8407, %v8497
      %v8499 = vsel %vm8456, %v8411, %v8498
      %v8500 = vsel %vm8444, %v8419, %v8415
      %v8501 = vsel %vm8446, %v8423, %v8500
      %v8502 = vsel %vm8448, %v8427, %v8501
      %v8503 = vsel %vm8450, %v8431, %v8502
      %v8504 = vsel %vm8452, %v8435, %v8503
      %v8505 = vsel %vm8454, %v8439, %v8504
      %v8506 = vsel %vm8456, %v8443, %v8505
      %vm8515 = vcmask 64512
      %8516 = vst.msk [vmem:[%s243] sm:$0xff] %vm8515, %v8457
      %8517 = vst.msk [vmem:[%s243 + $0x8] sm:$0xff] %vm8515, %v8464
      %8518 = vst.msk [vmem:[%s243 + $0x10] sm:$0xff] %vm8515, %v8471
      %8519 = vst.msk [vmem:[%s243 + $0x18] sm:$0xff] %vm8515, %v8478
      %8520 = vst.msk [vmem:[%s243 + $0x20] sm:$0xff] %vm8515, %v8485
      %8521 = vst.msk [vmem:[%s243 + $0x28] sm:$0xff] %vm8515, %v8492
      %8522 = vst.msk [vmem:[%s243 + $0x30] sm:$0xff] %vm8515, %v8499
      %8523 = vst.msk [vmem:[%s243 + $0x38] sm:$0xff] %vm8515, %v8506
      %s8524 = smul.u32 8, %s15
      %p8525 = scmp.lt.s32.totalorder %s8524, 31
      %s8526 = scalar_select %p8525, %s8524, 31
      %s8527 = smul.addr %s8526, 8
      %s8528 = scalar_lea.vmem %s4, %s8527
      // Predicated region
      $region37: #{tpu_custom_call.1} parent=35 // pred_check
        %p8529 = pneg %p132
      $region38: #{tpu_custom_call.1} parent=35 // pred_check_branch
        %8531 = sbr.rel (%p8529) target = $region40
      $region39: #{tpu_custom_call.1} parent=35 // pred_region
        %s8532 = smul.u32 8, %s15
      $region40: #{tpu_custom_call.1} parent=35 // pred_fallthru
        _
    $region36: #{tpu_custom_call.1} parent=5 // pred_fallthru
      _
    %p8533 = scmp.le.s32.totalorder 2, %s10
    // Predicated region
    $region41: #{tpu_custom_call.1} parent=5 // pred_check
      %p8534 = pneg %p8533
    $region42: #{tpu_custom_call.1} parent=5 // pred_check_branch
      %8536 = sbr.rel (%p8534) target = $region44
    $region43: #{tpu_custom_call.1} parent=5 // pred_region
      %s8537 = ssub.s32 %s10, 2
      // Predicated region
      $region45: #{tpu_custom_call.1} parent=43 // pred_check
        %p8538 = pneg %p138
      $region46: #{tpu_custom_call.1} parent=43 // pred_check_branch
        %8540 = sbr.rel (%p8538) target = $region48
      $region47: #{tpu_custom_call.1} parent=43 // pred_region
        %s8541 = smul.u32 8, %s16
        %p8542 = scmp.lt.s32.totalorder %s8541, 31
        %s8543 = scalar_select %p8542, %s8541, 31
        %s8544 = smul.addr %s8543, 8
        %s8545 = scalar_lea.vmem %s4, %s8544
      $region48: #{tpu_custom_call.1} parent=43 // pred_fallthru
        _
    $region44: #{tpu_custom_call.1} parent=5 // pred_fallthru
      _
  $region6: #{tpu_custom_call.1} parent=0 // loop_footer
    %s14 = sadd.s32 1, %s10
  $region7: #{tpu_custom_call.1} parent=0 // loop_footer_branch
    %9 = sbr.rel target = $region3
  $region8: #{tpu_custom_call.1} parent=0 // loop_exit
    _

</llo_original>
